<compile_context>
chip_gen: v6e
topology: v6e:2x2x1
jax: 0.10.0
libtpu: 0.0.40
codegen_flags: <defaults>
</compile_context>

<pallas_src>
import jax
import jax.numpy as jnp
import numpy as np
from jax.experimental import pallas as pl
from jax.experimental.pallas import tpu as pltpu


# ----------------------------------------------------------------------------
# Fused kernel: per-point MLP (conv1..conv4, BN folded) + running max over point
# tiles + both FC heads as an epilogue on the last tile.
# ----------------------------------------------------------------------------
def _encoder_kernel(x_ref,
                    w1_ref, b1_ref, w2_ref, b2_ref, w3_ref, b3_ref, w4_ref, b4_ref,
                    wh1_ref, bh1_ref, wh2_ref, bh2_ref, wh3_ref, bh3_ref,
                    out_ref, gmax_ref):
    n = pl.program_id(0)

    @pl.when(n == 0)
    def _init():
        gmax_ref[...] = jnp.full(gmax_ref.shape, -jnp.inf, gmax_ref.dtype)

    x = x_ref[...]                                   # (B, tile_n, cin) f32
    b, tile_n, cin = x.shape

    def mm(a, w_ref):
        # bf16 MXU operands, f32 accumulation.
        return jnp.dot(a.astype(jnp.bfloat16), w_ref[...],
                       preferred_element_type=jnp.float32)

    # conv1: K = cin (=3) -> rank-1 FMAs on the VPU instead of a K=3 MXU matmul.
    w1 = w1_ref[...]                                 # (cin, 128) f32
    h = x[:, :, 0:1] * w1[0]
    for i in range(1, cin):
        h = h + x[:, :, i:i + 1] * w1[i]
    h = jnp.maximum(h + b1_ref[...], 0.0)            # (B, tile_n, 128) f32
    h = h.reshape(b * tile_n, h.shape[-1])           # lane dim 128 -> no-op reshape

    h = jnp.maximum(mm(h, w2_ref) + b2_ref[...], 0.0)    # (B*tile_n, 128)
    h = jnp.maximum(mm(h, w3_ref) + b3_ref[...], 0.0)    # (B*tile_n, 256)
    h = mm(h, w4_ref) + b4_ref[...]                      # (B*tile_n, 512), no ReLU
    h = h.reshape(b, tile_n, h.shape[-1])

    # Running max over point tiles (XLU sublane reduce, overlapped with MXU).
    gmax_ref[...] = jnp.maximum(gmax_ref[...], jnp.max(h, axis=1))   # (B, 512)

    # Fused heads: run once, on the last point tile.  Weights are concatenated /
    # block-diagonal so one matmul chain produces [m | v] lane-dense (B, 2*zdim).
    @pl.when(n == pl.num_programs(0) - 1)
    def _heads():
        g = gmax_ref[...]
        h1 = jnp.maximum(mm(g, wh1_ref) + bh1_ref[...], 0.0)      # (B, 512)
        h2 = jnp.maximum(mm(h1, wh2_ref) + bh2_ref[...], 0.0)     # (B, 256)
        out_ref[...] = mm(h2, wh3_ref) + bh3_ref[...]             # (B, 2*zdim)


def pointnet_encoder(x, params, *, zdim, tile_n=512):
    """x: (B, N, C_in) f32 point cloud.  Returns (m, v), each (B, zdim) f32."""
    B, N, cin = x.shape
    tile_n = min(tile_n, N)
    assert N % tile_n == 0 and tile_n % 8 == 0

    (w1, b1), (w2, b2), (w3, b3), (w4, b4) = params["conv"]
    wh1, bh1, wh2, bh2, wh3, bh3 = params["heads"]
    weights = [w1, b1, w2, b2, w3, b3, w4, b4, wh1, bh1, wh2, bh2, wh3, bh3]

    in_specs = [pl.BlockSpec((B, tile_n, cin), lambda n: (0, n, 0))]
    # Weights / biases: full-array blocks, same block index every step -> fetched
    # once, kept resident in VMEM across the whole grid.
    in_specs += [pl.BlockSpec(w.shape, lambda n: (0, 0)) for w in weights]

    flops = (2 * B * N * (cin * 128 + 128 * 128 + 128 * 256 + 256 * 512)
             + 2 * B * (512 * 512 + 512 * 256 + 256 * 2 * zdim))
    bytes_accessed = (x.size * x.dtype.itemsize
                      + sum(int(w.size) * w.dtype.itemsize for w in weights)
                      + B * 2 * zdim * 4)

    out = pl.pallas_call(
        _encoder_kernel,
        out_shape=jax.ShapeDtypeStruct((B, 2 * zdim), jnp.float32),
        grid_spec=pltpu.PrefetchScalarGridSpec(
            num_scalar_prefetch=0,
            grid=(N // tile_n,),
            in_specs=in_specs,
            out_specs=pl.BlockSpec((B, 2 * zdim), lambda n: (0, 0)),
            scratch_shapes=[pltpu.VMEM((B, 512), jnp.float32)],
        ),
        compiler_params=pltpu.CompilerParams(
            dimension_semantics=("arbitrary",)),
        cost_estimate=pl.CostEstimate(
            flops=int(flops), transcendentals=0,
            bytes_accessed=int(bytes_accessed)),
    )(x, *weights)

    return out[:, :zdim], out[:, zdim:]


# ----------------------------------------------------------------------------
# Parameter construction (deterministic, in-script), BN folding, head fusion.
# ----------------------------------------------------------------------------
def init_linear(key, cin, cout):
    kw, kb = jax.random.split(key)
    lim = 1.0 / np.sqrt(cin)
    w = jax.random.uniform(kw, (cin, cout), jnp.float32, -lim, lim)
    b = jax.random.uniform(kb, (cout,), jnp.float32, -lim, lim)
    return w, b


def init_bn(key, c):
    k1, k2, k3, k4 = jax.random.split(key, 4)
    gamma = jax.random.uniform(k1, (c,), jnp.float32, 0.5, 1.5)
    beta = jax.random.uniform(k2, (c,), jnp.float32, -0.1, 0.1)
    mean = jax.random.uniform(k3, (c,), jnp.float32, -0.1, 0.1)
    var = jax.random.uniform(k4, (c,), jnp.float32, 0.5, 1.5)
    return gamma, beta, mean, var


def fold_bn(w, b, bn, eps=1e-5):
    gamma, beta, mean, var = bn
    scale = gamma / jnp.sqrt(var + eps)
    return w * scale[None, :], ((b - mean) * scale + beta).reshape(1, -1)


def _block_diag(a, b):
    top = jnp.concatenate([a, jnp.zeros((a.shape[0], b.shape[1]), a.dtype)], axis=1)
    bot = jnp.concatenate([jnp.zeros((b.shape[0], a.shape[1]), b.dtype), b], axis=1)
    return jnp.concatenate([top, bot], axis=0)


def make_params(key, input_dim, zdim):
    keys = iter(jax.random.split(key, 32))
    nxt = lambda: next(keys)

    # conv1..conv4 (1x1 convs == per-point linears) with bn1..bn4 folded.
    conv_dims = [(input_dim, 128), (128, 128), (128, 256), (256, 512)]
    conv_f32 = []
    for cin, cout in conv_dims:
        w, b = init_linear(nxt(), cin, cout)
        conv_f32.append(fold_bn(w, b, init_bn(nxt(), cout)))

    def make_head():
        layers = []
        for i, (cin, cout) in enumerate([(512, 256), (256, 128), (128, zdim)]):
            w, b = init_linear(nxt(), cin, cout)
            if i < 2:                         # fc_bn1_*, fc_bn2_*
                layers.append(fold_bn(w, b, init_bn(nxt(), cout)))
            else:                             # fc3_* has no BN
                layers.append((w, b.reshape(1, -1)))
        return layers

    m_layers, v_layers = make_head(), make_head()

    bf16 = jnp.bfloat16
    kernel_params = {
        # conv1 stays f32 (VPU rank-1 FMA path); conv2-4 as bf16 MXU operands.
        "conv": [(conv_f32[0][0], conv_f32[0][1])]
                + [(w.astype(bf16), b) for (w, b) in conv_f32[1:]],
        # m / v heads fused layer-wise: layer 1 output-concatenated, layers 2-3
        # block-diagonal -> one matmul chain computes [m | v] at once.
        "heads": (
            jnp.concatenate([m_layers[0][0], v_layers[0][0]], axis=1).astype(bf16),
            jnp.concatenate([m_layers[0][1], v_layers[0][1]], axis=1),
            _block_diag(m_layers[1][0], v_layers[1][0]).astype(bf16),
            jnp.concatenate([m_layers[1][1], v_layers[1][1]], axis=1),
            _block_diag(m_layers[2][0], v_layers[2][0]).astype(bf16),
            jnp.concatenate([m_layers[2][1], v_layers[2][1]], axis=1),
        ),
    }
    return kernel_params, (conv_f32, m_layers, v_layers)


# ----------------------------------------------------------------------------
# Pure-JAX reference mirroring the kernel's numerics (bf16 MXU operands with
# f32 accumulation) so the comparison tolerance stays tight.
# ----------------------------------------------------------------------------
def reference(x, conv_f32, m_layers, v_layers):
    def mm_bf16(a, w):
        return jnp.dot(a.astype(jnp.bfloat16), w.astype(jnp.bfloat16),
                       preferred_element_type=jnp.float32)

    w1, b1 = conv_f32[0]
    h = jnp.maximum(jnp.dot(x, w1) + b1, 0.0)        # conv1 in f32 (VPU path)
    for i, (w, b) in enumerate(conv_f32[1:]):
        h = mm_bf16(h, w) + b
        if i < 2:                                    # ReLU after conv2/conv3 only
            h = jnp.maximum(h, 0.0)
    g = jnp.max(h, axis=1)

    def head(layers):
        y = g
        for i, (w, b) in enumerate(layers):
            y = mm_bf16(y, w) + b
            if i < 2:
                y = jnp.maximum(y, 0.0)
        return y

    return head(m_layers), head(v_layers)


if __name__ == "__main__":
    # Small test shapes: 2 point clouds of 2048 xyz points; zdim=64 so the fused
    # head output is exactly 128 lanes (lane-dense store).
    B, N, INPUT_DIM, ZDIM = 2, 2048, 3, 64
    TILE_N = 512   # B*TILE_N = 1024 MXU rows per step; fits v5e's 16 MiB scoped VMEM.

    key = jax.random.PRNGKey(0)
    kx, kp = jax.random.split(key)
    x = jax.random.normal(kx, (B, N, INPUT_DIM), jnp.float32)

    kernel_params, (conv_f32, m_layers, v_layers) = make_params(kp, INPUT_DIM, ZDIM)

    m, v = pointnet_encoder(x, kernel_params, zdim=ZDIM, tile_n=TILE_N)
    m, v = jax.block_until_ready((m, v))

    m_ref, v_ref = reference(x, conv_f32, m_layers, v_layers)
    np.testing.assert_allclose(np.asarray(m), np.asarray(m_ref), rtol=2e-2, atol=2e-2)
    np.testing.assert_allclose(np.asarray(v), np.asarray(v_ref), rtol=2e-2, atol=2e-2)

    print("KERNEL_OK")
</pallas_src>

<mosaic_0001>
module attributes {stable_mosaic.version = 11 : i64} {
  func.func @_encoder_kernel(%arg0: i32, %arg1: memref<2x512x3xf32, #tpu.memory_space<vmem>>, %arg2: memref<3x128xf32, #tpu.memory_space<vmem>>, %arg3: memref<1x128xf32, #tpu.memory_space<vmem>>, %arg4: memref<128x128xbf16, #tpu.memory_space<vmem>>, %arg5: memref<1x128xf32, #tpu.memory_space<vmem>>, %arg6: memref<128x256xbf16, #tpu.memory_space<vmem>>, %arg7: memref<1x256xf32, #tpu.memory_space<vmem>>, %arg8: memref<256x512xbf16, #tpu.memory_space<vmem>>, %arg9: memref<1x512xf32, #tpu.memory_space<vmem>>, %arg10: memref<512x512xbf16, #tpu.memory_space<vmem>>, %arg11: memref<1x512xf32, #tpu.memory_space<vmem>>, %arg12: memref<512x256xbf16, #tpu.memory_space<vmem>>, %arg13: memref<1x256xf32, #tpu.memory_space<vmem>>, %arg14: memref<256x128xbf16, #tpu.memory_space<vmem>>, %arg15: memref<1x128xf32, #tpu.memory_space<vmem>>, %arg16: memref<2x128xf32, #tpu.memory_space<vmem>>, %arg17: memref<2x512xf32, #tpu.memory_space<vmem>>) attributes {dimension_semantics = [#tpu.dimension_semantics<arbitrary>], iteration_bounds = array<i64: 4>, scalar_prefetch = 0 : i64, scratch_operands = 1 : i64, tpu.core_type = #tpu.core_type<tc>, window_params = [{transform_indices = @transform_0, window_bounds = array<i64: 2, 512, 3>}, {pipeline_mode = #tpu.pipeline_mode<synchronous>, transform_indices = @transform_1, window_bounds = array<i64: 3, 128>}, {pipeline_mode = #tpu.pipeline_mode<synchronous>, transform_indices = @transform_2, window_bounds = array<i64: 1, 128>}, {pipeline_mode = #tpu.pipeline_mode<synchronous>, transform_indices = @transform_3, window_bounds = array<i64: 128, 128>}, {pipeline_mode = #tpu.pipeline_mode<synchronous>, transform_indices = @transform_4, window_bounds = array<i64: 1, 128>}, {pipeline_mode = #tpu.pipeline_mode<synchronous>, transform_indices = @transform_5, window_bounds = array<i64: 128, 256>}, {pipeline_mode = #tpu.pipeline_mode<synchronous>, transform_indices = @transform_6, window_bounds = array<i64: 1, 256>}, {pipeline_mode = #tpu.pipeline_mode<synchronous>, transform_indices = @transform_7, window_bounds = array<i64: 256, 512>}, {pipeline_mode = #tpu.pipeline_mode<synchronous>, transform_indices = @transform_8, window_bounds = array<i64: 1, 512>}, {pipeline_mode = #tpu.pipeline_mode<synchronous>, transform_indices = @transform_9, window_bounds = array<i64: 512, 512>}, {pipeline_mode = #tpu.pipeline_mode<synchronous>, transform_indices = @transform_10, window_bounds = array<i64: 1, 512>}, {pipeline_mode = #tpu.pipeline_mode<synchronous>, transform_indices = @transform_11, window_bounds = array<i64: 512, 256>}, {pipeline_mode = #tpu.pipeline_mode<synchronous>, transform_indices = @transform_12, window_bounds = array<i64: 1, 256>}, {pipeline_mode = #tpu.pipeline_mode<synchronous>, transform_indices = @transform_13, window_bounds = array<i64: 256, 128>}, {pipeline_mode = #tpu.pipeline_mode<synchronous>, transform_indices = @transform_14, window_bounds = array<i64: 1, 128>}, {pipeline_mode = #tpu.pipeline_mode<synchronous>, transform_indices = @transform_15, window_bounds = array<i64: 2, 128>}]} {
    %c0_i32 = arith.constant 0 : i32
    %0 = arith.cmpi eq, %arg0, %c0_i32 : i32
    %1 = arith.extui %0 : i1 to i32
    %c0_i32_0 = arith.constant 0 : i32
    %2 = arith.cmpi ne, %1, %c0_i32_0 : i32
    scf.if %2 {
      %cst_30 = arith.constant 0xFF800000 : f32
      %65 = vector.broadcast %cst_30 : f32 to vector<2x512xf32>
      %c0_31 = arith.constant 0 : index
      %c0_32 = arith.constant 0 : index
      %66 = vector.load %arg17[%c0_31, %c0_32] : memref<2x512xf32, #tpu.memory_space<vmem>>, vector<2x512xf32>
      tpu.vector_store %arg17[%c0_31, %c0_32], %65 {strides = array<i32>} : memref<2x512xf32, #tpu.memory_space<vmem>>, vector<2x512xf32>,
    } else {
    }
    %c0 = arith.constant 0 : index
    %c0_1 = arith.constant 0 : index
    %c0_2 = arith.constant 0 : index
    %3 = vector.load %arg1[%c0, %c0_1, %c0_2] : memref<2x512x3xf32, #tpu.memory_space<vmem>>, vector<2x512x3xf32>
    %c0_3 = arith.constant 0 : index
    %c0_4 = arith.constant 0 : index
    %4 = vector.load %arg2[%c0_3, %c0_4] : memref<3x128xf32, #tpu.memory_space<vmem>>, vector<3x128xf32>
    %5 = vector.extract_strided_slice %3 {offsets = [0, 0, 0], sizes = [2, 512, 1], strides = [1, 1, 1]} : vector<2x512x3xf32> to vector<2x512x1xf32>
    %6 = vector.extract_strided_slice %4 {offsets = [0, 0], sizes = [1, 128], strides = [1, 1]} : vector<3x128xf32> to vector<1x128xf32>
    %7 = vector.shape_cast %6 : vector<1x128xf32> to vector<128xf32>
    %8 = vector.shape_cast %7 : vector<128xf32> to vector<1x1x128xf32>
    %9 = vector.broadcast %5 : vector<2x512x1xf32> to vector<2x512x128xf32>
    %10 = vector.broadcast %8 : vector<1x1x128xf32> to vector<2x512x128xf32>
    %11 = arith.mulf %9, %10 : vector<2x512x128xf32>
    %12 = vector.extract_strided_slice %3 {offsets = [0, 0, 1], sizes = [2, 512, 1], strides = [1, 1, 1]} : vector<2x512x3xf32> to vector<2x512x1xf32>
    %13 = vector.extract_strided_slice %4 {offsets = [1, 0], sizes = [1, 128], strides = [1, 1]} : vector<3x128xf32> to vector<1x128xf32>
    %14 = vector.shape_cast %13 : vector<1x128xf32> to vector<128xf32>
    %15 = vector.shape_cast %14 : vector<128xf32> to vector<1x1x128xf32>
    %16 = vector.broadcast %12 : vector<2x512x1xf32> to vector<2x512x128xf32>
    %17 = vector.broadcast %15 : vector<1x1x128xf32> to vector<2x512x128xf32>
    %18 = arith.mulf %16, %17 : vector<2x512x128xf32>
    %19 = arith.addf %11, %18 : vector<2x512x128xf32>
    %20 = vector.extract_strided_slice %3 {offsets = [0, 0, 2], sizes = [2, 512, 1], strides = [1, 1, 1]} : vector<2x512x3xf32> to vector<2x512x1xf32>
    %21 = vector.extract_strided_slice %4 {offsets = [2, 0], sizes = [1, 128], strides = [1, 1]} : vector<3x128xf32> to vector<1x128xf32>
    %22 = vector.shape_cast %21 : vector<1x128xf32> to vector<128xf32>
    %23 = vector.shape_cast %22 : vector<128xf32> to vector<1x1x128xf32>
    %24 = vector.broadcast %20 : vector<2x512x1xf32> to vector<2x512x128xf32>
    %25 = vector.broadcast %23 : vector<1x1x128xf32> to vector<2x512x128xf32>
    %26 = arith.mulf %24, %25 : vector<2x512x128xf32>
    %27 = arith.addf %19, %26 : vector<2x512x128xf32>
    %c0_5 = arith.constant 0 : index
    %c0_6 = arith.constant 0 : index
    %28 = vector.load %arg3[%c0_5, %c0_6] : memref<1x128xf32, #tpu.memory_space<vmem>>, vector<1x128xf32>
    %29 = vector.shape_cast %28 : vector<1x128xf32> to vector<1x1x128xf32>
    %30 = vector.broadcast %29 : vector<1x1x128xf32> to vector<2x512x128xf32>
    %31 = arith.addf %27, %30 : vector<2x512x128xf32>
    %cst = arith.constant 0.000000e+00 : f32
    %32 = vector.broadcast %cst : f32 to vector<2x512x128xf32>
    %33 = arith.maximumf %31, %32 : vector<2x512x128xf32>
    %34 = vector.shape_cast %33 : vector<2x512x128xf32> to vector<1024x128xf32>
    %35 = arith.truncf %34 : vector<1024x128xf32> to vector<1024x128xbf16>
    %c0_7 = arith.constant 0 : index
    %c0_8 = arith.constant 0 : index
    %36 = vector.load %arg4[%c0_7, %c0_8] : memref<128x128xbf16, #tpu.memory_space<vmem>>, vector<128x128xbf16>
    %cst_9 = arith.constant dense<0.000000e+00> : vector<1024x128xf32>
    %37 = tpu.matmul %35, %36, %cst_9 {dimension_numbers = #tpu.dot_dimension_numbers<[1], [0], [0], [1], [0, 0, 1, 1], [], []>} : vector<1024x128xbf16>, vector<128x128xbf16>, vector<1024x128xf32> -> vector<1024x128xf32>
    %c0_10 = arith.constant 0 : index
    %c0_11 = arith.constant 0 : index
    %38 = vector.load %arg5[%c0_10, %c0_11] : memref<1x128xf32, #tpu.memory_space<vmem>>, vector<1x128xf32>
    %39 = vector.broadcast %38 : vector<1x128xf32> to vector<1024x128xf32>
    %40 = arith.addf %37, %39 : vector<1024x128xf32>
    %cst_12 = arith.constant 0.000000e+00 : f32
    %41 = vector.broadcast %cst_12 : f32 to vector<1024x128xf32>
    %42 = arith.maximumf %40, %41 : vector<1024x128xf32>
    %43 = arith.truncf %42 : vector<1024x128xf32> to vector<1024x128xbf16>
    %c0_13 = arith.constant 0 : index
    %c0_14 = arith.constant 0 : index
    %44 = vector.load %arg6[%c0_13, %c0_14] : memref<128x256xbf16, #tpu.memory_space<vmem>>, vector<128x256xbf16>
    %cst_15 = arith.constant dense<0.000000e+00> : vector<1024x256xf32>
    %45 = tpu.matmul %43, %44, %cst_15 {dimension_numbers = #tpu.dot_dimension_numbers<[1], [0], [0], [1], [0, 0, 1, 1], [], []>} : vector<1024x128xbf16>, vector<128x256xbf16>, vector<1024x256xf32> -> vector<1024x256xf32>
    %c0_16 = arith.constant 0 : index
    %c0_17 = arith.constant 0 : index
    %46 = vector.load %arg7[%c0_16, %c0_17] : memref<1x256xf32, #tpu.memory_space<vmem>>, vector<1x256xf32>
    %47 = vector.broadcast %46 : vector<1x256xf32> to vector<1024x256xf32>
    %48 = arith.addf %45, %47 : vector<1024x256xf32>
    %cst_18 = arith.constant 0.000000e+00 : f32
    %49 = vector.broadcast %cst_18 : f32 to vector<1024x256xf32>
    %50 = arith.maximumf %48, %49 : vector<1024x256xf32>
    %51 = arith.truncf %50 : vector<1024x256xf32> to vector<1024x256xbf16>
    %c0_19 = arith.constant 0 : index
    %c0_20 = arith.constant 0 : index
    %52 = vector.load %arg8[%c0_19, %c0_20] : memref<256x512xbf16, #tpu.memory_space<vmem>>, vector<256x512xbf16>
    %cst_21 = arith.constant dense<0.000000e+00> : vector<1024x512xf32>
    %53 = tpu.matmul %51, %52, %cst_21 {dimension_numbers = #tpu.dot_dimension_numbers<[1], [0], [0], [1], [0, 0, 1, 1], [], []>} : vector<1024x256xbf16>, vector<256x512xbf16>, vector<1024x512xf32> -> vector<1024x512xf32>
    %c0_22 = arith.constant 0 : index
    %c0_23 = arith.constant 0 : index
    %54 = vector.load %arg9[%c0_22, %c0_23] : memref<1x512xf32, #tpu.memory_space<vmem>>, vector<1x512xf32>
    %55 = vector.broadcast %54 : vector<1x512xf32> to vector<1024x512xf32>
    %56 = arith.addf %53, %55 : vector<1024x512xf32>
    %57 = vector.shape_cast %56 : vector<1024x512xf32> to vector<2x512x512xf32>
    %c0_24 = arith.constant 0 : index
    %c0_25 = arith.constant 0 : index
    %58 = vector.load %arg17[%c0_24, %c0_25] : memref<2x512xf32, #tpu.memory_space<vmem>>, vector<2x512xf32>
    %cst_26 = arith.constant dense<0xFF800000> : vector<2x512xf32>
    %59 = vector.multi_reduction <maximumf>, %57, %cst_26 [1] : vector<2x512x512xf32> to vector<2x512xf32>
    %60 = arith.maximumf %58, %59 : vector<2x512xf32>
    %c0_27 = arith.constant 0 : index
    %c0_28 = arith.constant 0 : index
    %61 = vector.load %arg17[%c0_27, %c0_28] : memref<2x512xf32, #tpu.memory_space<vmem>>, vector<2x512xf32>
    tpu.vector_store %arg17[%c0_27, %c0_28], %60 {strides = array<i32>} : memref<2x512xf32, #tpu.memory_space<vmem>>, vector<2x512xf32>,
    %c3_i32 = arith.constant 3 : i32
    %62 = arith.cmpi eq, %arg0, %c3_i32 : i32
    %63 = arith.extui %62 : i1 to i32
    %c0_i32_29 = arith.constant 0 : i32
    %64 = arith.cmpi ne, %63, %c0_i32_29 : i32
    scf.if %64 {
      %c0_30 = arith.constant 0 : index
      %c0_31 = arith.constant 0 : index
      %65 = vector.load %arg17[%c0_30, %c0_31] : memref<2x512xf32, #tpu.memory_space<vmem>>, vector<2x512xf32>
      %66 = arith.truncf %65 : vector<2x512xf32> to vector<2x512xbf16>
      %c0_32 = arith.constant 0 : index
      %c0_33 = arith.constant 0 : index
      %67 = vector.load %arg10[%c0_32, %c0_33] : memref<512x512xbf16, #tpu.memory_space<vmem>>, vector<512x512xbf16>
      %cst_34 = arith.constant dense<0.000000e+00> : vector<2x512xf32>
      %68 = tpu.matmul %66, %67, %cst_34 {dimension_numbers = #tpu.dot_dimension_numbers<[1], [0], [0], [1], [0, 0, 1, 1], [], []>} : vector<2x512xbf16>, vector<512x512xbf16>, vector<2x512xf32> -> vector<2x512xf32>
      %c0_35 = arith.constant 0 : index
      %c0_36 = arith.constant 0 : index
      %69 = vector.load %arg11[%c0_35, %c0_36] : memref<1x512xf32, #tpu.memory_space<vmem>>, vector<1x512xf32>
      %70 = vector.broadcast %69 : vector<1x512xf32> to vector<2x512xf32>
      %71 = arith.addf %68, %70 : vector<2x512xf32>
      %cst_37 = arith.constant 0.000000e+00 : f32
      %72 = vector.broadcast %cst_37 : f32 to vector<2x512xf32>
      %73 = arith.maximumf %71, %72 : vector<2x512xf32>
      %74 = arith.truncf %73 : vector<2x512xf32> to vector<2x512xbf16>
      %c0_38 = arith.constant 0 : index
      %c0_39 = arith.constant 0 : index
      %75 = vector.load %arg12[%c0_38, %c0_39] : memref<512x256xbf16, #tpu.memory_space<vmem>>, vector<512x256xbf16>
      %cst_40 = arith.constant dense<0.000000e+00> : vector<2x256xf32>
      %76 = tpu.matmul %74, %75, %cst_40 {dimension_numbers = #tpu.dot_dimension_numbers<[1], [0], [0], [1], [0, 0, 1, 1], [], []>} : vector<2x512xbf16>, vector<512x256xbf16>, vector<2x256xf32> -> vector<2x256xf32>
      %c0_41 = arith.constant 0 : index
      %c0_42 = arith.constant 0 : index
      %77 = vector.load %arg13[%c0_41, %c0_42] : memref<1x256xf32, #tpu.memory_space<vmem>>, vector<1x256xf32>
      %78 = vector.broadcast %77 : vector<1x256xf32> to vector<2x256xf32>
      %79 = arith.addf %76, %78 : vector<2x256xf32>
      %cst_43 = arith.constant 0.000000e+00 : f32
      %80 = vector.broadcast %cst_43 : f32 to vector<2x256xf32>
      %81 = arith.maximumf %79, %80 : vector<2x256xf32>
      %82 = arith.truncf %81 : vector<2x256xf32> to vector<2x256xbf16>
      %c0_44 = arith.constant 0 : index
      %c0_45 = arith.constant 0 : index
      %83 = vector.load %arg14[%c0_44, %c0_45] : memref<256x128xbf16, #tpu.memory_space<vmem>>, vector<256x128xbf16>
      %cst_46 = arith.constant dense<0.000000e+00> : vector<2x128xf32>
      %84 = tpu.matmul %82, %83, %cst_46 {dimension_numbers = #tpu.dot_dimension_numbers<[1], [0], [0], [1], [0, 0, 1, 1], [], []>} : vector<2x256xbf16>, vector<256x128xbf16>, vector<2x128xf32> -> vector<2x128xf32>
      %c0_47 = arith.constant 0 : index
      %c0_48 = arith.constant 0 : index
      %85 = vector.load %arg15[%c0_47, %c0_48] : memref<1x128xf32, #tpu.memory_space<vmem>>, vector<1x128xf32>
      %86 = vector.broadcast %85 : vector<1x128xf32> to vector<2x128xf32>
      %87 = arith.addf %84, %86 : vector<2x128xf32>
      %c0_49 = arith.constant 0 : index
      %c0_50 = arith.constant 0 : index
      %88 = vector.load %arg16[%c0_49, %c0_50] : memref<2x128xf32, #tpu.memory_space<vmem>>, vector<2x128xf32>
      tpu.vector_store %arg16[%c0_49, %c0_50], %87 {strides = array<i32>} : memref<2x128xf32, #tpu.memory_space<vmem>>, vector<2x128xf32>,
    } else {
    }
    return
  }
  func.func @transform_0(%arg0: i32) -> (i32, i32, i32) {
    %c0_i32 = arith.constant 0 : i32
    %c0_i32_0 = arith.constant 0 : i32
    %c0_i32_1 = arith.constant 0 : i32
    return %c0_i32, %arg0, %c0_i32_0 : i32, i32, i32
  }
  func.func @transform_1(%arg0: i32) -> (i32, i32) {
    %c0_i32 = arith.constant 0 : i32
    %c0_i32_0 = arith.constant 0 : i32
    %c0_i32_1 = arith.constant 0 : i32
    return %c0_i32, %c0_i32_0 : i32, i32
  }
  func.func @transform_2(%arg0: i32) -> (i32, i32) {
    %c0_i32 = arith.constant 0 : i32
    %c0_i32_0 = arith.constant 0 : i32
    %c0_i32_1 = arith.constant 0 : i32
    return %c0_i32, %c0_i32_0 : i32, i32
  }
  func.func @transform_3(%arg0: i32) -> (i32, i32) {
    %c0_i32 = arith.constant 0 : i32
    %c0_i32_0 = arith.constant 0 : i32
    %c0_i32_1 = arith.constant 0 : i32
    return %c0_i32, %c0_i32_0 : i32, i32
  }
  func.func @transform_4(%arg0: i32) -> (i32, i32) {
    %c0_i32 = arith.constant 0 : i32
    %c0_i32_0 = arith.constant 0 : i32
    %c0_i32_1 = arith.constant 0 : i32
    return %c0_i32, %c0_i32_0 : i32, i32
  }
  func.func @transform_5(%arg0: i32) -> (i32, i32) {
    %c0_i32 = arith.constant 0 : i32
    %c0_i32_0 = arith.constant 0 : i32
    %c0_i32_1 = arith.constant 0 : i32
    return %c0_i32, %c0_i32_0 : i32, i32
  }
  func.func @transform_6(%arg0: i32) -> (i32, i32) {
    %c0_i32 = arith.constant 0 : i32
    %c0_i32_0 = arith.constant 0 : i32
    %c0_i32_1 = arith.constant 0 : i32
    return %c0_i32, %c0_i32_0 : i32, i32
  }
  func.func @transform_7(%arg0: i32) -> (i32, i32) {
    %c0_i32 = arith.constant 0 : i32
    %c0_i32_0 = arith.constant 0 : i32
    %c0_i32_1 = arith.constant 0 : i32
    return %c0_i32, %c0_i32_0 : i32, i32
  }
  func.func @transform_8(%arg0: i32) -> (i32, i32) {
    %c0_i32 = arith.constant 0 : i32
    %c0_i32_0 = arith.constant 0 : i32
    %c0_i32_1 = arith.constant 0 : i32
    return %c0_i32, %c0_i32_0 : i32, i32
  }
  func.func @transform_9(%arg0: i32) -> (i32, i32) {
    %c0_i32 = arith.constant 0 : i32
    %c0_i32_0 = arith.constant 0 : i32
    %c0_i32_1 = arith.constant 0 : i32
    return %c0_i32, %c0_i32_0 : i32, i32
  }
  func.func @transform_10(%arg0: i32) -> (i32, i32) {
    %c0_i32 = arith.constant 0 : i32
    %c0_i32_0 = arith.constant 0 : i32
    %c0_i32_1 = arith.constant 0 : i32
    return %c0_i32, %c0_i32_0 : i32, i32
  }
  func.func @transform_11(%arg0: i32) -> (i32, i32) {
    %c0_i32 = arith.constant 0 : i32
    %c0_i32_0 = arith.constant 0 : i32
    %c0_i32_1 = arith.constant 0 : i32
    return %c0_i32, %c0_i32_0 : i32, i32
  }
  func.func @transform_12(%arg0: i32) -> (i32, i32) {
    %c0_i32 = arith.constant 0 : i32
    %c0_i32_0 = arith.constant 0 : i32
    %c0_i32_1 = arith.constant 0 : i32
    return %c0_i32, %c0_i32_0 : i32, i32
  }
  func.func @transform_13(%arg0: i32) -> (i32, i32) {
    %c0_i32 = arith.constant 0 : i32
    %c0_i32_0 = arith.constant 0 : i32
    %c0_i32_1 = arith.constant 0 : i32
    return %c0_i32, %c0_i32_0 : i32, i32
  }
  func.func @transform_14(%arg0: i32) -> (i32, i32) {
    %c0_i32 = arith.constant 0 : i32
    %c0_i32_0 = arith.constant 0 : i32
    %c0_i32_1 = arith.constant 0 : i32
    return %c0_i32, %c0_i32_0 : i32, i32
  }
  func.func @transform_15(%arg0: i32) -> (i32, i32) {
    %c0_i32 = arith.constant 0 : i32
    %c0_i32_0 = arith.constant 0 : i32
    %c0_i32_1 = arith.constant 0 : i32
    return %c0_i32, %c0_i32_0 : i32, i32
  }
}

</mosaic_0001>

<llo_original>
// kernel: tpu_custom_call.1
$region0: #{tpu_custom_call.1}
  #allocation0 [shape = 'u32[]', space=smem, size = 0x4, offset = 0x4, fixed_abs, tag = 'smem constant byte address 0x4 - core index']
  #allocation1 [shape = 'u32[144,128]{1,0:T(1,128)}', space=vmem, size = 0x12000, scoped, tag = 'internal scratch']
  #allocation2 [shape = 'f32[2,512]{1,0:T(2,128)}', space=vmem, size = 0x1000, scoped, tag = 'scratch operand']
  %s0 = inlined_call_operand.vmem [shape: f32[2,2048,3], index: 0, kind: input, shape index: {}]
  %s1 = inlined_call_operand.vmem [shape: f32[3,128], index: 1, kind: input, shape index: {}]
  %s2 = inlined_call_operand.vmem [shape: f32[1,128], index: 2, kind: input, shape index: {}]
  %s3 = inlined_call_operand.vmem [shape: bf16[128,128], index: 3, kind: input, shape index: {}]
  %s4 = inlined_call_operand.vmem [shape: f32[1,128], index: 4, kind: input, shape index: {}]
  %s5 = inlined_call_operand.vmem [shape: bf16[128,256], index: 5, kind: input, shape index: {}]
  %s6 = inlined_call_operand.vmem [shape: f32[1,256], index: 6, kind: input, shape index: {}]
  %s7 = inlined_call_operand.vmem [shape: bf16[256,512], index: 7, kind: input, shape index: {}]
  %s8 = inlined_call_operand.vmem [shape: f32[1,512], index: 8, kind: input, shape index: {}]
  %s9 = inlined_call_operand.vmem [shape: bf16[512,512], index: 9, kind: input, shape index: {}]
  %s10 = inlined_call_operand.vmem [shape: f32[1,512], index: 10, kind: input, shape index: {}]
  %s11 = inlined_call_operand.vmem [shape: bf16[512,256], index: 11, kind: input, shape index: {}]
  %s12 = inlined_call_operand.vmem [shape: f32[1,256], index: 12, kind: input, shape index: {}]
  %s13 = inlined_call_operand.vmem [shape: bf16[256,128], index: 13, kind: input, shape index: {}]
  %s14 = inlined_call_operand.vmem [shape: f32[1,128], index: 14, kind: input, shape index: {}]
  %s15 = inlined_call_operand.hbm [shape: f32[2,128], index: 15, kind: output, shape index: {}]
  %s16 = sld [smem:[#allocation0]]
  $region139: #{tpu_custom_call.1} parent=0
    _
  %s18 = ssub.s32 1, %s16
  %s19 = scalar_select 0, %s18, %s16
  $region1: #{tpu_custom_call.1} parent=0
    #allocation3 [shape = 'u8[1048576]{0}', space=vmem, size = 0x100000, scoped, tag = 'input window, operand 0']
    #allocation4 [shape = 'u8[1024]{0}', space=vmem, size = 0x400, scoped, tag = 'output window, operand 0, single buffered']
    #allocation5 [shape = 's32[2]{0}', space=sflag, size = 0x8, scoped, tag = 'scoped memory for tpu_custom_call.1']
    %20 = vsyncpa [#allocation5], 0
    loop: start=0, step=1, limit=6
    $region2: #{tpu_custom_call.1} parent=1 // loop_pre_header
      _
    $region3: #{tpu_custom_call.1} parent=1 // loop_header
      %s22 = sphi 0, %s26
      %p23 = scmp.ge.s32.totalorder %s22, 6
      %s32 = sphi 0, %s34
      %s35 = sphi 0, %s32
      %s36 = sphi 0, %s35
      %s52 = sphi 0, %s36
      %s56 = sphi 0, %s56
      %s58 = sphi 0, %s56
      %s59 = sphi 0, %s58
      %s73 = sphi 0, %s59
      %s77 = sphi 0, %s77
      %s79 = sphi 0, %s77
      %s80 = sphi 0, %s79
      %s94 = sphi 0, %s80
      %s98 = sphi 0, %s98
      %s100 = sphi 0, %s98
      %s101 = sphi 0, %s100
      %s115 = sphi 0, %s101
      %s119 = sphi 0, %s119
      %s121 = sphi 0, %s119
      %s122 = sphi 0, %s121
      %s136 = sphi 0, %s122
      %s140 = sphi 0, %s140
      %s142 = sphi 0, %s140
      %s143 = sphi 0, %s142
      %s157 = sphi 0, %s143
      %s161 = sphi 0, %s161
      %s163 = sphi 0, %s161
      %s164 = sphi 0, %s163
      %s178 = sphi 0, %s164
      %s182 = sphi 0, %s182
      %s184 = sphi 0, %s182
      %s185 = sphi 0, %s184
      %s199 = sphi 0, %s185
      %s203 = sphi 0, %s203
      %s205 = sphi 0, %s203
      %s206 = sphi 0, %s205
      %s220 = sphi 0, %s206
      %s224 = sphi 0, %s224
      %s226 = sphi 0, %s224
      %s227 = sphi 0, %s226
      %s241 = sphi 0, %s227
      %s245 = sphi 0, %s245
      %s247 = sphi 0, %s245
      %s248 = sphi 0, %s247
      %s262 = sphi 0, %s248
      %s266 = sphi 0, %s266
      %s268 = sphi 0, %s266
      %s269 = sphi 0, %s268
      %s283 = sphi 0, %s269
      %s287 = sphi 0, %s287
      %s289 = sphi 0, %s287
      %s290 = sphi 0, %s289
      %s304 = sphi 0, %s290
      %s308 = sphi 0, %s308
      %s310 = sphi 0, %s308
      %s311 = sphi 0, %s310
      %s325 = sphi 0, %s311
      %s329 = sphi 0, %s329
      %s331 = sphi 0, %s329
      %s332 = sphi 0, %s331
      %s346 = sphi 0, %s332
      %s350 = sphi 0, %s350
      %s352 = sphi 0, %s350
      %s353 = sphi 0, %s352
      %s367 = sphi 0, %s353
    $region4: #{tpu_custom_call.1} parent=1 // loop_header_branch
      %25 = sbr.rel (%p23) target = $region8
    $region5: #{tpu_custom_call.1} parent=1 // loop_body
      %s27 = ssub.s32 %s22, 1
      %s28 = ssub.s32 %s22, 2
      %s29 = sadd.s32 %s22, 1
      %s30 = ssub.s32 %s22, %s29
      %p31 = scmp.eq.s32.totalorder %s30, 0
      %s33 = sadd.s32 %s32, 1
      %s34 = scalar_select %p31, %s32, %s33
      %p37 = pneg %p31
      %p38 = scmp.eq.s32.totalorder %s22, 3
      %p39 = por %p37, %p38
      %p40 = scmp.ne.s32.totalorder %s32, %s35
      %p41 = scmp.eq.s32.totalorder %s22, 0
      %p42 = por %p40, %p41
      %p43 = scmp.ne.s32.totalorder %s32, %s35
      %p44 = scmp.eq.s32.totalorder %s27, 3
      %p45 = por %p43, %p44
      %p46 = scmp.ne.s32.totalorder %s35, %s36
      %p47 = scmp.eq.s32.totalorder %s27, 0
      %p48 = por %p46, %p47
      %p49 = scmp.ne.s32.totalorder %s35, %s36
      %p50 = scmp.eq.s32.totalorder %s28, 3
      %p51 = por %p49, %p50
      %p53 = scmp.ne.s32.totalorder %s36, %s52
      %p54 = scmp.eq.s32.totalorder %s28, 0
      %p55 = por %p53, %p54
      %s57 = sadd.s32 %s56, 1
      %p60 = scmp.eq.s32.totalorder %s22, 3
      %p61 = scmp.ne.s32.totalorder %s56, %s58
      %p62 = scmp.eq.s32.totalorder %s22, 0
      %p63 = por %p61, %p62
      %p64 = scmp.ne.s32.totalorder %s56, %s58
      %p65 = scmp.eq.s32.totalorder %s27, 3
      %p66 = por %p64, %p65
      %p67 = scmp.ne.s32.totalorder %s58, %s59
      %p68 = scmp.eq.s32.totalorder %s27, 0
      %p69 = por %p67, %p68
      %p70 = scmp.ne.s32.totalorder %s58, %s59
      %p71 = scmp.eq.s32.totalorder %s28, 3
      %p72 = por %p70, %p71
      %p74 = scmp.ne.s32.totalorder %s59, %s73
      %p75 = scmp.eq.s32.totalorder %s28, 0
      %p76 = por %p74, %p75
      %s78 = sadd.s32 %s77, 1
      %p81 = scmp.eq.s32.totalorder %s22, 3
      %p82 = scmp.ne.s32.totalorder %s77, %s79
      %p83 = scmp.eq.s32.totalorder %s22, 0
      %p84 = por %p82, %p83
      %p85 = scmp.ne.s32.totalorder %s77, %s79
      %p86 = scmp.eq.s32.totalorder %s27, 3
      %p87 = por %p85, %p86
      %p88 = scmp.ne.s32.totalorder %s79, %s80
      %p89 = scmp.eq.s32.totalorder %s27, 0
      %p90 = por %p88, %p89
      %p91 = scmp.ne.s32.totalorder %s79, %s80
      %p92 = scmp.eq.s32.totalorder %s28, 3
      %p93 = por %p91, %p92
      %p95 = scmp.ne.s32.totalorder %s80, %s94
      %p96 = scmp.eq.s32.totalorder %s28, 0
      %p97 = por %p95, %p96
      %s99 = sadd.s32 %s98, 1
      %p102 = scmp.eq.s32.totalorder %s22, 3
      %p103 = scmp.ne.s32.totalorder %s98, %s100
      %p104 = scmp.eq.s32.totalorder %s22, 0
      %p105 = por %p103, %p104
      %p106 = scmp.ne.s32.totalorder %s98, %s100
      %p107 = scmp.eq.s32.totalorder %s27, 3
      %p108 = por %p106, %p107
      %p109 = scmp.ne.s32.totalorder %s100, %s101
      %p110 = scmp.eq.s32.totalorder %s27, 0
      %p111 = por %p109, %p110
      %p112 = scmp.ne.s32.totalorder %s100, %s101
      %p113 = scmp.eq.s32.totalorder %s28, 3
      %p114 = por %p112, %p113
      %p116 = scmp.ne.s32.totalorder %s101, %s115
      %p117 = scmp.eq.s32.totalorder %s28, 0
      %p118 = por %p116, %p117
      %s120 = sadd.s32 %s119, 1
      %p123 = scmp.eq.s32.totalorder %s22, 3
      %p124 = scmp.ne.s32.totalorder %s119, %s121
      %p125 = scmp.eq.s32.totalorder %s22, 0
      %p126 = por %p124, %p125
      %p127 = scmp.ne.s32.totalorder %s119, %s121
      %p128 = scmp.eq.s32.totalorder %s27, 3
      %p129 = por %p127, %p128
      %p130 = scmp.ne.s32.totalorder %s121, %s122
      %p131 = scmp.eq.s32.totalorder %s27, 0
      %p132 = por %p130, %p131
      %p133 = scmp.ne.s32.totalorder %s121, %s122
      %p134 = scmp.eq.s32.totalorder %s28, 3
      %p135 = por %p133, %p134
      %p137 = scmp.ne.s32.totalorder %s122, %s136
      %p138 = scmp.eq.s32.totalorder %s28, 0
      %p139 = por %p137, %p138
      %s141 = sadd.s32 %s140, 1
      %p144 = scmp.eq.s32.totalorder %s22, 3
      %p145 = scmp.ne.s32.totalorder %s140, %s142
      %p146 = scmp.eq.s32.totalorder %s22, 0
      %p147 = por %p145, %p146
      %p148 = scmp.ne.s32.totalorder %s140, %s142
      %p149 = scmp.eq.s32.totalorder %s27, 3
      %p150 = por %p148, %p149
      %p151 = scmp.ne.s32.totalorder %s142, %s143
      %p152 = scmp.eq.s32.totalorder %s27, 0
      %p153 = por %p151, %p152
      %p154 = scmp.ne.s32.totalorder %s142, %s143
      %p155 = scmp.eq.s32.totalorder %s28, 3
      %p156 = por %p154, %p155
      %p158 = scmp.ne.s32.totalorder %s143, %s157
      %p159 = scmp.eq.s32.totalorder %s28, 0
      %p160 = por %p158, %p159
      %s162 = sadd.s32 %s161, 1
      %p165 = scmp.eq.s32.totalorder %s22, 3
      %p166 = scmp.ne.s32.totalorder %s161, %s163
      %p167 = scmp.eq.s32.totalorder %s22, 0
      %p168 = por %p166, %p167
      %p169 = scmp.ne.s32.totalorder %s161, %s163
      %p170 = scmp.eq.s32.totalorder %s27, 3
      %p171 = por %p169, %p170
      %p172 = scmp.ne.s32.totalorder %s163, %s164
      %p173 = scmp.eq.s32.totalorder %s27, 0
      %p174 = por %p172, %p173
      %p175 = scmp.ne.s32.totalorder %s163, %s164
      %p176 = scmp.eq.s32.totalorder %s28, 3
      %p177 = por %p175, %p176
      %p179 = scmp.ne.s32.totalorder %s164, %s178
      %p180 = scmp.eq.s32.totalorder %s28, 0
      %p181 = por %p179, %p180
      %s183 = sadd.s32 %s182, 1
      %p186 = scmp.eq.s32.totalorder %s22, 3
      %p187 = scmp.ne.s32.totalorder %s182, %s184
      %p188 = scmp.eq.s32.totalorder %s22, 0
      %p189 = por %p187, %p188
      %p190 = scmp.ne.s32.totalorder %s182, %s184
      %p191 = scmp.eq.s32.totalorder %s27, 3
      %p192 = por %p190, %p191
      %p193 = scmp.ne.s32.totalorder %s184, %s185
      %p194 = scmp.eq.s32.totalorder %s27, 0
      %p195 = por %p193, %p194
      %p196 = scmp.ne.s32.totalorder %s184, %s185
      %p197 = scmp.eq.s32.totalorder %s28, 3
      %p198 = por %p196, %p197
      %p200 = scmp.ne.s32.totalorder %s185, %s199
      %p201 = scmp.eq.s32.totalorder %s28, 0
      %p202 = por %p200, %p201
      %s204 = sadd.s32 %s203, 1
      %p207 = scmp.eq.s32.totalorder %s22, 3
      %p208 = scmp.ne.s32.totalorder %s203, %s205
      %p209 = scmp.eq.s32.totalorder %s22, 0
      %p210 = por %p208, %p209
      %p211 = scmp.ne.s32.totalorder %s203, %s205
      %p212 = scmp.eq.s32.totalorder %s27, 3
      %p213 = por %p211, %p212
      %p214 = scmp.ne.s32.totalorder %s205, %s206
      %p215 = scmp.eq.s32.totalorder %s27, 0
      %p216 = por %p214, %p215
      %p217 = scmp.ne.s32.totalorder %s205, %s206
      %p218 = scmp.eq.s32.totalorder %s28, 3
      %p219 = por %p217, %p218
      %p221 = scmp.ne.s32.totalorder %s206, %s220
      %p222 = scmp.eq.s32.totalorder %s28, 0
      %p223 = por %p221, %p222
      %s225 = sadd.s32 %s224, 1
      %p228 = scmp.eq.s32.totalorder %s22, 3
      %p229 = scmp.ne.s32.totalorder %s224, %s226
      %p230 = scmp.eq.s32.totalorder %s22, 0
      %p231 = por %p229, %p230
      %p232 = scmp.ne.s32.totalorder %s224, %s226
      %p233 = scmp.eq.s32.totalorder %s27, 3
      %p234 = por %p232, %p233
      %p235 = scmp.ne.s32.totalorder %s226, %s227
      %p236 = scmp.eq.s32.totalorder %s27, 0
      %p237 = por %p235, %p236
      %p238 = scmp.ne.s32.totalorder %s226, %s227
      %p239 = scmp.eq.s32.totalorder %s28, 3
      %p240 = por %p238, %p239
      %p242 = scmp.ne.s32.totalorder %s227, %s241
      %p243 = scmp.eq.s32.totalorder %s28, 0
      %p244 = por %p242, %p243
      %s246 = sadd.s32 %s245, 1
      %p249 = scmp.eq.s32.totalorder %s22, 3
      %p250 = scmp.ne.s32.totalorder %s245, %s247
      %p251 = scmp.eq.s32.totalorder %s22, 0
      %p252 = por %p250, %p251
      %p253 = scmp.ne.s32.totalorder %s245, %s247
      %p254 = scmp.eq.s32.totalorder %s27, 3
      %p255 = por %p253, %p254
      %p256 = scmp.ne.s32.totalorder %s247, %s248
      %p257 = scmp.eq.s32.totalorder %s27, 0
      %p258 = por %p256, %p257
      %p259 = scmp.ne.s32.totalorder %s247, %s248
      %p260 = scmp.eq.s32.totalorder %s28, 3
      %p261 = por %p259, %p260
      %p263 = scmp.ne.s32.totalorder %s248, %s262
      %p264 = scmp.eq.s32.totalorder %s28, 0
      %p265 = por %p263, %p264
      %s267 = sadd.s32 %s266, 1
      %p270 = scmp.eq.s32.totalorder %s22, 3
      %p271 = scmp.ne.s32.totalorder %s266, %s268
      %p272 = scmp.eq.s32.totalorder %s22, 0
      %p273 = por %p271, %p272
      %p274 = scmp.ne.s32.totalorder %s266, %s268
      %p275 = scmp.eq.s32.totalorder %s27, 3
      %p276 = por %p274, %p275
      %p277 = scmp.ne.s32.totalorder %s268, %s269
      %p278 = scmp.eq.s32.totalorder %s27, 0
      %p279 = por %p277, %p278
      %p280 = scmp.ne.s32.totalorder %s268, %s269
      %p281 = scmp.eq.s32.totalorder %s28, 3
      %p282 = por %p280, %p281
      %p284 = scmp.ne.s32.totalorder %s269, %s283
      %p285 = scmp.eq.s32.totalorder %s28, 0
      %p286 = por %p284, %p285
      %s288 = sadd.s32 %s287, 1
      %p291 = scmp.eq.s32.totalorder %s22, 3
      %p292 = scmp.ne.s32.totalorder %s287, %s289
      %p293 = scmp.eq.s32.totalorder %s22, 0
      %p294 = por %p292, %p293
      %p295 = scmp.ne.s32.totalorder %s287, %s289
      %p296 = scmp.eq.s32.totalorder %s27, 3
      %p297 = por %p295, %p296
      %p298 = scmp.ne.s32.totalorder %s289, %s290
      %p299 = scmp.eq.s32.totalorder %s27, 0
      %p300 = por %p298, %p299
      %p301 = scmp.ne.s32.totalorder %s289, %s290
      %p302 = scmp.eq.s32.totalorder %s28, 3
      %p303 = por %p301, %p302
      %p305 = scmp.ne.s32.totalorder %s290, %s304
      %p306 = scmp.eq.s32.totalorder %s28, 0
      %p307 = por %p305, %p306
      %s309 = sadd.s32 %s308, 1
      %p312 = scmp.eq.s32.totalorder %s22, 3
      %p313 = scmp.ne.s32.totalorder %s308, %s310
      %p314 = scmp.eq.s32.totalorder %s22, 0
      %p315 = por %p313, %p314
      %p316 = scmp.ne.s32.totalorder %s308, %s310
      %p317 = scmp.eq.s32.totalorder %s27, 3
      %p318 = por %p316, %p317
      %p319 = scmp.ne.s32.totalorder %s310, %s311
      %p320 = scmp.eq.s32.totalorder %s27, 0
      %p321 = por %p319, %p320
      %p322 = scmp.ne.s32.totalorder %s310, %s311
      %p323 = scmp.eq.s32.totalorder %s28, 3
      %p324 = por %p322, %p323
      %p326 = scmp.ne.s32.totalorder %s311, %s325
      %p327 = scmp.eq.s32.totalorder %s28, 0
      %p328 = por %p326, %p327
      %s330 = sadd.s32 %s329, 1
      %p333 = scmp.eq.s32.totalorder %s22, 3
      %p334 = scmp.ne.s32.totalorder %s329, %s331
      %p335 = scmp.eq.s32.totalorder %s22, 0
      %p336 = por %p334, %p335
      %p337 = scmp.ne.s32.totalorder %s329, %s331
      %p338 = scmp.eq.s32.totalorder %s27, 3
      %p339 = por %p337, %p338
      %p340 = scmp.ne.s32.totalorder %s331, %s332
      %p341 = scmp.eq.s32.totalorder %s27, 0
      %p342 = por %p340, %p341
      %p343 = scmp.ne.s32.totalorder %s331, %s332
      %p344 = scmp.eq.s32.totalorder %s28, 3
      %p345 = por %p343, %p344
      %p347 = scmp.ne.s32.totalorder %s332, %s346
      %p348 = scmp.eq.s32.totalorder %s28, 0
      %p349 = por %p347, %p348
      %s351 = sadd.s32 %s350, 1
      %p354 = scmp.eq.s32.totalorder %s22, 3
      %p355 = scmp.ne.s32.totalorder %s350, %s352
      %p356 = scmp.eq.s32.totalorder %s22, 0
      %p357 = por %p355, %p356
      %p358 = scmp.ne.s32.totalorder %s350, %s352
      %p359 = scmp.eq.s32.totalorder %s27, 3
      %p360 = por %p358, %p359
      %p361 = scmp.ne.s32.totalorder %s352, %s353
      %p362 = scmp.eq.s32.totalorder %s27, 0
      %p363 = por %p361, %p362
      %p364 = scmp.ne.s32.totalorder %s352, %s353
      %p365 = scmp.eq.s32.totalorder %s28, 3
      %p366 = por %p364, %p365
      %p368 = scmp.ne.s32.totalorder %s353, %s367
      %p369 = scmp.eq.s32.totalorder %s28, 0
      %p370 = por %p368, %p369
      %p371 = scmp.le.s32.totalorder 1, %s22
      %p372 = scmp.lt.s32.totalorder %s22, 5
      %p373 = pnand %p371, %p372
      %p374 = pneg %p373
      // Predicated region
      $region9: #{tpu_custom_call.1} parent=5 // pred_check
        _
      $region10: #{tpu_custom_call.1} parent=5 // pred_check_branch
        %376 = sbr.rel (%p373) target = $region12
      $region11: #{tpu_custom_call.1} parent=5 // pred_region
        %s377 = ssub.s32 %s22, 1
        // Predicated region
        $region13: #{tpu_custom_call.1} parent=11 // pred_check
          %p378 = pneg %p69
        $region14: #{tpu_custom_call.1} parent=11 // pred_check_branch
          %380 = sbr.rel (%p378) target = $region16
        $region15: #{tpu_custom_call.1} parent=11 // pred_region
          _
        $region16: #{tpu_custom_call.1} parent=11 // pred_fallthru
          _
        // Predicated region
        $region17: #{tpu_custom_call.1} parent=11 // pred_check
          %p381 = pneg %p90
        $region18: #{tpu_custom_call.1} parent=11 // pred_check_branch
          %383 = sbr.rel (%p381) target = $region20
        $region19: #{tpu_custom_call.1} parent=11 // pred_region
          _
        $region20: #{tpu_custom_call.1} parent=11 // pred_fallthru
          _
        // Predicated region
        $region21: #{tpu_custom_call.1} parent=11 // pred_check
          %p384 = pneg %p111
        $region22: #{tpu_custom_call.1} parent=11 // pred_check_branch
          %386 = sbr.rel (%p384) target = $region24
        $region23: #{tpu_custom_call.1} parent=11 // pred_region
          _
        $region24: #{tpu_custom_call.1} parent=11 // pred_fallthru
          _
        // Predicated region
        $region25: #{tpu_custom_call.1} parent=11 // pred_check
          %p387 = pneg %p132
        $region26: #{tpu_custom_call.1} parent=11 // pred_check_branch
          %389 = sbr.rel (%p387) target = $region28
        $region27: #{tpu_custom_call.1} parent=11 // pred_region
          _
        $region28: #{tpu_custom_call.1} parent=11 // pred_fallthru
          _
        // Predicated region
        $region29: #{tpu_custom_call.1} parent=11 // pred_check
          %p390 = pneg %p153
        $region30: #{tpu_custom_call.1} parent=11 // pred_check_branch
          %392 = sbr.rel (%p390) target = $region32
        $region31: #{tpu_custom_call.1} parent=11 // pred_region
          _
        $region32: #{tpu_custom_call.1} parent=11 // pred_fallthru
          _
        // Predicated region
        $region33: #{tpu_custom_call.1} parent=11 // pred_check
          %p393 = pneg %p174
        $region34: #{tpu_custom_call.1} parent=11 // pred_check_branch
          %395 = sbr.rel (%p393) target = $region36
        $region35: #{tpu_custom_call.1} parent=11 // pred_region
          _
        $region36: #{tpu_custom_call.1} parent=11 // pred_fallthru
          _
        // Predicated region
        $region37: #{tpu_custom_call.1} parent=11 // pred_check
          %p396 = pneg %p195
        $region38: #{tpu_custom_call.1} parent=11 // pred_check_branch
          %398 = sbr.rel (%p396) target = $region40
        $region39: #{tpu_custom_call.1} parent=11 // pred_region
          _
        $region40: #{tpu_custom_call.1} parent=11 // pred_fallthru
          _
        // Predicated region
        $region41: #{tpu_custom_call.1} parent=11 // pred_check
          %p399 = pneg %p216
        $region42: #{tpu_custom_call.1} parent=11 // pred_check_branch
          %401 = sbr.rel (%p399) target = $region44
        $region43: #{tpu_custom_call.1} parent=11 // pred_region
          _
        $region44: #{tpu_custom_call.1} parent=11 // pred_fallthru
          _
        // Predicated region
        $region45: #{tpu_custom_call.1} parent=11 // pred_check
          %p402 = pneg %p237
        $region46: #{tpu_custom_call.1} parent=11 // pred_check_branch
          %404 = sbr.rel (%p402) target = $region48
        $region47: #{tpu_custom_call.1} parent=11 // pred_region
          _
        $region48: #{tpu_custom_call.1} parent=11 // pred_fallthru
          _
        // Predicated region
        $region49: #{tpu_custom_call.1} parent=11 // pred_check
          %p405 = pneg %p258
        $region50: #{tpu_custom_call.1} parent=11 // pred_check_branch
          %407 = sbr.rel (%p405) target = $region52
        $region51: #{tpu_custom_call.1} parent=11 // pred_region
          _
        $region52: #{tpu_custom_call.1} parent=11 // pred_fallthru
          _
        // Predicated region
        $region53: #{tpu_custom_call.1} parent=11 // pred_check
          %p408 = pneg %p279
        $region54: #{tpu_custom_call.1} parent=11 // pred_check_branch
          %410 = sbr.rel (%p408) target = $region56
        $region55: #{tpu_custom_call.1} parent=11 // pred_region
          _
        $region56: #{tpu_custom_call.1} parent=11 // pred_fallthru
          _
        // Predicated region
        $region57: #{tpu_custom_call.1} parent=11 // pred_check
          %p411 = pneg %p300
        $region58: #{tpu_custom_call.1} parent=11 // pred_check_branch
          %413 = sbr.rel (%p411) target = $region60
        $region59: #{tpu_custom_call.1} parent=11 // pred_region
          _
        $region60: #{tpu_custom_call.1} parent=11 // pred_fallthru
          _
        // Predicated region
        $region61: #{tpu_custom_call.1} parent=11 // pred_check
          %p414 = pneg %p321
        $region62: #{tpu_custom_call.1} parent=11 // pred_check_branch
          %416 = sbr.rel (%p414) target = $region64
        $region63: #{tpu_custom_call.1} parent=11 // pred_region
          _
        $region64: #{tpu_custom_call.1} parent=11 // pred_fallthru
          _
        // Predicated region
        $region65: #{tpu_custom_call.1} parent=11 // pred_check
          %p417 = pneg %p342
        $region66: #{tpu_custom_call.1} parent=11 // pred_check_branch
          %419 = sbr.rel (%p417) target = $region68
        $region67: #{tpu_custom_call.1} parent=11 // pred_region
          _
        $region68: #{tpu_custom_call.1} parent=11 // pred_fallthru
          _
      $region12: #{tpu_custom_call.1} parent=5 // pred_fallthru
        _
      %p420 = scmp.lt.s32.totalorder %s22, 4
      // Predicated region
      $region69: #{tpu_custom_call.1} parent=5 // pred_check
        %p421 = pneg %p420
      $region70: #{tpu_custom_call.1} parent=5 // pred_check_branch
        %423 = sbr.rel (%p421) target = $region72
      $region71: #{tpu_custom_call.1} parent=5 // pred_region
        // Predicated region
        $region73: #{tpu_custom_call.1} parent=71 // pred_check
          %p424 = pneg %p42
        $region74: #{tpu_custom_call.1} parent=71 // pred_check_branch
          %426 = sbr.rel (%p424) target = $region76
        $region75: #{tpu_custom_call.1} parent=71 // pred_region
          %s427 = sand.u32 %s32, 1
          %s428 = sand.u32 %s32, 1
          %s429 = smul.addr %s428, 1024
          %s430 = scalar_lea.vmem [#allocation3], %s429
          %s431 = smul.u32 64, %s22
          %s432 = smul.addr %s431, 8
          %s433 = scalar_lea.vmem %s0, %s432
          // Predicated region
          $region77: #{tpu_custom_call.1} parent=75 // pred_check
            _
          $region78: #{tpu_custom_call.1} parent=75 // pred_check_branch
            %435 = sbr.rel (0) target = $region80
          $region79: #{tpu_custom_call.1} parent=75 // pred_region
            // Predicated region
            $region81: #{tpu_custom_call.1} parent=79 // pred_check
              _
            $region82: #{tpu_custom_call.1} parent=79 // pred_check_branch
              %437 = sbr.rel (0) target = $region84
            $region83: #{tpu_custom_call.1} parent=79 // pred_region
              // Predicated region
              $region96: #{tpu_custom_call.1} parent=83 // pred_check
                _
              $region97: #{tpu_custom_call.1} parent=83 // pred_check_branch
                %707 = sbr.rel (0) target = $region99
              $region98: #{tpu_custom_call.1} parent=83 // pred_region
                loop: start=0, step=1, limit=1
                $region100: #{tpu_custom_call.1} parent=98 // loop_pre_header
                  _
                $region101: #{tpu_custom_call.1} parent=98 // loop_header
                  %s709 = sphi 0, %s713
                  %p710 = scmp.ge.s32.totalorder %s709, 1
                  %s714 = sphi %s433, %s433
                  %s715 = sphi %s430, %s430
                $region102: #{tpu_custom_call.1} parent=98 // loop_header_branch
                  %712 = sbr.rel (%p710) target = $region106
                $region103: #{tpu_custom_call.1} parent=98 // loop_body
                  %v716 = vld [vmem:[%s714] sm:$0xff]
                  %717 = vst [vmem:[%s715] sm:$0xff] %v716
                  %v718 = vld [vmem:[%s714 + $0x8] sm:$0xff]
                  %719 = vst [vmem:[%s715 + $0x8] sm:$0xff] %v718
                  %v720 = vld [vmem:[%s714 + $0x10] sm:$0xff]
                  %721 = vst [vmem:[%s715 + $0x10] sm:$0xff] %v720
                  %v722 = vld [vmem:[%s714 + $0x18] sm:$0xff]
                  %723 = vst [vmem:[%s715 + $0x18] sm:$0xff] %v722
                  %v724 = vld [vmem:[%s714 + $0x20] sm:$0xff]
                  %725 = vst [vmem:[%s715 + $0x20] sm:$0xff] %v724
                  %v726 = vld [vmem:[%s714 + $0x28] sm:$0xff]
                  %727 = vst [vmem:[%s715 + $0x28] sm:$0xff] %v726
                  %v728 = vld [vmem:[%s714 + $0x30] sm:$0xff]
                  %729 = vst [vmem:[%s715 + $0x30] sm:$0xff] %v728
                  %v730 = vld [vmem:[%s714 + $0x38] sm:$0xff]
                  %731 = vst [vmem:[%s715 + $0x38] sm:$0xff] %v730
                  %v732 = vld [vmem:[%s714 + $0x40] sm:$0xff]
                  %733 = vst [vmem:[%s715 + $0x40] sm:$0xff] %v732
                  %v734 = vld [vmem:[%s714 + $0x48] sm:$0xff]
                  %735 = vst [vmem:[%s715 + $0x48] sm:$0xff] %v734
                  %v736 = vld [vmem:[%s714 + $0x50] sm:$0xff]
                  %737 = vst [vmem:[%s715 + $0x50] sm:$0xff] %v736
                  %v738 = vld [vmem:[%s714 + $0x58] sm:$0xff]
                  %739 = vst [vmem:[%s715 + $0x58] sm:$0xff] %v738
                  %v740 = vld [vmem:[%s714 + $0x60] sm:$0xff]
                  %741 = vst [vmem:[%s715 + $0x60] sm:$0xff] %v740
                  %v742 = vld [vmem:[%s714 + $0x68] sm:$0xff]
                  %743 = vst [vmem:[%s715 + $0x68] sm:$0xff] %v742
                  %v744 = vld [vmem:[%s714 + $0x70] sm:$0xff]
                  %745 = vst [vmem:[%s715 + $0x70] sm:$0xff] %v744
                  %v746 = vld [vmem:[%s714 + $0x78] sm:$0xff]
                  %747 = vst [vmem:[%s715 + $0x78] sm:$0xff] %v746
                  %v748 = vld [vmem:[%s714 + $0x80] sm:$0xff]
                  %749 = vst [vmem:[%s715 + $0x80] sm:$0xff] %v748
                  %v750 = vld [vmem:[%s714 + $0x88] sm:$0xff]
                  %751 = vst [vmem:[%s715 + $0x88] sm:$0xff] %v750
                  %v752 = vld [vmem:[%s714 + $0x90] sm:$0xff]
                  %753 = vst [vmem:[%s715 + $0x90] sm:$0xff] %v752
                  %v754 = vld [vmem:[%s714 + $0x98] sm:$0xff]
                  %755 = vst [vmem:[%s715 + $0x98] sm:$0xff] %v754
                  %v756 = vld [vmem:[%s714 + $0xa0] sm:$0xff]
                  %757 = vst [vmem:[%s715 + $0xa0] sm:$0xff] %v756
                  %v758 = vld [vmem:[%s714 + $0xa8] sm:$0xff]
                  %759 = vst [vmem:[%s715 + $0xa8] sm:$0xff] %v758
                  %v760 = vld [vmem:[%s714 + $0xb0] sm:$0xff]
                  %761 = vst [vmem:[%s715 + $0xb0] sm:$0xff] %v760
                  %v762 = vld [vmem:[%s714 + $0xb8] sm:$0xff]
                  %763 = vst [vmem:[%s715 + $0xb8] sm:$0xff] %v762
                  %v764 = vld [vmem:[%s714 + $0xc0] sm:$0xff]
                  %765 = vst [vmem:[%s715 + $0xc0] sm:$0xff] %v764
                  %v766 = vld [vmem:[%s714 + $0xc8] sm:$0xff]
                  %767 = vst [vmem:[%s715 + $0xc8] sm:$0xff] %v766
                  %v768 = vld [vmem:[%s714 + $0xd0] sm:$0xff]
                  %769 = vst [vmem:[%s715 + $0xd0] sm:$0xff] %v768
                  %v770 = vld [vmem:[%s714 + $0xd8] sm:$0xff]
                  %771 = vst [vmem:[%s715 + $0xd8] sm:$0xff] %v770
                  %v772 = vld [vmem:[%s714 + $0xe0] sm:$0xff]
                  %773 = vst [vmem:[%s715 + $0xe0] sm:$0xff] %v772
                  %v774 = vld [vmem:[%s714 + $0xe8] sm:$0xff]
                  %775 = vst [vmem:[%s715 + $0xe8] sm:$0xff] %v774
                  %v776 = vld [vmem:[%s714 + $0xf0] sm:$0xff]
                  %777 = vst [vmem:[%s715 + $0xf0] sm:$0xff] %v776
                  %v778 = vld [vmem:[%s714 + $0xf8] sm:$0xff]
                  %779 = vst [vmem:[%s715 + $0xf8] sm:$0xff] %v778
                  %v780 = vld [vmem:[%s714 + $0x100] sm:$0xff]
                  %781 = vst [vmem:[%s715 + $0x100] sm:$0xff] %v780
                  %v782 = vld [vmem:[%s714 + $0x108] sm:$0xff]
                  %783 = vst [vmem:[%s715 + $0x108] sm:$0xff] %v782
                  %v784 = vld [vmem:[%s714 + $0x110] sm:$0xff]
                  %785 = vst [vmem:[%s715 + $0x110] sm:$0xff] %v784
                  %v786 = vld [vmem:[%s714 + $0x118] sm:$0xff]
                  %787 = vst [vmem:[%s715 + $0x118] sm:$0xff] %v786
                  %v788 = vld [vmem:[%s714 + $0x120] sm:$0xff]
                  %789 = vst [vmem:[%s715 + $0x120] sm:$0xff] %v788
                  %v790 = vld [vmem:[%s714 + $0x128] sm:$0xff]
                  %791 = vst [vmem:[%s715 + $0x128] sm:$0xff] %v790
                  %v792 = vld [vmem:[%s714 + $0x130] sm:$0xff]
                  %793 = vst [vmem:[%s715 + $0x130] sm:$0xff] %v792
                  %v794 = vld [vmem:[%s714 + $0x138] sm:$0xff]
                  %795 = vst [vmem:[%s715 + $0x138] sm:$0xff] %v794
                  %v796 = vld [vmem:[%s714 + $0x140] sm:$0xff]
                  %797 = vst [vmem:[%s715 + $0x140] sm:$0xff] %v796
                  %v798 = vld [vmem:[%s714 + $0x148] sm:$0xff]
                  %799 = vst [vmem:[%s715 + $0x148] sm:$0xff] %v798
                  %v800 = vld [vmem:[%s714 + $0x150] sm:$0xff]
                  %801 = vst [vmem:[%s715 + $0x150] sm:$0xff] %v800
                  %v802 = vld [vmem:[%s714 + $0x158] sm:$0xff]
                  %803 = vst [vmem:[%s715 + $0x158] sm:$0xff] %v802
                  %v804 = vld [vmem:[%s714 + $0x160] sm:$0xff]
                  %805 = vst [vmem:[%s715 + $0x160] sm:$0xff] %v804
                  %v806 = vld [vmem:[%s714 + $0x168] sm:$0xff]
                  %807 = vst [vmem:[%s715 + $0x168] sm:$0xff] %v806
                  %v808 = vld [vmem:[%s714 + $0x170] sm:$0xff]
                  %809 = vst [vmem:[%s715 + $0x170] sm:$0xff] %v808
                  %v810 = vld [vmem:[%s714 + $0x178] sm:$0xff]
                  %811 = vst [vmem:[%s715 + $0x178] sm:$0xff] %v810
                  %v812 = vld [vmem:[%s714 + $0x180] sm:$0xff]
                  %813 = vst [vmem:[%s715 + $0x180] sm:$0xff] %v812
                  %v814 = vld [vmem:[%s714 + $0x188] sm:$0xff]
                  %815 = vst [vmem:[%s715 + $0x188] sm:$0xff] %v814
                  %v816 = vld [vmem:[%s714 + $0x190] sm:$0xff]
                  %817 = vst [vmem:[%s715 + $0x190] sm:$0xff] %v816
                  %v818 = vld [vmem:[%s714 + $0x198] sm:$0xff]
                  %819 = vst [vmem:[%s715 + $0x198] sm:$0xff] %v818
                  %v820 = vld [vmem:[%s714 + $0x1a0] sm:$0xff]
                  %821 = vst [vmem:[%s715 + $0x1a0] sm:$0xff] %v820
                  %v822 = vld [vmem:[%s714 + $0x1a8] sm:$0xff]
                  %823 = vst [vmem:[%s715 + $0x1a8] sm:$0xff] %v822
                  %v824 = vld [vmem:[%s714 + $0x1b0] sm:$0xff]
                  %825 = vst [vmem:[%s715 + $0x1b0] sm:$0xff] %v824
                  %v826 = vld [vmem:[%s714 + $0x1b8] sm:$0xff]
                  %827 = vst [vmem:[%s715 + $0x1b8] sm:$0xff] %v826
                  %v828 = vld [vmem:[%s714 + $0x1c0] sm:$0xff]
                  %829 = vst [vmem:[%s715 + $0x1c0] sm:$0xff] %v828
                  %v830 = vld [vmem:[%s714 + $0x1c8] sm:$0xff]
                  %831 = vst [vmem:[%s715 + $0x1c8] sm:$0xff] %v830
                  %v832 = vld [vmem:[%s714 + $0x1d0] sm:$0xff]
                  %833 = vst [vmem:[%s715 + $0x1d0] sm:$0xff] %v832
                  %v834 = vld [vmem:[%s714 + $0x1d8] sm:$0xff]
                  %835 = vst [vmem:[%s715 + $0x1d8] sm:$0xff] %v834
                  %v836 = vld [vmem:[%s714 + $0x1e0] sm:$0xff]
                  %837 = vst [vmem:[%s715 + $0x1e0] sm:$0xff] %v836
                  %v838 = vld [vmem:[%s714 + $0x1e8] sm:$0xff]
                  %839 = vst [vmem:[%s715 + $0x1e8] sm:$0xff] %v838
                  %v840 = vld [vmem:[%s714 + $0x1f0] sm:$0xff]
                  %841 = vst [vmem:[%s715 + $0x1f0] sm:$0xff] %v840
                  %v842 = vld [vmem:[%s714 + $0x1f8] sm:$0xff]
                  %843 = vst [vmem:[%s715 + $0x1f8] sm:$0xff] %v842
                  %v844 = vld [vmem:[%s714 + $0x800] sm:$0xff]
                  %845 = vst [vmem:[%s715 + $0x200] sm:$0xff] %v844
                  %v846 = vld [vmem:[%s714 + $0x808] sm:$0xff]
                  %847 = vst [vmem:[%s715 + $0x208] sm:$0xff] %v846
                  %v848 = vld [vmem:[%s714 + $0x810] sm:$0xff]
                  %849 = vst [vmem:[%s715 + $0x210] sm:$0xff] %v848
                  %v850 = vld [vmem:[%s714 + $0x818] sm:$0xff]
                  %851 = vst [vmem:[%s715 + $0x218] sm:$0xff] %v850
                  %v852 = vld [vmem:[%s714 + $0x820] sm:$0xff]
                  %853 = vst [vmem:[%s715 + $0x220] sm:$0xff] %v852
                  %v854 = vld [vmem:[%s714 + $0x828] sm:$0xff]
                  %855 = vst [vmem:[%s715 + $0x228] sm:$0xff] %v854
                  %v856 = vld [vmem:[%s714 + $0x830] sm:$0xff]
                  %857 = vst [vmem:[%s715 + $0x230] sm:$0xff] %v856
                  %v858 = vld [vmem:[%s714 + $0x838] sm:$0xff]
                  %859 = vst [vmem:[%s715 + $0x238] sm:$0xff] %v858
                  %v860 = vld [vmem:[%s714 + $0x840] sm:$0xff]
                  %861 = vst [vmem:[%s715 + $0x240] sm:$0xff] %v860
                  %v862 = vld [vmem:[%s714 + $0x848] sm:$0xff]
                  %863 = vst [vmem:[%s715 + $0x248] sm:$0xff] %v862
                  %v864 = vld [vmem:[%s714 + $0x850] sm:$0xff]
                  %865 = vst [vmem:[%s715 + $0x250] sm:$0xff] %v864
                  %v866 = vld [vmem:[%s714 + $0x858] sm:$0xff]
                  %867 = vst [vmem:[%s715 + $0x258] sm:$0xff] %v866
                  %v868 = vld [vmem:[%s714 + $0x860] sm:$0xff]
                  %869 = vst [vmem:[%s715 + $0x260] sm:$0xff] %v868
                  %v870 = vld [vmem:[%s714 + $0x868] sm:$0xff]
                  %871 = vst [vmem:[%s715 + $0x268] sm:$0xff] %v870
                  %v872 = vld [vmem:[%s714 + $0x870] sm:$0xff]
                  %873 = vst [vmem:[%s715 + $0x270] sm:$0xff] %v872
                  %v874 = vld [vmem:[%s714 + $0x878] sm:$0xff]
                  %875 = vst [vmem:[%s715 + $0x278] sm:$0xff] %v874
                  %v876 = vld [vmem:[%s714 + $0x880] sm:$0xff]
                  %877 = vst [vmem:[%s715 + $0x280] sm:$0xff] %v876
                  %v878 = vld [vmem:[%s714 + $0x888] sm:$0xff]
                  %879 = vst [vmem:[%s715 + $0x288] sm:$0xff] %v878
                  %v880 = vld [vmem:[%s714 + $0x890] sm:$0xff]
                  %881 = vst [vmem:[%s715 + $0x290] sm:$0xff] %v880
                  %v882 = vld [vmem:[%s714 + $0x898] sm:$0xff]
                  %883 = vst [vmem:[%s715 + $0x298] sm:$0xff] %v882
                  %v884 = vld [vmem:[%s714 + $0x8a0] sm:$0xff]
                  %885 = vst [vmem:[%s715 + $0x2a0] sm:$0xff] %v884
                  %v886 = vld [vmem:[%s714 + $0x8a8] sm:$0xff]
                  %887 = vst [vmem:[%s715 + $0x2a8] sm:$0xff] %v886
                  %v888 = vld [vmem:[%s714 + $0x8b0] sm:$0xff]
                  %889 = vst [vmem:[%s715 + $0x2b0] sm:$0xff] %v888
                  %v890 = vld [vmem:[%s714 + $0x8b8] sm:$0xff]
                  %891 = vst [vmem:[%s715 + $0x2b8] sm:$0xff] %v890
                  %v892 = vld [vmem:[%s714 + $0x8c0] sm:$0xff]
                  %893 = vst [vmem:[%s715 + $0x2c0] sm:$0xff] %v892
                  %v894 = vld [vmem:[%s714 + $0x8c8] sm:$0xff]
                  %895 = vst [vmem:[%s715 + $0x2c8] sm:$0xff] %v894
                  %v896 = vld [vmem:[%s714 + $0x8d0] sm:$0xff]
                  %897 = vst [vmem:[%s715 + $0x2d0] sm:$0xff] %v896
                  %v898 = vld [vmem:[%s714 + $0x8d8] sm:$0xff]
                  %899 = vst [vmem:[%s715 + $0x2d8] sm:$0xff] %v898
                  %v900 = vld [vmem:[%s714 + $0x8e0] sm:$0xff]
                  %901 = vst [vmem:[%s715 + $0x2e0] sm:$0xff] %v900
                  %v902 = vld [vmem:[%s714 + $0x8e8] sm:$0xff]
                  %903 = vst [vmem:[%s715 + $0x2e8] sm:$0xff] %v902
                  %v904 = vld [vmem:[%s714 + $0x8f0] sm:$0xff]
                  %905 = vst [vmem:[%s715 + $0x2f0] sm:$0xff] %v904
                  %v906 = vld [vmem:[%s714 + $0x8f8] sm:$0xff]
                  %907 = vst [vmem:[%s715 + $0x2f8] sm:$0xff] %v906
                  %v908 = vld [vmem:[%s714 + $0x900] sm:$0xff]
                  %909 = vst [vmem:[%s715 + $0x300] sm:$0xff] %v908
                  %v910 = vld [vmem:[%s714 + $0x908] sm:$0xff]
                  %911 = vst [vmem:[%s715 + $0x308] sm:$0xff] %v910
                  %v912 = vld [vmem:[%s714 + $0x910] sm:$0xff]
                  %913 = vst [vmem:[%s715 + $0x310] sm:$0xff] %v912
                  %v914 = vld [vmem:[%s714 + $0x918] sm:$0xff]
                  %915 = vst [vmem:[%s715 + $0x318] sm:$0xff] %v914
                  %v916 = vld [vmem:[%s714 + $0x920] sm:$0xff]
                  %917 = vst [vmem:[%s715 + $0x320] sm:$0xff] %v916
                  %v918 = vld [vmem:[%s714 + $0x928] sm:$0xff]
                  %919 = vst [vmem:[%s715 + $0x328] sm:$0xff] %v918
                  %v920 = vld [vmem:[%s714 + $0x930] sm:$0xff]
                  %921 = vst [vmem:[%s715 + $0x330] sm:$0xff] %v920
                  %v922 = vld [vmem:[%s714 + $0x938] sm:$0xff]
                  %923 = vst [vmem:[%s715 + $0x338] sm:$0xff] %v922
                  %v924 = vld [vmem:[%s714 + $0x940] sm:$0xff]
                  %925 = vst [vmem:[%s715 + $0x340] sm:$0xff] %v924
                  %v926 = vld [vmem:[%s714 + $0x948] sm:$0xff]
                  %927 = vst [vmem:[%s715 + $0x348] sm:$0xff] %v926
                  %v928 = vld [vmem:[%s714 + $0x950] sm:$0xff]
                  %929 = vst [vmem:[%s715 + $0x350] sm:$0xff] %v928
                  %v930 = vld [vmem:[%s714 + $0x958] sm:$0xff]
                  %931 = vst [vmem:[%s715 + $0x358] sm:$0xff] %v930
                  %v932 = vld [vmem:[%s714 + $0x960] sm:$0xff]
                  %933 = vst [vmem:[%s715 + $0x360] sm:$0xff] %v932
                  %v934 = vld [vmem:[%s714 + $0x968] sm:$0xff]
                  %935 = vst [vmem:[%s715 + $0x368] sm:$0xff] %v934
                  %v936 = vld [vmem:[%s714 + $0x970] sm:$0xff]
                  %937 = vst [vmem:[%s715 + $0x370] sm:$0xff] %v936
                  %v938 = vld [vmem:[%s714 + $0x978] sm:$0xff]
                  %939 = vst [vmem:[%s715 + $0x378] sm:$0xff] %v938
                  %v940 = vld [vmem:[%s714 + $0x980] sm:$0xff]
                  %941 = vst [vmem:[%s715 + $0x380] sm:$0xff] %v940
                  %v942 = vld [vmem:[%s714 + $0x988] sm:$0xff]
                  %943 = vst [vmem:[%s715 + $0x388] sm:$0xff] %v942
                  %v944 = vld [vmem:[%s714 + $0x990] sm:$0xff]
                  %945 = vst [vmem:[%s715 + $0x390] sm:$0xff] %v944
                  %v946 = vld [vmem:[%s714 + $0x998] sm:$0xff]
                  %947 = vst [vmem:[%s715 + $0x398] sm:$0xff] %v946
                  %v948 = vld [vmem:[%s714 + $0x9a0] sm:$0xff]
                  %949 = vst [vmem:[%s715 + $0x3a0] sm:$0xff] %v948
                  %v950 = vld [vmem:[%s714 + $0x9a8] sm:$0xff]
                  %951 = vst [vmem:[%s715 + $0x3a8] sm:$0xff] %v950
                  %v952 = vld [vmem:[%s714 + $0x9b0] sm:$0xff]
                  %953 = vst [vmem:[%s715 + $0x3b0] sm:$0xff] %v952
                  %v954 = vld [vmem:[%s714 + $0x9b8] sm:$0xff]
                  %955 = vst [vmem:[%s715 + $0x3b8] sm:$0xff] %v954
                  %v956 = vld [vmem:[%s714 + $0x9c0] sm:$0xff]
                  %957 = vst [vmem:[%s715 + $0x3c0] sm:$0xff] %v956
                  %v958 = vld [vmem:[%s714 + $0x9c8] sm:$0xff]
                  %959 = vst [vmem:[%s715 + $0x3c8] sm:$0xff] %v958
                  %v960 = vld [vmem:[%s714 + $0x9d0] sm:$0xff]
                  %961 = vst [vmem:[%s715 + $0x3d0] sm:$0xff] %v960
                  %v962 = vld [vmem:[%s714 + $0x9d8] sm:$0xff]
                  %963 = vst [vmem:[%s715 + $0x3d8] sm:$0xff] %v962
                  %v964 = vld [vmem:[%s714 + $0x9e0] sm:$0xff]
                  %965 = vst [vmem:[%s715 + $0x3e0] sm:$0xff] %v964
                  %v966 = vld [vmem:[%s714 + $0x9e8] sm:$0xff]
                  %967 = vst [vmem:[%s715 + $0x3e8] sm:$0xff] %v966
                  %v968 = vld [vmem:[%s714 + $0x9f0] sm:$0xff]
                  %969 = vst [vmem:[%s715 + $0x3f0] sm:$0xff] %v968
                  %v970 = vld [vmem:[%s714 + $0x9f8] sm:$0xff]
                  %971 = vst [vmem:[%s715 + $0x3f8] sm:$0xff] %v970
                $region104: #{tpu_custom_call.1} parent=98 // loop_footer
                  %s713 = sadd.s32 1, %s709
                $region105: #{tpu_custom_call.1} parent=98 // loop_footer_branch
                  %708 = sbr.rel target = $region101
                $region106: #{tpu_custom_call.1} parent=98 // loop_exit
                  _
              $region99: #{tpu_custom_call.1} parent=83 // pred_fallthru
                _
              // Predicated region
              $region107: #{tpu_custom_call.1} parent=83 // pred_check
                _
              $region108: #{tpu_custom_call.1} parent=83 // pred_check_branch
                %973 = sbr.rel target = $region110
              $region109: #{tpu_custom_call.1} parent=83 // pred_region
                _
              $region110: #{tpu_custom_call.1} parent=83 // pred_fallthru
                _
            $region84: #{tpu_custom_call.1} parent=79 // pred_fallthru
              _
            // Predicated region
            $region85: #{tpu_custom_call.1} parent=79 // pred_check
              _
            $region86: #{tpu_custom_call.1} parent=79 // pred_check_branch
              %439 = sbr.rel target = $region88
            $region87: #{tpu_custom_call.1} parent=79 // pred_region
              %s441 = ssub.s32 256, 1
              loop: start=0, step=1, limit=1
              $region89: #{tpu_custom_call.1} parent=87 // loop_pre_header
                _
              $region90: #{tpu_custom_call.1} parent=87 // loop_header
                %s443 = sphi 0, %s447
                %p444 = scmp.ge.s32.totalorder %s443, 1
                %s448 = sphi %s433, %s433
                %s449 = sphi %s430, %s430
              $region91: #{tpu_custom_call.1} parent=87 // loop_header_branch
                %446 = sbr.rel (%p444) target = $region95
              $region92: #{tpu_custom_call.1} parent=87 // loop_body
                %v450 = vld [vmem:[%s448] sm:%s441]
                %451 = vst [vmem:[%s449] sm:%s441] %v450
                %v452 = vld [vmem:[%s448 + $0x8] sm:%s441]
                %453 = vst [vmem:[%s449 + $0x8] sm:%s441] %v452
                %v454 = vld [vmem:[%s448 + $0x10] sm:%s441]
                %455 = vst [vmem:[%s449 + $0x10] sm:%s441] %v454
                %v456 = vld [vmem:[%s448 + $0x18] sm:%s441]
                %457 = vst [vmem:[%s449 + $0x18] sm:%s441] %v456
                %v458 = vld [vmem:[%s448 + $0x20] sm:%s441]
                %459 = vst [vmem:[%s449 + $0x20] sm:%s441] %v458
                %v460 = vld [vmem:[%s448 + $0x28] sm:%s441]
                %461 = vst [vmem:[%s449 + $0x28] sm:%s441] %v460
                %v462 = vld [vmem:[%s448 + $0x30] sm:%s441]
                %463 = vst [vmem:[%s449 + $0x30] sm:%s441] %v462
                %v464 = vld [vmem:[%s448 + $0x38] sm:%s441]
                %465 = vst [vmem:[%s449 + $0x38] sm:%s441] %v464
                %v466 = vld [vmem:[%s448 + $0x40] sm:%s441]
                %467 = vst [vmem:[%s449 + $0x40] sm:%s441] %v466
                %v468 = vld [vmem:[%s448 + $0x48] sm:%s441]
                %469 = vst [vmem:[%s449 + $0x48] sm:%s441] %v468
                %v470 = vld [vmem:[%s448 + $0x50] sm:%s441]
                %471 = vst [vmem:[%s449 + $0x50] sm:%s441] %v470
                %v472 = vld [vmem:[%s448 + $0x58] sm:%s441]
                %473 = vst [vmem:[%s449 + $0x58] sm:%s441] %v472
                %v474 = vld [vmem:[%s448 + $0x60] sm:%s441]
                %475 = vst [vmem:[%s449 + $0x60] sm:%s441] %v474
                %v476 = vld [vmem:[%s448 + $0x68] sm:%s441]
                %477 = vst [vmem:[%s449 + $0x68] sm:%s441] %v476
                %v478 = vld [vmem:[%s448 + $0x70] sm:%s441]
                %479 = vst [vmem:[%s449 + $0x70] sm:%s441] %v478
                %v480 = vld [vmem:[%s448 + $0x78] sm:%s441]
                %481 = vst [vmem:[%s449 + $0x78] sm:%s441] %v480
                %v482 = vld [vmem:[%s448 + $0x80] sm:%s441]
                %483 = vst [vmem:[%s449 + $0x80] sm:%s441] %v482
                %v484 = vld [vmem:[%s448 + $0x88] sm:%s441]
                %485 = vst [vmem:[%s449 + $0x88] sm:%s441] %v484
                %v486 = vld [vmem:[%s448 + $0x90] sm:%s441]
                %487 = vst [vmem:[%s449 + $0x90] sm:%s441] %v486
                %v488 = vld [vmem:[%s448 + $0x98] sm:%s441]
                %489 = vst [vmem:[%s449 + $0x98] sm:%s441] %v488
                %v490 = vld [vmem:[%s448 + $0xa0] sm:%s441]
                %491 = vst [vmem:[%s449 + $0xa0] sm:%s441] %v490
                %v492 = vld [vmem:[%s448 + $0xa8] sm:%s441]
                %493 = vst [vmem:[%s449 + $0xa8] sm:%s441] %v492
                %v494 = vld [vmem:[%s448 + $0xb0] sm:%s441]
                %495 = vst [vmem:[%s449 + $0xb0] sm:%s441] %v494
                %v496 = vld [vmem:[%s448 + $0xb8] sm:%s441]
                %497 = vst [vmem:[%s449 + $0xb8] sm:%s441] %v496
                %v498 = vld [vmem:[%s448 + $0xc0] sm:%s441]
                %499 = vst [vmem:[%s449 + $0xc0] sm:%s441] %v498
                %v500 = vld [vmem:[%s448 + $0xc8] sm:%s441]
                %501 = vst [vmem:[%s449 + $0xc8] sm:%s441] %v500
                %v502 = vld [vmem:[%s448 + $0xd0] sm:%s441]
                %503 = vst [vmem:[%s449 + $0xd0] sm:%s441] %v502
                %v504 = vld [vmem:[%s448 + $0xd8] sm:%s441]
                %505 = vst [vmem:[%s449 + $0xd8] sm:%s441] %v504
                %v506 = vld [vmem:[%s448 + $0xe0] sm:%s441]
                %507 = vst [vmem:[%s449 + $0xe0] sm:%s441] %v506
                %v508 = vld [vmem:[%s448 + $0xe8] sm:%s441]
                %509 = vst [vmem:[%s449 + $0xe8] sm:%s441] %v508
                %v510 = vld [vmem:[%s448 + $0xf0] sm:%s441]
                %511 = vst [vmem:[%s449 + $0xf0] sm:%s441] %v510
                %v512 = vld [vmem:[%s448 + $0xf8] sm:%s441]
                %513 = vst [vmem:[%s449 + $0xf8] sm:%s441] %v512
                %v514 = vld [vmem:[%s448 + $0x100] sm:%s441]
                %515 = vst [vmem:[%s449 + $0x100] sm:%s441] %v514
                %v516 = vld [vmem:[%s448 + $0x108] sm:%s441]
                %517 = vst [vmem:[%s449 + $0x108] sm:%s441] %v516
                %v518 = vld [vmem:[%s448 + $0x110] sm:%s441]
                %519 = vst [vmem:[%s449 + $0x110] sm:%s441] %v518
                %v520 = vld [vmem:[%s448 + $0x118] sm:%s441]
                %521 = vst [vmem:[%s449 + $0x118] sm:%s441] %v520
                %v522 = vld [vmem:[%s448 + $0x120] sm:%s441]
                %523 = vst [vmem:[%s449 + $0x120] sm:%s441] %v522
                %v524 = vld [vmem:[%s448 + $0x128] sm:%s441]
                %525 = vst [vmem:[%s449 + $0x128] sm:%s441] %v524
                %v526 = vld [vmem:[%s448 + $0x130] sm:%s441]
                %527 = vst [vmem:[%s449 + $0x130] sm:%s441] %v526
                %v528 = vld [vmem:[%s448 + $0x138] sm:%s441]
                %529 = vst [vmem:[%s449 + $0x138] sm:%s441] %v528
                %v530 = vld [vmem:[%s448 + $0x140] sm:%s441]
                %531 = vst [vmem:[%s449 + $0x140] sm:%s441] %v530
                %v532 = vld [vmem:[%s448 + $0x148] sm:%s441]
                %533 = vst [vmem:[%s449 + $0x148] sm:%s441] %v532
                %v534 = vld [vmem:[%s448 + $0x150] sm:%s441]
                %535 = vst [vmem:[%s449 + $0x150] sm:%s441] %v534
                %v536 = vld [vmem:[%s448 + $0x158] sm:%s441]
                %537 = vst [vmem:[%s449 + $0x158] sm:%s441] %v536
                %v538 = vld [vmem:[%s448 + $0x160] sm:%s441]
                %539 = vst [vmem:[%s449 + $0x160] sm:%s441] %v538
                %v540 = vld [vmem:[%s448 + $0x168] sm:%s441]
                %541 = vst [vmem:[%s449 + $0x168] sm:%s441] %v540
                %v542 = vld [vmem:[%s448 + $0x170] sm:%s441]
                %543 = vst [vmem:[%s449 + $0x170] sm:%s441] %v542
                %v544 = vld [vmem:[%s448 + $0x178] sm:%s441]
                %545 = vst [vmem:[%s449 + $0x178] sm:%s441] %v544
                %v546 = vld [vmem:[%s448 + $0x180] sm:%s441]
                %547 = vst [vmem:[%s449 + $0x180] sm:%s441] %v546
                %v548 = vld [vmem:[%s448 + $0x188] sm:%s441]
                %549 = vst [vmem:[%s449 + $0x188] sm:%s441] %v548
                %v550 = vld [vmem:[%s448 + $0x190] sm:%s441]
                %551 = vst [vmem:[%s449 + $0x190] sm:%s441] %v550
                %v552 = vld [vmem:[%s448 + $0x198] sm:%s441]
                %553 = vst [vmem:[%s449 + $0x198] sm:%s441] %v552
                %v554 = vld [vmem:[%s448 + $0x1a0] sm:%s441]
                %555 = vst [vmem:[%s449 + $0x1a0] sm:%s441] %v554
                %v556 = vld [vmem:[%s448 + $0x1a8] sm:%s441]
                %557 = vst [vmem:[%s449 + $0x1a8] sm:%s441] %v556
                %v558 = vld [vmem:[%s448 + $0x1b0] sm:%s441]
                %559 = vst [vmem:[%s449 + $0x1b0] sm:%s441] %v558
                %v560 = vld [vmem:[%s448 + $0x1b8] sm:%s441]
                %561 = vst [vmem:[%s449 + $0x1b8] sm:%s441] %v560
                %v562 = vld [vmem:[%s448 + $0x1c0] sm:%s441]
                %563 = vst [vmem:[%s449 + $0x1c0] sm:%s441] %v562
                %v564 = vld [vmem:[%s448 + $0x1c8] sm:%s441]
                %565 = vst [vmem:[%s449 + $0x1c8] sm:%s441] %v564
                %v566 = vld [vmem:[%s448 + $0x1d0] sm:%s441]
                %567 = vst [vmem:[%s449 + $0x1d0] sm:%s441] %v566
                %v568 = vld [vmem:[%s448 + $0x1d8] sm:%s441]
                %569 = vst [vmem:[%s449 + $0x1d8] sm:%s441] %v568
                %v570 = vld [vmem:[%s448 + $0x1e0] sm:%s441]
                %571 = vst [vmem:[%s449 + $0x1e0] sm:%s441] %v570
                %v572 = vld [vmem:[%s448 + $0x1e8] sm:%s441]
                %573 = vst [vmem:[%s449 + $0x1e8] sm:%s441] %v572
                %v574 = vld [vmem:[%s448 + $0x1f0] sm:%s441]
                %575 = vst [vmem:[%s449 + $0x1f0] sm:%s441] %v574
                %v576 = vld [vmem:[%s448 + $0x1f8] sm:%s441]
                %577 = vst [vmem:[%s449 + $0x1f8] sm:%s441] %v576
                %v578 = vld [vmem:[%s448 + $0x800] sm:%s441]
                %579 = vst [vmem:[%s449 + $0x200] sm:%s441] %v578
                %v580 = vld [vmem:[%s448 + $0x808] sm:%s441]
                %581 = vst [vmem:[%s449 + $0x208] sm:%s441] %v580
                %v582 = vld [vmem:[%s448 + $0x810] sm:%s441]
                %583 = vst [vmem:[%s449 + $0x210] sm:%s441] %v582
                %v584 = vld [vmem:[%s448 + $0x818] sm:%s441]
                %585 = vst [vmem:[%s449 + $0x218] sm:%s441] %v584
                %v586 = vld [vmem:[%s448 + $0x820] sm:%s441]
                %587 = vst [vmem:[%s449 + $0x220] sm:%s441] %v586
                %v588 = vld [vmem:[%s448 + $0x828] sm:%s441]
                %589 = vst [vmem:[%s449 + $0x228] sm:%s441] %v588
                %v590 = vld [vmem:[%s448 + $0x830] sm:%s441]
                %591 = vst [vmem:[%s449 + $0x230] sm:%s441] %v590
                %v592 = vld [vmem:[%s448 + $0x838] sm:%s441]
                %593 = vst [vmem:[%s449 + $0x238] sm:%s441] %v592
                %v594 = vld [vmem:[%s448 + $0x840] sm:%s441]
                %595 = vst [vmem:[%s449 + $0x240] sm:%s441] %v594
                %v596 = vld [vmem:[%s448 + $0x848] sm:%s441]
                %597 = vst [vmem:[%s449 + $0x248] sm:%s441] %v596
                %v598 = vld [vmem:[%s448 + $0x850] sm:%s441]
                %599 = vst [vmem:[%s449 + $0x250] sm:%s441] %v598
                %v600 = vld [vmem:[%s448 + $0x858] sm:%s441]
                %601 = vst [vmem:[%s449 + $0x258] sm:%s441] %v600
                %v602 = vld [vmem:[%s448 + $0x860] sm:%s441]
                %603 = vst [vmem:[%s449 + $0x260] sm:%s441] %v602
                %v604 = vld [vmem:[%s448 + $0x868] sm:%s441]
                %605 = vst [vmem:[%s449 + $0x268] sm:%s441] %v604
                %v606 = vld [vmem:[%s448 + $0x870] sm:%s441]
                %607 = vst [vmem:[%s449 + $0x270] sm:%s441] %v606
                %v608 = vld [vmem:[%s448 + $0x878] sm:%s441]
                %609 = vst [vmem:[%s449 + $0x278] sm:%s441] %v608
                %v610 = vld [vmem:[%s448 + $0x880] sm:%s441]
                %611 = vst [vmem:[%s449 + $0x280] sm:%s441] %v610
                %v612 = vld [vmem:[%s448 + $0x888] sm:%s441]
                %613 = vst [vmem:[%s449 + $0x288] sm:%s441] %v612
                %v614 = vld [vmem:[%s448 + $0x890] sm:%s441]
                %615 = vst [vmem:[%s449 + $0x290] sm:%s441] %v614
                %v616 = vld [vmem:[%s448 + $0x898] sm:%s441]
                %617 = vst [vmem:[%s449 + $0x298] sm:%s441] %v616
                %v618 = vld [vmem:[%s448 + $0x8a0] sm:%s441]
                %619 = vst [vmem:[%s449 + $0x2a0] sm:%s441] %v618
                %v620 = vld [vmem:[%s448 + $0x8a8] sm:%s441]
                %621 = vst [vmem:[%s449 + $0x2a8] sm:%s441] %v620
                %v622 = vld [vmem:[%s448 + $0x8b0] sm:%s441]
                %623 = vst [vmem:[%s449 + $0x2b0] sm:%s441] %v622
                %v624 = vld [vmem:[%s448 + $0x8b8] sm:%s441]
                %625 = vst [vmem:[%s449 + $0x2b8] sm:%s441] %v624
                %v626 = vld [vmem:[%s448 + $0x8c0] sm:%s441]
                %627 = vst [vmem:[%s449 + $0x2c0] sm:%s441] %v626
                %v628 = vld [vmem:[%s448 + $0x8c8] sm:%s441]
                %629 = vst [vmem:[%s449 + $0x2c8] sm:%s441] %v628
                %v630 = vld [vmem:[%s448 + $0x8d0] sm:%s441]
                %631 = vst [vmem:[%s449 + $0x2d0] sm:%s441] %v630
                %v632 = vld [vmem:[%s448 + $0x8d8] sm:%s441]
                %633 = vst [vmem:[%s449 + $0x2d8] sm:%s441] %v632
                %v634 = vld [vmem:[%s448 + $0x8e0] sm:%s441]
                %635 = vst [vmem:[%s449 + $0x2e0] sm:%s441] %v634
                %v636 = vld [vmem:[%s448 + $0x8e8] sm:%s441]
                %637 = vst [vmem:[%s449 + $0x2e8] sm:%s441] %v636
                %v638 = vld [vmem:[%s448 + $0x8f0] sm:%s441]
                %639 = vst [vmem:[%s449 + $0x2f0] sm:%s441] %v638
                %v640 = vld [vmem:[%s448 + $0x8f8] sm:%s441]
                %641 = vst [vmem:[%s449 + $0x2f8] sm:%s441] %v640
                %v642 = vld [vmem:[%s448 + $0x900] sm:%s441]
                %643 = vst [vmem:[%s449 + $0x300] sm:%s441] %v642
                %v644 = vld [vmem:[%s448 + $0x908] sm:%s441]
                %645 = vst [vmem:[%s449 + $0x308] sm:%s441] %v644
                %v646 = vld [vmem:[%s448 + $0x910] sm:%s441]
                %647 = vst [vmem:[%s449 + $0x310] sm:%s441] %v646
                %v648 = vld [vmem:[%s448 + $0x918] sm:%s441]
                %649 = vst [vmem:[%s449 + $0x318] sm:%s441] %v648
                %v650 = vld [vmem:[%s448 + $0x920] sm:%s441]
                %651 = vst [vmem:[%s449 + $0x320] sm:%s441] %v650
                %v652 = vld [vmem:[%s448 + $0x928] sm:%s441]
                %653 = vst [vmem:[%s449 + $0x328] sm:%s441] %v652
                %v654 = vld [vmem:[%s448 + $0x930] sm:%s441]
                %655 = vst [vmem:[%s449 + $0x330] sm:%s441] %v654
                %v656 = vld [vmem:[%s448 + $0x938] sm:%s441]
                %657 = vst [vmem:[%s449 + $0x338] sm:%s441] %v656
                %v658 = vld [vmem:[%s448 + $0x940] sm:%s441]
                %659 = vst [vmem:[%s449 + $0x340] sm:%s441] %v658
                %v660 = vld [vmem:[%s448 + $0x948] sm:%s441]
                %661 = vst [vmem:[%s449 + $0x348] sm:%s441] %v660
                %v662 = vld [vmem:[%s448 + $0x950] sm:%s441]
                %663 = vst [vmem:[%s449 + $0x350] sm:%s441] %v662
                %v664 = vld [vmem:[%s448 + $0x958] sm:%s441]
                %665 = vst [vmem:[%s449 + $0x358] sm:%s441] %v664
                %v666 = vld [vmem:[%s448 + $0x960] sm:%s441]
                %667 = vst [vmem:[%s449 + $0x360] sm:%s441] %v666
                %v668 = vld [vmem:[%s448 + $0x968] sm:%s441]
                %669 = vst [vmem:[%s449 + $0x368] sm:%s441] %v668
                %v670 = vld [vmem:[%s448 + $0x970] sm:%s441]
                %671 = vst [vmem:[%s449 + $0x370] sm:%s441] %v670
                %v672 = vld [vmem:[%s448 + $0x978] sm:%s441]
                %673 = vst [vmem:[%s449 + $0x378] sm:%s441] %v672
                %v674 = vld [vmem:[%s448 + $0x980] sm:%s441]
                %675 = vst [vmem:[%s449 + $0x380] sm:%s441] %v674
                %v676 = vld [vmem:[%s448 + $0x988] sm:%s441]
                %677 = vst [vmem:[%s449 + $0x388] sm:%s441] %v676
                %v678 = vld [vmem:[%s448 + $0x990] sm:%s441]
                %679 = vst [vmem:[%s449 + $0x390] sm:%s441] %v678
                %v680 = vld [vmem:[%s448 + $0x998] sm:%s441]
                %681 = vst [vmem:[%s449 + $0x398] sm:%s441] %v680
                %v682 = vld [vmem:[%s448 + $0x9a0] sm:%s441]
                %683 = vst [vmem:[%s449 + $0x3a0] sm:%s441] %v682
                %v684 = vld [vmem:[%s448 + $0x9a8] sm:%s441]
                %685 = vst [vmem:[%s449 + $0x3a8] sm:%s441] %v684
                %v686 = vld [vmem:[%s448 + $0x9b0] sm:%s441]
                %687 = vst [vmem:[%s449 + $0x3b0] sm:%s441] %v686
                %v688 = vld [vmem:[%s448 + $0x9b8] sm:%s441]
                %689 = vst [vmem:[%s449 + $0x3b8] sm:%s441] %v688
                %v690 = vld [vmem:[%s448 + $0x9c0] sm:%s441]
                %691 = vst [vmem:[%s449 + $0x3c0] sm:%s441] %v690
                %v692 = vld [vmem:[%s448 + $0x9c8] sm:%s441]
                %693 = vst [vmem:[%s449 + $0x3c8] sm:%s441] %v692
                %v694 = vld [vmem:[%s448 + $0x9d0] sm:%s441]
                %695 = vst [vmem:[%s449 + $0x3d0] sm:%s441] %v694
                %v696 = vld [vmem:[%s448 + $0x9d8] sm:%s441]
                %697 = vst [vmem:[%s449 + $0x3d8] sm:%s441] %v696
                %v698 = vld [vmem:[%s448 + $0x9e0] sm:%s441]
                %699 = vst [vmem:[%s449 + $0x3e0] sm:%s441] %v698
                %v700 = vld [vmem:[%s448 + $0x9e8] sm:%s441]
                %701 = vst [vmem:[%s449 + $0x3e8] sm:%s441] %v700
                %v702 = vld [vmem:[%s448 + $0x9f0] sm:%s441]
                %703 = vst [vmem:[%s449 + $0x3f0] sm:%s441] %v702
                %v704 = vld [vmem:[%s448 + $0x9f8] sm:%s441]
                %705 = vst [vmem:[%s449 + $0x3f8] sm:%s441] %v704
              $region93: #{tpu_custom_call.1} parent=87 // loop_footer
                %s447 = sadd.s32 1, %s443
              $region94: #{tpu_custom_call.1} parent=87 // loop_footer_branch
                %442 = sbr.rel target = $region90
              $region95: #{tpu_custom_call.1} parent=87 // loop_exit
                _
            $region88: #{tpu_custom_call.1} parent=79 // pred_fallthru
              _
          $region80: #{tpu_custom_call.1} parent=75 // pred_fallthru
            _
          %974 = vnop
        $region76: #{tpu_custom_call.1} parent=71 // pred_fallthru
          _
      $region72: #{tpu_custom_call.1} parent=5 // pred_fallthru
        _
      %p975 = scmp.le.s32.totalorder 1, %s22
      %p976 = scmp.lt.s32.totalorder %s22, 5
      %p977 = pnand %p975, %p976
      %p978 = pneg %p977
      // Predicated region
      $region111: #{tpu_custom_call.1} parent=5 // pred_check
        _
      $region112: #{tpu_custom_call.1} parent=5 // pred_check_branch
        %980 = sbr.rel (%p977) target = $region114
      $region113: #{tpu_custom_call.1} parent=5 // pred_region
        %s981 = ssub.s32 %s22, 1
        %s982 = sand.u32 %s35, 1
        %s983 = sand.u32 %s35, 1
        %s984 = smul.addr %s983, 1024
        %s985 = scalar_lea.vmem [#allocation3], %s984
        // Predicated region
        $region115: #{tpu_custom_call.1} parent=113 // pred_check
          %p986 = pneg %p48
        $region116: #{tpu_custom_call.1} parent=113 // pred_check_branch
          %988 = sbr.rel (%p986) target = $region118
        $region117: #{tpu_custom_call.1} parent=113 // pred_region
          _
        $region118: #{tpu_custom_call.1} parent=113 // pred_fallthru
          _
        %s989 = sand.u32 %s35, 1
        %s990 = sand.u32 %s35, 1
        %s991 = smul.addr %s990, 1024
        %s992 = scalar_lea.vmem [#allocation3], %s991
        %p993 = pneg %p48
        %p994 = pneg %p45
        %p995 = pneg %p69
        %p996 = pneg %p66
        %p997 = pneg %p90
        %p998 = pneg %p87
        %p999 = pneg %p111
        %p1000 = pneg %p108
        %p1001 = pneg %p132
        %p1002 = pneg %p129
        %p1003 = pneg %p153
        %p1004 = pneg %p150
        %p1005 = pneg %p174
        %p1006 = pneg %p171
        %p1007 = pneg %p195
        %p1008 = pneg %p192
        %p1009 = pneg %p216
        %p1010 = pneg %p213
        %p1011 = pneg %p237
        %p1012 = pneg %p234
        %p1013 = pneg %p258
        %p1014 = pneg %p255
        %p1015 = pneg %p279
        %p1016 = pneg %p276
        %p1017 = pneg %p300
        %p1018 = pneg %p297
        %p1019 = pneg %p321
        %p1020 = pneg %p318
        %p1021 = pneg %p342
        %p1022 = pneg %p339
        %p1023 = pneg %p363
        %p1024 = pneg %p360
        %s1025 = smul.u32 64, %s27
        %p1027 = scmp.eq.s32.totalorder %s27, 0
        // Predicated region
        $region119: #{tpu_custom_call.1} parent=113 // pred_check
          %p1028 = pneg %p1027
        $region120: #{tpu_custom_call.1} parent=113 // pred_check_branch
          %1030 = sbr.rel (%p1028) target = $region122
        $region121: #{tpu_custom_call.1} parent=113 // pred_region
          %1031 = vst [vmem:[#allocation2] sm:$0xff] -inf
        $region122: #{tpu_custom_call.1} parent=113 // pred_fallthru
          _
        %v1032 = vld [vmem:[%s985] sm:$0xff]
        %v1033 = vld [vmem:[%s985 + $0x8] sm:$0xff]
        %v1034 = vld [vmem:[%s985 + $0x10] sm:$0xff]
        %v1035 = vld [vmem:[%s985 + $0x18] sm:$0xff]
        %v1036 = vld [vmem:[%s985 + $0x20] sm:$0xff]
        %v1037 = vld [vmem:[%s985 + $0x28] sm:$0xff]
        %v1038 = vld [vmem:[%s985 + $0x30] sm:$0xff]
        %v1039 = vld [vmem:[%s985 + $0x38] sm:$0xff]
        %v1040 = vld [vmem:[%s985 + $0x40] sm:$0xff]
        %v1041 = vld [vmem:[%s985 + $0x48] sm:$0xff]
        %v1042 = vld [vmem:[%s985 + $0x50] sm:$0xff]
        %v1043 = vld [vmem:[%s985 + $0x58] sm:$0xff]
        %v1044 = vld [vmem:[%s985 + $0x60] sm:$0xff]
        %v1045 = vld [vmem:[%s985 + $0x68] sm:$0xff]
        %v1046 = vld [vmem:[%s985 + $0x70] sm:$0xff]
        %v1047 = vld [vmem:[%s985 + $0x78] sm:$0xff]
        %v1048 = vld [vmem:[%s985 + $0x80] sm:$0xff]
        %v1049 = vld [vmem:[%s985 + $0x88] sm:$0xff]
        %v1050 = vld [vmem:[%s985 + $0x90] sm:$0xff]
        %v1051 = vld [vmem:[%s985 + $0x98] sm:$0xff]
        %v1052 = vld [vmem:[%s985 + $0xa0] sm:$0xff]
        %v1053 = vld [vmem:[%s985 + $0xa8] sm:$0xff]
        %v1054 = vld [vmem:[%s985 + $0xb0] sm:$0xff]
        %v1055 = vld [vmem:[%s985 + $0xb8] sm:$0xff]
        %v1056 = vld [vmem:[%s985 + $0xc0] sm:$0xff]
        %v1057 = vld [vmem:[%s985 + $0xc8] sm:$0xff]
        %v1058 = vld [vmem:[%s985 + $0xd0] sm:$0xff]
        %v1059 = vld [vmem:[%s985 + $0xd8] sm:$0xff]
        %v1060 = vld [vmem:[%s985 + $0xe0] sm:$0xff]
        %v1061 = vld [vmem:[%s985 + $0xe8] sm:$0xff]
        %v1062 = vld [vmem:[%s985 + $0xf0] sm:$0xff]
        %v1063 = vld [vmem:[%s985 + $0xf8] sm:$0xff]
        %v1064 = vld [vmem:[%s985 + $0x100] sm:$0xff]
        %v1065 = vld [vmem:[%s985 + $0x108] sm:$0xff]
        %v1066 = vld [vmem:[%s985 + $0x110] sm:$0xff]
        %v1067 = vld [vmem:[%s985 + $0x118] sm:$0xff]
        %v1068 = vld [vmem:[%s985 + $0x120] sm:$0xff]
        %v1069 = vld [vmem:[%s985 + $0x128] sm:$0xff]
        %v1070 = vld [vmem:[%s985 + $0x130] sm:$0xff]
        %v1071 = vld [vmem:[%s985 + $0x138] sm:$0xff]
        %v1072 = vld [vmem:[%s985 + $0x140] sm:$0xff]
        %v1073 = vld [vmem:[%s985 + $0x148] sm:$0xff]
        %v1074 = vld [vmem:[%s985 + $0x150] sm:$0xff]
        %v1075 = vld [vmem:[%s985 + $0x158] sm:$0xff]
        %v1076 = vld [vmem:[%s985 + $0x160] sm:$0xff]
        %v1077 = vld [vmem:[%s985 + $0x168] sm:$0xff]
        %v1078 = vld [vmem:[%s985 + $0x170] sm:$0xff]
        %v1079 = vld [vmem:[%s985 + $0x178] sm:$0xff]
        %v1080 = vld [vmem:[%s985 + $0x180] sm:$0xff]
        %v1081 = vld [vmem:[%s985 + $0x188] sm:$0xff]
        %v1082 = vld [vmem:[%s985 + $0x190] sm:$0xff]
        %v1083 = vld [vmem:[%s985 + $0x198] sm:$0xff]
        %v1084 = vld [vmem:[%s985 + $0x1a0] sm:$0xff]
        %v1085 = vld [vmem:[%s985 + $0x1a8] sm:$0xff]
        %v1086 = vld [vmem:[%s985 + $0x1b0] sm:$0xff]
        %v1087 = vld [vmem:[%s985 + $0x1b8] sm:$0xff]
        %v1088 = vld [vmem:[%s985 + $0x1c0] sm:$0xff]
        %v1089 = vld [vmem:[%s985 + $0x1c8] sm:$0xff]
        %v1090 = vld [vmem:[%s985 + $0x1d0] sm:$0xff]
        %v1091 = vld [vmem:[%s985 + $0x1d8] sm:$0xff]
        %v1092 = vld [vmem:[%s985 + $0x1e0] sm:$0xff]
        %v1093 = vld [vmem:[%s985 + $0x1e8] sm:$0xff]
        %v1094 = vld [vmem:[%s985 + $0x1f0] sm:$0xff]
        %v1095 = vld [vmem:[%s985 + $0x1f8] sm:$0xff]
        %v1096 = vld [vmem:[%s985 + $0x200] sm:$0xff]
        %v1097 = vld [vmem:[%s985 + $0x208] sm:$0xff]
        %v1098 = vld [vmem:[%s985 + $0x210] sm:$0xff]
        %v1099 = vld [vmem:[%s985 + $0x218] sm:$0xff]
        %v1100 = vld [vmem:[%s985 + $0x220] sm:$0xff]
        %v1101 = vld [vmem:[%s985 + $0x228] sm:$0xff]
        %v1102 = vld [vmem:[%s985 + $0x230] sm:$0xff]
        %v1103 = vld [vmem:[%s985 + $0x238] sm:$0xff]
        %v1104 = vld [vmem:[%s985 + $0x240] sm:$0xff]
        %v1105 = vld [vmem:[%s985 + $0x248] sm:$0xff]
        %v1106 = vld [vmem:[%s985 + $0x250] sm:$0xff]
        %v1107 = vld [vmem:[%s985 + $0x258] sm:$0xff]
        %v1108 = vld [vmem:[%s985 + $0x260] sm:$0xff]
        %v1109 = vld [vmem:[%s985 + $0x268] sm:$0xff]
        %v1110 = vld [vmem:[%s985 + $0x270] sm:$0xff]
        %v1111 = vld [vmem:[%s985 + $0x278] sm:$0xff]
        %v1112 = vld [vmem:[%s985 + $0x280] sm:$0xff]
        %v1113 = vld [vmem:[%s985 + $0x288] sm:$0xff]
        %v1114 = vld [vmem:[%s985 + $0x290] sm:$0xff]
        %v1115 = vld [vmem:[%s985 + $0x298] sm:$0xff]
        %v1116 = vld [vmem:[%s985 + $0x2a0] sm:$0xff]
        %v1117 = vld [vmem:[%s985 + $0x2a8] sm:$0xff]
        %v1118 = vld [vmem:[%s985 + $0x2b0] sm:$0xff]
        %v1119 = vld [vmem:[%s985 + $0x2b8] sm:$0xff]
        %v1120 = vld [vmem:[%s985 + $0x2c0] sm:$0xff]
        %v1121 = vld [vmem:[%s985 + $0x2c8] sm:$0xff]
        %v1122 = vld [vmem:[%s985 + $0x2d0] sm:$0xff]
        %v1123 = vld [vmem:[%s985 + $0x2d8] sm:$0xff]
        %v1124 = vld [vmem:[%s985 + $0x2e0] sm:$0xff]
        %v1125 = vld [vmem:[%s985 + $0x2e8] sm:$0xff]
        %v1126 = vld [vmem:[%s985 + $0x2f0] sm:$0xff]
        %v1127 = vld [vmem:[%s985 + $0x2f8] sm:$0xff]
        %v1128 = vld [vmem:[%s985 + $0x300] sm:$0xff]
        %v1129 = vld [vmem:[%s985 + $0x308] sm:$0xff]
        %v1130 = vld [vmem:[%s985 + $0x310] sm:$0xff]
        %v1131 = vld [vmem:[%s985 + $0x318] sm:$0xff]
        %v1132 = vld [vmem:[%s985 + $0x320] sm:$0xff]
        %v1133 = vld [vmem:[%s985 + $0x328] sm:$0xff]
        %v1134 = vld [vmem:[%s985 + $0x330] sm:$0xff]
        %v1135 = vld [vmem:[%s985 + $0x338] sm:$0xff]
        %v1136 = vld [vmem:[%s985 + $0x340] sm:$0xff]
        %v1137 = vld [vmem:[%s985 + $0x348] sm:$0xff]
        %v1138 = vld [vmem:[%s985 + $0x350] sm:$0xff]
        %v1139 = vld [vmem:[%s985 + $0x358] sm:$0xff]
        %v1140 = vld [vmem:[%s985 + $0x360] sm:$0xff]
        %v1141 = vld [vmem:[%s985 + $0x368] sm:$0xff]
        %v1142 = vld [vmem:[%s985 + $0x370] sm:$0xff]
        %v1143 = vld [vmem:[%s985 + $0x378] sm:$0xff]
        %v1144 = vld [vmem:[%s985 + $0x380] sm:$0xff]
        %v1145 = vld [vmem:[%s985 + $0x388] sm:$0xff]
        %v1146 = vld [vmem:[%s985 + $0x390] sm:$0xff]
        %v1147 = vld [vmem:[%s985 + $0x398] sm:$0xff]
        %v1148 = vld [vmem:[%s985 + $0x3a0] sm:$0xff]
        %v1149 = vld [vmem:[%s985 + $0x3a8] sm:$0xff]
        %v1150 = vld [vmem:[%s985 + $0x3b0] sm:$0xff]
        %v1151 = vld [vmem:[%s985 + $0x3b8] sm:$0xff]
        %v1152 = vld [vmem:[%s985 + $0x3c0] sm:$0xff]
        %v1153 = vld [vmem:[%s985 + $0x3c8] sm:$0xff]
        %v1154 = vld [vmem:[%s985 + $0x3d0] sm:$0xff]
        %v1155 = vld [vmem:[%s985 + $0x3d8] sm:$0xff]
        %v1156 = vld [vmem:[%s985 + $0x3e0] sm:$0xff]
        %v1157 = vld [vmem:[%s985 + $0x3e8] sm:$0xff]
        %v1158 = vld [vmem:[%s985 + $0x3f0] sm:$0xff]
        %v1159 = vld [vmem:[%s985 + $0x3f8] sm:$0xff]
        %v1160 = vld [vmem:[%s1] sm:$0x7]
        %1162 = vset.pattern.permute.xlu0 0
        %1163 = vperm.xlu0 %1162, %v1032
        %v1164 = vpop.permute.xlu0 %1163
        %1167 = vset.pattern.permute.xlu0 0
        %1168 = vperm.xlu0 %1167, %v1033
        %v1169 = vpop.permute.xlu0 %1168
        %1172 = vset.pattern.permute.xlu0 0
        %1173 = vperm.xlu0 %1172, %v1034
        %v1174 = vpop.permute.xlu0 %1173
        %1177 = vset.pattern.permute.xlu0 0
        %1178 = vperm.xlu0 %1177, %v1035
        %v1179 = vpop.permute.xlu0 %1178
        %1182 = vset.pattern.permute.xlu0 0
        %1183 = vperm.xlu0 %1182, %v1036
        %v1184 = vpop.permute.xlu0 %1183
        %1187 = vset.pattern.permute.xlu0 0
        %1188 = vperm.xlu0 %1187, %v1037
        %v1189 = vpop.permute.xlu0 %1188
        %1192 = vset.pattern.permute.xlu0 0
        %1193 = vperm.xlu0 %1192, %v1038
        %v1194 = vpop.permute.xlu0 %1193
        %1197 = vset.pattern.permute.xlu0 0
        %1198 = vperm.xlu0 %1197, %v1039
        %v1199 = vpop.permute.xlu0 %1198
        %1202 = vset.pattern.permute.xlu0 0
        %1203 = vperm.xlu0 %1202, %v1040
        %v1204 = vpop.permute.xlu0 %1203
        %1207 = vset.pattern.permute.xlu0 0
        %1208 = vperm.xlu0 %1207, %v1041
        %v1209 = vpop.permute.xlu0 %1208
        %1212 = vset.pattern.permute.xlu0 0
        %1213 = vperm.xlu0 %1212, %v1042
        %v1214 = vpop.permute.xlu0 %1213
        %1217 = vset.pattern.permute.xlu0 0
        %1218 = vperm.xlu0 %1217, %v1043
        %v1219 = vpop.permute.xlu0 %1218
        %1222 = vset.pattern.permute.xlu0 0
        %1223 = vperm.xlu0 %1222, %v1044
        %v1224 = vpop.permute.xlu0 %1223
        %1227 = vset.pattern.permute.xlu0 0
        %1228 = vperm.xlu0 %1227, %v1045
        %v1229 = vpop.permute.xlu0 %1228
        %1232 = vset.pattern.permute.xlu0 0
        %1233 = vperm.xlu0 %1232, %v1046
        %v1234 = vpop.permute.xlu0 %1233
        %1237 = vset.pattern.permute.xlu0 0
        %1238 = vperm.xlu0 %1237, %v1047
        %v1239 = vpop.permute.xlu0 %1238
        %1242 = vset.pattern.permute.xlu0 0
        %1243 = vperm.xlu0 %1242, %v1048
        %v1244 = vpop.permute.xlu0 %1243
        %1247 = vset.pattern.permute.xlu0 0
        %1248 = vperm.xlu0 %1247, %v1049
        %v1249 = vpop.permute.xlu0 %1248
        %1252 = vset.pattern.permute.xlu0 0
        %1253 = vperm.xlu0 %1252, %v1050
        %v1254 = vpop.permute.xlu0 %1253
        %1257 = vset.pattern.permute.xlu0 0
        %1258 = vperm.xlu0 %1257, %v1051
        %v1259 = vpop.permute.xlu0 %1258
        %1262 = vset.pattern.permute.xlu0 0
        %1263 = vperm.xlu0 %1262, %v1052
        %v1264 = vpop.permute.xlu0 %1263
        %1267 = vset.pattern.permute.xlu0 0
        %1268 = vperm.xlu0 %1267, %v1053
        %v1269 = vpop.permute.xlu0 %1268
        %1272 = vset.pattern.permute.xlu0 0
        %1273 = vperm.xlu0 %1272, %v1054
        %v1274 = vpop.permute.xlu0 %1273
        %1277 = vset.pattern.permute.xlu0 0
        %1278 = vperm.xlu0 %1277, %v1055
        %v1279 = vpop.permute.xlu0 %1278
        %1282 = vset.pattern.permute.xlu0 0
        %1283 = vperm.xlu0 %1282, %v1056
        %v1284 = vpop.permute.xlu0 %1283
        %1287 = vset.pattern.permute.xlu0 0
        %1288 = vperm.xlu0 %1287, %v1057
        %v1289 = vpop.permute.xlu0 %1288
        %1292 = vset.pattern.permute.xlu0 0
        %1293 = vperm.xlu0 %1292, %v1058
        %v1294 = vpop.permute.xlu0 %1293
        %1297 = vset.pattern.permute.xlu0 0
        %1298 = vperm.xlu0 %1297, %v1059
        %v1299 = vpop.permute.xlu0 %1298
        %1302 = vset.pattern.permute.xlu0 0
        %1303 = vperm.xlu0 %1302, %v1060
        %v1304 = vpop.permute.xlu0 %1303
        %1307 = vset.pattern.permute.xlu0 0
        %1308 = vperm.xlu0 %1307, %v1061
        %v1309 = vpop.permute.xlu0 %1308
        %1312 = vset.pattern.permute.xlu0 0
        %1313 = vperm.xlu0 %1312, %v1062
        %v1314 = vpop.permute.xlu0 %1313
        %1317 = vset.pattern.permute.xlu0 0
        %1318 = vperm.xlu0 %1317, %v1063
        %v1319 = vpop.permute.xlu0 %1318
        %1322 = vset.pattern.permute.xlu0 0
        %1323 = vperm.xlu0 %1322, %v1064
        %v1324 = vpop.permute.xlu0 %1323
        %1327 = vset.pattern.permute.xlu0 0
        %1328 = vperm.xlu0 %1327, %v1065
        %v1329 = vpop.permute.xlu0 %1328
        %1332 = vset.pattern.permute.xlu0 0
        %1333 = vperm.xlu0 %1332, %v1066
        %v1334 = vpop.permute.xlu0 %1333
        %1337 = vset.pattern.permute.xlu0 0
        %1338 = vperm.xlu0 %1337, %v1067
        %v1339 = vpop.permute.xlu0 %1338
        %1342 = vset.pattern.permute.xlu0 0
        %1343 = vperm.xlu0 %1342, %v1068
        %v1344 = vpop.permute.xlu0 %1343
        %1347 = vset.pattern.permute.xlu0 0
        %1348 = vperm.xlu0 %1347, %v1069
        %v1349 = vpop.permute.xlu0 %1348
        %1352 = vset.pattern.permute.xlu0 0
        %1353 = vperm.xlu0 %1352, %v1070
        %v1354 = vpop.permute.xlu0 %1353
        %1357 = vset.pattern.permute.xlu0 0
        %1358 = vperm.xlu0 %1357, %v1071
        %v1359 = vpop.permute.xlu0 %1358
        %1362 = vset.pattern.permute.xlu0 0
        %1363 = vperm.xlu0 %1362, %v1072
        %v1364 = vpop.permute.xlu0 %1363
        %1367 = vset.pattern.permute.xlu0 0
        %1368 = vperm.xlu0 %1367, %v1073
        %v1369 = vpop.permute.xlu0 %1368
        %1372 = vset.pattern.permute.xlu0 0
        %1373 = vperm.xlu0 %1372, %v1074
        %v1374 = vpop.permute.xlu0 %1373
        %1377 = vset.pattern.permute.xlu0 0
        %1378 = vperm.xlu0 %1377, %v1075
        %v1379 = vpop.permute.xlu0 %1378
        %1382 = vset.pattern.permute.xlu0 0
        %1383 = vperm.xlu0 %1382, %v1076
        %v1384 = vpop.permute.xlu0 %1383
        %1387 = vset.pattern.permute.xlu0 0
        %1388 = vperm.xlu0 %1387, %v1077
        %v1389 = vpop.permute.xlu0 %1388
        %1392 = vset.pattern.permute.xlu0 0
        %1393 = vperm.xlu0 %1392, %v1078
        %v1394 = vpop.permute.xlu0 %1393
        %1397 = vset.pattern.permute.xlu0 0
        %1398 = vperm.xlu0 %1397, %v1079
        %v1399 = vpop.permute.xlu0 %1398
        %1402 = vset.pattern.permute.xlu0 0
        %1403 = vperm.xlu0 %1402, %v1080
        %v1404 = vpop.permute.xlu0 %1403
        %1407 = vset.pattern.permute.xlu0 0
        %1408 = vperm.xlu0 %1407, %v1081
        %v1409 = vpop.permute.xlu0 %1408
        %1412 = vset.pattern.permute.xlu0 0
        %1413 = vperm.xlu0 %1412, %v1082
        %v1414 = vpop.permute.xlu0 %1413
        %1417 = vset.pattern.permute.xlu0 0
        %1418 = vperm.xlu0 %1417, %v1083
        %v1419 = vpop.permute.xlu0 %1418
        %1422 = vset.pattern.permute.xlu0 0
        %1423 = vperm.xlu0 %1422, %v1084
        %v1424 = vpop.permute.xlu0 %1423
        %1427 = vset.pattern.permute.xlu0 0
        %1428 = vperm.xlu0 %1427, %v1085
        %v1429 = vpop.permute.xlu0 %1428
        %1432 = vset.pattern.permute.xlu0 0
        %1433 = vperm.xlu0 %1432, %v1086
        %v1434 = vpop.permute.xlu0 %1433
        %1437 = vset.pattern.permute.xlu0 0
        %1438 = vperm.xlu0 %1437, %v1087
        %v1439 = vpop.permute.xlu0 %1438
        %1442 = vset.pattern.permute.xlu0 0
        %1443 = vperm.xlu0 %1442, %v1088
        %v1444 = vpop.permute.xlu0 %1443
        %1447 = vset.pattern.permute.xlu0 0
        %1448 = vperm.xlu0 %1447, %v1089
        %v1449 = vpop.permute.xlu0 %1448
        %1452 = vset.pattern.permute.xlu0 0
        %1453 = vperm.xlu0 %1452, %v1090
        %v1454 = vpop.permute.xlu0 %1453
        %1457 = vset.pattern.permute.xlu0 0
        %1458 = vperm.xlu0 %1457, %v1091
        %v1459 = vpop.permute.xlu0 %1458
        %1462 = vset.pattern.permute.xlu0 0
        %1463 = vperm.xlu0 %1462, %v1092
        %v1464 = vpop.permute.xlu0 %1463
        %1467 = vset.pattern.permute.xlu0 0
        %1468 = vperm.xlu0 %1467, %v1093
        %v1469 = vpop.permute.xlu0 %1468
        %1472 = vset.pattern.permute.xlu0 0
        %1473 = vperm.xlu0 %1472, %v1094
        %v1474 = vpop.permute.xlu0 %1473
        %1477 = vset.pattern.permute.xlu0 0
        %1478 = vperm.xlu0 %1477, %v1095
        %v1479 = vpop.permute.xlu0 %1478
        %1482 = vset.pattern.permute.xlu0 0
        %1483 = vperm.xlu0 %1482, %v1096
        %v1484 = vpop.permute.xlu0 %1483
        %1487 = vset.pattern.permute.xlu0 0
        %1488 = vperm.xlu0 %1487, %v1097
        %v1489 = vpop.permute.xlu0 %1488
        %1492 = vset.pattern.permute.xlu0 0
        %1493 = vperm.xlu0 %1492, %v1098
        %v1494 = vpop.permute.xlu0 %1493
        %1497 = vset.pattern.permute.xlu0 0
        %1498 = vperm.xlu0 %1497, %v1099
        %v1499 = vpop.permute.xlu0 %1498
        %1502 = vset.pattern.permute.xlu0 0
        %1503 = vperm.xlu0 %1502, %v1100
        %v1504 = vpop.permute.xlu0 %1503
        %1507 = vset.pattern.permute.xlu0 0
        %1508 = vperm.xlu0 %1507, %v1101
        %v1509 = vpop.permute.xlu0 %1508
        %1512 = vset.pattern.permute.xlu0 0
        %1513 = vperm.xlu0 %1512, %v1102
        %v1514 = vpop.permute.xlu0 %1513
        %1517 = vset.pattern.permute.xlu0 0
        %1518 = vperm.xlu0 %1517, %v1103
        %v1519 = vpop.permute.xlu0 %1518
        %1522 = vset.pattern.permute.xlu0 0
        %1523 = vperm.xlu0 %1522, %v1104
        %v1524 = vpop.permute.xlu0 %1523
        %1527 = vset.pattern.permute.xlu0 0
        %1528 = vperm.xlu0 %1527, %v1105
        %v1529 = vpop.permute.xlu0 %1528
        %1532 = vset.pattern.permute.xlu0 0
        %1533 = vperm.xlu0 %1532, %v1106
        %v1534 = vpop.permute.xlu0 %1533
        %1537 = vset.pattern.permute.xlu0 0
        %1538 = vperm.xlu0 %1537, %v1107
        %v1539 = vpop.permute.xlu0 %1538
        %1542 = vset.pattern.permute.xlu0 0
        %1543 = vperm.xlu0 %1542, %v1108
        %v1544 = vpop.permute.xlu0 %1543
        %1547 = vset.pattern.permute.xlu0 0
        %1548 = vperm.xlu0 %1547, %v1109
        %v1549 = vpop.permute.xlu0 %1548
        %1552 = vset.pattern.permute.xlu0 0
        %1553 = vperm.xlu0 %1552, %v1110
        %v1554 = vpop.permute.xlu0 %1553
        %1557 = vset.pattern.permute.xlu0 0
        %1558 = vperm.xlu0 %1557, %v1111
        %v1559 = vpop.permute.xlu0 %1558
        %1562 = vset.pattern.permute.xlu0 0
        %1563 = vperm.xlu0 %1562, %v1112
        %v1564 = vpop.permute.xlu0 %1563
        %1567 = vset.pattern.permute.xlu0 0
        %1568 = vperm.xlu0 %1567, %v1113
        %v1569 = vpop.permute.xlu0 %1568
        %1572 = vset.pattern.permute.xlu0 0
        %1573 = vperm.xlu0 %1572, %v1114
        %v1574 = vpop.permute.xlu0 %1573
        %1577 = vset.pattern.permute.xlu0 0
        %1578 = vperm.xlu0 %1577, %v1115
        %v1579 = vpop.permute.xlu0 %1578
        %1582 = vset.pattern.permute.xlu0 0
        %1583 = vperm.xlu0 %1582, %v1116
        %v1584 = vpop.permute.xlu0 %1583
        %1587 = vset.pattern.permute.xlu0 0
        %1588 = vperm.xlu0 %1587, %v1117
        %v1589 = vpop.permute.xlu0 %1588
        %1592 = vset.pattern.permute.xlu0 0
        %1593 = vperm.xlu0 %1592, %v1118
        %v1594 = vpop.permute.xlu0 %1593
        %1597 = vset.pattern.permute.xlu0 0
        %1598 = vperm.xlu0 %1597, %v1119
        %v1599 = vpop.permute.xlu0 %1598
        %1602 = vset.pattern.permute.xlu0 0
        %1603 = vperm.xlu0 %1602, %v1120
        %v1604 = vpop.permute.xlu0 %1603
        %1607 = vset.pattern.permute.xlu0 0
        %1608 = vperm.xlu0 %1607, %v1121
        %v1609 = vpop.permute.xlu0 %1608
        %1612 = vset.pattern.permute.xlu0 0
        %1613 = vperm.xlu0 %1612, %v1122
        %v1614 = vpop.permute.xlu0 %1613
        %1617 = vset.pattern.permute.xlu0 0
        %1618 = vperm.xlu0 %1617, %v1123
        %v1619 = vpop.permute.xlu0 %1618
        %1622 = vset.pattern.permute.xlu0 0
        %1623 = vperm.xlu0 %1622, %v1124
        %v1624 = vpop.permute.xlu0 %1623
        %1627 = vset.pattern.permute.xlu0 0
        %1628 = vperm.xlu0 %1627, %v1125
        %v1629 = vpop.permute.xlu0 %1628
        %1632 = vset.pattern.permute.xlu0 0
        %1633 = vperm.xlu0 %1632, %v1126
        %v1634 = vpop.permute.xlu0 %1633
        %1637 = vset.pattern.permute.xlu0 0
        %1638 = vperm.xlu0 %1637, %v1127
        %v1639 = vpop.permute.xlu0 %1638
        %1642 = vset.pattern.permute.xlu0 0
        %1643 = vperm.xlu0 %1642, %v1128
        %v1644 = vpop.permute.xlu0 %1643
        %1647 = vset.pattern.permute.xlu0 0
        %1648 = vperm.xlu0 %1647, %v1129
        %v1649 = vpop.permute.xlu0 %1648
        %1652 = vset.pattern.permute.xlu0 0
        %1653 = vperm.xlu0 %1652, %v1130
        %v1654 = vpop.permute.xlu0 %1653
        %1657 = vset.pattern.permute.xlu0 0
        %1658 = vperm.xlu0 %1657, %v1131
        %v1659 = vpop.permute.xlu0 %1658
        %1662 = vset.pattern.permute.xlu0 0
        %1663 = vperm.xlu0 %1662, %v1132
        %v1664 = vpop.permute.xlu0 %1663
        %1667 = vset.pattern.permute.xlu0 0
        %1668 = vperm.xlu0 %1667, %v1133
        %v1669 = vpop.permute.xlu0 %1668
        %1672 = vset.pattern.permute.xlu0 0
        %1673 = vperm.xlu0 %1672, %v1134
        %v1674 = vpop.permute.xlu0 %1673
        %1677 = vset.pattern.permute.xlu0 0
        %1678 = vperm.xlu0 %1677, %v1135
        %v1679 = vpop.permute.xlu0 %1678
        %1682 = vset.pattern.permute.xlu0 0
        %1683 = vperm.xlu0 %1682, %v1136
        %v1684 = vpop.permute.xlu0 %1683
        %1687 = vset.pattern.permute.xlu0 0
        %1688 = vperm.xlu0 %1687, %v1137
        %v1689 = vpop.permute.xlu0 %1688
        %1692 = vset.pattern.permute.xlu0 0
        %1693 = vperm.xlu0 %1692, %v1138
        %v1694 = vpop.permute.xlu0 %1693
        %1697 = vset.pattern.permute.xlu0 0
        %1698 = vperm.xlu0 %1697, %v1139
        %v1699 = vpop.permute.xlu0 %1698
        %1702 = vset.pattern.permute.xlu0 0
        %1703 = vperm.xlu0 %1702, %v1140
        %v1704 = vpop.permute.xlu0 %1703
        %1707 = vset.pattern.permute.xlu0 0
        %1708 = vperm.xlu0 %1707, %v1141
        %v1709 = vpop.permute.xlu0 %1708
        %1712 = vset.pattern.permute.xlu0 0
        %1713 = vperm.xlu0 %1712, %v1142
        %v1714 = vpop.permute.xlu0 %1713
        %1717 = vset.pattern.permute.xlu0 0
        %1718 = vperm.xlu0 %1717, %v1143
        %v1719 = vpop.permute.xlu0 %1718
        %1722 = vset.pattern.permute.xlu0 0
        %1723 = vperm.xlu0 %1722, %v1144
        %v1724 = vpop.permute.xlu0 %1723
        %1727 = vset.pattern.permute.xlu0 0
        %1728 = vperm.xlu0 %1727, %v1145
        %v1729 = vpop.permute.xlu0 %1728
        %1732 = vset.pattern.permute.xlu0 0
        %1733 = vperm.xlu0 %1732, %v1146
        %v1734 = vpop.permute.xlu0 %1733
        %1737 = vset.pattern.permute.xlu0 0
        %1738 = vperm.xlu0 %1737, %v1147
        %v1739 = vpop.permute.xlu0 %1738
        %1742 = vset.pattern.permute.xlu0 0
        %1743 = vperm.xlu0 %1742, %v1148
        %v1744 = vpop.permute.xlu0 %1743
        %1747 = vset.pattern.permute.xlu0 0
        %1748 = vperm.xlu0 %1747, %v1149
        %v1749 = vpop.permute.xlu0 %1748
        %1752 = vset.pattern.permute.xlu0 0
        %1753 = vperm.xlu0 %1752, %v1150
        %v1754 = vpop.permute.xlu0 %1753
        %1757 = vset.pattern.permute.xlu0 0
        %1758 = vperm.xlu0 %1757, %v1151
        %v1759 = vpop.permute.xlu0 %1758
        %1762 = vset.pattern.permute.xlu0 0
        %1763 = vperm.xlu0 %1762, %v1152
        %v1764 = vpop.permute.xlu0 %1763
        %1767 = vset.pattern.permute.xlu0 0
        %1768 = vperm.xlu0 %1767, %v1153
        %v1769 = vpop.permute.xlu0 %1768
        %1772 = vset.pattern.permute.xlu0 0
        %1773 = vperm.xlu0 %1772, %v1154
        %v1774 = vpop.permute.xlu0 %1773
        %1777 = vset.pattern.permute.xlu0 0
        %1778 = vperm.xlu0 %1777, %v1155
        %v1779 = vpop.permute.xlu0 %1778
        %1782 = vset.pattern.permute.xlu0 0
        %1783 = vperm.xlu0 %1782, %v1156
        %v1784 = vpop.permute.xlu0 %1783
        %1787 = vset.pattern.permute.xlu0 0
        %1788 = vperm.xlu0 %1787, %v1157
        %v1789 = vpop.permute.xlu0 %1788
        %1792 = vset.pattern.permute.xlu0 0
        %1793 = vperm.xlu0 %1792, %v1158
        %v1794 = vpop.permute.xlu0 %1793
        %1797 = vset.pattern.permute.xlu0 0
        %1798 = vperm.xlu0 %1797, %v1159
        %v1799 = vpop.permute.xlu0 %1798
        %v1801 = vlaneseq
        %v1802 = vshrl.u32 %v1801, 7
        %v1803 = vsub.s32 0, %v1802
        %v1804 = vrot.slane %v1160, %v1803
        %v1805 = vmul.f32 %v1164, %v1804
        %v1806 = vmul.f32 %v1169, %v1804
        %v1807 = vmul.f32 %v1174, %v1804
        %v1808 = vmul.f32 %v1179, %v1804
        %v1809 = vmul.f32 %v1184, %v1804
        %v1810 = vmul.f32 %v1189, %v1804
        %v1811 = vmul.f32 %v1194, %v1804
        %v1812 = vmul.f32 %v1199, %v1804
        %v1813 = vmul.f32 %v1204, %v1804
        %v1814 = vmul.f32 %v1209, %v1804
        %v1815 = vmul.f32 %v1214, %v1804
        %v1816 = vmul.f32 %v1219, %v1804
        %v1817 = vmul.f32 %v1224, %v1804
        %v1818 = vmul.f32 %v1229, %v1804
        %v1819 = vmul.f32 %v1234, %v1804
        %v1820 = vmul.f32 %v1239, %v1804
        %v1821 = vmul.f32 %v1244, %v1804
        %v1822 = vmul.f32 %v1249, %v1804
        %v1823 = vmul.f32 %v1254, %v1804
        %v1824 = vmul.f32 %v1259, %v1804
        %v1825 = vmul.f32 %v1264, %v1804
        %v1826 = vmul.f32 %v1269, %v1804
        %v1827 = vmul.f32 %v1274, %v1804
        %v1828 = vmul.f32 %v1279, %v1804
        %v1829 = vmul.f32 %v1284, %v1804
        %v1830 = vmul.f32 %v1289, %v1804
        %v1831 = vmul.f32 %v1294, %v1804
        %v1832 = vmul.f32 %v1299, %v1804
        %v1833 = vmul.f32 %v1304, %v1804
        %v1834 = vmul.f32 %v1309, %v1804
        %v1835 = vmul.f32 %v1314, %v1804
        %v1836 = vmul.f32 %v1319, %v1804
        %v1837 = vmul.f32 %v1324, %v1804
        %v1838 = vmul.f32 %v1329, %v1804
        %v1839 = vmul.f32 %v1334, %v1804
        %v1840 = vmul.f32 %v1339, %v1804
        %v1841 = vmul.f32 %v1344, %v1804
        %v1842 = vmul.f32 %v1349, %v1804
        %v1843 = vmul.f32 %v1354, %v1804
        %v1844 = vmul.f32 %v1359, %v1804
        %v1845 = vmul.f32 %v1364, %v1804
        %v1846 = vmul.f32 %v1369, %v1804
        %v1847 = vmul.f32 %v1374, %v1804
        %v1848 = vmul.f32 %v1379, %v1804
        %v1849 = vmul.f32 %v1384, %v1804
        %v1850 = vmul.f32 %v1389, %v1804
        %v1851 = vmul.f32 %v1394, %v1804
        %v1852 = vmul.f32 %v1399, %v1804
        %v1853 = vmul.f32 %v1404, %v1804
        %v1854 = vmul.f32 %v1409, %v1804
        %v1855 = vmul.f32 %v1414, %v1804
        %v1856 = vmul.f32 %v1419, %v1804
        %v1857 = vmul.f32 %v1424, %v1804
        %v1858 = vmul.f32 %v1429, %v1804
        %v1859 = vmul.f32 %v1434, %v1804
        %v1860 = vmul.f32 %v1439, %v1804
        %v1861 = vmul.f32 %v1444, %v1804
        %v1862 = vmul.f32 %v1449, %v1804
        %v1863 = vmul.f32 %v1454, %v1804
        %v1864 = vmul.f32 %v1459, %v1804
        %v1865 = vmul.f32 %v1464, %v1804
        %v1866 = vmul.f32 %v1469, %v1804
        %v1867 = vmul.f32 %v1474, %v1804
        %v1868 = vmul.f32 %v1479, %v1804
        %v1869 = vmul.f32 %v1484, %v1804
        %v1870 = vmul.f32 %v1489, %v1804
        %v1871 = vmul.f32 %v1494, %v1804
        %v1872 = vmul.f32 %v1499, %v1804
        %v1873 = vmul.f32 %v1504, %v1804
        %v1874 = vmul.f32 %v1509, %v1804
        %v1875 = vmul.f32 %v1514, %v1804
        %v1876 = vmul.f32 %v1519, %v1804
        %v1877 = vmul.f32 %v1524, %v1804
        %v1878 = vmul.f32 %v1529, %v1804
        %v1879 = vmul.f32 %v1534, %v1804
        %v1880 = vmul.f32 %v1539, %v1804
        %v1881 = vmul.f32 %v1544, %v1804
        %v1882 = vmul.f32 %v1549, %v1804
        %v1883 = vmul.f32 %v1554, %v1804
        %v1884 = vmul.f32 %v1559, %v1804
        %v1885 = vmul.f32 %v1564, %v1804
        %v1886 = vmul.f32 %v1569, %v1804
        %v1887 = vmul.f32 %v1574, %v1804
        %v1888 = vmul.f32 %v1579, %v1804
        %v1889 = vmul.f32 %v1584, %v1804
        %v1890 = vmul.f32 %v1589, %v1804
        %v1891 = vmul.f32 %v1594, %v1804
        %v1892 = vmul.f32 %v1599, %v1804
        %v1893 = vmul.f32 %v1604, %v1804
        %v1894 = vmul.f32 %v1609, %v1804
        %v1895 = vmul.f32 %v1614, %v1804
        %v1896 = vmul.f32 %v1619, %v1804
        %v1897 = vmul.f32 %v1624, %v1804
        %v1898 = vmul.f32 %v1629, %v1804
        %v1899 = vmul.f32 %v1634, %v1804
        %v1900 = vmul.f32 %v1639, %v1804
        %v1901 = vmul.f32 %v1644, %v1804
        %v1902 = vmul.f32 %v1649, %v1804
        %v1903 = vmul.f32 %v1654, %v1804
        %v1904 = vmul.f32 %v1659, %v1804
        %v1905 = vmul.f32 %v1664, %v1804
        %v1906 = vmul.f32 %v1669, %v1804
        %v1907 = vmul.f32 %v1674, %v1804
        %v1908 = vmul.f32 %v1679, %v1804
        %v1909 = vmul.f32 %v1684, %v1804
        %v1910 = vmul.f32 %v1689, %v1804
        %v1911 = vmul.f32 %v1694, %v1804
        %v1912 = vmul.f32 %v1699, %v1804
        %v1913 = vmul.f32 %v1704, %v1804
        %v1914 = vmul.f32 %v1709, %v1804
        %v1915 = vmul.f32 %v1714, %v1804
        %v1916 = vmul.f32 %v1719, %v1804
        %v1917 = vmul.f32 %v1724, %v1804
        %v1918 = vmul.f32 %v1729, %v1804
        %v1919 = vmul.f32 %v1734, %v1804
        %v1920 = vmul.f32 %v1739, %v1804
        %v1921 = vmul.f32 %v1744, %v1804
        %v1922 = vmul.f32 %v1749, %v1804
        %v1923 = vmul.f32 %v1754, %v1804
        %v1924 = vmul.f32 %v1759, %v1804
        %v1925 = vmul.f32 %v1764, %v1804
        %v1926 = vmul.f32 %v1769, %v1804
        %v1927 = vmul.f32 %v1774, %v1804
        %v1928 = vmul.f32 %v1779, %v1804
        %v1929 = vmul.f32 %v1784, %v1804
        %v1930 = vmul.f32 %v1789, %v1804
        %v1931 = vmul.f32 %v1794, %v1804
        %v1932 = vmul.f32 %v1799, %v1804
        %1933 = vset.pattern.permute.xlu0 1
        %1934 = vperm.xlu0 %1933, %v1032
        %v1935 = vpop.permute.xlu0 %1934
        %1937 = vset.pattern.permute.xlu0 1
        %1938 = vperm.xlu0 %1937, %v1033
        %v1939 = vpop.permute.xlu0 %1938
        %1941 = vset.pattern.permute.xlu0 1
        %1942 = vperm.xlu0 %1941, %v1034
        %v1943 = vpop.permute.xlu0 %1942
        %1945 = vset.pattern.permute.xlu0 1
        %1946 = vperm.xlu0 %1945, %v1035
        %v1947 = vpop.permute.xlu0 %1946
        %1949 = vset.pattern.permute.xlu0 1
        %1950 = vperm.xlu0 %1949, %v1036
        %v1951 = vpop.permute.xlu0 %1950
        %1953 = vset.pattern.permute.xlu0 1
        %1954 = vperm.xlu0 %1953, %v1037
        %v1955 = vpop.permute.xlu0 %1954
        %1957 = vset.pattern.permute.xlu0 1
        %1958 = vperm.xlu0 %1957, %v1038
        %v1959 = vpop.permute.xlu0 %1958
        %1961 = vset.pattern.permute.xlu0 1
        %1962 = vperm.xlu0 %1961, %v1039
        %v1963 = vpop.permute.xlu0 %1962
        %1965 = vset.pattern.permute.xlu0 1
        %1966 = vperm.xlu0 %1965, %v1040
        %v1967 = vpop.permute.xlu0 %1966
        %1969 = vset.pattern.permute.xlu0 1
        %1970 = vperm.xlu0 %1969, %v1041
        %v1971 = vpop.permute.xlu0 %1970
        %1973 = vset.pattern.permute.xlu0 1
        %1974 = vperm.xlu0 %1973, %v1042
        %v1975 = vpop.permute.xlu0 %1974
        %1977 = vset.pattern.permute.xlu0 1
        %1978 = vperm.xlu0 %1977, %v1043
        %v1979 = vpop.permute.xlu0 %1978
        %1981 = vset.pattern.permute.xlu0 1
        %1982 = vperm.xlu0 %1981, %v1044
        %v1983 = vpop.permute.xlu0 %1982
        %1985 = vset.pattern.permute.xlu0 1
        %1986 = vperm.xlu0 %1985, %v1045
        %v1987 = vpop.permute.xlu0 %1986
        %1989 = vset.pattern.permute.xlu0 1
        %1990 = vperm.xlu0 %1989, %v1046
        %v1991 = vpop.permute.xlu0 %1990
        %1993 = vset.pattern.permute.xlu0 1
        %1994 = vperm.xlu0 %1993, %v1047
        %v1995 = vpop.permute.xlu0 %1994
        %1997 = vset.pattern.permute.xlu0 1
        %1998 = vperm.xlu0 %1997, %v1048
        %v1999 = vpop.permute.xlu0 %1998
        %2001 = vset.pattern.permute.xlu0 1
        %2002 = vperm.xlu0 %2001, %v1049
        %v2003 = vpop.permute.xlu0 %2002
        %2005 = vset.pattern.permute.xlu0 1
        %2006 = vperm.xlu0 %2005, %v1050
        %v2007 = vpop.permute.xlu0 %2006
        %2009 = vset.pattern.permute.xlu0 1
        %2010 = vperm.xlu0 %2009, %v1051
        %v2011 = vpop.permute.xlu0 %2010
        %2013 = vset.pattern.permute.xlu0 1
        %2014 = vperm.xlu0 %2013, %v1052
        %v2015 = vpop.permute.xlu0 %2014
        %2017 = vset.pattern.permute.xlu0 1
        %2018 = vperm.xlu0 %2017, %v1053
        %v2019 = vpop.permute.xlu0 %2018
        %2021 = vset.pattern.permute.xlu0 1
        %2022 = vperm.xlu0 %2021, %v1054
        %v2023 = vpop.permute.xlu0 %2022
        %2025 = vset.pattern.permute.xlu0 1
        %2026 = vperm.xlu0 %2025, %v1055
        %v2027 = vpop.permute.xlu0 %2026
        %2029 = vset.pattern.permute.xlu0 1
        %2030 = vperm.xlu0 %2029, %v1056
        %v2031 = vpop.permute.xlu0 %2030
        %2033 = vset.pattern.permute.xlu0 1
        %2034 = vperm.xlu0 %2033, %v1057
        %v2035 = vpop.permute.xlu0 %2034
        %2037 = vset.pattern.permute.xlu0 1
        %2038 = vperm.xlu0 %2037, %v1058
        %v2039 = vpop.permute.xlu0 %2038
        %2041 = vset.pattern.permute.xlu0 1
        %2042 = vperm.xlu0 %2041, %v1059
        %v2043 = vpop.permute.xlu0 %2042
        %2045 = vset.pattern.permute.xlu0 1
        %2046 = vperm.xlu0 %2045, %v1060
        %v2047 = vpop.permute.xlu0 %2046
        %2049 = vset.pattern.permute.xlu0 1
        %2050 = vperm.xlu0 %2049, %v1061
        %v2051 = vpop.permute.xlu0 %2050
        %2053 = vset.pattern.permute.xlu0 1
        %2054 = vperm.xlu0 %2053, %v1062
        %v2055 = vpop.permute.xlu0 %2054
        %2057 = vset.pattern.permute.xlu0 1
        %2058 = vperm.xlu0 %2057, %v1063
        %v2059 = vpop.permute.xlu0 %2058
        %2061 = vset.pattern.permute.xlu0 1
        %2062 = vperm.xlu0 %2061, %v1064
        %v2063 = vpop.permute.xlu0 %2062
        %2065 = vset.pattern.permute.xlu0 1
        %2066 = vperm.xlu0 %2065, %v1065
        %v2067 = vpop.permute.xlu0 %2066
        %2069 = vset.pattern.permute.xlu0 1
        %2070 = vperm.xlu0 %2069, %v1066
        %v2071 = vpop.permute.xlu0 %2070
        %2073 = vset.pattern.permute.xlu0 1
        %2074 = vperm.xlu0 %2073, %v1067
        %v2075 = vpop.permute.xlu0 %2074
        %2077 = vset.pattern.permute.xlu0 1
        %2078 = vperm.xlu0 %2077, %v1068
        %v2079 = vpop.permute.xlu0 %2078
        %2081 = vset.pattern.permute.xlu0 1
        %2082 = vperm.xlu0 %2081, %v1069
        %v2083 = vpop.permute.xlu0 %2082
        %2085 = vset.pattern.permute.xlu0 1
        %2086 = vperm.xlu0 %2085, %v1070
        %v2087 = vpop.permute.xlu0 %2086
        %2089 = vset.pattern.permute.xlu0 1
        %2090 = vperm.xlu0 %2089, %v1071
        %v2091 = vpop.permute.xlu0 %2090
        %2093 = vset.pattern.permute.xlu0 1
        %2094 = vperm.xlu0 %2093, %v1072
        %v2095 = vpop.permute.xlu0 %2094
        %2097 = vset.pattern.permute.xlu0 1
        %2098 = vperm.xlu0 %2097, %v1073
        %v2099 = vpop.permute.xlu0 %2098
        %2101 = vset.pattern.permute.xlu0 1
        %2102 = vperm.xlu0 %2101, %v1074
        %v2103 = vpop.permute.xlu0 %2102
        %2105 = vset.pattern.permute.xlu0 1
        %2106 = vperm.xlu0 %2105, %v1075
        %v2107 = vpop.permute.xlu0 %2106
        %2109 = vset.pattern.permute.xlu0 1
        %2110 = vperm.xlu0 %2109, %v1076
        %v2111 = vpop.permute.xlu0 %2110
        %2113 = vset.pattern.permute.xlu0 1
        %2114 = vperm.xlu0 %2113, %v1077
        %v2115 = vpop.permute.xlu0 %2114
        %2117 = vset.pattern.permute.xlu0 1
        %2118 = vperm.xlu0 %2117, %v1078
        %v2119 = vpop.permute.xlu0 %2118
        %2121 = vset.pattern.permute.xlu0 1
        %2122 = vperm.xlu0 %2121, %v1079
        %v2123 = vpop.permute.xlu0 %2122
        %2125 = vset.pattern.permute.xlu0 1
        %2126 = vperm.xlu0 %2125, %v1080
        %v2127 = vpop.permute.xlu0 %2126
        %2129 = vset.pattern.permute.xlu0 1
        %2130 = vperm.xlu0 %2129, %v1081
        %v2131 = vpop.permute.xlu0 %2130
        %2133 = vset.pattern.permute.xlu0 1
        %2134 = vperm.xlu0 %2133, %v1082
        %v2135 = vpop.permute.xlu0 %2134
        %2137 = vset.pattern.permute.xlu0 1
        %2138 = vperm.xlu0 %2137, %v1083
        %v2139 = vpop.permute.xlu0 %2138
        %2141 = vset.pattern.permute.xlu0 1
        %2142 = vperm.xlu0 %2141, %v1084
        %v2143 = vpop.permute.xlu0 %2142
        %2145 = vset.pattern.permute.xlu0 1
        %2146 = vperm.xlu0 %2145, %v1085
        %v2147 = vpop.permute.xlu0 %2146
        %2149 = vset.pattern.permute.xlu0 1
        %2150 = vperm.xlu0 %2149, %v1086
        %v2151 = vpop.permute.xlu0 %2150
        %2153 = vset.pattern.permute.xlu0 1
        %2154 = vperm.xlu0 %2153, %v1087
        %v2155 = vpop.permute.xlu0 %2154
        %2157 = vset.pattern.permute.xlu0 1
        %2158 = vperm.xlu0 %2157, %v1088
        %v2159 = vpop.permute.xlu0 %2158
        %2161 = vset.pattern.permute.xlu0 1
        %2162 = vperm.xlu0 %2161, %v1089
        %v2163 = vpop.permute.xlu0 %2162
        %2165 = vset.pattern.permute.xlu0 1
        %2166 = vperm.xlu0 %2165, %v1090
        %v2167 = vpop.permute.xlu0 %2166
        %2169 = vset.pattern.permute.xlu0 1
        %2170 = vperm.xlu0 %2169, %v1091
        %v2171 = vpop.permute.xlu0 %2170
        %2173 = vset.pattern.permute.xlu0 1
        %2174 = vperm.xlu0 %2173, %v1092
        %v2175 = vpop.permute.xlu0 %2174
        %2177 = vset.pattern.permute.xlu0 1
        %2178 = vperm.xlu0 %2177, %v1093
        %v2179 = vpop.permute.xlu0 %2178
        %2181 = vset.pattern.permute.xlu0 1
        %2182 = vperm.xlu0 %2181, %v1094
        %v2183 = vpop.permute.xlu0 %2182
        %2185 = vset.pattern.permute.xlu0 1
        %2186 = vperm.xlu0 %2185, %v1095
        %v2187 = vpop.permute.xlu0 %2186
        %2189 = vset.pattern.permute.xlu0 1
        %2190 = vperm.xlu0 %2189, %v1096
        %v2191 = vpop.permute.xlu0 %2190
        %2193 = vset.pattern.permute.xlu0 1
        %2194 = vperm.xlu0 %2193, %v1097
        %v2195 = vpop.permute.xlu0 %2194
        %2197 = vset.pattern.permute.xlu0 1
        %2198 = vperm.xlu0 %2197, %v1098
        %v2199 = vpop.permute.xlu0 %2198
        %2201 = vset.pattern.permute.xlu0 1
        %2202 = vperm.xlu0 %2201, %v1099
        %v2203 = vpop.permute.xlu0 %2202
        %2205 = vset.pattern.permute.xlu0 1
        %2206 = vperm.xlu0 %2205, %v1100
        %v2207 = vpop.permute.xlu0 %2206
        %2209 = vset.pattern.permute.xlu0 1
        %2210 = vperm.xlu0 %2209, %v1101
        %v2211 = vpop.permute.xlu0 %2210
        %2213 = vset.pattern.permute.xlu0 1
        %2214 = vperm.xlu0 %2213, %v1102
        %v2215 = vpop.permute.xlu0 %2214
        %2217 = vset.pattern.permute.xlu0 1
        %2218 = vperm.xlu0 %2217, %v1103
        %v2219 = vpop.permute.xlu0 %2218
        %2221 = vset.pattern.permute.xlu0 1
        %2222 = vperm.xlu0 %2221, %v1104
        %v2223 = vpop.permute.xlu0 %2222
        %2225 = vset.pattern.permute.xlu0 1
        %2226 = vperm.xlu0 %2225, %v1105
        %v2227 = vpop.permute.xlu0 %2226
        %2229 = vset.pattern.permute.xlu0 1
        %2230 = vperm.xlu0 %2229, %v1106
        %v2231 = vpop.permute.xlu0 %2230
        %2233 = vset.pattern.permute.xlu0 1
        %2234 = vperm.xlu0 %2233, %v1107
        %v2235 = vpop.permute.xlu0 %2234
        %2237 = vset.pattern.permute.xlu0 1
        %2238 = vperm.xlu0 %2237, %v1108
        %v2239 = vpop.permute.xlu0 %2238
        %2241 = vset.pattern.permute.xlu0 1
        %2242 = vperm.xlu0 %2241, %v1109
        %v2243 = vpop.permute.xlu0 %2242
        %2245 = vset.pattern.permute.xlu0 1
        %2246 = vperm.xlu0 %2245, %v1110
        %v2247 = vpop.permute.xlu0 %2246
        %2249 = vset.pattern.permute.xlu0 1
        %2250 = vperm.xlu0 %2249, %v1111
        %v2251 = vpop.permute.xlu0 %2250
        %2253 = vset.pattern.permute.xlu0 1
        %2254 = vperm.xlu0 %2253, %v1112
        %v2255 = vpop.permute.xlu0 %2254
        %2257 = vset.pattern.permute.xlu0 1
        %2258 = vperm.xlu0 %2257, %v1113
        %v2259 = vpop.permute.xlu0 %2258
        %2261 = vset.pattern.permute.xlu0 1
        %2262 = vperm.xlu0 %2261, %v1114
        %v2263 = vpop.permute.xlu0 %2262
        %2265 = vset.pattern.permute.xlu0 1
        %2266 = vperm.xlu0 %2265, %v1115
        %v2267 = vpop.permute.xlu0 %2266
        %2269 = vset.pattern.permute.xlu0 1
        %2270 = vperm.xlu0 %2269, %v1116
        %v2271 = vpop.permute.xlu0 %2270
        %2273 = vset.pattern.permute.xlu0 1
        %2274 = vperm.xlu0 %2273, %v1117
        %v2275 = vpop.permute.xlu0 %2274
        %2277 = vset.pattern.permute.xlu0 1
        %2278 = vperm.xlu0 %2277, %v1118
        %v2279 = vpop.permute.xlu0 %2278
        %2281 = vset.pattern.permute.xlu0 1
        %2282 = vperm.xlu0 %2281, %v1119
        %v2283 = vpop.permute.xlu0 %2282
        %2285 = vset.pattern.permute.xlu0 1
        %2286 = vperm.xlu0 %2285, %v1120
        %v2287 = vpop.permute.xlu0 %2286
        %2289 = vset.pattern.permute.xlu0 1
        %2290 = vperm.xlu0 %2289, %v1121
        %v2291 = vpop.permute.xlu0 %2290
        %2293 = vset.pattern.permute.xlu0 1
        %2294 = vperm.xlu0 %2293, %v1122
        %v2295 = vpop.permute.xlu0 %2294
        %2297 = vset.pattern.permute.xlu0 1
        %2298 = vperm.xlu0 %2297, %v1123
        %v2299 = vpop.permute.xlu0 %2298
        %2301 = vset.pattern.permute.xlu0 1
        %2302 = vperm.xlu0 %2301, %v1124
        %v2303 = vpop.permute.xlu0 %2302
        %2305 = vset.pattern.permute.xlu0 1
        %2306 = vperm.xlu0 %2305, %v1125
        %v2307 = vpop.permute.xlu0 %2306
        %2309 = vset.pattern.permute.xlu0 1
        %2310 = vperm.xlu0 %2309, %v1126
        %v2311 = vpop.permute.xlu0 %2310
        %2313 = vset.pattern.permute.xlu0 1
        %2314 = vperm.xlu0 %2313, %v1127
        %v2315 = vpop.permute.xlu0 %2314
        %2317 = vset.pattern.permute.xlu0 1
        %2318 = vperm.xlu0 %2317, %v1128
        %v2319 = vpop.permute.xlu0 %2318
        %2321 = vset.pattern.permute.xlu0 1
        %2322 = vperm.xlu0 %2321, %v1129
        %v2323 = vpop.permute.xlu0 %2322
        %2325 = vset.pattern.permute.xlu0 1
        %2326 = vperm.xlu0 %2325, %v1130
        %v2327 = vpop.permute.xlu0 %2326
        %2329 = vset.pattern.permute.xlu0 1
        %2330 = vperm.xlu0 %2329, %v1131
        %v2331 = vpop.permute.xlu0 %2330
        %2333 = vset.pattern.permute.xlu0 1
        %2334 = vperm.xlu0 %2333, %v1132
        %v2335 = vpop.permute.xlu0 %2334
        %2337 = vset.pattern.permute.xlu0 1
        %2338 = vperm.xlu0 %2337, %v1133
        %v2339 = vpop.permute.xlu0 %2338
        %2341 = vset.pattern.permute.xlu0 1
        %2342 = vperm.xlu0 %2341, %v1134
        %v2343 = vpop.permute.xlu0 %2342
        %2345 = vset.pattern.permute.xlu0 1
        %2346 = vperm.xlu0 %2345, %v1135
        %v2347 = vpop.permute.xlu0 %2346
        %2349 = vset.pattern.permute.xlu0 1
        %2350 = vperm.xlu0 %2349, %v1136
        %v2351 = vpop.permute.xlu0 %2350
        %2353 = vset.pattern.permute.xlu0 1
        %2354 = vperm.xlu0 %2353, %v1137
        %v2355 = vpop.permute.xlu0 %2354
        %2357 = vset.pattern.permute.xlu0 1
        %2358 = vperm.xlu0 %2357, %v1138
        %v2359 = vpop.permute.xlu0 %2358
        %2361 = vset.pattern.permute.xlu0 1
        %2362 = vperm.xlu0 %2361, %v1139
        %v2363 = vpop.permute.xlu0 %2362
        %2365 = vset.pattern.permute.xlu0 1
        %2366 = vperm.xlu0 %2365, %v1140
        %v2367 = vpop.permute.xlu0 %2366
        %2369 = vset.pattern.permute.xlu0 1
        %2370 = vperm.xlu0 %2369, %v1141
        %v2371 = vpop.permute.xlu0 %2370
        %2373 = vset.pattern.permute.xlu0 1
        %2374 = vperm.xlu0 %2373, %v1142
        %v2375 = vpop.permute.xlu0 %2374
        %2377 = vset.pattern.permute.xlu0 1
        %2378 = vperm.xlu0 %2377, %v1143
        %v2379 = vpop.permute.xlu0 %2378
        %2381 = vset.pattern.permute.xlu0 1
        %2382 = vperm.xlu0 %2381, %v1144
        %v2383 = vpop.permute.xlu0 %2382
        %2385 = vset.pattern.permute.xlu0 1
        %2386 = vperm.xlu0 %2385, %v1145
        %v2387 = vpop.permute.xlu0 %2386
        %2389 = vset.pattern.permute.xlu0 1
        %2390 = vperm.xlu0 %2389, %v1146
        %v2391 = vpop.permute.xlu0 %2390
        %2393 = vset.pattern.permute.xlu0 1
        %2394 = vperm.xlu0 %2393, %v1147
        %v2395 = vpop.permute.xlu0 %2394
        %2397 = vset.pattern.permute.xlu0 1
        %2398 = vperm.xlu0 %2397, %v1148
        %v2399 = vpop.permute.xlu0 %2398
        %2401 = vset.pattern.permute.xlu0 1
        %2402 = vperm.xlu0 %2401, %v1149
        %v2403 = vpop.permute.xlu0 %2402
        %2405 = vset.pattern.permute.xlu0 1
        %2406 = vperm.xlu0 %2405, %v1150
        %v2407 = vpop.permute.xlu0 %2406
        %2409 = vset.pattern.permute.xlu0 1
        %2410 = vperm.xlu0 %2409, %v1151
        %v2411 = vpop.permute.xlu0 %2410
        %2413 = vset.pattern.permute.xlu0 1
        %2414 = vperm.xlu0 %2413, %v1152
        %v2415 = vpop.permute.xlu0 %2414
        %2417 = vset.pattern.permute.xlu0 1
        %2418 = vperm.xlu0 %2417, %v1153
        %v2419 = vpop.permute.xlu0 %2418
        %2421 = vset.pattern.permute.xlu0 1
        %2422 = vperm.xlu0 %2421, %v1154
        %v2423 = vpop.permute.xlu0 %2422
        %2425 = vset.pattern.permute.xlu0 1
        %2426 = vperm.xlu0 %2425, %v1155
        %v2427 = vpop.permute.xlu0 %2426
        %2429 = vset.pattern.permute.xlu0 1
        %2430 = vperm.xlu0 %2429, %v1156
        %v2431 = vpop.permute.xlu0 %2430
        %2433 = vset.pattern.permute.xlu0 1
        %2434 = vperm.xlu0 %2433, %v1157
        %v2435 = vpop.permute.xlu0 %2434
        %2437 = vset.pattern.permute.xlu0 1
        %2438 = vperm.xlu0 %2437, %v1158
        %v2439 = vpop.permute.xlu0 %2438
        %2441 = vset.pattern.permute.xlu0 1
        %2442 = vperm.xlu0 %2441, %v1159
        %v2443 = vpop.permute.xlu0 %2442
        %v2445 = vlaneseq
        %v2446 = vshrl.u32 %v2445, 7
        %v2447 = vsub.s32 1, %v2446
        %v2448 = vrot.slane %v1160, %v2447
        %v2449 = vmul.f32 %v1935, %v2448
        %v2450 = vmul.f32 %v1939, %v2448
        %v2451 = vmul.f32 %v1943, %v2448
        %v2452 = vmul.f32 %v1947, %v2448
        %v2453 = vmul.f32 %v1951, %v2448
        %v2454 = vmul.f32 %v1955, %v2448
        %v2455 = vmul.f32 %v1959, %v2448
        %v2456 = vmul.f32 %v1963, %v2448
        %v2457 = vmul.f32 %v1967, %v2448
        %v2458 = vmul.f32 %v1971, %v2448
        %v2459 = vmul.f32 %v1975, %v2448
        %v2460 = vmul.f32 %v1979, %v2448
        %v2461 = vmul.f32 %v1983, %v2448
        %v2462 = vmul.f32 %v1987, %v2448
        %v2463 = vmul.f32 %v1991, %v2448
        %v2464 = vmul.f32 %v1995, %v2448
        %v2465 = vmul.f32 %v1999, %v2448
        %v2466 = vmul.f32 %v2003, %v2448
        %v2467 = vmul.f32 %v2007, %v2448
        %v2468 = vmul.f32 %v2011, %v2448
        %v2469 = vmul.f32 %v2015, %v2448
        %v2470 = vmul.f32 %v2019, %v2448
        %v2471 = vmul.f32 %v2023, %v2448
        %v2472 = vmul.f32 %v2027, %v2448
        %v2473 = vmul.f32 %v2031, %v2448
        %v2474 = vmul.f32 %v2035, %v2448
        %v2475 = vmul.f32 %v2039, %v2448
        %v2476 = vmul.f32 %v2043, %v2448
        %v2477 = vmul.f32 %v2047, %v2448
        %v2478 = vmul.f32 %v2051, %v2448
        %v2479 = vmul.f32 %v2055, %v2448
        %v2480 = vmul.f32 %v2059, %v2448
        %v2481 = vmul.f32 %v2063, %v2448
        %v2482 = vmul.f32 %v2067, %v2448
        %v2483 = vmul.f32 %v2071, %v2448
        %v2484 = vmul.f32 %v2075, %v2448
        %v2485 = vmul.f32 %v2079, %v2448
        %v2486 = vmul.f32 %v2083, %v2448
        %v2487 = vmul.f32 %v2087, %v2448
        %v2488 = vmul.f32 %v2091, %v2448
        %v2489 = vmul.f32 %v2095, %v2448
        %v2490 = vmul.f32 %v2099, %v2448
        %v2491 = vmul.f32 %v2103, %v2448
        %v2492 = vmul.f32 %v2107, %v2448
        %v2493 = vmul.f32 %v2111, %v2448
        %v2494 = vmul.f32 %v2115, %v2448
        %v2495 = vmul.f32 %v2119, %v2448
        %v2496 = vmul.f32 %v2123, %v2448
        %v2497 = vmul.f32 %v2127, %v2448
        %v2498 = vmul.f32 %v2131, %v2448
        %v2499 = vmul.f32 %v2135, %v2448
        %v2500 = vmul.f32 %v2139, %v2448
        %v2501 = vmul.f32 %v2143, %v2448
        %v2502 = vmul.f32 %v2147, %v2448
        %v2503 = vmul.f32 %v2151, %v2448
        %v2504 = vmul.f32 %v2155, %v2448
        %v2505 = vmul.f32 %v2159, %v2448
        %v2506 = vmul.f32 %v2163, %v2448
        %v2507 = vmul.f32 %v2167, %v2448
        %v2508 = vmul.f32 %v2171, %v2448
        %v2509 = vmul.f32 %v2175, %v2448
        %v2510 = vmul.f32 %v2179, %v2448
        %v2511 = vmul.f32 %v2183, %v2448
        %v2512 = vmul.f32 %v2187, %v2448
        %v2513 = vmul.f32 %v2191, %v2448
        %v2514 = vmul.f32 %v2195, %v2448
        %v2515 = vmul.f32 %v2199, %v2448
        %v2516 = vmul.f32 %v2203, %v2448
        %v2517 = vmul.f32 %v2207, %v2448
        %v2518 = vmul.f32 %v2211, %v2448
        %v2519 = vmul.f32 %v2215, %v2448
        %v2520 = vmul.f32 %v2219, %v2448
        %v2521 = vmul.f32 %v2223, %v2448
        %v2522 = vmul.f32 %v2227, %v2448
        %v2523 = vmul.f32 %v2231, %v2448
        %v2524 = vmul.f32 %v2235, %v2448
        %v2525 = vmul.f32 %v2239, %v2448
        %v2526 = vmul.f32 %v2243, %v2448
        %v2527 = vmul.f32 %v2247, %v2448
        %v2528 = vmul.f32 %v2251, %v2448
        %v2529 = vmul.f32 %v2255, %v2448
        %v2530 = vmul.f32 %v2259, %v2448
        %v2531 = vmul.f32 %v2263, %v2448
        %v2532 = vmul.f32 %v2267, %v2448
        %v2533 = vmul.f32 %v2271, %v2448
        %v2534 = vmul.f32 %v2275, %v2448
        %v2535 = vmul.f32 %v2279, %v2448
        %v2536 = vmul.f32 %v2283, %v2448
        %v2537 = vmul.f32 %v2287, %v2448
        %v2538 = vmul.f32 %v2291, %v2448
        %v2539 = vmul.f32 %v2295, %v2448
        %v2540 = vmul.f32 %v2299, %v2448
        %v2541 = vmul.f32 %v2303, %v2448
        %v2542 = vmul.f32 %v2307, %v2448
        %v2543 = vmul.f32 %v2311, %v2448
        %v2544 = vmul.f32 %v2315, %v2448
        %v2545 = vmul.f32 %v2319, %v2448
        %v2546 = vmul.f32 %v2323, %v2448
        %v2547 = vmul.f32 %v2327, %v2448
        %v2548 = vmul.f32 %v2331, %v2448
        %v2549 = vmul.f32 %v2335, %v2448
        %v2550 = vmul.f32 %v2339, %v2448
        %v2551 = vmul.f32 %v2343, %v2448
        %v2552 = vmul.f32 %v2347, %v2448
        %v2553 = vmul.f32 %v2351, %v2448
        %v2554 = vmul.f32 %v2355, %v2448
        %v2555 = vmul.f32 %v2359, %v2448
        %v2556 = vmul.f32 %v2363, %v2448
        %v2557 = vmul.f32 %v2367, %v2448
        %v2558 = vmul.f32 %v2371, %v2448
        %v2559 = vmul.f32 %v2375, %v2448
        %v2560 = vmul.f32 %v2379, %v2448
        %v2561 = vmul.f32 %v2383, %v2448
        %v2562 = vmul.f32 %v2387, %v2448
        %v2563 = vmul.f32 %v2391, %v2448
        %v2564 = vmul.f32 %v2395, %v2448
        %v2565 = vmul.f32 %v2399, %v2448
        %v2566 = vmul.f32 %v2403, %v2448
        %v2567 = vmul.f32 %v2407, %v2448
        %v2568 = vmul.f32 %v2411, %v2448
        %v2569 = vmul.f32 %v2415, %v2448
        %v2570 = vmul.f32 %v2419, %v2448
        %v2571 = vmul.f32 %v2423, %v2448
        %v2572 = vmul.f32 %v2427, %v2448
        %v2573 = vmul.f32 %v2431, %v2448
        %v2574 = vmul.f32 %v2435, %v2448
        %v2575 = vmul.f32 %v2439, %v2448
        %v2576 = vmul.f32 %v2443, %v2448
        %v2577 = vadd.f32 %v1805, %v2449
        %v2578 = vadd.f32 %v1806, %v2450
        %v2579 = vadd.f32 %v1807, %v2451
        %v2580 = vadd.f32 %v1808, %v2452
        %v2581 = vadd.f32 %v1809, %v2453
        %v2582 = vadd.f32 %v1810, %v2454
        %v2583 = vadd.f32 %v1811, %v2455
        %v2584 = vadd.f32 %v1812, %v2456
        %v2585 = vadd.f32 %v1813, %v2457
        %v2586 = vadd.f32 %v1814, %v2458
        %v2587 = vadd.f32 %v1815, %v2459
        %v2588 = vadd.f32 %v1816, %v2460
        %v2589 = vadd.f32 %v1817, %v2461
        %v2590 = vadd.f32 %v1818, %v2462
        %v2591 = vadd.f32 %v1819, %v2463
        %v2592 = vadd.f32 %v1820, %v2464
        %v2593 = vadd.f32 %v1821, %v2465
        %v2594 = vadd.f32 %v1822, %v2466
        %v2595 = vadd.f32 %v1823, %v2467
        %v2596 = vadd.f32 %v1824, %v2468
        %v2597 = vadd.f32 %v1825, %v2469
        %v2598 = vadd.f32 %v1826, %v2470
        %v2599 = vadd.f32 %v1827, %v2471
        %v2600 = vadd.f32 %v1828, %v2472
        %v2601 = vadd.f32 %v1829, %v2473
        %v2602 = vadd.f32 %v1830, %v2474
        %v2603 = vadd.f32 %v1831, %v2475
        %v2604 = vadd.f32 %v1832, %v2476
        %v2605 = vadd.f32 %v1833, %v2477
        %v2606 = vadd.f32 %v1834, %v2478
        %v2607 = vadd.f32 %v1835, %v2479
        %v2608 = vadd.f32 %v1836, %v2480
        %v2609 = vadd.f32 %v1837, %v2481
        %v2610 = vadd.f32 %v1838, %v2482
        %v2611 = vadd.f32 %v1839, %v2483
        %v2612 = vadd.f32 %v1840, %v2484
        %v2613 = vadd.f32 %v1841, %v2485
        %v2614 = vadd.f32 %v1842, %v2486
        %v2615 = vadd.f32 %v1843, %v2487
        %v2616 = vadd.f32 %v1844, %v2488
        %v2617 = vadd.f32 %v1845, %v2489
        %v2618 = vadd.f32 %v1846, %v2490
        %v2619 = vadd.f32 %v1847, %v2491
        %v2620 = vadd.f32 %v1848, %v2492
        %v2621 = vadd.f32 %v1849, %v2493
        %v2622 = vadd.f32 %v1850, %v2494
        %v2623 = vadd.f32 %v1851, %v2495
        %v2624 = vadd.f32 %v1852, %v2496
        %v2625 = vadd.f32 %v1853, %v2497
        %v2626 = vadd.f32 %v1854, %v2498
        %v2627 = vadd.f32 %v1855, %v2499
        %v2628 = vadd.f32 %v1856, %v2500
        %v2629 = vadd.f32 %v1857, %v2501
        %v2630 = vadd.f32 %v1858, %v2502
        %v2631 = vadd.f32 %v1859, %v2503
        %v2632 = vadd.f32 %v1860, %v2504
        %v2633 = vadd.f32 %v1861, %v2505
        %v2634 = vadd.f32 %v1862, %v2506
        %v2635 = vadd.f32 %v1863, %v2507
        %v2636 = vadd.f32 %v1864, %v2508
        %v2637 = vadd.f32 %v1865, %v2509
        %v2638 = vadd.f32 %v1866, %v2510
        %v2639 = vadd.f32 %v1867, %v2511
        %v2640 = vadd.f32 %v1868, %v2512
        %v2641 = vadd.f32 %v1869, %v2513
        %v2642 = vadd.f32 %v1870, %v2514
        %v2643 = vadd.f32 %v1871, %v2515
        %v2644 = vadd.f32 %v1872, %v2516
        %v2645 = vadd.f32 %v1873, %v2517
        %v2646 = vadd.f32 %v1874, %v2518
        %v2647 = vadd.f32 %v1875, %v2519
        %v2648 = vadd.f32 %v1876, %v2520
        %v2649 = vadd.f32 %v1877, %v2521
        %v2650 = vadd.f32 %v1878, %v2522
        %v2651 = vadd.f32 %v1879, %v2523
        %v2652 = vadd.f32 %v1880, %v2524
        %v2653 = vadd.f32 %v1881, %v2525
        %v2654 = vadd.f32 %v1882, %v2526
        %v2655 = vadd.f32 %v1883, %v2527
        %v2656 = vadd.f32 %v1884, %v2528
        %v2657 = vadd.f32 %v1885, %v2529
        %v2658 = vadd.f32 %v1886, %v2530
        %v2659 = vadd.f32 %v1887, %v2531
        %v2660 = vadd.f32 %v1888, %v2532
        %v2661 = vadd.f32 %v1889, %v2533
        %v2662 = vadd.f32 %v1890, %v2534
        %v2663 = vadd.f32 %v1891, %v2535
        %v2664 = vadd.f32 %v1892, %v2536
        %v2665 = vadd.f32 %v1893, %v2537
        %v2666 = vadd.f32 %v1894, %v2538
        %v2667 = vadd.f32 %v1895, %v2539
        %v2668 = vadd.f32 %v1896, %v2540
        %v2669 = vadd.f32 %v1897, %v2541
        %v2670 = vadd.f32 %v1898, %v2542
        %v2671 = vadd.f32 %v1899, %v2543
        %v2672 = vadd.f32 %v1900, %v2544
        %v2673 = vadd.f32 %v1901, %v2545
        %v2674 = vadd.f32 %v1902, %v2546
        %v2675 = vadd.f32 %v1903, %v2547
        %v2676 = vadd.f32 %v1904, %v2548
        %v2677 = vadd.f32 %v1905, %v2549
        %v2678 = vadd.f32 %v1906, %v2550
        %v2679 = vadd.f32 %v1907, %v2551
        %v2680 = vadd.f32 %v1908, %v2552
        %v2681 = vadd.f32 %v1909, %v2553
        %v2682 = vadd.f32 %v1910, %v2554
        %v2683 = vadd.f32 %v1911, %v2555
        %v2684 = vadd.f32 %v1912, %v2556
        %v2685 = vadd.f32 %v1913, %v2557
        %v2686 = vadd.f32 %v1914, %v2558
        %v2687 = vadd.f32 %v1915, %v2559
        %v2688 = vadd.f32 %v1916, %v2560
        %v2689 = vadd.f32 %v1917, %v2561
        %v2690 = vadd.f32 %v1918, %v2562
        %v2691 = vadd.f32 %v1919, %v2563
        %v2692 = vadd.f32 %v1920, %v2564
        %v2693 = vadd.f32 %v1921, %v2565
        %v2694 = vadd.f32 %v1922, %v2566
        %v2695 = vadd.f32 %v1923, %v2567
        %v2696 = vadd.f32 %v1924, %v2568
        %v2697 = vadd.f32 %v1925, %v2569
        %v2698 = vadd.f32 %v1926, %v2570
        %v2699 = vadd.f32 %v1927, %v2571
        %v2700 = vadd.f32 %v1928, %v2572
        %v2701 = vadd.f32 %v1929, %v2573
        %v2702 = vadd.f32 %v1930, %v2574
        %v2703 = vadd.f32 %v1931, %v2575
        %v2704 = vadd.f32 %v1932, %v2576
        %2705 = vset.pattern.permute.xlu0 2
        %2706 = vperm.xlu0 %2705, %v1032
        %v2707 = vpop.permute.xlu0 %2706
        %2709 = vset.pattern.permute.xlu0 2
        %2710 = vperm.xlu0 %2709, %v1033
        %v2711 = vpop.permute.xlu0 %2710
        %2713 = vset.pattern.permute.xlu0 2
        %2714 = vperm.xlu0 %2713, %v1034
        %v2715 = vpop.permute.xlu0 %2714
        %2717 = vset.pattern.permute.xlu0 2
        %2718 = vperm.xlu0 %2717, %v1035
        %v2719 = vpop.permute.xlu0 %2718
        %2721 = vset.pattern.permute.xlu0 2
        %2722 = vperm.xlu0 %2721, %v1036
        %v2723 = vpop.permute.xlu0 %2722
        %2725 = vset.pattern.permute.xlu0 2
        %2726 = vperm.xlu0 %2725, %v1037
        %v2727 = vpop.permute.xlu0 %2726
        %2729 = vset.pattern.permute.xlu0 2
        %2730 = vperm.xlu0 %2729, %v1038
        %v2731 = vpop.permute.xlu0 %2730
        %2733 = vset.pattern.permute.xlu0 2
        %2734 = vperm.xlu0 %2733, %v1039
        %v2735 = vpop.permute.xlu0 %2734
        %2737 = vset.pattern.permute.xlu0 2
        %2738 = vperm.xlu0 %2737, %v1040
        %v2739 = vpop.permute.xlu0 %2738
        %2741 = vset.pattern.permute.xlu0 2
        %2742 = vperm.xlu0 %2741, %v1041
        %v2743 = vpop.permute.xlu0 %2742
        %2745 = vset.pattern.permute.xlu0 2
        %2746 = vperm.xlu0 %2745, %v1042
        %v2747 = vpop.permute.xlu0 %2746
        %2749 = vset.pattern.permute.xlu0 2
        %2750 = vperm.xlu0 %2749, %v1043
        %v2751 = vpop.permute.xlu0 %2750
        %2753 = vset.pattern.permute.xlu0 2
        %2754 = vperm.xlu0 %2753, %v1044
        %v2755 = vpop.permute.xlu0 %2754
        %2757 = vset.pattern.permute.xlu0 2
        %2758 = vperm.xlu0 %2757, %v1045
        %v2759 = vpop.permute.xlu0 %2758
        %2761 = vset.pattern.permute.xlu0 2
        %2762 = vperm.xlu0 %2761, %v1046
        %v2763 = vpop.permute.xlu0 %2762
        %2765 = vset.pattern.permute.xlu0 2
        %2766 = vperm.xlu0 %2765, %v1047
        %v2767 = vpop.permute.xlu0 %2766
        %2769 = vset.pattern.permute.xlu0 2
        %2770 = vperm.xlu0 %2769, %v1048
        %v2771 = vpop.permute.xlu0 %2770
        %2773 = vset.pattern.permute.xlu0 2
        %2774 = vperm.xlu0 %2773, %v1049
        %v2775 = vpop.permute.xlu0 %2774
        %2777 = vset.pattern.permute.xlu0 2
        %2778 = vperm.xlu0 %2777, %v1050
        %v2779 = vpop.permute.xlu0 %2778
        %2781 = vset.pattern.permute.xlu0 2
        %2782 = vperm.xlu0 %2781, %v1051
        %v2783 = vpop.permute.xlu0 %2782
        %2785 = vset.pattern.permute.xlu0 2
        %2786 = vperm.xlu0 %2785, %v1052
        %v2787 = vpop.permute.xlu0 %2786
        %2789 = vset.pattern.permute.xlu0 2
        %2790 = vperm.xlu0 %2789, %v1053
        %v2791 = vpop.permute.xlu0 %2790
        %2793 = vset.pattern.permute.xlu0 2
        %2794 = vperm.xlu0 %2793, %v1054
        %v2795 = vpop.permute.xlu0 %2794
        %2797 = vset.pattern.permute.xlu0 2
        %2798 = vperm.xlu0 %2797, %v1055
        %v2799 = vpop.permute.xlu0 %2798
        %2801 = vset.pattern.permute.xlu0 2
        %2802 = vperm.xlu0 %2801, %v1056
        %v2803 = vpop.permute.xlu0 %2802
        %2805 = vset.pattern.permute.xlu0 2
        %2806 = vperm.xlu0 %2805, %v1057
        %v2807 = vpop.permute.xlu0 %2806
        %2809 = vset.pattern.permute.xlu0 2
        %2810 = vperm.xlu0 %2809, %v1058
        %v2811 = vpop.permute.xlu0 %2810
        %2813 = vset.pattern.permute.xlu0 2
        %2814 = vperm.xlu0 %2813, %v1059
        %v2815 = vpop.permute.xlu0 %2814
        %2817 = vset.pattern.permute.xlu0 2
        %2818 = vperm.xlu0 %2817, %v1060
        %v2819 = vpop.permute.xlu0 %2818
        %2821 = vset.pattern.permute.xlu0 2
        %2822 = vperm.xlu0 %2821, %v1061
        %v2823 = vpop.permute.xlu0 %2822
        %2825 = vset.pattern.permute.xlu0 2
        %2826 = vperm.xlu0 %2825, %v1062
        %v2827 = vpop.permute.xlu0 %2826
        %2829 = vset.pattern.permute.xlu0 2
        %2830 = vperm.xlu0 %2829, %v1063
        %v2831 = vpop.permute.xlu0 %2830
        %2833 = vset.pattern.permute.xlu0 2
        %2834 = vperm.xlu0 %2833, %v1064
        %v2835 = vpop.permute.xlu0 %2834
        %2837 = vset.pattern.permute.xlu0 2
        %2838 = vperm.xlu0 %2837, %v1065
        %v2839 = vpop.permute.xlu0 %2838
        %2841 = vset.pattern.permute.xlu0 2
        %2842 = vperm.xlu0 %2841, %v1066
        %v2843 = vpop.permute.xlu0 %2842
        %2845 = vset.pattern.permute.xlu0 2
        %2846 = vperm.xlu0 %2845, %v1067
        %v2847 = vpop.permute.xlu0 %2846
        %2849 = vset.pattern.permute.xlu0 2
        %2850 = vperm.xlu0 %2849, %v1068
        %v2851 = vpop.permute.xlu0 %2850
        %2853 = vset.pattern.permute.xlu0 2
        %2854 = vperm.xlu0 %2853, %v1069
        %v2855 = vpop.permute.xlu0 %2854
        %2857 = vset.pattern.permute.xlu0 2
        %2858 = vperm.xlu0 %2857, %v1070
        %v2859 = vpop.permute.xlu0 %2858
        %2861 = vset.pattern.permute.xlu0 2
        %2862 = vperm.xlu0 %2861, %v1071
        %v2863 = vpop.permute.xlu0 %2862
        %2865 = vset.pattern.permute.xlu0 2
        %2866 = vperm.xlu0 %2865, %v1072
        %v2867 = vpop.permute.xlu0 %2866
        %2869 = vset.pattern.permute.xlu0 2
        %2870 = vperm.xlu0 %2869, %v1073
        %v2871 = vpop.permute.xlu0 %2870
        %2873 = vset.pattern.permute.xlu0 2
        %2874 = vperm.xlu0 %2873, %v1074
        %v2875 = vpop.permute.xlu0 %2874
        %2877 = vset.pattern.permute.xlu0 2
        %2878 = vperm.xlu0 %2877, %v1075
        %v2879 = vpop.permute.xlu0 %2878
        %2881 = vset.pattern.permute.xlu0 2
        %2882 = vperm.xlu0 %2881, %v1076
        %v2883 = vpop.permute.xlu0 %2882
        %2885 = vset.pattern.permute.xlu0 2
        %2886 = vperm.xlu0 %2885, %v1077
        %v2887 = vpop.permute.xlu0 %2886
        %2889 = vset.pattern.permute.xlu0 2
        %2890 = vperm.xlu0 %2889, %v1078
        %v2891 = vpop.permute.xlu0 %2890
        %2893 = vset.pattern.permute.xlu0 2
        %2894 = vperm.xlu0 %2893, %v1079
        %v2895 = vpop.permute.xlu0 %2894
        %2897 = vset.pattern.permute.xlu0 2
        %2898 = vperm.xlu0 %2897, %v1080
        %v2899 = vpop.permute.xlu0 %2898
        %2901 = vset.pattern.permute.xlu0 2
        %2902 = vperm.xlu0 %2901, %v1081
        %v2903 = vpop.permute.xlu0 %2902
        %2905 = vset.pattern.permute.xlu0 2
        %2906 = vperm.xlu0 %2905, %v1082
        %v2907 = vpop.permute.xlu0 %2906
        %2909 = vset.pattern.permute.xlu0 2
        %2910 = vperm.xlu0 %2909, %v1083
        %v2911 = vpop.permute.xlu0 %2910
        %2913 = vset.pattern.permute.xlu0 2
        %2914 = vperm.xlu0 %2913, %v1084
        %v2915 = vpop.permute.xlu0 %2914
        %2917 = vset.pattern.permute.xlu0 2
        %2918 = vperm.xlu0 %2917, %v1085
        %v2919 = vpop.permute.xlu0 %2918
        %2921 = vset.pattern.permute.xlu0 2
        %2922 = vperm.xlu0 %2921, %v1086
        %v2923 = vpop.permute.xlu0 %2922
        %2925 = vset.pattern.permute.xlu0 2
        %2926 = vperm.xlu0 %2925, %v1087
        %v2927 = vpop.permute.xlu0 %2926
        %2929 = vset.pattern.permute.xlu0 2
        %2930 = vperm.xlu0 %2929, %v1088
        %v2931 = vpop.permute.xlu0 %2930
        %2933 = vset.pattern.permute.xlu0 2
        %2934 = vperm.xlu0 %2933, %v1089
        %v2935 = vpop.permute.xlu0 %2934
        %2937 = vset.pattern.permute.xlu0 2
        %2938 = vperm.xlu0 %2937, %v1090
        %v2939 = vpop.permute.xlu0 %2938
        %2941 = vset.pattern.permute.xlu0 2
        %2942 = vperm.xlu0 %2941, %v1091
        %v2943 = vpop.permute.xlu0 %2942
        %2945 = vset.pattern.permute.xlu0 2
        %2946 = vperm.xlu0 %2945, %v1092
        %v2947 = vpop.permute.xlu0 %2946
        %2949 = vset.pattern.permute.xlu0 2
        %2950 = vperm.xlu0 %2949, %v1093
        %v2951 = vpop.permute.xlu0 %2950
        %2953 = vset.pattern.permute.xlu0 2
        %2954 = vperm.xlu0 %2953, %v1094
        %v2955 = vpop.permute.xlu0 %2954
        %2957 = vset.pattern.permute.xlu0 2
        %2958 = vperm.xlu0 %2957, %v1095
        %v2959 = vpop.permute.xlu0 %2958
        %2961 = vset.pattern.permute.xlu0 2
        %2962 = vperm.xlu0 %2961, %v1096
        %v2963 = vpop.permute.xlu0 %2962
        %2965 = vset.pattern.permute.xlu0 2
        %2966 = vperm.xlu0 %2965, %v1097
        %v2967 = vpop.permute.xlu0 %2966
        %2969 = vset.pattern.permute.xlu0 2
        %2970 = vperm.xlu0 %2969, %v1098
        %v2971 = vpop.permute.xlu0 %2970
        %2973 = vset.pattern.permute.xlu0 2
        %2974 = vperm.xlu0 %2973, %v1099
        %v2975 = vpop.permute.xlu0 %2974
        %2977 = vset.pattern.permute.xlu0 2
        %2978 = vperm.xlu0 %2977, %v1100
        %v2979 = vpop.permute.xlu0 %2978
        %2981 = vset.pattern.permute.xlu0 2
        %2982 = vperm.xlu0 %2981, %v1101
        %v2983 = vpop.permute.xlu0 %2982
        %2985 = vset.pattern.permute.xlu0 2
        %2986 = vperm.xlu0 %2985, %v1102
        %v2987 = vpop.permute.xlu0 %2986
        %2989 = vset.pattern.permute.xlu0 2
        %2990 = vperm.xlu0 %2989, %v1103
        %v2991 = vpop.permute.xlu0 %2990
        %2993 = vset.pattern.permute.xlu0 2
        %2994 = vperm.xlu0 %2993, %v1104
        %v2995 = vpop.permute.xlu0 %2994
        %2997 = vset.pattern.permute.xlu0 2
        %2998 = vperm.xlu0 %2997, %v1105
        %v2999 = vpop.permute.xlu0 %2998
        %3001 = vset.pattern.permute.xlu0 2
        %3002 = vperm.xlu0 %3001, %v1106
        %v3003 = vpop.permute.xlu0 %3002
        %3005 = vset.pattern.permute.xlu0 2
        %3006 = vperm.xlu0 %3005, %v1107
        %v3007 = vpop.permute.xlu0 %3006
        %3009 = vset.pattern.permute.xlu0 2
        %3010 = vperm.xlu0 %3009, %v1108
        %v3011 = vpop.permute.xlu0 %3010
        %3013 = vset.pattern.permute.xlu0 2
        %3014 = vperm.xlu0 %3013, %v1109
        %v3015 = vpop.permute.xlu0 %3014
        %3017 = vset.pattern.permute.xlu0 2
        %3018 = vperm.xlu0 %3017, %v1110
        %v3019 = vpop.permute.xlu0 %3018
        %3021 = vset.pattern.permute.xlu0 2
        %3022 = vperm.xlu0 %3021, %v1111
        %v3023 = vpop.permute.xlu0 %3022
        %3025 = vset.pattern.permute.xlu0 2
        %3026 = vperm.xlu0 %3025, %v1112
        %v3027 = vpop.permute.xlu0 %3026
        %3029 = vset.pattern.permute.xlu0 2
        %3030 = vperm.xlu0 %3029, %v1113
        %v3031 = vpop.permute.xlu0 %3030
        %3033 = vset.pattern.permute.xlu0 2
        %3034 = vperm.xlu0 %3033, %v1114
        %v3035 = vpop.permute.xlu0 %3034
        %3037 = vset.pattern.permute.xlu0 2
        %3038 = vperm.xlu0 %3037, %v1115
        %v3039 = vpop.permute.xlu0 %3038
        %3041 = vset.pattern.permute.xlu0 2
        %3042 = vperm.xlu0 %3041, %v1116
        %v3043 = vpop.permute.xlu0 %3042
        %3045 = vset.pattern.permute.xlu0 2
        %3046 = vperm.xlu0 %3045, %v1117
        %v3047 = vpop.permute.xlu0 %3046
        %3049 = vset.pattern.permute.xlu0 2
        %3050 = vperm.xlu0 %3049, %v1118
        %v3051 = vpop.permute.xlu0 %3050
        %3053 = vset.pattern.permute.xlu0 2
        %3054 = vperm.xlu0 %3053, %v1119
        %v3055 = vpop.permute.xlu0 %3054
        %3057 = vset.pattern.permute.xlu0 2
        %3058 = vperm.xlu0 %3057, %v1120
        %v3059 = vpop.permute.xlu0 %3058
        %3061 = vset.pattern.permute.xlu0 2
        %3062 = vperm.xlu0 %3061, %v1121
        %v3063 = vpop.permute.xlu0 %3062
        %3065 = vset.pattern.permute.xlu0 2
        %3066 = vperm.xlu0 %3065, %v1122
        %v3067 = vpop.permute.xlu0 %3066
        %3069 = vset.pattern.permute.xlu0 2
        %3070 = vperm.xlu0 %3069, %v1123
        %v3071 = vpop.permute.xlu0 %3070
        %3073 = vset.pattern.permute.xlu0 2
        %3074 = vperm.xlu0 %3073, %v1124
        %v3075 = vpop.permute.xlu0 %3074
        %3077 = vset.pattern.permute.xlu0 2
        %3078 = vperm.xlu0 %3077, %v1125
        %v3079 = vpop.permute.xlu0 %3078
        %3081 = vset.pattern.permute.xlu0 2
        %3082 = vperm.xlu0 %3081, %v1126
        %v3083 = vpop.permute.xlu0 %3082
        %3085 = vset.pattern.permute.xlu0 2
        %3086 = vperm.xlu0 %3085, %v1127
        %v3087 = vpop.permute.xlu0 %3086
        %3089 = vset.pattern.permute.xlu0 2
        %3090 = vperm.xlu0 %3089, %v1128
        %v3091 = vpop.permute.xlu0 %3090
        %3093 = vset.pattern.permute.xlu0 2
        %3094 = vperm.xlu0 %3093, %v1129
        %v3095 = vpop.permute.xlu0 %3094
        %3097 = vset.pattern.permute.xlu0 2
        %3098 = vperm.xlu0 %3097, %v1130
        %v3099 = vpop.permute.xlu0 %3098
        %3101 = vset.pattern.permute.xlu0 2
        %3102 = vperm.xlu0 %3101, %v1131
        %v3103 = vpop.permute.xlu0 %3102
        %3105 = vset.pattern.permute.xlu0 2
        %3106 = vperm.xlu0 %3105, %v1132
        %v3107 = vpop.permute.xlu0 %3106
        %3109 = vset.pattern.permute.xlu0 2
        %3110 = vperm.xlu0 %3109, %v1133
        %v3111 = vpop.permute.xlu0 %3110
        %3113 = vset.pattern.permute.xlu0 2
        %3114 = vperm.xlu0 %3113, %v1134
        %v3115 = vpop.permute.xlu0 %3114
        %3117 = vset.pattern.permute.xlu0 2
        %3118 = vperm.xlu0 %3117, %v1135
        %v3119 = vpop.permute.xlu0 %3118
        %3121 = vset.pattern.permute.xlu0 2
        %3122 = vperm.xlu0 %3121, %v1136
        %v3123 = vpop.permute.xlu0 %3122
        %3125 = vset.pattern.permute.xlu0 2
        %3126 = vperm.xlu0 %3125, %v1137
        %v3127 = vpop.permute.xlu0 %3126
        %3129 = vset.pattern.permute.xlu0 2
        %3130 = vperm.xlu0 %3129, %v1138
        %v3131 = vpop.permute.xlu0 %3130
        %3133 = vset.pattern.permute.xlu0 2
        %3134 = vperm.xlu0 %3133, %v1139
        %v3135 = vpop.permute.xlu0 %3134
        %3137 = vset.pattern.permute.xlu0 2
        %3138 = vperm.xlu0 %3137, %v1140
        %v3139 = vpop.permute.xlu0 %3138
        %3141 = vset.pattern.permute.xlu0 2
        %3142 = vperm.xlu0 %3141, %v1141
        %v3143 = vpop.permute.xlu0 %3142
        %3145 = vset.pattern.permute.xlu0 2
        %3146 = vperm.xlu0 %3145, %v1142
        %v3147 = vpop.permute.xlu0 %3146
        %3149 = vset.pattern.permute.xlu0 2
        %3150 = vperm.xlu0 %3149, %v1143
        %v3151 = vpop.permute.xlu0 %3150
        %3153 = vset.pattern.permute.xlu0 2
        %3154 = vperm.xlu0 %3153, %v1144
        %v3155 = vpop.permute.xlu0 %3154
        %3157 = vset.pattern.permute.xlu0 2
        %3158 = vperm.xlu0 %3157, %v1145
        %v3159 = vpop.permute.xlu0 %3158
        %3161 = vset.pattern.permute.xlu0 2
        %3162 = vperm.xlu0 %3161, %v1146
        %v3163 = vpop.permute.xlu0 %3162
        %3165 = vset.pattern.permute.xlu0 2
        %3166 = vperm.xlu0 %3165, %v1147
        %v3167 = vpop.permute.xlu0 %3166
        %3169 = vset.pattern.permute.xlu0 2
        %3170 = vperm.xlu0 %3169, %v1148
        %v3171 = vpop.permute.xlu0 %3170
        %3173 = vset.pattern.permute.xlu0 2
        %3174 = vperm.xlu0 %3173, %v1149
        %v3175 = vpop.permute.xlu0 %3174
        %3177 = vset.pattern.permute.xlu0 2
        %3178 = vperm.xlu0 %3177, %v1150
        %v3179 = vpop.permute.xlu0 %3178
        %3181 = vset.pattern.permute.xlu0 2
        %3182 = vperm.xlu0 %3181, %v1151
        %v3183 = vpop.permute.xlu0 %3182
        %3185 = vset.pattern.permute.xlu0 2
        %3186 = vperm.xlu0 %3185, %v1152
        %v3187 = vpop.permute.xlu0 %3186
        %3189 = vset.pattern.permute.xlu0 2
        %3190 = vperm.xlu0 %3189, %v1153
        %v3191 = vpop.permute.xlu0 %3190
        %3193 = vset.pattern.permute.xlu0 2
        %3194 = vperm.xlu0 %3193, %v1154
        %v3195 = vpop.permute.xlu0 %3194
        %3197 = vset.pattern.permute.xlu0 2
        %3198 = vperm.xlu0 %3197, %v1155
        %v3199 = vpop.permute.xlu0 %3198
        %3201 = vset.pattern.permute.xlu0 2
        %3202 = vperm.xlu0 %3201, %v1156
        %v3203 = vpop.permute.xlu0 %3202
        %3205 = vset.pattern.permute.xlu0 2
        %3206 = vperm.xlu0 %3205, %v1157
        %v3207 = vpop.permute.xlu0 %3206
        %3209 = vset.pattern.permute.xlu0 2
        %3210 = vperm.xlu0 %3209, %v1158
        %v3211 = vpop.permute.xlu0 %3210
        %3213 = vset.pattern.permute.xlu0 2
        %3214 = vperm.xlu0 %3213, %v1159
        %v3215 = vpop.permute.xlu0 %3214
        %v3217 = vlaneseq
        %v3218 = vshrl.u32 %v3217, 7
        %v3219 = vsub.s32 2, %v3218
        %v3220 = vrot.slane %v1160, %v3219
        %v3221 = vmul.f32 %v2707, %v3220
        %v3222 = vmul.f32 %v2711, %v3220
        %v3223 = vmul.f32 %v2715, %v3220
        %v3224 = vmul.f32 %v2719, %v3220
        %v3225 = vmul.f32 %v2723, %v3220
        %v3226 = vmul.f32 %v2727, %v3220
        %v3227 = vmul.f32 %v2731, %v3220
        %v3228 = vmul.f32 %v2735, %v3220
        %v3229 = vmul.f32 %v2739, %v3220
        %v3230 = vmul.f32 %v2743, %v3220
        %v3231 = vmul.f32 %v2747, %v3220
        %v3232 = vmul.f32 %v2751, %v3220
        %v3233 = vmul.f32 %v2755, %v3220
        %v3234 = vmul.f32 %v2759, %v3220
        %v3235 = vmul.f32 %v2763, %v3220
        %v3236 = vmul.f32 %v2767, %v3220
        %v3237 = vmul.f32 %v2771, %v3220
        %v3238 = vmul.f32 %v2775, %v3220
        %v3239 = vmul.f32 %v2779, %v3220
        %v3240 = vmul.f32 %v2783, %v3220
        %v3241 = vmul.f32 %v2787, %v3220
        %v3242 = vmul.f32 %v2791, %v3220
        %v3243 = vmul.f32 %v2795, %v3220
        %v3244 = vmul.f32 %v2799, %v3220
        %v3245 = vmul.f32 %v2803, %v3220
        %v3246 = vmul.f32 %v2807, %v3220
        %v3247 = vmul.f32 %v2811, %v3220
        %v3248 = vmul.f32 %v2815, %v3220
        %v3249 = vmul.f32 %v2819, %v3220
        %v3250 = vmul.f32 %v2823, %v3220
        %v3251 = vmul.f32 %v2827, %v3220
        %v3252 = vmul.f32 %v2831, %v3220
        %v3253 = vmul.f32 %v2835, %v3220
        %v3254 = vmul.f32 %v2839, %v3220
        %v3255 = vmul.f32 %v2843, %v3220
        %v3256 = vmul.f32 %v2847, %v3220
        %v3257 = vmul.f32 %v2851, %v3220
        %v3258 = vmul.f32 %v2855, %v3220
        %v3259 = vmul.f32 %v2859, %v3220
        %v3260 = vmul.f32 %v2863, %v3220
        %v3261 = vmul.f32 %v2867, %v3220
        %v3262 = vmul.f32 %v2871, %v3220
        %v3263 = vmul.f32 %v2875, %v3220
        %v3264 = vmul.f32 %v2879, %v3220
        %v3265 = vmul.f32 %v2883, %v3220
        %v3266 = vmul.f32 %v2887, %v3220
        %v3267 = vmul.f32 %v2891, %v3220
        %v3268 = vmul.f32 %v2895, %v3220
        %v3269 = vmul.f32 %v2899, %v3220
        %v3270 = vmul.f32 %v2903, %v3220
        %v3271 = vmul.f32 %v2907, %v3220
        %v3272 = vmul.f32 %v2911, %v3220
        %v3273 = vmul.f32 %v2915, %v3220
        %v3274 = vmul.f32 %v2919, %v3220
        %v3275 = vmul.f32 %v2923, %v3220
        %v3276 = vmul.f32 %v2927, %v3220
        %v3277 = vmul.f32 %v2931, %v3220
        %v3278 = vmul.f32 %v2935, %v3220
        %v3279 = vmul.f32 %v2939, %v3220
        %v3280 = vmul.f32 %v2943, %v3220
        %v3281 = vmul.f32 %v2947, %v3220
        %v3282 = vmul.f32 %v2951, %v3220
        %v3283 = vmul.f32 %v2955, %v3220
        %v3284 = vmul.f32 %v2959, %v3220
        %v3285 = vmul.f32 %v2963, %v3220
        %v3286 = vmul.f32 %v2967, %v3220
        %v3287 = vmul.f32 %v2971, %v3220
        %v3288 = vmul.f32 %v2975, %v3220
        %v3289 = vmul.f32 %v2979, %v3220
        %v3290 = vmul.f32 %v2983, %v3220
        %v3291 = vmul.f32 %v2987, %v3220
        %v3292 = vmul.f32 %v2991, %v3220
        %v3293 = vmul.f32 %v2995, %v3220
        %v3294 = vmul.f32 %v2999, %v3220
        %v3295 = vmul.f32 %v3003, %v3220
        %v3296 = vmul.f32 %v3007, %v3220
        %v3297 = vmul.f32 %v3011, %v3220
        %v3298 = vmul.f32 %v3015, %v3220
        %v3299 = vmul.f32 %v3019, %v3220
        %v3300 = vmul.f32 %v3023, %v3220
        %v3301 = vmul.f32 %v3027, %v3220
        %v3302 = vmul.f32 %v3031, %v3220
        %v3303 = vmul.f32 %v3035, %v3220
        %v3304 = vmul.f32 %v3039, %v3220
        %v3305 = vmul.f32 %v3043, %v3220
        %v3306 = vmul.f32 %v3047, %v3220
        %v3307 = vmul.f32 %v3051, %v3220
        %v3308 = vmul.f32 %v3055, %v3220
        %v3309 = vmul.f32 %v3059, %v3220
        %v3310 = vmul.f32 %v3063, %v3220
        %v3311 = vmul.f32 %v3067, %v3220
        %v3312 = vmul.f32 %v3071, %v3220
        %v3313 = vmul.f32 %v3075, %v3220
        %v3314 = vmul.f32 %v3079, %v3220
        %v3315 = vmul.f32 %v3083, %v3220
        %v3316 = vmul.f32 %v3087, %v3220
        %v3317 = vmul.f32 %v3091, %v3220
        %v3318 = vmul.f32 %v3095, %v3220
        %v3319 = vmul.f32 %v3099, %v3220
        %v3320 = vmul.f32 %v3103, %v3220
        %v3321 = vmul.f32 %v3107, %v3220
        %v3322 = vmul.f32 %v3111, %v3220
        %v3323 = vmul.f32 %v3115, %v3220
        %v3324 = vmul.f32 %v3119, %v3220
        %v3325 = vmul.f32 %v3123, %v3220
        %v3326 = vmul.f32 %v3127, %v3220
        %v3327 = vmul.f32 %v3131, %v3220
        %v3328 = vmul.f32 %v3135, %v3220
        %v3329 = vmul.f32 %v3139, %v3220
        %v3330 = vmul.f32 %v3143, %v3220
        %v3331 = vmul.f32 %v3147, %v3220
        %v3332 = vmul.f32 %v3151, %v3220
        %v3333 = vmul.f32 %v3155, %v3220
        %v3334 = vmul.f32 %v3159, %v3220
        %v3335 = vmul.f32 %v3163, %v3220
        %v3336 = vmul.f32 %v3167, %v3220
        %v3337 = vmul.f32 %v3171, %v3220
        %v3338 = vmul.f32 %v3175, %v3220
        %v3339 = vmul.f32 %v3179, %v3220
        %v3340 = vmul.f32 %v3183, %v3220
        %v3341 = vmul.f32 %v3187, %v3220
        %v3342 = vmul.f32 %v3191, %v3220
        %v3343 = vmul.f32 %v3195, %v3220
        %v3344 = vmul.f32 %v3199, %v3220
        %v3345 = vmul.f32 %v3203, %v3220
        %v3346 = vmul.f32 %v3207, %v3220
        %v3347 = vmul.f32 %v3211, %v3220
        %v3348 = vmul.f32 %v3215, %v3220
        %v3349 = vadd.f32 %v2577, %v3221
        %v3350 = vadd.f32 %v2578, %v3222
        %v3351 = vadd.f32 %v2579, %v3223
        %v3352 = vadd.f32 %v2580, %v3224
        %v3353 = vadd.f32 %v2581, %v3225
        %v3354 = vadd.f32 %v2582, %v3226
        %v3355 = vadd.f32 %v2583, %v3227
        %v3356 = vadd.f32 %v2584, %v3228
        %v3357 = vadd.f32 %v2585, %v3229
        %v3358 = vadd.f32 %v2586, %v3230
        %v3359 = vadd.f32 %v2587, %v3231
        %v3360 = vadd.f32 %v2588, %v3232
        %v3361 = vadd.f32 %v2589, %v3233
        %v3362 = vadd.f32 %v2590, %v3234
        %v3363 = vadd.f32 %v2591, %v3235
        %v3364 = vadd.f32 %v2592, %v3236
        %v3365 = vadd.f32 %v2593, %v3237
        %v3366 = vadd.f32 %v2594, %v3238
        %v3367 = vadd.f32 %v2595, %v3239
        %v3368 = vadd.f32 %v2596, %v3240
        %v3369 = vadd.f32 %v2597, %v3241
        %v3370 = vadd.f32 %v2598, %v3242
        %v3371 = vadd.f32 %v2599, %v3243
        %v3372 = vadd.f32 %v2600, %v3244
        %v3373 = vadd.f32 %v2601, %v3245
        %v3374 = vadd.f32 %v2602, %v3246
        %v3375 = vadd.f32 %v2603, %v3247
        %v3376 = vadd.f32 %v2604, %v3248
        %v3377 = vadd.f32 %v2605, %v3249
        %v3378 = vadd.f32 %v2606, %v3250
        %v3379 = vadd.f32 %v2607, %v3251
        %v3380 = vadd.f32 %v2608, %v3252
        %v3381 = vadd.f32 %v2609, %v3253
        %v3382 = vadd.f32 %v2610, %v3254
        %v3383 = vadd.f32 %v2611, %v3255
        %v3384 = vadd.f32 %v2612, %v3256
        %v3385 = vadd.f32 %v2613, %v3257
        %v3386 = vadd.f32 %v2614, %v3258
        %v3387 = vadd.f32 %v2615, %v3259
        %v3388 = vadd.f32 %v2616, %v3260
        %v3389 = vadd.f32 %v2617, %v3261
        %v3390 = vadd.f32 %v2618, %v3262
        %v3391 = vadd.f32 %v2619, %v3263
        %v3392 = vadd.f32 %v2620, %v3264
        %v3393 = vadd.f32 %v2621, %v3265
        %v3394 = vadd.f32 %v2622, %v3266
        %v3395 = vadd.f32 %v2623, %v3267
        %v3396 = vadd.f32 %v2624, %v3268
        %v3397 = vadd.f32 %v2625, %v3269
        %v3398 = vadd.f32 %v2626, %v3270
        %v3399 = vadd.f32 %v2627, %v3271
        %v3400 = vadd.f32 %v2628, %v3272
        %v3401 = vadd.f32 %v2629, %v3273
        %v3402 = vadd.f32 %v2630, %v3274
        %v3403 = vadd.f32 %v2631, %v3275
        %v3404 = vadd.f32 %v2632, %v3276
        %v3405 = vadd.f32 %v2633, %v3277
        %v3406 = vadd.f32 %v2634, %v3278
        %v3407 = vadd.f32 %v2635, %v3279
        %v3408 = vadd.f32 %v2636, %v3280
        %v3409 = vadd.f32 %v2637, %v3281
        %v3410 = vadd.f32 %v2638, %v3282
        %v3411 = vadd.f32 %v2639, %v3283
        %v3412 = vadd.f32 %v2640, %v3284
        %v3413 = vadd.f32 %v2641, %v3285
        %v3414 = vadd.f32 %v2642, %v3286
        %v3415 = vadd.f32 %v2643, %v3287
        %v3416 = vadd.f32 %v2644, %v3288
        %v3417 = vadd.f32 %v2645, %v3289
        %v3418 = vadd.f32 %v2646, %v3290
        %v3419 = vadd.f32 %v2647, %v3291
        %v3420 = vadd.f32 %v2648, %v3292
        %v3421 = vadd.f32 %v2649, %v3293
        %v3422 = vadd.f32 %v2650, %v3294
        %v3423 = vadd.f32 %v2651, %v3295
        %v3424 = vadd.f32 %v2652, %v3296
        %v3425 = vadd.f32 %v2653, %v3297
        %v3426 = vadd.f32 %v2654, %v3298
        %v3427 = vadd.f32 %v2655, %v3299
        %v3428 = vadd.f32 %v2656, %v3300
        %v3429 = vadd.f32 %v2657, %v3301
        %v3430 = vadd.f32 %v2658, %v3302
        %v3431 = vadd.f32 %v2659, %v3303
        %v3432 = vadd.f32 %v2660, %v3304
        %v3433 = vadd.f32 %v2661, %v3305
        %v3434 = vadd.f32 %v2662, %v3306
        %v3435 = vadd.f32 %v2663, %v3307
        %v3436 = vadd.f32 %v2664, %v3308
        %v3437 = vadd.f32 %v2665, %v3309
        %v3438 = vadd.f32 %v2666, %v3310
        %v3439 = vadd.f32 %v2667, %v3311
        %v3440 = vadd.f32 %v2668, %v3312
        %v3441 = vadd.f32 %v2669, %v3313
        %v3442 = vadd.f32 %v2670, %v3314
        %v3443 = vadd.f32 %v2671, %v3315
        %v3444 = vadd.f32 %v2672, %v3316
        %v3445 = vadd.f32 %v2673, %v3317
        %v3446 = vadd.f32 %v2674, %v3318
        %v3447 = vadd.f32 %v2675, %v3319
        %v3448 = vadd.f32 %v2676, %v3320
        %v3449 = vadd.f32 %v2677, %v3321
        %v3450 = vadd.f32 %v2678, %v3322
        %v3451 = vadd.f32 %v2679, %v3323
        %v3452 = vadd.f32 %v2680, %v3324
        %v3453 = vadd.f32 %v2681, %v3325
        %v3454 = vadd.f32 %v2682, %v3326
        %v3455 = vadd.f32 %v2683, %v3327
        %v3456 = vadd.f32 %v2684, %v3328
        %v3457 = vadd.f32 %v2685, %v3329
        %v3458 = vadd.f32 %v2686, %v3330
        %v3459 = vadd.f32 %v2687, %v3331
        %v3460 = vadd.f32 %v2688, %v3332
        %v3461 = vadd.f32 %v2689, %v3333
        %v3462 = vadd.f32 %v2690, %v3334
        %v3463 = vadd.f32 %v2691, %v3335
        %v3464 = vadd.f32 %v2692, %v3336
        %v3465 = vadd.f32 %v2693, %v3337
        %v3466 = vadd.f32 %v2694, %v3338
        %v3467 = vadd.f32 %v2695, %v3339
        %v3468 = vadd.f32 %v2696, %v3340
        %v3469 = vadd.f32 %v2697, %v3341
        %v3470 = vadd.f32 %v2698, %v3342
        %v3471 = vadd.f32 %v2699, %v3343
        %v3472 = vadd.f32 %v2700, %v3344
        %v3473 = vadd.f32 %v2701, %v3345
        %v3474 = vadd.f32 %v2702, %v3346
        %v3475 = vadd.f32 %v2703, %v3347
        %v3476 = vadd.f32 %v2704, %v3348
        %v3477 = vld [vmem:[%s2] sm:$0x1]
        %v3479 = vlaneseq
        %v3480 = vshrl.u32 %v3479, 7
        %v3481 = vsub.s32 0, %v3480
        %v3482 = vrot.slane %v3477, %v3481
        %v3484 = vadd.f32 %v3349, %v3482
        %v3485 = vadd.f32 %v3350, %v3482
        %v3486 = vadd.f32 %v3351, %v3482
        %v3487 = vadd.f32 %v3352, %v3482
        %v3488 = vadd.f32 %v3353, %v3482
        %v3489 = vadd.f32 %v3354, %v3482
        %v3490 = vadd.f32 %v3355, %v3482
        %v3491 = vadd.f32 %v3356, %v3482
        %v3492 = vadd.f32 %v3357, %v3482
        %v3493 = vadd.f32 %v3358, %v3482
        %v3494 = vadd.f32 %v3359, %v3482
        %v3495 = vadd.f32 %v3360, %v3482
        %v3496 = vadd.f32 %v3361, %v3482
        %v3497 = vadd.f32 %v3362, %v3482
        %v3498 = vadd.f32 %v3363, %v3482
        %v3499 = vadd.f32 %v3364, %v3482
        %v3500 = vadd.f32 %v3365, %v3482
        %v3501 = vadd.f32 %v3366, %v3482
        %v3502 = vadd.f32 %v3367, %v3482
        %v3503 = vadd.f32 %v3368, %v3482
        %v3504 = vadd.f32 %v3369, %v3482
        %v3505 = vadd.f32 %v3370, %v3482
        %v3506 = vadd.f32 %v3371, %v3482
        %v3507 = vadd.f32 %v3372, %v3482
        %v3508 = vadd.f32 %v3373, %v3482
        %v3509 = vadd.f32 %v3374, %v3482
        %v3510 = vadd.f32 %v3375, %v3482
        %v3511 = vadd.f32 %v3376, %v3482
        %v3512 = vadd.f32 %v3377, %v3482
        %v3513 = vadd.f32 %v3378, %v3482
        %v3514 = vadd.f32 %v3379, %v3482
        %v3515 = vadd.f32 %v3380, %v3482
        %v3516 = vadd.f32 %v3381, %v3482
        %v3517 = vadd.f32 %v3382, %v3482
        %v3518 = vadd.f32 %v3383, %v3482
        %v3519 = vadd.f32 %v3384, %v3482
        %v3520 = vadd.f32 %v3385, %v3482
        %v3521 = vadd.f32 %v3386, %v3482
        %v3522 = vadd.f32 %v3387, %v3482
        %v3523 = vadd.f32 %v3388, %v3482
        %v3524 = vadd.f32 %v3389, %v3482
        %v3525 = vadd.f32 %v3390, %v3482
        %v3526 = vadd.f32 %v3391, %v3482
        %v3527 = vadd.f32 %v3392, %v3482
        %v3528 = vadd.f32 %v3393, %v3482
        %v3529 = vadd.f32 %v3394, %v3482
        %v3530 = vadd.f32 %v3395, %v3482
        %v3531 = vadd.f32 %v3396, %v3482
        %v3532 = vadd.f32 %v3397, %v3482
        %v3533 = vadd.f32 %v3398, %v3482
        %v3534 = vadd.f32 %v3399, %v3482
        %v3535 = vadd.f32 %v3400, %v3482
        %v3536 = vadd.f32 %v3401, %v3482
        %v3537 = vadd.f32 %v3402, %v3482
        %v3538 = vadd.f32 %v3403, %v3482
        %v3539 = vadd.f32 %v3404, %v3482
        %v3540 = vadd.f32 %v3405, %v3482
        %v3541 = vadd.f32 %v3406, %v3482
        %v3542 = vadd.f32 %v3407, %v3482
        %v3543 = vadd.f32 %v3408, %v3482
        %v3544 = vadd.f32 %v3409, %v3482
        %v3545 = vadd.f32 %v3410, %v3482
        %v3546 = vadd.f32 %v3411, %v3482
        %v3547 = vadd.f32 %v3412, %v3482
        %v3548 = vadd.f32 %v3413, %v3482
        %v3549 = vadd.f32 %v3414, %v3482
        %v3550 = vadd.f32 %v3415, %v3482
        %v3551 = vadd.f32 %v3416, %v3482
        %v3552 = vadd.f32 %v3417, %v3482
        %v3553 = vadd.f32 %v3418, %v3482
        %v3554 = vadd.f32 %v3419, %v3482
        %v3555 = vadd.f32 %v3420, %v3482
        %v3556 = vadd.f32 %v3421, %v3482
        %v3557 = vadd.f32 %v3422, %v3482
        %v3558 = vadd.f32 %v3423, %v3482
        %v3559 = vadd.f32 %v3424, %v3482
        %v3560 = vadd.f32 %v3425, %v3482
        %v3561 = vadd.f32 %v3426, %v3482
        %v3562 = vadd.f32 %v3427, %v3482
        %v3563 = vadd.f32 %v3428, %v3482
        %v3564 = vadd.f32 %v3429, %v3482
        %v3565 = vadd.f32 %v3430, %v3482
        %v3566 = vadd.f32 %v3431, %v3482
        %v3567 = vadd.f32 %v3432, %v3482
        %v3568 = vadd.f32 %v3433, %v3482
        %v3569 = vadd.f32 %v3434, %v3482
        %v3570 = vadd.f32 %v3435, %v3482
        %v3571 = vadd.f32 %v3436, %v3482
        %v3572 = vadd.f32 %v3437, %v3482
        %v3573 = vadd.f32 %v3438, %v3482
        %v3574 = vadd.f32 %v3439, %v3482
        %v3575 = vadd.f32 %v3440, %v3482
        %v3576 = vadd.f32 %v3441, %v3482
        %v3577 = vadd.f32 %v3442, %v3482
        %v3578 = vadd.f32 %v3443, %v3482
        %v3579 = vadd.f32 %v3444, %v3482
        %v3580 = vadd.f32 %v3445, %v3482
        %v3581 = vadd.f32 %v3446, %v3482
        %v3582 = vadd.f32 %v3447, %v3482
        %v3583 = vadd.f32 %v3448, %v3482
        %v3584 = vadd.f32 %v3449, %v3482
        %v3585 = vadd.f32 %v3450, %v3482
        %v3586 = vadd.f32 %v3451, %v3482
        %v3587 = vadd.f32 %v3452, %v3482
        %v3588 = vadd.f32 %v3453, %v3482
        %v3589 = vadd.f32 %v3454, %v3482
        %v3590 = vadd.f32 %v3455, %v3482
        %v3591 = vadd.f32 %v3456, %v3482
        %v3592 = vadd.f32 %v3457, %v3482
        %v3593 = vadd.f32 %v3458, %v3482
        %v3594 = vadd.f32 %v3459, %v3482
        %v3595 = vadd.f32 %v3460, %v3482
        %v3596 = vadd.f32 %v3461, %v3482
        %v3597 = vadd.f32 %v3462, %v3482
        %v3598 = vadd.f32 %v3463, %v3482
        %v3599 = vadd.f32 %v3464, %v3482
        %v3600 = vadd.f32 %v3465, %v3482
        %v3601 = vadd.f32 %v3466, %v3482
        %v3602 = vadd.f32 %v3467, %v3482
        %v3603 = vadd.f32 %v3468, %v3482
        %v3604 = vadd.f32 %v3469, %v3482
        %v3605 = vadd.f32 %v3470, %v3482
        %v3606 = vadd.f32 %v3471, %v3482
        %v3607 = vadd.f32 %v3472, %v3482
        %v3608 = vadd.f32 %v3473, %v3482
        %v3609 = vadd.f32 %v3474, %v3482
        %v3610 = vadd.f32 %v3475, %v3482
        %v3611 = vadd.f32 %v3476, %v3482
        %v3612 = vmax.f32 %v3484, 0.0
        %v3613 = vmax.f32 %v3485, 0.0
        %v3614 = vmax.f32 %v3486, 0.0
        %v3615 = vmax.f32 %v3487, 0.0
        %v3616 = vmax.f32 %v3488, 0.0
        %v3617 = vmax.f32 %v3489, 0.0
        %v3618 = vmax.f32 %v3490, 0.0
        %v3619 = vmax.f32 %v3491, 0.0
        %v3620 = vmax.f32 %v3492, 0.0
        %v3621 = vmax.f32 %v3493, 0.0
        %v3622 = vmax.f32 %v3494, 0.0
        %v3623 = vmax.f32 %v3495, 0.0
        %v3624 = vmax.f32 %v3496, 0.0
        %v3625 = vmax.f32 %v3497, 0.0
        %v3626 = vmax.f32 %v3498, 0.0
        %v3627 = vmax.f32 %v3499, 0.0
        %v3628 = vmax.f32 %v3500, 0.0
        %v3629 = vmax.f32 %v3501, 0.0
        %v3630 = vmax.f32 %v3502, 0.0
        %v3631 = vmax.f32 %v3503, 0.0
        %v3632 = vmax.f32 %v3504, 0.0
        %v3633 = vmax.f32 %v3505, 0.0
        %v3634 = vmax.f32 %v3506, 0.0
        %v3635 = vmax.f32 %v3507, 0.0
        %v3636 = vmax.f32 %v3508, 0.0
        %v3637 = vmax.f32 %v3509, 0.0
        %v3638 = vmax.f32 %v3510, 0.0
        %v3639 = vmax.f32 %v3511, 0.0
        %v3640 = vmax.f32 %v3512, 0.0
        %v3641 = vmax.f32 %v3513, 0.0
        %v3642 = vmax.f32 %v3514, 0.0
        %v3643 = vmax.f32 %v3515, 0.0
        %v3644 = vmax.f32 %v3516, 0.0
        %v3645 = vmax.f32 %v3517, 0.0
        %v3646 = vmax.f32 %v3518, 0.0
        %v3647 = vmax.f32 %v3519, 0.0
        %v3648 = vmax.f32 %v3520, 0.0
        %v3649 = vmax.f32 %v3521, 0.0
        %v3650 = vmax.f32 %v3522, 0.0
        %v3651 = vmax.f32 %v3523, 0.0
        %v3652 = vmax.f32 %v3524, 0.0
        %v3653 = vmax.f32 %v3525, 0.0
        %v3654 = vmax.f32 %v3526, 0.0
        %v3655 = vmax.f32 %v3527, 0.0
        %v3656 = vmax.f32 %v3528, 0.0
        %v3657 = vmax.f32 %v3529, 0.0
        %v3658 = vmax.f32 %v3530, 0.0
        %v3659 = vmax.f32 %v3531, 0.0
        %v3660 = vmax.f32 %v3532, 0.0
        %v3661 = vmax.f32 %v3533, 0.0
        %v3662 = vmax.f32 %v3534, 0.0
        %v3663 = vmax.f32 %v3535, 0.0
        %v3664 = vmax.f32 %v3536, 0.0
        %v3665 = vmax.f32 %v3537, 0.0
        %v3666 = vmax.f32 %v3538, 0.0
        %v3667 = vmax.f32 %v3539, 0.0
        %v3668 = vmax.f32 %v3540, 0.0
        %v3669 = vmax.f32 %v3541, 0.0
        %v3670 = vmax.f32 %v3542, 0.0
        %v3671 = vmax.f32 %v3543, 0.0
        %v3672 = vmax.f32 %v3544, 0.0
        %v3673 = vmax.f32 %v3545, 0.0
        %v3674 = vmax.f32 %v3546, 0.0
        %v3675 = vmax.f32 %v3547, 0.0
        %v3676 = vmax.f32 %v3548, 0.0
        %v3677 = vmax.f32 %v3549, 0.0
        %v3678 = vmax.f32 %v3550, 0.0
        %v3679 = vmax.f32 %v3551, 0.0
        %v3680 = vmax.f32 %v3552, 0.0
        %v3681 = vmax.f32 %v3553, 0.0
        %v3682 = vmax.f32 %v3554, 0.0
        %v3683 = vmax.f32 %v3555, 0.0
        %v3684 = vmax.f32 %v3556, 0.0
        %v3685 = vmax.f32 %v3557, 0.0
        %v3686 = vmax.f32 %v3558, 0.0
        %v3687 = vmax.f32 %v3559, 0.0
        %v3688 = vmax.f32 %v3560, 0.0
        %v3689 = vmax.f32 %v3561, 0.0
        %v3690 = vmax.f32 %v3562, 0.0
        %v3691 = vmax.f32 %v3563, 0.0
        %v3692 = vmax.f32 %v3564, 0.0
        %v3693 = vmax.f32 %v3565, 0.0
        %v3694 = vmax.f32 %v3566, 0.0
        %v3695 = vmax.f32 %v3567, 0.0
        %v3696 = vmax.f32 %v3568, 0.0
        %v3697 = vmax.f32 %v3569, 0.0
        %v3698 = vmax.f32 %v3570, 0.0
        %v3699 = vmax.f32 %v3571, 0.0
        %v3700 = vmax.f32 %v3572, 0.0
        %v3701 = vmax.f32 %v3573, 0.0
        %v3702 = vmax.f32 %v3574, 0.0
        %v3703 = vmax.f32 %v3575, 0.0
        %v3704 = vmax.f32 %v3576, 0.0
        %v3705 = vmax.f32 %v3577, 0.0
        %v3706 = vmax.f32 %v3578, 0.0
        %v3707 = vmax.f32 %v3579, 0.0
        %v3708 = vmax.f32 %v3580, 0.0
        %v3709 = vmax.f32 %v3581, 0.0
        %v3710 = vmax.f32 %v3582, 0.0
        %v3711 = vmax.f32 %v3583, 0.0
        %v3712 = vmax.f32 %v3584, 0.0
        %v3713 = vmax.f32 %v3585, 0.0
        %v3714 = vmax.f32 %v3586, 0.0
        %v3715 = vmax.f32 %v3587, 0.0
        %v3716 = vmax.f32 %v3588, 0.0
        %v3717 = vmax.f32 %v3589, 0.0
        %v3718 = vmax.f32 %v3590, 0.0
        %v3719 = vmax.f32 %v3591, 0.0
        %v3720 = vmax.f32 %v3592, 0.0
        %v3721 = vmax.f32 %v3593, 0.0
        %v3722 = vmax.f32 %v3594, 0.0
        %v3723 = vmax.f32 %v3595, 0.0
        %v3724 = vmax.f32 %v3596, 0.0
        %v3725 = vmax.f32 %v3597, 0.0
        %v3726 = vmax.f32 %v3598, 0.0
        %v3727 = vmax.f32 %v3599, 0.0
        %v3728 = vmax.f32 %v3600, 0.0
        %v3729 = vmax.f32 %v3601, 0.0
        %v3730 = vmax.f32 %v3602, 0.0
        %v3731 = vmax.f32 %v3603, 0.0
        %v3732 = vmax.f32 %v3604, 0.0
        %v3733 = vmax.f32 %v3605, 0.0
        %v3734 = vmax.f32 %v3606, 0.0
        %v3735 = vmax.f32 %v3607, 0.0
        %v3736 = vmax.f32 %v3608, 0.0
        %v3737 = vmax.f32 %v3609, 0.0
        %v3738 = vmax.f32 %v3610, 0.0
        %v3739 = vmax.f32 %v3611, 0.0
        %v3740 = vpack.c.bf16 %v3613, %v3612
        %v3741 = vpack.c.bf16 %v3615, %v3614
        %v3742 = vpack.c.bf16 %v3617, %v3616
        %v3743 = vpack.c.bf16 %v3619, %v3618
        %v3744 = vpack.c.bf16 %v3621, %v3620
        %v3745 = vpack.c.bf16 %v3623, %v3622
        %v3746 = vpack.c.bf16 %v3625, %v3624
        %v3747 = vpack.c.bf16 %v3627, %v3626
        %v3748 = vpack.c.bf16 %v3629, %v3628
        %v3749 = vpack.c.bf16 %v3631, %v3630
        %v3750 = vpack.c.bf16 %v3633, %v3632
        %v3751 = vpack.c.bf16 %v3635, %v3634
        %v3752 = vpack.c.bf16 %v3637, %v3636
        %v3753 = vpack.c.bf16 %v3639, %v3638
        %v3754 = vpack.c.bf16 %v3641, %v3640
        %v3755 = vpack.c.bf16 %v3643, %v3642
        %v3756 = vpack.c.bf16 %v3645, %v3644
        %v3757 = vpack.c.bf16 %v3647, %v3646
        %v3758 = vpack.c.bf16 %v3649, %v3648
        %v3759 = vpack.c.bf16 %v3651, %v3650
        %v3760 = vpack.c.bf16 %v3653, %v3652
        %v3761 = vpack.c.bf16 %v3655, %v3654
        %v3762 = vpack.c.bf16 %v3657, %v3656
        %v3763 = vpack.c.bf16 %v3659, %v3658
        %v3764 = vpack.c.bf16 %v3661, %v3660
        %v3765 = vpack.c.bf16 %v3663, %v3662
        %v3766 = vpack.c.bf16 %v3665, %v3664
        %v3767 = vpack.c.bf16 %v3667, %v3666
        %v3768 = vpack.c.bf16 %v3669, %v3668
        %v3769 = vpack.c.bf16 %v3671, %v3670
        %v3770 = vpack.c.bf16 %v3673, %v3672
        %v3771 = vpack.c.bf16 %v3675, %v3674
        %v3772 = vpack.c.bf16 %v3677, %v3676
        %v3773 = vpack.c.bf16 %v3679, %v3678
        %v3774 = vpack.c.bf16 %v3681, %v3680
        %v3775 = vpack.c.bf16 %v3683, %v3682
        %v3776 = vpack.c.bf16 %v3685, %v3684
        %v3777 = vpack.c.bf16 %v3687, %v3686
        %v3778 = vpack.c.bf16 %v3689, %v3688
        %v3779 = vpack.c.bf16 %v3691, %v3690
        %v3780 = vpack.c.bf16 %v3693, %v3692
        %v3781 = vpack.c.bf16 %v3695, %v3694
        %v3782 = vpack.c.bf16 %v3697, %v3696
        %v3783 = vpack.c.bf16 %v3699, %v3698
        %v3784 = vpack.c.bf16 %v3701, %v3700
        %v3785 = vpack.c.bf16 %v3703, %v3702
        %v3786 = vpack.c.bf16 %v3705, %v3704
        %v3787 = vpack.c.bf16 %v3707, %v3706
        %v3788 = vpack.c.bf16 %v3709, %v3708
        %v3789 = vpack.c.bf16 %v3711, %v3710
        %v3790 = vpack.c.bf16 %v3713, %v3712
        %v3791 = vpack.c.bf16 %v3715, %v3714
        %v3792 = vpack.c.bf16 %v3717, %v3716
        %v3793 = vpack.c.bf16 %v3719, %v3718
        %v3794 = vpack.c.bf16 %v3721, %v3720
        %v3795 = vpack.c.bf16 %v3723, %v3722
        %v3796 = vpack.c.bf16 %v3725, %v3724
        %v3797 = vpack.c.bf16 %v3727, %v3726
        %v3798 = vpack.c.bf16 %v3729, %v3728
        %v3799 = vpack.c.bf16 %v3731, %v3730
        %v3800 = vpack.c.bf16 %v3733, %v3732
        %v3801 = vpack.c.bf16 %v3735, %v3734
        %v3802 = vpack.c.bf16 %v3737, %v3736
        %v3803 = vpack.c.bf16 %v3739, %v3738
        %v3804 = vld [vmem:[%s3] sm:$0xf]
        %v3805 = vld [vmem:[%s3 + $0x4] sm:$0xf]
        %v3806 = vld [vmem:[%s3 + $0x8] sm:$0xf]
        %v3807 = vld [vmem:[%s3 + $0xc] sm:$0xf]
        %v3808 = vld [vmem:[%s3 + $0x10] sm:$0xf]
        %v3809 = vld [vmem:[%s3 + $0x14] sm:$0xf]
        %v3810 = vld [vmem:[%s3 + $0x18] sm:$0xf]
        %v3811 = vld [vmem:[%s3 + $0x1c] sm:$0xf]
        %v3812 = vld [vmem:[%s3 + $0x20] sm:$0xf]
        %v3813 = vld [vmem:[%s3 + $0x24] sm:$0xf]
        %v3814 = vld [vmem:[%s3 + $0x28] sm:$0xf]
        %v3815 = vld [vmem:[%s3 + $0x2c] sm:$0xf]
        %v3816 = vld [vmem:[%s3 + $0x30] sm:$0xf]
        %v3817 = vld [vmem:[%s3 + $0x34] sm:$0xf]
        %v3818 = vld [vmem:[%s3 + $0x38] sm:$0xf]
        %v3819 = vld [vmem:[%s3 + $0x3c] sm:$0xf]
        %v3820 = vld [vmem:[%s4] sm:$0x1]
        %v3822 = vlaneseq
        %v3823 = vshrl.u32 %v3822, 7
        %v3824 = vsub.s32 0, %v3823
        %v3825 = vrot.slane %v3820, %v3824
        %v3843 = vunpack.c.l.b16 %v3804
        %v3844 = vunpack.c.l.b16 %v3805
        %v3845 = vunpack.c.l.b16 %v3806
        %v3846 = vunpack.c.l.b16 %v3807
        %v3847 = vunpack.c.l.b16 %v3808
        %v3848 = vunpack.c.l.b16 %v3809
        %v3849 = vunpack.c.l.b16 %v3810
        %v3850 = vunpack.c.l.b16 %v3811
        %v3851 = vunpack.c.l.b16 %v3812
        %v3852 = vunpack.c.l.b16 %v3813
        %v3853 = vunpack.c.l.b16 %v3814
        %v3854 = vunpack.c.l.b16 %v3815
        %v3855 = vunpack.c.l.b16 %v3816
        %v3856 = vunpack.c.l.b16 %v3817
        %v3857 = vunpack.c.l.b16 %v3818
        %v3858 = vunpack.c.l.b16 %v3819
        %v3859 = vpack.c.b16 %v3844, %v3843
        %v3860 = vpack.c.b16 %v3846, %v3845
        %v3861 = vpack.c.b16 %v3848, %v3847
        %v3862 = vpack.c.b16 %v3850, %v3849
        %v3863 = vpack.c.b16 %v3852, %v3851
        %v3864 = vpack.c.b16 %v3854, %v3853
        %v3865 = vpack.c.b16 %v3856, %v3855
        %v3866 = vpack.c.b16 %v3858, %v3857
        %3875 = vmatprep.subr.bf16.mxu0 0
        %3876 = vmatpush1.bf16.msra.mxu0 %v3866
        %3877 = vmatprep.subr.bf16.mxu0 0
        %3878 = vmatpush1.bf16.msra.mxu0 %v3865
        %3879 = vmatprep.subr.bf16.mxu0 0
        %3880 = vmatpush1.bf16.msra.mxu0 %v3864
        %3881 = vmatprep.subr.bf16.mxu0 0
        %3882 = vmatpush1.bf16.msra.mxu0 %v3863
        %3883 = vmatprep.subr.bf16.mxu0 0
        %3884 = vmatpush1.bf16.msra.mxu0 %v3862
        %3885 = vmatprep.subr.bf16.mxu0 0
        %3886 = vmatpush1.bf16.msra.mxu0 %v3861
        %3887 = vmatprep.subr.bf16.mxu0 0
        %3888 = vmatpush1.bf16.msra.mxu0 %v3860
        %3889 = vmatprep.subr.bf16.mxu0 0
        %3890 = vmatpush1.bf16.msra.mxu0 %v3859
        %3891 = vmatprep.subr.bf16.mxu0 0
        %3892 = vmatpush2.bf16.msra.mxu0 0
        %3893 = vmatprep.subr.bf16.mxu0 0
        %3894 = vmatpush2.bf16.msra.mxu0 0
        %3895 = vmatprep.subr.bf16.mxu0 0
        %3896 = vmatpush2.bf16.msra.mxu0 0
        %3897 = vmatprep.subr.bf16.mxu0 0
        %3898 = vmatpush2.bf16.msra.mxu0 0
        %3899 = vmatprep.subr.bf16.mxu0 0
        %3900 = vmatpush2.bf16.msra.mxu0 0
        %3901 = vmatprep.subr.bf16.mxu0 0
        %3902 = vmatpush2.bf16.msra.mxu0 0
        %3903 = vmatprep.subr.bf16.mxu0 0
        %3904 = vmatpush2.bf16.msra.mxu0 0
        %3905 = vmatprep.subr.bf16.mxu0 0
        %3906 = vmatpush2.bf16.msra.mxu0 0
        %3907 = vmatprep.mubr.bf16.mxu0 0
        %3908 = vmatmul.mubr.bf16.gmra.mxu0 %v3740
        %v3909 = vpop.f32.mrf.mxu0
        %v3910 = vadd.f32 %v3825, %v3909
        %v3911 = vpop.f32.mrf.mxu0
        %v3912 = vpop.f32.mrf.mxu0
        %v3913 = vadd.f32 %v3825, %v3912
        %v3914 = vpop.f32.mrf.mxu0
        %3915 = vmatprep.mubr.bf16.mxu0 0
        %3916 = vmatmul.mubr.bf16.gmra.mxu0 %v3741
        %v3917 = vpop.f32.mrf.mxu0
        %v3918 = vadd.f32 %v3825, %v3917
        %v3919 = vpop.f32.mrf.mxu0
        %v3920 = vpop.f32.mrf.mxu0
        %v3921 = vadd.f32 %v3825, %v3920
        %v3922 = vpop.f32.mrf.mxu0
        %3923 = vmatprep.mubr.bf16.mxu0 0
        %3924 = vmatmul.mubr.bf16.gmra.mxu0 %v3742
        %v3925 = vpop.f32.mrf.mxu0
        %v3926 = vadd.f32 %v3825, %v3925
        %v3927 = vpop.f32.mrf.mxu0
        %v3928 = vpop.f32.mrf.mxu0
        %v3929 = vadd.f32 %v3825, %v3928
        %v3930 = vpop.f32.mrf.mxu0
        %3931 = vmatprep.mubr.bf16.mxu0 0
        %3932 = vmatmul.mubr.bf16.gmra.mxu0 %v3743
        %v3933 = vpop.f32.mrf.mxu0
        %v3934 = vadd.f32 %v3825, %v3933
        %v3935 = vpop.f32.mrf.mxu0
        %v3936 = vpop.f32.mrf.mxu0
        %v3937 = vadd.f32 %v3825, %v3936
        %v3938 = vpop.f32.mrf.mxu0
        %3939 = vmatprep.mubr.bf16.mxu0 0
        %3940 = vmatmul.mubr.bf16.gmra.mxu0 %v3744
        %v3941 = vpop.f32.mrf.mxu0
        %v3942 = vadd.f32 %v3825, %v3941
        %v3943 = vpop.f32.mrf.mxu0
        %v3944 = vpop.f32.mrf.mxu0
        %v3945 = vadd.f32 %v3825, %v3944
        %v3946 = vpop.f32.mrf.mxu0
        %3947 = vmatprep.mubr.bf16.mxu0 0
        %3948 = vmatmul.mubr.bf16.gmra.mxu0 %v3745
        %v3949 = vpop.f32.mrf.mxu0
        %v3950 = vadd.f32 %v3825, %v3949
        %v3951 = vpop.f32.mrf.mxu0
        %v3952 = vpop.f32.mrf.mxu0
        %v3953 = vadd.f32 %v3825, %v3952
        %v3954 = vpop.f32.mrf.mxu0
        %3955 = vmatprep.mubr.bf16.mxu0 0
        %3956 = vmatmul.mubr.bf16.gmra.mxu0 %v3746
        %v3957 = vpop.f32.mrf.mxu0
        %v3958 = vadd.f32 %v3825, %v3957
        %v3959 = vpop.f32.mrf.mxu0
        %v3960 = vpop.f32.mrf.mxu0
        %v3961 = vadd.f32 %v3825, %v3960
        %v3962 = vpop.f32.mrf.mxu0
        %3963 = vmatprep.mubr.bf16.mxu0 0
        %3964 = vmatmul.mubr.bf16.gmra.mxu0 %v3747
        %v3965 = vpop.f32.mrf.mxu0
        %v3966 = vadd.f32 %v3825, %v3965
        %v3967 = vpop.f32.mrf.mxu0
        %v3968 = vpop.f32.mrf.mxu0
        %v3969 = vadd.f32 %v3825, %v3968
        %v3970 = vpop.f32.mrf.mxu0
        %3971 = vmatprep.mubr.bf16.mxu0 0
        %3972 = vmatmul.mubr.bf16.gmra.mxu0 %v3748
        %v3973 = vpop.f32.mrf.mxu0
        %v3974 = vadd.f32 %v3825, %v3973
        %v3975 = vpop.f32.mrf.mxu0
        %v3976 = vpop.f32.mrf.mxu0
        %v3977 = vadd.f32 %v3825, %v3976
        %v3978 = vpop.f32.mrf.mxu0
        %3979 = vmatprep.mubr.bf16.mxu0 0
        %3980 = vmatmul.mubr.bf16.gmra.mxu0 %v3749
        %v3981 = vpop.f32.mrf.mxu0
        %v3982 = vadd.f32 %v3825, %v3981
        %v3983 = vpop.f32.mrf.mxu0
        %v3984 = vpop.f32.mrf.mxu0
        %v3985 = vadd.f32 %v3825, %v3984
        %v3986 = vpop.f32.mrf.mxu0
        %3987 = vmatprep.mubr.bf16.mxu0 0
        %3988 = vmatmul.mubr.bf16.gmra.mxu0 %v3750
        %v3989 = vpop.f32.mrf.mxu0
        %v3990 = vadd.f32 %v3825, %v3989
        %v3991 = vpop.f32.mrf.mxu0
        %v3992 = vpop.f32.mrf.mxu0
        %v3993 = vadd.f32 %v3825, %v3992
        %v3994 = vpop.f32.mrf.mxu0
        %3995 = vmatprep.mubr.bf16.mxu0 0
        %3996 = vmatmul.mubr.bf16.gmra.mxu0 %v3751
        %v3997 = vpop.f32.mrf.mxu0
        %v3998 = vadd.f32 %v3825, %v3997
        %v3999 = vpop.f32.mrf.mxu0
        %v4000 = vpop.f32.mrf.mxu0
        %v4001 = vadd.f32 %v3825, %v4000
        %v4002 = vpop.f32.mrf.mxu0
        %4003 = vmatprep.mubr.bf16.mxu0 0
        %4004 = vmatmul.mubr.bf16.gmra.mxu0 %v3752
        %v4005 = vpop.f32.mrf.mxu0
        %v4006 = vadd.f32 %v3825, %v4005
        %v4007 = vpop.f32.mrf.mxu0
        %v4008 = vpop.f32.mrf.mxu0
        %v4009 = vadd.f32 %v3825, %v4008
        %v4010 = vpop.f32.mrf.mxu0
        %4011 = vmatprep.mubr.bf16.mxu0 0
        %4012 = vmatmul.mubr.bf16.gmra.mxu0 %v3753
        %v4013 = vpop.f32.mrf.mxu0
        %v4014 = vadd.f32 %v3825, %v4013
        %v4015 = vpop.f32.mrf.mxu0
        %v4016 = vpop.f32.mrf.mxu0
        %v4017 = vadd.f32 %v3825, %v4016
        %v4018 = vpop.f32.mrf.mxu0
        %4019 = vmatprep.mubr.bf16.mxu0 0
        %4020 = vmatmul.mubr.bf16.gmra.mxu0 %v3754
        %v4021 = vpop.f32.mrf.mxu0
        %v4022 = vadd.f32 %v3825, %v4021
        %v4023 = vpop.f32.mrf.mxu0
        %v4024 = vpop.f32.mrf.mxu0
        %v4025 = vadd.f32 %v3825, %v4024
        %v4026 = vpop.f32.mrf.mxu0
        %4027 = vmatprep.mubr.bf16.mxu0 0
        %4028 = vmatmul.mubr.bf16.gmra.mxu0 %v3755
        %v4029 = vpop.f32.mrf.mxu0
        %v4030 = vadd.f32 %v3825, %v4029
        %v4031 = vpop.f32.mrf.mxu0
        %v4032 = vpop.f32.mrf.mxu0
        %v4033 = vadd.f32 %v3825, %v4032
        %v4034 = vpop.f32.mrf.mxu0
        %4035 = vmatprep.mubr.bf16.mxu0 0
        %4036 = vmatmul.mubr.bf16.gmra.mxu0 %v3756
        %v4037 = vpop.f32.mrf.mxu0
        %v4038 = vadd.f32 %v3825, %v4037
        %v4039 = vpop.f32.mrf.mxu0
        %v4040 = vpop.f32.mrf.mxu0
        %v4041 = vadd.f32 %v3825, %v4040
        %v4042 = vpop.f32.mrf.mxu0
        %4043 = vmatprep.mubr.bf16.mxu0 0
        %4044 = vmatmul.mubr.bf16.gmra.mxu0 %v3757
        %v4045 = vpop.f32.mrf.mxu0
        %v4046 = vadd.f32 %v3825, %v4045
        %v4047 = vpop.f32.mrf.mxu0
        %v4048 = vpop.f32.mrf.mxu0
        %v4049 = vadd.f32 %v3825, %v4048
        %v4050 = vpop.f32.mrf.mxu0
        %4051 = vmatprep.mubr.bf16.mxu0 0
        %4052 = vmatmul.mubr.bf16.gmra.mxu0 %v3758
        %v4053 = vpop.f32.mrf.mxu0
        %v4054 = vadd.f32 %v3825, %v4053
        %v4055 = vpop.f32.mrf.mxu0
        %v4056 = vpop.f32.mrf.mxu0
        %v4057 = vadd.f32 %v3825, %v4056
        %v4058 = vpop.f32.mrf.mxu0
        %4059 = vmatprep.mubr.bf16.mxu0 0
        %4060 = vmatmul.mubr.bf16.gmra.mxu0 %v3759
        %v4061 = vpop.f32.mrf.mxu0
        %v4062 = vadd.f32 %v3825, %v4061
        %v4063 = vpop.f32.mrf.mxu0
        %v4064 = vpop.f32.mrf.mxu0
        %v4065 = vadd.f32 %v3825, %v4064
        %v4066 = vpop.f32.mrf.mxu0
        %4067 = vmatprep.mubr.bf16.mxu0 0
        %4068 = vmatmul.mubr.bf16.gmra.mxu0 %v3760
        %v4069 = vpop.f32.mrf.mxu0
        %v4070 = vadd.f32 %v3825, %v4069
        %v4071 = vpop.f32.mrf.mxu0
        %v4072 = vpop.f32.mrf.mxu0
        %v4073 = vadd.f32 %v3825, %v4072
        %v4074 = vpop.f32.mrf.mxu0
        %4075 = vmatprep.mubr.bf16.mxu0 0
        %4076 = vmatmul.mubr.bf16.gmra.mxu0 %v3761
        %v4077 = vpop.f32.mrf.mxu0
        %v4078 = vadd.f32 %v3825, %v4077
        %v4079 = vpop.f32.mrf.mxu0
        %v4080 = vpop.f32.mrf.mxu0
        %v4081 = vadd.f32 %v3825, %v4080
        %v4082 = vpop.f32.mrf.mxu0
        %4083 = vmatprep.mubr.bf16.mxu0 0
        %4084 = vmatmul.mubr.bf16.gmra.mxu0 %v3762
        %v4085 = vpop.f32.mrf.mxu0
        %v4086 = vadd.f32 %v3825, %v4085
        %v4087 = vpop.f32.mrf.mxu0
        %v4088 = vpop.f32.mrf.mxu0
        %v4089 = vadd.f32 %v3825, %v4088
        %v4090 = vpop.f32.mrf.mxu0
        %4091 = vmatprep.mubr.bf16.mxu0 0
        %4092 = vmatmul.mubr.bf16.gmra.mxu0 %v3763
        %v4093 = vpop.f32.mrf.mxu0
        %v4094 = vadd.f32 %v3825, %v4093
        %v4095 = vpop.f32.mrf.mxu0
        %v4096 = vpop.f32.mrf.mxu0
        %v4097 = vadd.f32 %v3825, %v4096
        %v4098 = vpop.f32.mrf.mxu0
        %4099 = vmatprep.mubr.bf16.mxu0 0
        %4100 = vmatmul.mubr.bf16.gmra.mxu0 %v3764
        %v4101 = vpop.f32.mrf.mxu0
        %v4102 = vadd.f32 %v3825, %v4101
        %v4103 = vpop.f32.mrf.mxu0
        %v4104 = vpop.f32.mrf.mxu0
        %v4105 = vadd.f32 %v3825, %v4104
        %v4106 = vpop.f32.mrf.mxu0
        %4107 = vmatprep.mubr.bf16.mxu0 0
        %4108 = vmatmul.mubr.bf16.gmra.mxu0 %v3765
        %v4109 = vpop.f32.mrf.mxu0
        %v4110 = vadd.f32 %v3825, %v4109
        %v4111 = vpop.f32.mrf.mxu0
        %v4112 = vpop.f32.mrf.mxu0
        %v4113 = vadd.f32 %v3825, %v4112
        %v4114 = vpop.f32.mrf.mxu0
        %4115 = vmatprep.mubr.bf16.mxu0 0
        %4116 = vmatmul.mubr.bf16.gmra.mxu0 %v3766
        %v4117 = vpop.f32.mrf.mxu0
        %v4118 = vadd.f32 %v3825, %v4117
        %v4119 = vpop.f32.mrf.mxu0
        %v4120 = vpop.f32.mrf.mxu0
        %v4121 = vadd.f32 %v3825, %v4120
        %v4122 = vpop.f32.mrf.mxu0
        %4123 = vmatprep.mubr.bf16.mxu0 0
        %4124 = vmatmul.mubr.bf16.gmra.mxu0 %v3767
        %v4125 = vpop.f32.mrf.mxu0
        %v4126 = vadd.f32 %v3825, %v4125
        %v4127 = vpop.f32.mrf.mxu0
        %v4128 = vpop.f32.mrf.mxu0
        %v4129 = vadd.f32 %v3825, %v4128
        %v4130 = vpop.f32.mrf.mxu0
        %4131 = vmatprep.mubr.bf16.mxu0 0
        %4132 = vmatmul.mubr.bf16.gmra.mxu0 %v3768
        %v4133 = vpop.f32.mrf.mxu0
        %v4134 = vadd.f32 %v3825, %v4133
        %v4135 = vpop.f32.mrf.mxu0
        %v4136 = vpop.f32.mrf.mxu0
        %v4137 = vadd.f32 %v3825, %v4136
        %v4138 = vpop.f32.mrf.mxu0
        %4139 = vmatprep.mubr.bf16.mxu0 0
        %4140 = vmatmul.mubr.bf16.gmra.mxu0 %v3769
        %v4141 = vpop.f32.mrf.mxu0
        %v4142 = vadd.f32 %v3825, %v4141
        %v4143 = vpop.f32.mrf.mxu0
        %v4144 = vpop.f32.mrf.mxu0
        %v4145 = vadd.f32 %v3825, %v4144
        %v4146 = vpop.f32.mrf.mxu0
        %4147 = vmatprep.mubr.bf16.mxu0 0
        %4148 = vmatmul.mubr.bf16.gmra.mxu0 %v3770
        %v4149 = vpop.f32.mrf.mxu0
        %v4150 = vadd.f32 %v3825, %v4149
        %v4151 = vpop.f32.mrf.mxu0
        %v4152 = vpop.f32.mrf.mxu0
        %v4153 = vadd.f32 %v3825, %v4152
        %v4154 = vpop.f32.mrf.mxu0
        %4155 = vmatprep.mubr.bf16.mxu0 0
        %4156 = vmatmul.mubr.bf16.gmra.mxu0 %v3771
        %v4157 = vpop.f32.mrf.mxu0
        %v4158 = vadd.f32 %v3825, %v4157
        %v4159 = vpop.f32.mrf.mxu0
        %v4160 = vpop.f32.mrf.mxu0
        %v4161 = vadd.f32 %v3825, %v4160
        %v4162 = vpop.f32.mrf.mxu0
        %4163 = vmatprep.mubr.bf16.mxu0 0
        %4164 = vmatmul.mubr.bf16.gmra.mxu0 %v3772
        %v4165 = vpop.f32.mrf.mxu0
        %v4166 = vadd.f32 %v3825, %v4165
        %v4167 = vpop.f32.mrf.mxu0
        %v4168 = vpop.f32.mrf.mxu0
        %v4169 = vadd.f32 %v3825, %v4168
        %v4170 = vpop.f32.mrf.mxu0
        %4171 = vmatprep.mubr.bf16.mxu0 0
        %4172 = vmatmul.mubr.bf16.gmra.mxu0 %v3773
        %v4173 = vpop.f32.mrf.mxu0
        %v4174 = vadd.f32 %v3825, %v4173
        %v4175 = vpop.f32.mrf.mxu0
        %v4176 = vpop.f32.mrf.mxu0
        %v4177 = vadd.f32 %v3825, %v4176
        %v4178 = vpop.f32.mrf.mxu0
        %4179 = vmatprep.mubr.bf16.mxu0 0
        %4180 = vmatmul.mubr.bf16.gmra.mxu0 %v3774
        %v4181 = vpop.f32.mrf.mxu0
        %v4182 = vadd.f32 %v3825, %v4181
        %v4183 = vpop.f32.mrf.mxu0
        %v4184 = vpop.f32.mrf.mxu0
        %v4185 = vadd.f32 %v3825, %v4184
        %v4186 = vpop.f32.mrf.mxu0
        %4187 = vmatprep.mubr.bf16.mxu0 0
        %4188 = vmatmul.mubr.bf16.gmra.mxu0 %v3775
        %v4189 = vpop.f32.mrf.mxu0
        %v4190 = vadd.f32 %v3825, %v4189
        %v4191 = vpop.f32.mrf.mxu0
        %v4192 = vpop.f32.mrf.mxu0
        %v4193 = vadd.f32 %v3825, %v4192
        %v4194 = vpop.f32.mrf.mxu0
        %4195 = vmatprep.mubr.bf16.mxu0 0
        %4196 = vmatmul.mubr.bf16.gmra.mxu0 %v3776
        %v4197 = vpop.f32.mrf.mxu0
        %v4198 = vadd.f32 %v3825, %v4197
        %v4199 = vpop.f32.mrf.mxu0
        %v4200 = vpop.f32.mrf.mxu0
        %v4201 = vadd.f32 %v3825, %v4200
        %v4202 = vpop.f32.mrf.mxu0
        %4203 = vmatprep.mubr.bf16.mxu0 0
        %4204 = vmatmul.mubr.bf16.gmra.mxu0 %v3777
        %v4205 = vpop.f32.mrf.mxu0
        %v4206 = vadd.f32 %v3825, %v4205
        %v4207 = vpop.f32.mrf.mxu0
        %v4208 = vpop.f32.mrf.mxu0
        %v4209 = vadd.f32 %v3825, %v4208
        %v4210 = vpop.f32.mrf.mxu0
        %4211 = vmatprep.mubr.bf16.mxu0 0
        %4212 = vmatmul.mubr.bf16.gmra.mxu0 %v3778
        %v4213 = vpop.f32.mrf.mxu0
        %v4214 = vadd.f32 %v3825, %v4213
        %v4215 = vpop.f32.mrf.mxu0
        %v4216 = vpop.f32.mrf.mxu0
        %v4217 = vadd.f32 %v3825, %v4216
        %v4218 = vpop.f32.mrf.mxu0
        %4219 = vmatprep.mubr.bf16.mxu0 0
        %4220 = vmatmul.mubr.bf16.gmra.mxu0 %v3779
        %v4221 = vpop.f32.mrf.mxu0
        %v4222 = vadd.f32 %v3825, %v4221
        %v4223 = vpop.f32.mrf.mxu0
        %v4224 = vpop.f32.mrf.mxu0
        %v4225 = vadd.f32 %v3825, %v4224
        %v4226 = vpop.f32.mrf.mxu0
        %4227 = vmatprep.mubr.bf16.mxu0 0
        %4228 = vmatmul.mubr.bf16.gmra.mxu0 %v3780
        %v4229 = vpop.f32.mrf.mxu0
        %v4230 = vadd.f32 %v3825, %v4229
        %v4231 = vpop.f32.mrf.mxu0
        %v4232 = vpop.f32.mrf.mxu0
        %v4233 = vadd.f32 %v3825, %v4232
        %v4234 = vpop.f32.mrf.mxu0
        %4235 = vmatprep.mubr.bf16.mxu0 0
        %4236 = vmatmul.mubr.bf16.gmra.mxu0 %v3781
        %v4237 = vpop.f32.mrf.mxu0
        %v4238 = vadd.f32 %v3825, %v4237
        %v4239 = vpop.f32.mrf.mxu0
        %v4240 = vpop.f32.mrf.mxu0
        %v4241 = vadd.f32 %v3825, %v4240
        %v4242 = vpop.f32.mrf.mxu0
        %4243 = vmatprep.mubr.bf16.mxu0 0
        %4244 = vmatmul.mubr.bf16.gmra.mxu0 %v3782
        %v4245 = vpop.f32.mrf.mxu0
        %v4246 = vadd.f32 %v3825, %v4245
        %v4247 = vpop.f32.mrf.mxu0
        %v4248 = vpop.f32.mrf.mxu0
        %v4249 = vadd.f32 %v3825, %v4248
        %v4250 = vpop.f32.mrf.mxu0
        %4251 = vmatprep.mubr.bf16.mxu0 0
        %4252 = vmatmul.mubr.bf16.gmra.mxu0 %v3783
        %v4253 = vpop.f32.mrf.mxu0
        %v4254 = vadd.f32 %v3825, %v4253
        %v4255 = vpop.f32.mrf.mxu0
        %v4256 = vpop.f32.mrf.mxu0
        %v4257 = vadd.f32 %v3825, %v4256
        %v4258 = vpop.f32.mrf.mxu0
        %4259 = vmatprep.mubr.bf16.mxu0 0
        %4260 = vmatmul.mubr.bf16.gmra.mxu0 %v3784
        %v4261 = vpop.f32.mrf.mxu0
        %v4262 = vadd.f32 %v3825, %v4261
        %v4263 = vpop.f32.mrf.mxu0
        %v4264 = vpop.f32.mrf.mxu0
        %v4265 = vadd.f32 %v3825, %v4264
        %v4266 = vpop.f32.mrf.mxu0
        %4267 = vmatprep.mubr.bf16.mxu0 0
        %4268 = vmatmul.mubr.bf16.gmra.mxu0 %v3785
        %v4269 = vpop.f32.mrf.mxu0
        %v4270 = vadd.f32 %v3825, %v4269
        %v4271 = vpop.f32.mrf.mxu0
        %v4272 = vpop.f32.mrf.mxu0
        %v4273 = vadd.f32 %v3825, %v4272
        %v4274 = vpop.f32.mrf.mxu0
        %4275 = vmatprep.mubr.bf16.mxu0 0
        %4276 = vmatmul.mubr.bf16.gmra.mxu0 %v3786
        %v4277 = vpop.f32.mrf.mxu0
        %v4278 = vadd.f32 %v3825, %v4277
        %v4279 = vpop.f32.mrf.mxu0
        %v4280 = vpop.f32.mrf.mxu0
        %v4281 = vadd.f32 %v3825, %v4280
        %v4282 = vpop.f32.mrf.mxu0
        %4283 = vmatprep.mubr.bf16.mxu0 0
        %4284 = vmatmul.mubr.bf16.gmra.mxu0 %v3787
        %v4285 = vpop.f32.mrf.mxu0
        %v4286 = vadd.f32 %v3825, %v4285
        %v4287 = vpop.f32.mrf.mxu0
        %v4288 = vpop.f32.mrf.mxu0
        %v4289 = vadd.f32 %v3825, %v4288
        %v4290 = vpop.f32.mrf.mxu0
        %4291 = vmatprep.mubr.bf16.mxu0 0
        %4292 = vmatmul.mubr.bf16.gmra.mxu0 %v3788
        %v4293 = vpop.f32.mrf.mxu0
        %v4294 = vadd.f32 %v3825, %v4293
        %v4295 = vpop.f32.mrf.mxu0
        %v4296 = vpop.f32.mrf.mxu0
        %v4297 = vadd.f32 %v3825, %v4296
        %v4298 = vpop.f32.mrf.mxu0
        %4299 = vmatprep.mubr.bf16.mxu0 0
        %4300 = vmatmul.mubr.bf16.gmra.mxu0 %v3789
        %v4301 = vpop.f32.mrf.mxu0
        %v4302 = vadd.f32 %v3825, %v4301
        %v4303 = vpop.f32.mrf.mxu0
        %v4304 = vpop.f32.mrf.mxu0
        %v4305 = vadd.f32 %v3825, %v4304
        %v4306 = vpop.f32.mrf.mxu0
        %4307 = vmatprep.mubr.bf16.mxu0 0
        %4308 = vmatmul.mubr.bf16.gmra.mxu0 %v3790
        %v4309 = vpop.f32.mrf.mxu0
        %v4310 = vadd.f32 %v3825, %v4309
        %v4311 = vpop.f32.mrf.mxu0
        %v4312 = vpop.f32.mrf.mxu0
        %v4313 = vadd.f32 %v3825, %v4312
        %v4314 = vpop.f32.mrf.mxu0
        %4315 = vmatprep.mubr.bf16.mxu0 0
        %4316 = vmatmul.mubr.bf16.gmra.mxu0 %v3791
        %v4317 = vpop.f32.mrf.mxu0
        %v4318 = vadd.f32 %v3825, %v4317
        %v4319 = vpop.f32.mrf.mxu0
        %v4320 = vpop.f32.mrf.mxu0
        %v4321 = vadd.f32 %v3825, %v4320
        %v4322 = vpop.f32.mrf.mxu0
        %4323 = vmatprep.mubr.bf16.mxu0 0
        %4324 = vmatmul.mubr.bf16.gmra.mxu0 %v3792
        %v4325 = vpop.f32.mrf.mxu0
        %v4326 = vadd.f32 %v3825, %v4325
        %v4327 = vpop.f32.mrf.mxu0
        %v4328 = vpop.f32.mrf.mxu0
        %v4329 = vadd.f32 %v3825, %v4328
        %v4330 = vpop.f32.mrf.mxu0
        %4331 = vmatprep.mubr.bf16.mxu0 0
        %4332 = vmatmul.mubr.bf16.gmra.mxu0 %v3793
        %v4333 = vpop.f32.mrf.mxu0
        %v4334 = vadd.f32 %v3825, %v4333
        %v4335 = vpop.f32.mrf.mxu0
        %v4336 = vpop.f32.mrf.mxu0
        %v4337 = vadd.f32 %v3825, %v4336
        %v4338 = vpop.f32.mrf.mxu0
        %4339 = vmatprep.mubr.bf16.mxu0 0
        %4340 = vmatmul.mubr.bf16.gmra.mxu0 %v3794
        %v4341 = vpop.f32.mrf.mxu0
        %v4342 = vadd.f32 %v3825, %v4341
        %v4343 = vpop.f32.mrf.mxu0
        %v4344 = vpop.f32.mrf.mxu0
        %v4345 = vadd.f32 %v3825, %v4344
        %v4346 = vpop.f32.mrf.mxu0
        %4347 = vmatprep.mubr.bf16.mxu0 0
        %4348 = vmatmul.mubr.bf16.gmra.mxu0 %v3795
        %v4349 = vpop.f32.mrf.mxu0
        %v4350 = vadd.f32 %v3825, %v4349
        %v4351 = vpop.f32.mrf.mxu0
        %v4352 = vpop.f32.mrf.mxu0
        %v4353 = vadd.f32 %v3825, %v4352
        %v4354 = vpop.f32.mrf.mxu0
        %4355 = vmatprep.mubr.bf16.mxu0 0
        %4356 = vmatmul.mubr.bf16.gmra.mxu0 %v3796
        %v4357 = vpop.f32.mrf.mxu0
        %v4358 = vadd.f32 %v3825, %v4357
        %v4359 = vpop.f32.mrf.mxu0
        %v4360 = vpop.f32.mrf.mxu0
        %v4361 = vadd.f32 %v3825, %v4360
        %v4362 = vpop.f32.mrf.mxu0
        %4363 = vmatprep.mubr.bf16.mxu0 0
        %4364 = vmatmul.mubr.bf16.gmra.mxu0 %v3797
        %v4365 = vpop.f32.mrf.mxu0
        %v4366 = vadd.f32 %v3825, %v4365
        %v4367 = vpop.f32.mrf.mxu0
        %v4368 = vpop.f32.mrf.mxu0
        %v4369 = vadd.f32 %v3825, %v4368
        %v4370 = vpop.f32.mrf.mxu0
        %4371 = vmatprep.mubr.bf16.mxu0 0
        %4372 = vmatmul.mubr.bf16.gmra.mxu0 %v3798
        %v4373 = vpop.f32.mrf.mxu0
        %v4374 = vadd.f32 %v3825, %v4373
        %v4375 = vpop.f32.mrf.mxu0
        %v4376 = vpop.f32.mrf.mxu0
        %v4377 = vadd.f32 %v3825, %v4376
        %v4378 = vpop.f32.mrf.mxu0
        %4379 = vmatprep.mubr.bf16.mxu0 0
        %4380 = vmatmul.mubr.bf16.gmra.mxu0 %v3799
        %v4381 = vpop.f32.mrf.mxu0
        %v4382 = vadd.f32 %v3825, %v4381
        %v4383 = vpop.f32.mrf.mxu0
        %v4384 = vpop.f32.mrf.mxu0
        %v4385 = vadd.f32 %v3825, %v4384
        %v4386 = vpop.f32.mrf.mxu0
        %4387 = vmatprep.mubr.bf16.mxu0 0
        %4388 = vmatmul.mubr.bf16.gmra.mxu0 %v3800
        %v4389 = vpop.f32.mrf.mxu0
        %v4390 = vadd.f32 %v3825, %v4389
        %v4391 = vpop.f32.mrf.mxu0
        %v4392 = vpop.f32.mrf.mxu0
        %v4393 = vadd.f32 %v3825, %v4392
        %v4394 = vpop.f32.mrf.mxu0
        %4395 = vmatprep.mubr.bf16.mxu0 0
        %4396 = vmatmul.mubr.bf16.gmra.mxu0 %v3801
        %v4397 = vpop.f32.mrf.mxu0
        %v4398 = vadd.f32 %v3825, %v4397
        %v4399 = vpop.f32.mrf.mxu0
        %v4400 = vpop.f32.mrf.mxu0
        %v4401 = vadd.f32 %v3825, %v4400
        %v4402 = vpop.f32.mrf.mxu0
        %4403 = vmatprep.mubr.bf16.mxu0 0
        %4404 = vmatmul.mubr.bf16.gmra.mxu0 %v3802
        %v4405 = vpop.f32.mrf.mxu0
        %v4406 = vadd.f32 %v3825, %v4405
        %v4407 = vpop.f32.mrf.mxu0
        %v4408 = vpop.f32.mrf.mxu0
        %v4409 = vadd.f32 %v3825, %v4408
        %v4410 = vpop.f32.mrf.mxu0
        %4411 = vmatprep.mubr.bf16.mxu0 0
        %4412 = vmatmul.mubr.bf16.gmra.mxu0 %v3803
        %v4413 = vpop.f32.mrf.mxu0
        %v4414 = vadd.f32 %v3825, %v4413
        %v4415 = vpop.f32.mrf.mxu0
        %v4416 = vpop.f32.mrf.mxu0
        %v4417 = vadd.f32 %v3825, %v4416
        %v4418 = vpop.f32.mrf.mxu0
        %4419 = vdwg.mxu0
        %v4420 = vmax.f32 %v3910, 0.0
        %v4421 = vmax.f32 %v3913, 0.0
        %v4422 = vmax.f32 %v3918, 0.0
        %v4423 = vmax.f32 %v3921, 0.0
        %v4424 = vmax.f32 %v3926, 0.0
        %v4425 = vmax.f32 %v3929, 0.0
        %v4426 = vmax.f32 %v3934, 0.0
        %v4427 = vmax.f32 %v3937, 0.0
        %v4428 = vmax.f32 %v3942, 0.0
        %v4429 = vmax.f32 %v3945, 0.0
        %v4430 = vmax.f32 %v3950, 0.0
        %v4431 = vmax.f32 %v3953, 0.0
        %v4432 = vmax.f32 %v3958, 0.0
        %v4433 = vmax.f32 %v3961, 0.0
        %v4434 = vmax.f32 %v3966, 0.0
        %v4435 = vmax.f32 %v3969, 0.0
        %v4436 = vmax.f32 %v3974, 0.0
        %v4437 = vmax.f32 %v3977, 0.0
        %v4438 = vmax.f32 %v3982, 0.0
        %v4439 = vmax.f32 %v3985, 0.0
        %v4440 = vmax.f32 %v3990, 0.0
        %v4441 = vmax.f32 %v3993, 0.0
        %v4442 = vmax.f32 %v3998, 0.0
        %v4443 = vmax.f32 %v4001, 0.0
        %v4444 = vmax.f32 %v4006, 0.0
        %v4445 = vmax.f32 %v4009, 0.0
        %v4446 = vmax.f32 %v4014, 0.0
        %v4447 = vmax.f32 %v4017, 0.0
        %v4448 = vmax.f32 %v4022, 0.0
        %v4449 = vmax.f32 %v4025, 0.0
        %v4450 = vmax.f32 %v4030, 0.0
        %v4451 = vmax.f32 %v4033, 0.0
        %v4452 = vmax.f32 %v4038, 0.0
        %v4453 = vmax.f32 %v4041, 0.0
        %v4454 = vmax.f32 %v4046, 0.0
        %v4455 = vmax.f32 %v4049, 0.0
        %v4456 = vmax.f32 %v4054, 0.0
        %v4457 = vmax.f32 %v4057, 0.0
        %v4458 = vmax.f32 %v4062, 0.0
        %v4459 = vmax.f32 %v4065, 0.0
        %v4460 = vmax.f32 %v4070, 0.0
        %v4461 = vmax.f32 %v4073, 0.0
        %v4462 = vmax.f32 %v4078, 0.0
        %v4463 = vmax.f32 %v4081, 0.0
        %v4464 = vmax.f32 %v4086, 0.0
        %v4465 = vmax.f32 %v4089, 0.0
        %v4466 = vmax.f32 %v4094, 0.0
        %v4467 = vmax.f32 %v4097, 0.0
        %v4468 = vmax.f32 %v4102, 0.0
        %v4469 = vmax.f32 %v4105, 0.0
        %v4470 = vmax.f32 %v4110, 0.0
        %v4471 = vmax.f32 %v4113, 0.0
        %v4472 = vmax.f32 %v4118, 0.0
        %v4473 = vmax.f32 %v4121, 0.0
        %v4474 = vmax.f32 %v4126, 0.0
        %v4475 = vmax.f32 %v4129, 0.0
        %v4476 = vmax.f32 %v4134, 0.0
        %v4477 = vmax.f32 %v4137, 0.0
        %v4478 = vmax.f32 %v4142, 0.0
        %v4479 = vmax.f32 %v4145, 0.0
        %v4480 = vmax.f32 %v4150, 0.0
        %v4481 = vmax.f32 %v4153, 0.0
        %v4482 = vmax.f32 %v4158, 0.0
        %v4483 = vmax.f32 %v4161, 0.0
        %v4484 = vmax.f32 %v4166, 0.0
        %v4485 = vmax.f32 %v4169, 0.0
        %v4486 = vmax.f32 %v4174, 0.0
        %v4487 = vmax.f32 %v4177, 0.0
        %v4488 = vmax.f32 %v4182, 0.0
        %v4489 = vmax.f32 %v4185, 0.0
        %v4490 = vmax.f32 %v4190, 0.0
        %v4491 = vmax.f32 %v4193, 0.0
        %v4492 = vmax.f32 %v4198, 0.0
        %v4493 = vmax.f32 %v4201, 0.0
        %v4494 = vmax.f32 %v4206, 0.0
        %v4495 = vmax.f32 %v4209, 0.0
        %v4496 = vmax.f32 %v4214, 0.0
        %v4497 = vmax.f32 %v4217, 0.0
        %v4498 = vmax.f32 %v4222, 0.0
        %v4499 = vmax.f32 %v4225, 0.0
        %v4500 = vmax.f32 %v4230, 0.0
        %v4501 = vmax.f32 %v4233, 0.0
        %v4502 = vmax.f32 %v4238, 0.0
        %v4503 = vmax.f32 %v4241, 0.0
        %v4504 = vmax.f32 %v4246, 0.0
        %v4505 = vmax.f32 %v4249, 0.0
        %v4506 = vmax.f32 %v4254, 0.0
        %v4507 = vmax.f32 %v4257, 0.0
        %v4508 = vmax.f32 %v4262, 0.0
        %v4509 = vmax.f32 %v4265, 0.0
        %v4510 = vmax.f32 %v4270, 0.0
        %v4511 = vmax.f32 %v4273, 0.0
        %v4512 = vmax.f32 %v4278, 0.0
        %v4513 = vmax.f32 %v4281, 0.0
        %v4514 = vmax.f32 %v4286, 0.0
        %v4515 = vmax.f32 %v4289, 0.0
        %v4516 = vmax.f32 %v4294, 0.0
        %v4517 = vmax.f32 %v4297, 0.0
        %v4518 = vmax.f32 %v4302, 0.0
        %v4519 = vmax.f32 %v4305, 0.0
        %v4520 = vmax.f32 %v4310, 0.0
        %v4521 = vmax.f32 %v4313, 0.0
        %v4522 = vmax.f32 %v4318, 0.0
        %v4523 = vmax.f32 %v4321, 0.0
        %v4524 = vmax.f32 %v4326, 0.0
        %v4525 = vmax.f32 %v4329, 0.0
        %v4526 = vmax.f32 %v4334, 0.0
        %v4527 = vmax.f32 %v4337, 0.0
        %v4528 = vmax.f32 %v4342, 0.0
        %v4529 = vmax.f32 %v4345, 0.0
        %v4530 = vmax.f32 %v4350, 0.0
        %v4531 = vmax.f32 %v4353, 0.0
        %v4532 = vmax.f32 %v4358, 0.0
        %v4533 = vmax.f32 %v4361, 0.0
        %v4534 = vmax.f32 %v4366, 0.0
        %v4535 = vmax.f32 %v4369, 0.0
        %v4536 = vmax.f32 %v4374, 0.0
        %v4537 = vmax.f32 %v4377, 0.0
        %v4538 = vmax.f32 %v4382, 0.0
        %v4539 = vmax.f32 %v4385, 0.0
        %v4540 = vmax.f32 %v4390, 0.0
        %v4541 = vmax.f32 %v4393, 0.0
        %v4542 = vmax.f32 %v4398, 0.0
        %v4543 = vmax.f32 %v4401, 0.0
        %v4544 = vmax.f32 %v4406, 0.0
        %v4545 = vmax.f32 %v4409, 0.0
        %v4546 = vmax.f32 %v4414, 0.0
        %v4547 = vmax.f32 %v4417, 0.0
        %v4548 = vpack.c.bf16 %v4421, %v4420
        %v4549 = vpack.c.bf16 %v4423, %v4422
        %v4550 = vpack.c.bf16 %v4425, %v4424
        %v4551 = vpack.c.bf16 %v4427, %v4426
        %v4552 = vpack.c.bf16 %v4429, %v4428
        %v4553 = vpack.c.bf16 %v4431, %v4430
        %v4554 = vpack.c.bf16 %v4433, %v4432
        %v4555 = vpack.c.bf16 %v4435, %v4434
        %v4556 = vpack.c.bf16 %v4437, %v4436
        %v4557 = vpack.c.bf16 %v4439, %v4438
        %v4558 = vpack.c.bf16 %v4441, %v4440
        %v4559 = vpack.c.bf16 %v4443, %v4442
        %v4560 = vpack.c.bf16 %v4445, %v4444
        %v4561 = vpack.c.bf16 %v4447, %v4446
        %v4562 = vpack.c.bf16 %v4449, %v4448
        %v4563 = vpack.c.bf16 %v4451, %v4450
        %v4564 = vpack.c.bf16 %v4453, %v4452
        %v4565 = vpack.c.bf16 %v4455, %v4454
        %v4566 = vpack.c.bf16 %v4457, %v4456
        %v4567 = vpack.c.bf16 %v4459, %v4458
        %v4568 = vpack.c.bf16 %v4461, %v4460
        %v4569 = vpack.c.bf16 %v4463, %v4462
        %v4570 = vpack.c.bf16 %v4465, %v4464
        %v4571 = vpack.c.bf16 %v4467, %v4466
        %v4572 = vpack.c.bf16 %v4469, %v4468
        %v4573 = vpack.c.bf16 %v4471, %v4470
        %v4574 = vpack.c.bf16 %v4473, %v4472
        %v4575 = vpack.c.bf16 %v4475, %v4474
        %v4576 = vpack.c.bf16 %v4477, %v4476
        %v4577 = vpack.c.bf16 %v4479, %v4478
        %v4578 = vpack.c.bf16 %v4481, %v4480
        %v4579 = vpack.c.bf16 %v4483, %v4482
        %v4580 = vpack.c.bf16 %v4485, %v4484
        %v4581 = vpack.c.bf16 %v4487, %v4486
        %v4582 = vpack.c.bf16 %v4489, %v4488
        %v4583 = vpack.c.bf16 %v4491, %v4490
        %v4584 = vpack.c.bf16 %v4493, %v4492
        %v4585 = vpack.c.bf16 %v4495, %v4494
        %v4586 = vpack.c.bf16 %v4497, %v4496
        %v4587 = vpack.c.bf16 %v4499, %v4498
        %v4588 = vpack.c.bf16 %v4501, %v4500
        %v4589 = vpack.c.bf16 %v4503, %v4502
        %v4590 = vpack.c.bf16 %v4505, %v4504
        %v4591 = vpack.c.bf16 %v4507, %v4506
        %v4592 = vpack.c.bf16 %v4509, %v4508
        %v4593 = vpack.c.bf16 %v4511, %v4510
        %v4594 = vpack.c.bf16 %v4513, %v4512
        %v4595 = vpack.c.bf16 %v4515, %v4514
        %v4596 = vpack.c.bf16 %v4517, %v4516
        %v4597 = vpack.c.bf16 %v4519, %v4518
        %v4598 = vpack.c.bf16 %v4521, %v4520
        %v4599 = vpack.c.bf16 %v4523, %v4522
        %v4600 = vpack.c.bf16 %v4525, %v4524
        %v4601 = vpack.c.bf16 %v4527, %v4526
        %v4602 = vpack.c.bf16 %v4529, %v4528
        %v4603 = vpack.c.bf16 %v4531, %v4530
        %v4604 = vpack.c.bf16 %v4533, %v4532
        %v4605 = vpack.c.bf16 %v4535, %v4534
        %v4606 = vpack.c.bf16 %v4537, %v4536
        %v4607 = vpack.c.bf16 %v4539, %v4538
        %v4608 = vpack.c.bf16 %v4541, %v4540
        %v4609 = vpack.c.bf16 %v4543, %v4542
        %v4610 = vpack.c.bf16 %v4545, %v4544
        %v4611 = vpack.c.bf16 %v4547, %v4546
        %v4612 = vld [vmem:[%s5] sm:$0xff]
        %v4613 = vld [vmem:[%s5 + $0x8] sm:$0xff]
        %v4614 = vld [vmem:[%s5 + $0x10] sm:$0xff]
        %v4615 = vld [vmem:[%s5 + $0x18] sm:$0xff]
        %v4616 = vld [vmem:[%s5 + $0x20] sm:$0xff]
        %v4617 = vld [vmem:[%s5 + $0x28] sm:$0xff]
        %v4618 = vld [vmem:[%s5 + $0x30] sm:$0xff]
        %v4619 = vld [vmem:[%s5 + $0x38] sm:$0xff]
        %v4620 = vld [vmem:[%s5 + $0x40] sm:$0xff]
        %v4621 = vld [vmem:[%s5 + $0x48] sm:$0xff]
        %v4622 = vld [vmem:[%s5 + $0x50] sm:$0xff]
        %v4623 = vld [vmem:[%s5 + $0x58] sm:$0xff]
        %v4624 = vld [vmem:[%s5 + $0x60] sm:$0xff]
        %v4625 = vld [vmem:[%s5 + $0x68] sm:$0xff]
        %v4626 = vld [vmem:[%s5 + $0x70] sm:$0xff]
        %v4627 = vld [vmem:[%s5 + $0x78] sm:$0xff]
        %v4628 = vld [vmem:[%s6] sm:$0x3]
        %v4630 = vlaneseq
        %v4631 = vshrl.u32 %v4630, 7
        %v4632 = vsub.s32 0, %v4631
        %v4633 = vrot.slane %v4628, %v4632
        %v4634 = vlaneseq
        %v4635 = vshrl.u32 %v4634, 7
        %v4636 = vsub.s32 1, %v4635
        %v4637 = vrot.slane %v4628, %v4636
        %v4656 = vunpack.c.l.b16 %v4612
        %v4657 = vunpack.c.h.b16 %v4612
        %v4658 = vunpack.c.l.b16 %v4613
        %v4659 = vunpack.c.h.b16 %v4613
        %v4660 = vunpack.c.l.b16 %v4614
        %v4661 = vunpack.c.h.b16 %v4614
        %v4662 = vunpack.c.l.b16 %v4615
        %v4663 = vunpack.c.h.b16 %v4615
        %v4664 = vunpack.c.l.b16 %v4616
        %v4665 = vunpack.c.h.b16 %v4616
        %v4666 = vunpack.c.l.b16 %v4617
        %v4667 = vunpack.c.h.b16 %v4617
        %v4668 = vunpack.c.l.b16 %v4618
        %v4669 = vunpack.c.h.b16 %v4618
        %v4670 = vunpack.c.l.b16 %v4619
        %v4671 = vunpack.c.h.b16 %v4619
        %v4672 = vunpack.c.l.b16 %v4620
        %v4673 = vunpack.c.h.b16 %v4620
        %v4674 = vunpack.c.l.b16 %v4621
        %v4675 = vunpack.c.h.b16 %v4621
        %v4676 = vunpack.c.l.b16 %v4622
        %v4677 = vunpack.c.h.b16 %v4622
        %v4678 = vunpack.c.l.b16 %v4623
        %v4679 = vunpack.c.h.b16 %v4623
        %v4680 = vunpack.c.l.b16 %v4624
        %v4681 = vunpack.c.h.b16 %v4624
        %v4682 = vunpack.c.l.b16 %v4625
        %v4683 = vunpack.c.h.b16 %v4625
        %v4684 = vunpack.c.l.b16 %v4626
        %v4685 = vunpack.c.h.b16 %v4626
        %v4686 = vunpack.c.l.b16 %v4627
        %v4687 = vunpack.c.h.b16 %v4627
        %v4688 = vpack.c.b16 %v4658, %v4656
        %v4689 = vpack.c.b16 %v4659, %v4657
        %v4690 = vpack.c.b16 %v4662, %v4660
        %v4691 = vpack.c.b16 %v4663, %v4661
        %v4692 = vpack.c.b16 %v4666, %v4664
        %v4693 = vpack.c.b16 %v4667, %v4665
        %v4694 = vpack.c.b16 %v4670, %v4668
        %v4695 = vpack.c.b16 %v4671, %v4669
        %v4696 = vpack.c.b16 %v4674, %v4672
        %v4697 = vpack.c.b16 %v4675, %v4673
        %v4698 = vpack.c.b16 %v4678, %v4676
        %v4699 = vpack.c.b16 %v4679, %v4677
        %v4700 = vpack.c.b16 %v4682, %v4680
        %v4701 = vpack.c.b16 %v4683, %v4681
        %v4702 = vpack.c.b16 %v4686, %v4684
        %v4703 = vpack.c.b16 %v4687, %v4685
        %4720 = vmatprep.subr.bf16.mxu0 %v4703
        %4721 = vmatpush1.bf16.msra.mxu0 %v4702
        %4722 = vmatprep.subr.bf16.mxu0 %v4701
        %4723 = vmatpush1.bf16.msra.mxu0 %v4700
        %4724 = vmatprep.subr.bf16.mxu0 %v4699
        %4725 = vmatpush1.bf16.msra.mxu0 %v4698
        %4726 = vmatprep.subr.bf16.mxu0 %v4697
        %4727 = vmatpush1.bf16.msra.mxu0 %v4696
        %4728 = vmatprep.subr.bf16.mxu0 %v4695
        %4729 = vmatpush1.bf16.msra.mxu0 %v4694
        %4730 = vmatprep.subr.bf16.mxu0 %v4693
        %4731 = vmatpush1.bf16.msra.mxu0 %v4692
        %4732 = vmatprep.subr.bf16.mxu0 %v4691
        %4733 = vmatpush1.bf16.msra.mxu0 %v4690
        %4734 = vmatprep.subr.bf16.mxu0 %v4689
        %4735 = vmatpush1.bf16.msra.mxu0 %v4688
        %4736 = vmatprep.subr.bf16.mxu0 0
        %4737 = vmatpush2.bf16.msra.mxu0 0
        %4738 = vmatprep.subr.bf16.mxu0 0
        %4739 = vmatpush2.bf16.msra.mxu0 0
        %4740 = vmatprep.subr.bf16.mxu0 0
        %4741 = vmatpush2.bf16.msra.mxu0 0
        %4742 = vmatprep.subr.bf16.mxu0 0
        %4743 = vmatpush2.bf16.msra.mxu0 0
        %4744 = vmatprep.subr.bf16.mxu0 0
        %4745 = vmatpush2.bf16.msra.mxu0 0
        %4746 = vmatprep.subr.bf16.mxu0 0
        %4747 = vmatpush2.bf16.msra.mxu0 0
        %4748 = vmatprep.subr.bf16.mxu0 0
        %4749 = vmatpush2.bf16.msra.mxu0 0
        %4750 = vmatprep.subr.bf16.mxu0 0
        %4751 = vmatpush2.bf16.msra.mxu0 0
        %4752 = vmatprep.mubr.bf16.mxu0 0
        %4753 = vmatmul.mubr.bf16.gmra.mxu0 %v4548
        %v4754 = vpop.f32.mrf.mxu0
        %v4755 = vadd.f32 %v4633, %v4754
        %v4756 = vpop.f32.mrf.mxu0
        %v4757 = vadd.f32 %v4637, %v4756
        %v4758 = vpop.f32.mrf.mxu0
        %v4759 = vadd.f32 %v4633, %v4758
        %v4760 = vpop.f32.mrf.mxu0
        %v4761 = vadd.f32 %v4637, %v4760
        %4762 = vmatprep.mubr.bf16.mxu0 0
        %4763 = vmatmul.mubr.bf16.gmra.mxu0 %v4549
        %v4764 = vpop.f32.mrf.mxu0
        %v4765 = vadd.f32 %v4633, %v4764
        %v4766 = vpop.f32.mrf.mxu0
        %v4767 = vadd.f32 %v4637, %v4766
        %v4768 = vpop.f32.mrf.mxu0
        %v4769 = vadd.f32 %v4633, %v4768
        %v4770 = vpop.f32.mrf.mxu0
        %v4771 = vadd.f32 %v4637, %v4770
        %4772 = vmatprep.mubr.bf16.mxu0 0
        %4773 = vmatmul.mubr.bf16.gmra.mxu0 %v4550
        %v4774 = vpop.f32.mrf.mxu0
        %v4775 = vadd.f32 %v4633, %v4774
        %v4776 = vpop.f32.mrf.mxu0
        %v4777 = vadd.f32 %v4637, %v4776
        %v4778 = vpop.f32.mrf.mxu0
        %v4779 = vadd.f32 %v4633, %v4778
        %v4780 = vpop.f32.mrf.mxu0
        %v4781 = vadd.f32 %v4637, %v4780
        %4782 = vmatprep.mubr.bf16.mxu0 0
        %4783 = vmatmul.mubr.bf16.gmra.mxu0 %v4551
        %v4784 = vpop.f32.mrf.mxu0
        %v4785 = vadd.f32 %v4633, %v4784
        %v4786 = vpop.f32.mrf.mxu0
        %v4787 = vadd.f32 %v4637, %v4786
        %v4788 = vpop.f32.mrf.mxu0
        %v4789 = vadd.f32 %v4633, %v4788
        %v4790 = vpop.f32.mrf.mxu0
        %v4791 = vadd.f32 %v4637, %v4790
        %4792 = vmatprep.mubr.bf16.mxu0 0
        %4793 = vmatmul.mubr.bf16.gmra.mxu0 %v4552
        %v4794 = vpop.f32.mrf.mxu0
        %v4795 = vadd.f32 %v4633, %v4794
        %v4796 = vpop.f32.mrf.mxu0
        %v4797 = vadd.f32 %v4637, %v4796
        %v4798 = vpop.f32.mrf.mxu0
        %v4799 = vadd.f32 %v4633, %v4798
        %v4800 = vpop.f32.mrf.mxu0
        %v4801 = vadd.f32 %v4637, %v4800
        %4802 = vmatprep.mubr.bf16.mxu0 0
        %4803 = vmatmul.mubr.bf16.gmra.mxu0 %v4553
        %v4804 = vpop.f32.mrf.mxu0
        %v4805 = vadd.f32 %v4633, %v4804
        %v4806 = vpop.f32.mrf.mxu0
        %v4807 = vadd.f32 %v4637, %v4806
        %v4808 = vpop.f32.mrf.mxu0
        %v4809 = vadd.f32 %v4633, %v4808
        %v4810 = vpop.f32.mrf.mxu0
        %v4811 = vadd.f32 %v4637, %v4810
        %4812 = vmatprep.mubr.bf16.mxu0 0
        %4813 = vmatmul.mubr.bf16.gmra.mxu0 %v4554
        %v4814 = vpop.f32.mrf.mxu0
        %v4815 = vadd.f32 %v4633, %v4814
        %v4816 = vpop.f32.mrf.mxu0
        %v4817 = vadd.f32 %v4637, %v4816
        %v4818 = vpop.f32.mrf.mxu0
        %v4819 = vadd.f32 %v4633, %v4818
        %v4820 = vpop.f32.mrf.mxu0
        %v4821 = vadd.f32 %v4637, %v4820
        %4822 = vmatprep.mubr.bf16.mxu0 0
        %4823 = vmatmul.mubr.bf16.gmra.mxu0 %v4555
        %v4824 = vpop.f32.mrf.mxu0
        %v4825 = vadd.f32 %v4633, %v4824
        %v4826 = vpop.f32.mrf.mxu0
        %v4827 = vadd.f32 %v4637, %v4826
        %v4828 = vpop.f32.mrf.mxu0
        %v4829 = vadd.f32 %v4633, %v4828
        %v4830 = vpop.f32.mrf.mxu0
        %v4831 = vadd.f32 %v4637, %v4830
        %4832 = vmatprep.mubr.bf16.mxu0 0
        %4833 = vmatmul.mubr.bf16.gmra.mxu0 %v4556
        %v4834 = vpop.f32.mrf.mxu0
        %v4835 = vadd.f32 %v4633, %v4834
        %v4836 = vpop.f32.mrf.mxu0
        %v4837 = vadd.f32 %v4637, %v4836
        %v4838 = vpop.f32.mrf.mxu0
        %v4839 = vadd.f32 %v4633, %v4838
        %v4840 = vpop.f32.mrf.mxu0
        %v4841 = vadd.f32 %v4637, %v4840
        %4842 = vmatprep.mubr.bf16.mxu0 0
        %4843 = vmatmul.mubr.bf16.gmra.mxu0 %v4557
        %v4844 = vpop.f32.mrf.mxu0
        %v4845 = vadd.f32 %v4633, %v4844
        %v4846 = vpop.f32.mrf.mxu0
        %v4847 = vadd.f32 %v4637, %v4846
        %v4848 = vpop.f32.mrf.mxu0
        %v4849 = vadd.f32 %v4633, %v4848
        %v4850 = vpop.f32.mrf.mxu0
        %v4851 = vadd.f32 %v4637, %v4850
        %4852 = vmatprep.mubr.bf16.mxu0 0
        %4853 = vmatmul.mubr.bf16.gmra.mxu0 %v4558
        %v4854 = vpop.f32.mrf.mxu0
        %v4855 = vadd.f32 %v4633, %v4854
        %v4856 = vpop.f32.mrf.mxu0
        %v4857 = vadd.f32 %v4637, %v4856
        %v4858 = vpop.f32.mrf.mxu0
        %v4859 = vadd.f32 %v4633, %v4858
        %v4860 = vpop.f32.mrf.mxu0
        %v4861 = vadd.f32 %v4637, %v4860
        %4862 = vmatprep.mubr.bf16.mxu0 0
        %4863 = vmatmul.mubr.bf16.gmra.mxu0 %v4559
        %v4864 = vpop.f32.mrf.mxu0
        %v4865 = vadd.f32 %v4633, %v4864
        %v4866 = vpop.f32.mrf.mxu0
        %v4867 = vadd.f32 %v4637, %v4866
        %v4868 = vpop.f32.mrf.mxu0
        %v4869 = vadd.f32 %v4633, %v4868
        %v4870 = vpop.f32.mrf.mxu0
        %v4871 = vadd.f32 %v4637, %v4870
        %4872 = vmatprep.mubr.bf16.mxu0 0
        %4873 = vmatmul.mubr.bf16.gmra.mxu0 %v4560
        %v4874 = vpop.f32.mrf.mxu0
        %v4875 = vadd.f32 %v4633, %v4874
        %v4876 = vpop.f32.mrf.mxu0
        %v4877 = vadd.f32 %v4637, %v4876
        %v4878 = vpop.f32.mrf.mxu0
        %v4879 = vadd.f32 %v4633, %v4878
        %v4880 = vpop.f32.mrf.mxu0
        %v4881 = vadd.f32 %v4637, %v4880
        %4882 = vmatprep.mubr.bf16.mxu0 0
        %4883 = vmatmul.mubr.bf16.gmra.mxu0 %v4561
        %v4884 = vpop.f32.mrf.mxu0
        %v4885 = vadd.f32 %v4633, %v4884
        %v4886 = vpop.f32.mrf.mxu0
        %v4887 = vadd.f32 %v4637, %v4886
        %v4888 = vpop.f32.mrf.mxu0
        %v4889 = vadd.f32 %v4633, %v4888
        %v4890 = vpop.f32.mrf.mxu0
        %v4891 = vadd.f32 %v4637, %v4890
        %4892 = vmatprep.mubr.bf16.mxu0 0
        %4893 = vmatmul.mubr.bf16.gmra.mxu0 %v4562
        %v4894 = vpop.f32.mrf.mxu0
        %v4895 = vadd.f32 %v4633, %v4894
        %v4896 = vpop.f32.mrf.mxu0
        %v4897 = vadd.f32 %v4637, %v4896
        %v4898 = vpop.f32.mrf.mxu0
        %v4899 = vadd.f32 %v4633, %v4898
        %v4900 = vpop.f32.mrf.mxu0
        %v4901 = vadd.f32 %v4637, %v4900
        %4902 = vmatprep.mubr.bf16.mxu0 0
        %4903 = vmatmul.mubr.bf16.gmra.mxu0 %v4563
        %v4904 = vpop.f32.mrf.mxu0
        %v4905 = vadd.f32 %v4633, %v4904
        %v4906 = vpop.f32.mrf.mxu0
        %v4907 = vadd.f32 %v4637, %v4906
        %v4908 = vpop.f32.mrf.mxu0
        %v4909 = vadd.f32 %v4633, %v4908
        %v4910 = vpop.f32.mrf.mxu0
        %v4911 = vadd.f32 %v4637, %v4910
        %4912 = vmatprep.mubr.bf16.mxu0 0
        %4913 = vmatmul.mubr.bf16.gmra.mxu0 %v4564
        %v4914 = vpop.f32.mrf.mxu0
        %v4915 = vadd.f32 %v4633, %v4914
        %v4916 = vpop.f32.mrf.mxu0
        %v4917 = vadd.f32 %v4637, %v4916
        %v4918 = vpop.f32.mrf.mxu0
        %v4919 = vadd.f32 %v4633, %v4918
        %v4920 = vpop.f32.mrf.mxu0
        %v4921 = vadd.f32 %v4637, %v4920
        %4922 = vmatprep.mubr.bf16.mxu0 0
        %4923 = vmatmul.mubr.bf16.gmra.mxu0 %v4565
        %v4924 = vpop.f32.mrf.mxu0
        %v4925 = vadd.f32 %v4633, %v4924
        %v4926 = vpop.f32.mrf.mxu0
        %v4927 = vadd.f32 %v4637, %v4926
        %v4928 = vpop.f32.mrf.mxu0
        %v4929 = vadd.f32 %v4633, %v4928
        %v4930 = vpop.f32.mrf.mxu0
        %v4931 = vadd.f32 %v4637, %v4930
        %4932 = vmatprep.mubr.bf16.mxu0 0
        %4933 = vmatmul.mubr.bf16.gmra.mxu0 %v4566
        %v4934 = vpop.f32.mrf.mxu0
        %v4935 = vadd.f32 %v4633, %v4934
        %v4936 = vpop.f32.mrf.mxu0
        %v4937 = vadd.f32 %v4637, %v4936
        %v4938 = vpop.f32.mrf.mxu0
        %v4939 = vadd.f32 %v4633, %v4938
        %v4940 = vpop.f32.mrf.mxu0
        %v4941 = vadd.f32 %v4637, %v4940
        %4942 = vmatprep.mubr.bf16.mxu0 0
        %4943 = vmatmul.mubr.bf16.gmra.mxu0 %v4567
        %v4944 = vpop.f32.mrf.mxu0
        %v4945 = vadd.f32 %v4633, %v4944
        %v4946 = vpop.f32.mrf.mxu0
        %v4947 = vadd.f32 %v4637, %v4946
        %v4948 = vpop.f32.mrf.mxu0
        %v4949 = vadd.f32 %v4633, %v4948
        %v4950 = vpop.f32.mrf.mxu0
        %v4951 = vadd.f32 %v4637, %v4950
        %4952 = vmatprep.mubr.bf16.mxu0 0
        %4953 = vmatmul.mubr.bf16.gmra.mxu0 %v4568
        %v4954 = vpop.f32.mrf.mxu0
        %v4955 = vadd.f32 %v4633, %v4954
        %v4956 = vpop.f32.mrf.mxu0
        %v4957 = vadd.f32 %v4637, %v4956
        %v4958 = vpop.f32.mrf.mxu0
        %v4959 = vadd.f32 %v4633, %v4958
        %v4960 = vpop.f32.mrf.mxu0
        %v4961 = vadd.f32 %v4637, %v4960
        %4962 = vmatprep.mubr.bf16.mxu0 0
        %4963 = vmatmul.mubr.bf16.gmra.mxu0 %v4569
        %v4964 = vpop.f32.mrf.mxu0
        %v4965 = vadd.f32 %v4633, %v4964
        %v4966 = vpop.f32.mrf.mxu0
        %v4967 = vadd.f32 %v4637, %v4966
        %v4968 = vpop.f32.mrf.mxu0
        %v4969 = vadd.f32 %v4633, %v4968
        %v4970 = vpop.f32.mrf.mxu0
        %v4971 = vadd.f32 %v4637, %v4970
        %4972 = vmatprep.mubr.bf16.mxu0 0
        %4973 = vmatmul.mubr.bf16.gmra.mxu0 %v4570
        %v4974 = vpop.f32.mrf.mxu0
        %v4975 = vadd.f32 %v4633, %v4974
        %v4976 = vpop.f32.mrf.mxu0
        %v4977 = vadd.f32 %v4637, %v4976
        %v4978 = vpop.f32.mrf.mxu0
        %v4979 = vadd.f32 %v4633, %v4978
        %v4980 = vpop.f32.mrf.mxu0
        %v4981 = vadd.f32 %v4637, %v4980
        %4982 = vmatprep.mubr.bf16.mxu0 0
        %4983 = vmatmul.mubr.bf16.gmra.mxu0 %v4571
        %v4984 = vpop.f32.mrf.mxu0
        %v4985 = vadd.f32 %v4633, %v4984
        %v4986 = vpop.f32.mrf.mxu0
        %v4987 = vadd.f32 %v4637, %v4986
        %v4988 = vpop.f32.mrf.mxu0
        %v4989 = vadd.f32 %v4633, %v4988
        %v4990 = vpop.f32.mrf.mxu0
        %v4991 = vadd.f32 %v4637, %v4990
        %4992 = vmatprep.mubr.bf16.mxu0 0
        %4993 = vmatmul.mubr.bf16.gmra.mxu0 %v4572
        %v4994 = vpop.f32.mrf.mxu0
        %v4995 = vadd.f32 %v4633, %v4994
        %v4996 = vpop.f32.mrf.mxu0
        %v4997 = vadd.f32 %v4637, %v4996
        %v4998 = vpop.f32.mrf.mxu0
        %v4999 = vadd.f32 %v4633, %v4998
        %v5000 = vpop.f32.mrf.mxu0
        %v5001 = vadd.f32 %v4637, %v5000
        %5002 = vmatprep.mubr.bf16.mxu0 0
        %5003 = vmatmul.mubr.bf16.gmra.mxu0 %v4573
        %v5004 = vpop.f32.mrf.mxu0
        %v5005 = vadd.f32 %v4633, %v5004
        %v5006 = vpop.f32.mrf.mxu0
        %v5007 = vadd.f32 %v4637, %v5006
        %v5008 = vpop.f32.mrf.mxu0
        %v5009 = vadd.f32 %v4633, %v5008
        %v5010 = vpop.f32.mrf.mxu0
        %v5011 = vadd.f32 %v4637, %v5010
        %5012 = vmatprep.mubr.bf16.mxu0 0
        %5013 = vmatmul.mubr.bf16.gmra.mxu0 %v4574
        %v5014 = vpop.f32.mrf.mxu0
        %v5015 = vadd.f32 %v4633, %v5014
        %v5016 = vpop.f32.mrf.mxu0
        %v5017 = vadd.f32 %v4637, %v5016
        %v5018 = vpop.f32.mrf.mxu0
        %v5019 = vadd.f32 %v4633, %v5018
        %v5020 = vpop.f32.mrf.mxu0
        %v5021 = vadd.f32 %v4637, %v5020
        %5022 = vmatprep.mubr.bf16.mxu0 0
        %5023 = vmatmul.mubr.bf16.gmra.mxu0 %v4575
        %v5024 = vpop.f32.mrf.mxu0
        %v5025 = vadd.f32 %v4633, %v5024
        %v5026 = vpop.f32.mrf.mxu0
        %v5027 = vadd.f32 %v4637, %v5026
        %v5028 = vpop.f32.mrf.mxu0
        %v5029 = vadd.f32 %v4633, %v5028
        %v5030 = vpop.f32.mrf.mxu0
        %v5031 = vadd.f32 %v4637, %v5030
        %5032 = vmatprep.mubr.bf16.mxu0 0
        %5033 = vmatmul.mubr.bf16.gmra.mxu0 %v4576
        %v5034 = vpop.f32.mrf.mxu0
        %v5035 = vadd.f32 %v4633, %v5034
        %v5036 = vpop.f32.mrf.mxu0
        %v5037 = vadd.f32 %v4637, %v5036
        %v5038 = vpop.f32.mrf.mxu0
        %v5039 = vadd.f32 %v4633, %v5038
        %v5040 = vpop.f32.mrf.mxu0
        %v5041 = vadd.f32 %v4637, %v5040
        %5042 = vmatprep.mubr.bf16.mxu0 0
        %5043 = vmatmul.mubr.bf16.gmra.mxu0 %v4577
        %v5044 = vpop.f32.mrf.mxu0
        %v5045 = vadd.f32 %v4633, %v5044
        %v5046 = vpop.f32.mrf.mxu0
        %v5047 = vadd.f32 %v4637, %v5046
        %v5048 = vpop.f32.mrf.mxu0
        %v5049 = vadd.f32 %v4633, %v5048
        %v5050 = vpop.f32.mrf.mxu0
        %v5051 = vadd.f32 %v4637, %v5050
        %5052 = vmatprep.mubr.bf16.mxu0 0
        %5053 = vmatmul.mubr.bf16.gmra.mxu0 %v4578
        %v5054 = vpop.f32.mrf.mxu0
        %v5055 = vadd.f32 %v4633, %v5054
        %v5056 = vpop.f32.mrf.mxu0
        %v5057 = vadd.f32 %v4637, %v5056
        %v5058 = vpop.f32.mrf.mxu0
        %v5059 = vadd.f32 %v4633, %v5058
        %v5060 = vpop.f32.mrf.mxu0
        %v5061 = vadd.f32 %v4637, %v5060
        %5062 = vmatprep.mubr.bf16.mxu0 0
        %5063 = vmatmul.mubr.bf16.gmra.mxu0 %v4579
        %v5064 = vpop.f32.mrf.mxu0
        %v5065 = vadd.f32 %v4633, %v5064
        %v5066 = vpop.f32.mrf.mxu0
        %v5067 = vadd.f32 %v4637, %v5066
        %v5068 = vpop.f32.mrf.mxu0
        %v5069 = vadd.f32 %v4633, %v5068
        %v5070 = vpop.f32.mrf.mxu0
        %v5071 = vadd.f32 %v4637, %v5070
        %5072 = vmatprep.mubr.bf16.mxu0 0
        %5073 = vmatmul.mubr.bf16.gmra.mxu0 %v4580
        %v5074 = vpop.f32.mrf.mxu0
        %v5075 = vadd.f32 %v4633, %v5074
        %v5076 = vpop.f32.mrf.mxu0
        %v5077 = vadd.f32 %v4637, %v5076
        %v5078 = vpop.f32.mrf.mxu0
        %v5079 = vadd.f32 %v4633, %v5078
        %v5080 = vpop.f32.mrf.mxu0
        %v5081 = vadd.f32 %v4637, %v5080
        %5082 = vmatprep.mubr.bf16.mxu0 0
        %5083 = vmatmul.mubr.bf16.gmra.mxu0 %v4581
        %v5084 = vpop.f32.mrf.mxu0
        %v5085 = vadd.f32 %v4633, %v5084
        %v5086 = vpop.f32.mrf.mxu0
        %v5087 = vadd.f32 %v4637, %v5086
        %v5088 = vpop.f32.mrf.mxu0
        %v5089 = vadd.f32 %v4633, %v5088
        %v5090 = vpop.f32.mrf.mxu0
        %v5091 = vadd.f32 %v4637, %v5090
        %5092 = vmatprep.mubr.bf16.mxu0 0
        %5093 = vmatmul.mubr.bf16.gmra.mxu0 %v4582
        %v5094 = vpop.f32.mrf.mxu0
        %v5095 = vadd.f32 %v4633, %v5094
        %v5096 = vpop.f32.mrf.mxu0
        %v5097 = vadd.f32 %v4637, %v5096
        %v5098 = vpop.f32.mrf.mxu0
        %v5099 = vadd.f32 %v4633, %v5098
        %v5100 = vpop.f32.mrf.mxu0
        %v5101 = vadd.f32 %v4637, %v5100
        %5102 = vmatprep.mubr.bf16.mxu0 0
        %5103 = vmatmul.mubr.bf16.gmra.mxu0 %v4583
        %v5104 = vpop.f32.mrf.mxu0
        %v5105 = vadd.f32 %v4633, %v5104
        %v5106 = vpop.f32.mrf.mxu0
        %v5107 = vadd.f32 %v4637, %v5106
        %v5108 = vpop.f32.mrf.mxu0
        %v5109 = vadd.f32 %v4633, %v5108
        %v5110 = vpop.f32.mrf.mxu0
        %v5111 = vadd.f32 %v4637, %v5110
        %5112 = vmatprep.mubr.bf16.mxu0 0
        %5113 = vmatmul.mubr.bf16.gmra.mxu0 %v4584
        %v5114 = vpop.f32.mrf.mxu0
        %v5115 = vadd.f32 %v4633, %v5114
        %v5116 = vpop.f32.mrf.mxu0
        %v5117 = vadd.f32 %v4637, %v5116
        %v5118 = vpop.f32.mrf.mxu0
        %v5119 = vadd.f32 %v4633, %v5118
        %v5120 = vpop.f32.mrf.mxu0
        %v5121 = vadd.f32 %v4637, %v5120
        %5122 = vmatprep.mubr.bf16.mxu0 0
        %5123 = vmatmul.mubr.bf16.gmra.mxu0 %v4585
        %v5124 = vpop.f32.mrf.mxu0
        %v5125 = vadd.f32 %v4633, %v5124
        %v5126 = vpop.f32.mrf.mxu0
        %v5127 = vadd.f32 %v4637, %v5126
        %v5128 = vpop.f32.mrf.mxu0
        %v5129 = vadd.f32 %v4633, %v5128
        %v5130 = vpop.f32.mrf.mxu0
        %v5131 = vadd.f32 %v4637, %v5130
        %5132 = vmatprep.mubr.bf16.mxu0 0
        %5133 = vmatmul.mubr.bf16.gmra.mxu0 %v4586
        %v5134 = vpop.f32.mrf.mxu0
        %v5135 = vadd.f32 %v4633, %v5134
        %v5136 = vpop.f32.mrf.mxu0
        %v5137 = vadd.f32 %v4637, %v5136
        %v5138 = vpop.f32.mrf.mxu0
        %v5139 = vadd.f32 %v4633, %v5138
        %v5140 = vpop.f32.mrf.mxu0
        %v5141 = vadd.f32 %v4637, %v5140
        %5142 = vmatprep.mubr.bf16.mxu0 0
        %5143 = vmatmul.mubr.bf16.gmra.mxu0 %v4587
        %v5144 = vpop.f32.mrf.mxu0
        %v5145 = vadd.f32 %v4633, %v5144
        %v5146 = vpop.f32.mrf.mxu0
        %v5147 = vadd.f32 %v4637, %v5146
        %v5148 = vpop.f32.mrf.mxu0
        %v5149 = vadd.f32 %v4633, %v5148
        %v5150 = vpop.f32.mrf.mxu0
        %v5151 = vadd.f32 %v4637, %v5150
        %5152 = vmatprep.mubr.bf16.mxu0 0
        %5153 = vmatmul.mubr.bf16.gmra.mxu0 %v4588
        %v5154 = vpop.f32.mrf.mxu0
        %v5155 = vadd.f32 %v4633, %v5154
        %v5156 = vpop.f32.mrf.mxu0
        %v5157 = vadd.f32 %v4637, %v5156
        %v5158 = vpop.f32.mrf.mxu0
        %v5159 = vadd.f32 %v4633, %v5158
        %v5160 = vpop.f32.mrf.mxu0
        %v5161 = vadd.f32 %v4637, %v5160
        %5162 = vmatprep.mubr.bf16.mxu0 0
        %5163 = vmatmul.mubr.bf16.gmra.mxu0 %v4589
        %v5164 = vpop.f32.mrf.mxu0
        %v5165 = vadd.f32 %v4633, %v5164
        %v5166 = vpop.f32.mrf.mxu0
        %v5167 = vadd.f32 %v4637, %v5166
        %v5168 = vpop.f32.mrf.mxu0
        %v5169 = vadd.f32 %v4633, %v5168
        %v5170 = vpop.f32.mrf.mxu0
        %v5171 = vadd.f32 %v4637, %v5170
        %5172 = vmatprep.mubr.bf16.mxu0 0
        %5173 = vmatmul.mubr.bf16.gmra.mxu0 %v4590
        %v5174 = vpop.f32.mrf.mxu0
        %v5175 = vadd.f32 %v4633, %v5174
        %v5176 = vpop.f32.mrf.mxu0
        %v5177 = vadd.f32 %v4637, %v5176
        %v5178 = vpop.f32.mrf.mxu0
        %v5179 = vadd.f32 %v4633, %v5178
        %v5180 = vpop.f32.mrf.mxu0
        %v5181 = vadd.f32 %v4637, %v5180
        %5182 = vmatprep.mubr.bf16.mxu0 0
        %5183 = vmatmul.mubr.bf16.gmra.mxu0 %v4591
        %v5184 = vpop.f32.mrf.mxu0
        %v5185 = vadd.f32 %v4633, %v5184
        %v5186 = vpop.f32.mrf.mxu0
        %v5187 = vadd.f32 %v4637, %v5186
        %v5188 = vpop.f32.mrf.mxu0
        %v5189 = vadd.f32 %v4633, %v5188
        %v5190 = vpop.f32.mrf.mxu0
        %v5191 = vadd.f32 %v4637, %v5190
        %5192 = vmatprep.mubr.bf16.mxu0 0
        %5193 = vmatmul.mubr.bf16.gmra.mxu0 %v4592
        %v5194 = vpop.f32.mrf.mxu0
        %v5195 = vadd.f32 %v4633, %v5194
        %v5196 = vpop.f32.mrf.mxu0
        %v5197 = vadd.f32 %v4637, %v5196
        %v5198 = vpop.f32.mrf.mxu0
        %v5199 = vadd.f32 %v4633, %v5198
        %v5200 = vpop.f32.mrf.mxu0
        %v5201 = vadd.f32 %v4637, %v5200
        %5202 = vmatprep.mubr.bf16.mxu0 0
        %5203 = vmatmul.mubr.bf16.gmra.mxu0 %v4593
        %v5204 = vpop.f32.mrf.mxu0
        %v5205 = vadd.f32 %v4633, %v5204
        %v5206 = vpop.f32.mrf.mxu0
        %v5207 = vadd.f32 %v4637, %v5206
        %v5208 = vpop.f32.mrf.mxu0
        %v5209 = vadd.f32 %v4633, %v5208
        %v5210 = vpop.f32.mrf.mxu0
        %v5211 = vadd.f32 %v4637, %v5210
        %5212 = vmatprep.mubr.bf16.mxu0 0
        %5213 = vmatmul.mubr.bf16.gmra.mxu0 %v4594
        %v5214 = vpop.f32.mrf.mxu0
        %v5215 = vadd.f32 %v4633, %v5214
        %v5216 = vpop.f32.mrf.mxu0
        %v5217 = vadd.f32 %v4637, %v5216
        %v5218 = vpop.f32.mrf.mxu0
        %v5219 = vadd.f32 %v4633, %v5218
        %v5220 = vpop.f32.mrf.mxu0
        %v5221 = vadd.f32 %v4637, %v5220
        %5222 = vmatprep.mubr.bf16.mxu0 0
        %5223 = vmatmul.mubr.bf16.gmra.mxu0 %v4595
        %v5224 = vpop.f32.mrf.mxu0
        %v5225 = vadd.f32 %v4633, %v5224
        %v5226 = vpop.f32.mrf.mxu0
        %v5227 = vadd.f32 %v4637, %v5226
        %v5228 = vpop.f32.mrf.mxu0
        %v5229 = vadd.f32 %v4633, %v5228
        %v5230 = vpop.f32.mrf.mxu0
        %v5231 = vadd.f32 %v4637, %v5230
        %5232 = vmatprep.mubr.bf16.mxu0 0
        %5233 = vmatmul.mubr.bf16.gmra.mxu0 %v4596
        %v5234 = vpop.f32.mrf.mxu0
        %v5235 = vadd.f32 %v4633, %v5234
        %v5236 = vpop.f32.mrf.mxu0
        %v5237 = vadd.f32 %v4637, %v5236
        %v5238 = vpop.f32.mrf.mxu0
        %v5239 = vadd.f32 %v4633, %v5238
        %v5240 = vpop.f32.mrf.mxu0
        %v5241 = vadd.f32 %v4637, %v5240
        %5242 = vmatprep.mubr.bf16.mxu0 0
        %5243 = vmatmul.mubr.bf16.gmra.mxu0 %v4597
        %v5244 = vpop.f32.mrf.mxu0
        %v5245 = vadd.f32 %v4633, %v5244
        %v5246 = vpop.f32.mrf.mxu0
        %v5247 = vadd.f32 %v4637, %v5246
        %v5248 = vpop.f32.mrf.mxu0
        %v5249 = vadd.f32 %v4633, %v5248
        %v5250 = vpop.f32.mrf.mxu0
        %v5251 = vadd.f32 %v4637, %v5250
        %5252 = vmatprep.mubr.bf16.mxu0 0
        %5253 = vmatmul.mubr.bf16.gmra.mxu0 %v4598
        %v5254 = vpop.f32.mrf.mxu0
        %v5255 = vadd.f32 %v4633, %v5254
        %v5256 = vpop.f32.mrf.mxu0
        %v5257 = vadd.f32 %v4637, %v5256
        %v5258 = vpop.f32.mrf.mxu0
        %v5259 = vadd.f32 %v4633, %v5258
        %v5260 = vpop.f32.mrf.mxu0
        %v5261 = vadd.f32 %v4637, %v5260
        %5262 = vmatprep.mubr.bf16.mxu0 0
        %5263 = vmatmul.mubr.bf16.gmra.mxu0 %v4599
        %v5264 = vpop.f32.mrf.mxu0
        %v5265 = vadd.f32 %v4633, %v5264
        %v5266 = vpop.f32.mrf.mxu0
        %v5267 = vadd.f32 %v4637, %v5266
        %v5268 = vpop.f32.mrf.mxu0
        %v5269 = vadd.f32 %v4633, %v5268
        %v5270 = vpop.f32.mrf.mxu0
        %v5271 = vadd.f32 %v4637, %v5270
        %5272 = vmatprep.mubr.bf16.mxu0 0
        %5273 = vmatmul.mubr.bf16.gmra.mxu0 %v4600
        %v5274 = vpop.f32.mrf.mxu0
        %v5275 = vadd.f32 %v4633, %v5274
        %v5276 = vpop.f32.mrf.mxu0
        %v5277 = vadd.f32 %v4637, %v5276
        %v5278 = vpop.f32.mrf.mxu0
        %v5279 = vadd.f32 %v4633, %v5278
        %v5280 = vpop.f32.mrf.mxu0
        %v5281 = vadd.f32 %v4637, %v5280
        %5282 = vmatprep.mubr.bf16.mxu0 0
        %5283 = vmatmul.mubr.bf16.gmra.mxu0 %v4601
        %v5284 = vpop.f32.mrf.mxu0
        %v5285 = vadd.f32 %v4633, %v5284
        %v5286 = vpop.f32.mrf.mxu0
        %v5287 = vadd.f32 %v4637, %v5286
        %v5288 = vpop.f32.mrf.mxu0
        %v5289 = vadd.f32 %v4633, %v5288
        %v5290 = vpop.f32.mrf.mxu0
        %v5291 = vadd.f32 %v4637, %v5290
        %5292 = vmatprep.mubr.bf16.mxu0 0
        %5293 = vmatmul.mubr.bf16.gmra.mxu0 %v4602
        %v5294 = vpop.f32.mrf.mxu0
        %v5295 = vadd.f32 %v4633, %v5294
        %v5296 = vpop.f32.mrf.mxu0
        %v5297 = vadd.f32 %v4637, %v5296
        %v5298 = vpop.f32.mrf.mxu0
        %v5299 = vadd.f32 %v4633, %v5298
        %v5300 = vpop.f32.mrf.mxu0
        %v5301 = vadd.f32 %v4637, %v5300
        %5302 = vmatprep.mubr.bf16.mxu0 0
        %5303 = vmatmul.mubr.bf16.gmra.mxu0 %v4603
        %v5304 = vpop.f32.mrf.mxu0
        %v5305 = vadd.f32 %v4633, %v5304
        %v5306 = vpop.f32.mrf.mxu0
        %v5307 = vadd.f32 %v4637, %v5306
        %v5308 = vpop.f32.mrf.mxu0
        %v5309 = vadd.f32 %v4633, %v5308
        %v5310 = vpop.f32.mrf.mxu0
        %v5311 = vadd.f32 %v4637, %v5310
        %5312 = vmatprep.mubr.bf16.mxu0 0
        %5313 = vmatmul.mubr.bf16.gmra.mxu0 %v4604
        %v5314 = vpop.f32.mrf.mxu0
        %v5315 = vadd.f32 %v4633, %v5314
        %v5316 = vpop.f32.mrf.mxu0
        %v5317 = vadd.f32 %v4637, %v5316
        %v5318 = vpop.f32.mrf.mxu0
        %v5319 = vadd.f32 %v4633, %v5318
        %v5320 = vpop.f32.mrf.mxu0
        %v5321 = vadd.f32 %v4637, %v5320
        %5322 = vmatprep.mubr.bf16.mxu0 0
        %5323 = vmatmul.mubr.bf16.gmra.mxu0 %v4605
        %v5324 = vpop.f32.mrf.mxu0
        %v5325 = vadd.f32 %v4633, %v5324
        %v5326 = vpop.f32.mrf.mxu0
        %v5327 = vadd.f32 %v4637, %v5326
        %v5328 = vpop.f32.mrf.mxu0
        %v5329 = vadd.f32 %v4633, %v5328
        %v5330 = vpop.f32.mrf.mxu0
        %v5331 = vadd.f32 %v4637, %v5330
        %5332 = vmatprep.mubr.bf16.mxu0 0
        %5333 = vmatmul.mubr.bf16.gmra.mxu0 %v4606
        %v5334 = vpop.f32.mrf.mxu0
        %v5335 = vadd.f32 %v4633, %v5334
        %v5336 = vpop.f32.mrf.mxu0
        %v5337 = vadd.f32 %v4637, %v5336
        %v5338 = vpop.f32.mrf.mxu0
        %v5339 = vadd.f32 %v4633, %v5338
        %v5340 = vpop.f32.mrf.mxu0
        %v5341 = vadd.f32 %v4637, %v5340
        %5342 = vmatprep.mubr.bf16.mxu0 0
        %5343 = vmatmul.mubr.bf16.gmra.mxu0 %v4607
        %v5344 = vpop.f32.mrf.mxu0
        %v5345 = vadd.f32 %v4633, %v5344
        %v5346 = vpop.f32.mrf.mxu0
        %v5347 = vadd.f32 %v4637, %v5346
        %v5348 = vpop.f32.mrf.mxu0
        %v5349 = vadd.f32 %v4633, %v5348
        %v5350 = vpop.f32.mrf.mxu0
        %v5351 = vadd.f32 %v4637, %v5350
        %5352 = vmatprep.mubr.bf16.mxu0 0
        %5353 = vmatmul.mubr.bf16.gmra.mxu0 %v4608
        %v5354 = vpop.f32.mrf.mxu0
        %v5355 = vadd.f32 %v4633, %v5354
        %v5356 = vpop.f32.mrf.mxu0
        %v5357 = vadd.f32 %v4637, %v5356
        %v5358 = vpop.f32.mrf.mxu0
        %v5359 = vadd.f32 %v4633, %v5358
        %v5360 = vpop.f32.mrf.mxu0
        %v5361 = vadd.f32 %v4637, %v5360
        %5362 = vmatprep.mubr.bf16.mxu0 0
        %5363 = vmatmul.mubr.bf16.gmra.mxu0 %v4609
        %v5364 = vpop.f32.mrf.mxu0
        %v5365 = vadd.f32 %v4633, %v5364
        %v5366 = vpop.f32.mrf.mxu0
        %v5367 = vadd.f32 %v4637, %v5366
        %v5368 = vpop.f32.mrf.mxu0
        %v5369 = vadd.f32 %v4633, %v5368
        %v5370 = vpop.f32.mrf.mxu0
        %v5371 = vadd.f32 %v4637, %v5370
        %5372 = vmatprep.mubr.bf16.mxu0 0
        %5373 = vmatmul.mubr.bf16.gmra.mxu0 %v4610
        %v5374 = vpop.f32.mrf.mxu0
        %v5375 = vadd.f32 %v4633, %v5374
        %v5376 = vpop.f32.mrf.mxu0
        %v5377 = vadd.f32 %v4637, %v5376
        %v5378 = vpop.f32.mrf.mxu0
        %v5379 = vadd.f32 %v4633, %v5378
        %v5380 = vpop.f32.mrf.mxu0
        %v5381 = vadd.f32 %v4637, %v5380
        %5382 = vmatprep.mubr.bf16.mxu0 0
        %5383 = vmatmul.mubr.bf16.gmra.mxu0 %v4611
        %v5384 = vpop.f32.mrf.mxu0
        %v5385 = vadd.f32 %v4633, %v5384
        %v5386 = vpop.f32.mrf.mxu0
        %v5387 = vadd.f32 %v4637, %v5386
        %v5388 = vpop.f32.mrf.mxu0
        %v5389 = vadd.f32 %v4633, %v5388
        %v5390 = vpop.f32.mrf.mxu0
        %v5391 = vadd.f32 %v4637, %v5390
        %5392 = vdwg.mxu0
        %v5393 = vmax.f32 %v4755, 0.0
        %v5394 = vmax.f32 %v4757, 0.0
        %v5395 = vmax.f32 %v4759, 0.0
        %v5396 = vmax.f32 %v4761, 0.0
        %v5397 = vmax.f32 %v4765, 0.0
        %v5398 = vmax.f32 %v4767, 0.0
        %v5399 = vmax.f32 %v4769, 0.0
        %v5400 = vmax.f32 %v4771, 0.0
        %v5401 = vmax.f32 %v4775, 0.0
        %v5402 = vmax.f32 %v4777, 0.0
        %v5403 = vmax.f32 %v4779, 0.0
        %v5404 = vmax.f32 %v4781, 0.0
        %v5405 = vmax.f32 %v4785, 0.0
        %v5406 = vmax.f32 %v4787, 0.0
        %v5407 = vmax.f32 %v4789, 0.0
        %v5408 = vmax.f32 %v4791, 0.0
        %v5409 = vmax.f32 %v4795, 0.0
        %v5410 = vmax.f32 %v4797, 0.0
        %v5411 = vmax.f32 %v4799, 0.0
        %v5412 = vmax.f32 %v4801, 0.0
        %v5413 = vmax.f32 %v4805, 0.0
        %v5414 = vmax.f32 %v4807, 0.0
        %v5415 = vmax.f32 %v4809, 0.0
        %v5416 = vmax.f32 %v4811, 0.0
        %v5417 = vmax.f32 %v4815, 0.0
        %v5418 = vmax.f32 %v4817, 0.0
        %v5419 = vmax.f32 %v4819, 0.0
        %v5420 = vmax.f32 %v4821, 0.0
        %v5421 = vmax.f32 %v4825, 0.0
        %v5422 = vmax.f32 %v4827, 0.0
        %v5423 = vmax.f32 %v4829, 0.0
        %v5424 = vmax.f32 %v4831, 0.0
        %v5425 = vmax.f32 %v4835, 0.0
        %v5426 = vmax.f32 %v4837, 0.0
        %v5427 = vmax.f32 %v4839, 0.0
        %v5428 = vmax.f32 %v4841, 0.0
        %v5429 = vmax.f32 %v4845, 0.0
        %v5430 = vmax.f32 %v4847, 0.0
        %v5431 = vmax.f32 %v4849, 0.0
        %v5432 = vmax.f32 %v4851, 0.0
        %v5433 = vmax.f32 %v4855, 0.0
        %v5434 = vmax.f32 %v4857, 0.0
        %v5435 = vmax.f32 %v4859, 0.0
        %v5436 = vmax.f32 %v4861, 0.0
        %v5437 = vmax.f32 %v4865, 0.0
        %v5438 = vmax.f32 %v4867, 0.0
        %v5439 = vmax.f32 %v4869, 0.0
        %v5440 = vmax.f32 %v4871, 0.0
        %v5441 = vmax.f32 %v4875, 0.0
        %v5442 = vmax.f32 %v4877, 0.0
        %v5443 = vmax.f32 %v4879, 0.0
        %v5444 = vmax.f32 %v4881, 0.0
        %v5445 = vmax.f32 %v4885, 0.0
        %v5446 = vmax.f32 %v4887, 0.0
        %v5447 = vmax.f32 %v4889, 0.0
        %v5448 = vmax.f32 %v4891, 0.0
        %v5449 = vmax.f32 %v4895, 0.0
        %v5450 = vmax.f32 %v4897, 0.0
        %v5451 = vmax.f32 %v4899, 0.0
        %v5452 = vmax.f32 %v4901, 0.0
        %v5453 = vmax.f32 %v4905, 0.0
        %v5454 = vmax.f32 %v4907, 0.0
        %v5455 = vmax.f32 %v4909, 0.0
        %v5456 = vmax.f32 %v4911, 0.0
        %v5457 = vmax.f32 %v4915, 0.0
        %v5458 = vmax.f32 %v4917, 0.0
        %v5459 = vmax.f32 %v4919, 0.0
        %v5460 = vmax.f32 %v4921, 0.0
        %v5461 = vmax.f32 %v4925, 0.0
        %v5462 = vmax.f32 %v4927, 0.0
        %v5463 = vmax.f32 %v4929, 0.0
        %v5464 = vmax.f32 %v4931, 0.0
        %v5465 = vmax.f32 %v4935, 0.0
        %v5466 = vmax.f32 %v4937, 0.0
        %v5467 = vmax.f32 %v4939, 0.0
        %v5468 = vmax.f32 %v4941, 0.0
        %v5469 = vmax.f32 %v4945, 0.0
        %v5470 = vmax.f32 %v4947, 0.0
        %v5471 = vmax.f32 %v4949, 0.0
        %v5472 = vmax.f32 %v4951, 0.0
        %v5473 = vmax.f32 %v4955, 0.0
        %v5474 = vmax.f32 %v4957, 0.0
        %v5475 = vmax.f32 %v4959, 0.0
        %v5476 = vmax.f32 %v4961, 0.0
        %v5477 = vmax.f32 %v4965, 0.0
        %v5478 = vmax.f32 %v4967, 0.0
        %v5479 = vmax.f32 %v4969, 0.0
        %v5480 = vmax.f32 %v4971, 0.0
        %v5481 = vmax.f32 %v4975, 0.0
        %v5482 = vmax.f32 %v4977, 0.0
        %v5483 = vmax.f32 %v4979, 0.0
        %v5484 = vmax.f32 %v4981, 0.0
        %v5485 = vmax.f32 %v4985, 0.0
        %v5486 = vmax.f32 %v4987, 0.0
        %v5487 = vmax.f32 %v4989, 0.0
        %v5488 = vmax.f32 %v4991, 0.0
        %v5489 = vmax.f32 %v4995, 0.0
        %v5490 = vmax.f32 %v4997, 0.0
        %v5491 = vmax.f32 %v4999, 0.0
        %v5492 = vmax.f32 %v5001, 0.0
        %v5493 = vmax.f32 %v5005, 0.0
        %v5494 = vmax.f32 %v5007, 0.0
        %v5495 = vmax.f32 %v5009, 0.0
        %v5496 = vmax.f32 %v5011, 0.0
        %v5497 = vmax.f32 %v5015, 0.0
        %v5498 = vmax.f32 %v5017, 0.0
        %v5499 = vmax.f32 %v5019, 0.0
        %v5500 = vmax.f32 %v5021, 0.0
        %v5501 = vmax.f32 %v5025, 0.0
        %v5502 = vmax.f32 %v5027, 0.0
        %v5503 = vmax.f32 %v5029, 0.0
        %v5504 = vmax.f32 %v5031, 0.0
        %v5505 = vmax.f32 %v5035, 0.0
        %v5506 = vmax.f32 %v5037, 0.0
        %v5507 = vmax.f32 %v5039, 0.0
        %v5508 = vmax.f32 %v5041, 0.0
        %v5509 = vmax.f32 %v5045, 0.0
        %v5510 = vmax.f32 %v5047, 0.0
        %v5511 = vmax.f32 %v5049, 0.0
        %v5512 = vmax.f32 %v5051, 0.0
        %v5513 = vmax.f32 %v5055, 0.0
        %v5514 = vmax.f32 %v5057, 0.0
        %v5515 = vmax.f32 %v5059, 0.0
        %v5516 = vmax.f32 %v5061, 0.0
        %v5517 = vmax.f32 %v5065, 0.0
        %v5518 = vmax.f32 %v5067, 0.0
        %v5519 = vmax.f32 %v5069, 0.0
        %v5520 = vmax.f32 %v5071, 0.0
        %v5521 = vmax.f32 %v5075, 0.0
        %v5522 = vmax.f32 %v5077, 0.0
        %v5523 = vmax.f32 %v5079, 0.0
        %v5524 = vmax.f32 %v5081, 0.0
        %v5525 = vmax.f32 %v5085, 0.0
        %v5526 = vmax.f32 %v5087, 0.0
        %v5527 = vmax.f32 %v5089, 0.0
        %v5528 = vmax.f32 %v5091, 0.0
        %v5529 = vmax.f32 %v5095, 0.0
        %v5530 = vmax.f32 %v5097, 0.0
        %v5531 = vmax.f32 %v5099, 0.0
        %v5532 = vmax.f32 %v5101, 0.0
        %v5533 = vmax.f32 %v5105, 0.0
        %v5534 = vmax.f32 %v5107, 0.0
        %v5535 = vmax.f32 %v5109, 0.0
        %v5536 = vmax.f32 %v5111, 0.0
        %v5537 = vmax.f32 %v5115, 0.0
        %v5538 = vmax.f32 %v5117, 0.0
        %v5539 = vmax.f32 %v5119, 0.0
        %v5540 = vmax.f32 %v5121, 0.0
        %v5541 = vmax.f32 %v5125, 0.0
        %v5542 = vmax.f32 %v5127, 0.0
        %v5543 = vmax.f32 %v5129, 0.0
        %v5544 = vmax.f32 %v5131, 0.0
        %v5545 = vmax.f32 %v5135, 0.0
        %v5546 = vmax.f32 %v5137, 0.0
        %v5547 = vmax.f32 %v5139, 0.0
        %v5548 = vmax.f32 %v5141, 0.0
        %v5549 = vmax.f32 %v5145, 0.0
        %v5550 = vmax.f32 %v5147, 0.0
        %v5551 = vmax.f32 %v5149, 0.0
        %v5552 = vmax.f32 %v5151, 0.0
        %v5553 = vmax.f32 %v5155, 0.0
        %v5554 = vmax.f32 %v5157, 0.0
        %v5555 = vmax.f32 %v5159, 0.0
        %v5556 = vmax.f32 %v5161, 0.0
        %v5557 = vmax.f32 %v5165, 0.0
        %v5558 = vmax.f32 %v5167, 0.0
        %v5559 = vmax.f32 %v5169, 0.0
        %v5560 = vmax.f32 %v5171, 0.0
        %v5561 = vmax.f32 %v5175, 0.0
        %v5562 = vmax.f32 %v5177, 0.0
        %v5563 = vmax.f32 %v5179, 0.0
        %v5564 = vmax.f32 %v5181, 0.0
        %v5565 = vmax.f32 %v5185, 0.0
        %v5566 = vmax.f32 %v5187, 0.0
        %v5567 = vmax.f32 %v5189, 0.0
        %v5568 = vmax.f32 %v5191, 0.0
        %v5569 = vmax.f32 %v5195, 0.0
        %v5570 = vmax.f32 %v5197, 0.0
        %v5571 = vmax.f32 %v5199, 0.0
        %v5572 = vmax.f32 %v5201, 0.0
        %v5573 = vmax.f32 %v5205, 0.0
        %v5574 = vmax.f32 %v5207, 0.0
        %v5575 = vmax.f32 %v5209, 0.0
        %v5576 = vmax.f32 %v5211, 0.0
        %v5577 = vmax.f32 %v5215, 0.0
        %v5578 = vmax.f32 %v5217, 0.0
        %v5579 = vmax.f32 %v5219, 0.0
        %v5580 = vmax.f32 %v5221, 0.0
        %v5581 = vmax.f32 %v5225, 0.0
        %v5582 = vmax.f32 %v5227, 0.0
        %v5583 = vmax.f32 %v5229, 0.0
        %v5584 = vmax.f32 %v5231, 0.0
        %v5585 = vmax.f32 %v5235, 0.0
        %v5586 = vmax.f32 %v5237, 0.0
        %v5587 = vmax.f32 %v5239, 0.0
        %v5588 = vmax.f32 %v5241, 0.0
        %v5589 = vmax.f32 %v5245, 0.0
        %v5590 = vmax.f32 %v5247, 0.0
        %v5591 = vmax.f32 %v5249, 0.0
        %v5592 = vmax.f32 %v5251, 0.0
        %v5593 = vmax.f32 %v5255, 0.0
        %v5594 = vmax.f32 %v5257, 0.0
        %v5595 = vmax.f32 %v5259, 0.0
        %v5596 = vmax.f32 %v5261, 0.0
        %v5597 = vmax.f32 %v5265, 0.0
        %v5598 = vmax.f32 %v5267, 0.0
        %v5599 = vmax.f32 %v5269, 0.0
        %v5600 = vmax.f32 %v5271, 0.0
        %v5601 = vmax.f32 %v5275, 0.0
        %v5602 = vmax.f32 %v5277, 0.0
        %v5603 = vmax.f32 %v5279, 0.0
        %v5604 = vmax.f32 %v5281, 0.0
        %v5605 = vmax.f32 %v5285, 0.0
        %v5606 = vmax.f32 %v5287, 0.0
        %v5607 = vmax.f32 %v5289, 0.0
        %v5608 = vmax.f32 %v5291, 0.0
        %v5609 = vmax.f32 %v5295, 0.0
        %v5610 = vmax.f32 %v5297, 0.0
        %v5611 = vmax.f32 %v5299, 0.0
        %v5612 = vmax.f32 %v5301, 0.0
        %v5613 = vmax.f32 %v5305, 0.0
        %v5614 = vmax.f32 %v5307, 0.0
        %v5615 = vmax.f32 %v5309, 0.0
        %v5616 = vmax.f32 %v5311, 0.0
        %v5617 = vmax.f32 %v5315, 0.0
        %v5618 = vmax.f32 %v5317, 0.0
        %v5619 = vmax.f32 %v5319, 0.0
        %v5620 = vmax.f32 %v5321, 0.0
        %v5621 = vmax.f32 %v5325, 0.0
        %v5622 = vmax.f32 %v5327, 0.0
        %v5623 = vmax.f32 %v5329, 0.0
        %v5624 = vmax.f32 %v5331, 0.0
        %v5625 = vmax.f32 %v5335, 0.0
        %v5626 = vmax.f32 %v5337, 0.0
        %v5627 = vmax.f32 %v5339, 0.0
        %v5628 = vmax.f32 %v5341, 0.0
        %v5629 = vmax.f32 %v5345, 0.0
        %v5630 = vmax.f32 %v5347, 0.0
        %v5631 = vmax.f32 %v5349, 0.0
        %v5632 = vmax.f32 %v5351, 0.0
        %v5633 = vmax.f32 %v5355, 0.0
        %v5634 = vmax.f32 %v5357, 0.0
        %v5635 = vmax.f32 %v5359, 0.0
        %v5636 = vmax.f32 %v5361, 0.0
        %v5637 = vmax.f32 %v5365, 0.0
        %v5638 = vmax.f32 %v5367, 0.0
        %v5639 = vmax.f32 %v5369, 0.0
        %v5640 = vmax.f32 %v5371, 0.0
        %v5641 = vmax.f32 %v5375, 0.0
        %v5642 = vmax.f32 %v5377, 0.0
        %v5643 = vmax.f32 %v5379, 0.0
        %v5644 = vmax.f32 %v5381, 0.0
        %v5645 = vmax.f32 %v5385, 0.0
        %v5646 = vmax.f32 %v5387, 0.0
        %v5647 = vmax.f32 %v5389, 0.0
        %v5648 = vmax.f32 %v5391, 0.0
        %v5649 = vpack.c.bf16 %v5395, %v5393
        %v5650 = vpack.c.bf16 %v5396, %v5394
        %v5651 = vpack.c.bf16 %v5399, %v5397
        %v5652 = vpack.c.bf16 %v5400, %v5398
        %v5653 = vpack.c.bf16 %v5403, %v5401
        %v5654 = vpack.c.bf16 %v5404, %v5402
        %v5655 = vpack.c.bf16 %v5407, %v5405
        %v5656 = vpack.c.bf16 %v5408, %v5406
        %v5657 = vpack.c.bf16 %v5411, %v5409
        %v5658 = vpack.c.bf16 %v5412, %v5410
        %v5659 = vpack.c.bf16 %v5415, %v5413
        %v5660 = vpack.c.bf16 %v5416, %v5414
        %v5661 = vpack.c.bf16 %v5419, %v5417
        %v5662 = vpack.c.bf16 %v5420, %v5418
        %v5663 = vpack.c.bf16 %v5423, %v5421
        %v5664 = vpack.c.bf16 %v5424, %v5422
        %v5665 = vpack.c.bf16 %v5427, %v5425
        %v5666 = vpack.c.bf16 %v5428, %v5426
        %v5667 = vpack.c.bf16 %v5431, %v5429
        %v5668 = vpack.c.bf16 %v5432, %v5430
        %v5669 = vpack.c.bf16 %v5435, %v5433
        %v5670 = vpack.c.bf16 %v5436, %v5434
        %v5671 = vpack.c.bf16 %v5439, %v5437
        %v5672 = vpack.c.bf16 %v5440, %v5438
        %v5673 = vpack.c.bf16 %v5443, %v5441
        %v5674 = vpack.c.bf16 %v5444, %v5442
        %v5675 = vpack.c.bf16 %v5447, %v5445
        %v5676 = vpack.c.bf16 %v5448, %v5446
        %v5677 = vpack.c.bf16 %v5451, %v5449
        %v5678 = vpack.c.bf16 %v5452, %v5450
        %v5679 = vpack.c.bf16 %v5455, %v5453
        %v5680 = vpack.c.bf16 %v5456, %v5454
        %v5681 = vpack.c.bf16 %v5459, %v5457
        %v5682 = vpack.c.bf16 %v5460, %v5458
        %v5683 = vpack.c.bf16 %v5463, %v5461
        %v5684 = vpack.c.bf16 %v5464, %v5462
        %v5685 = vpack.c.bf16 %v5467, %v5465
        %v5686 = vpack.c.bf16 %v5468, %v5466
        %v5687 = vpack.c.bf16 %v5471, %v5469
        %v5688 = vpack.c.bf16 %v5472, %v5470
        %v5689 = vpack.c.bf16 %v5475, %v5473
        %v5690 = vpack.c.bf16 %v5476, %v5474
        %v5691 = vpack.c.bf16 %v5479, %v5477
        %v5692 = vpack.c.bf16 %v5480, %v5478
        %v5693 = vpack.c.bf16 %v5483, %v5481
        %v5694 = vpack.c.bf16 %v5484, %v5482
        %v5695 = vpack.c.bf16 %v5487, %v5485
        %v5696 = vpack.c.bf16 %v5488, %v5486
        %v5697 = vpack.c.bf16 %v5491, %v5489
        %v5698 = vpack.c.bf16 %v5492, %v5490
        %v5699 = vpack.c.bf16 %v5495, %v5493
        %v5700 = vpack.c.bf16 %v5496, %v5494
        %v5701 = vpack.c.bf16 %v5499, %v5497
        %v5702 = vpack.c.bf16 %v5500, %v5498
        %v5703 = vpack.c.bf16 %v5503, %v5501
        %v5704 = vpack.c.bf16 %v5504, %v5502
        %v5705 = vpack.c.bf16 %v5507, %v5505
        %v5706 = vpack.c.bf16 %v5508, %v5506
        %v5707 = vpack.c.bf16 %v5511, %v5509
        %v5708 = vpack.c.bf16 %v5512, %v5510
        %v5709 = vpack.c.bf16 %v5515, %v5513
        %v5710 = vpack.c.bf16 %v5516, %v5514
        %v5711 = vpack.c.bf16 %v5519, %v5517
        %v5712 = vpack.c.bf16 %v5520, %v5518
        %v5713 = vpack.c.bf16 %v5523, %v5521
        %v5714 = vpack.c.bf16 %v5524, %v5522
        %v5715 = vpack.c.bf16 %v5527, %v5525
        %v5716 = vpack.c.bf16 %v5528, %v5526
        %v5717 = vpack.c.bf16 %v5531, %v5529
        %v5718 = vpack.c.bf16 %v5532, %v5530
        %v5719 = vpack.c.bf16 %v5535, %v5533
        %v5720 = vpack.c.bf16 %v5536, %v5534
        %v5721 = vpack.c.bf16 %v5539, %v5537
        %v5722 = vpack.c.bf16 %v5540, %v5538
        %v5723 = vpack.c.bf16 %v5543, %v5541
        %v5724 = vpack.c.bf16 %v5544, %v5542
        %v5725 = vpack.c.bf16 %v5547, %v5545
        %v5726 = vpack.c.bf16 %v5548, %v5546
        %v5727 = vpack.c.bf16 %v5551, %v5549
        %v5728 = vpack.c.bf16 %v5552, %v5550
        %v5729 = vpack.c.bf16 %v5555, %v5553
        %v5730 = vpack.c.bf16 %v5556, %v5554
        %v5731 = vpack.c.bf16 %v5559, %v5557
        %v5732 = vpack.c.bf16 %v5560, %v5558
        %v5733 = vpack.c.bf16 %v5563, %v5561
        %v5734 = vpack.c.bf16 %v5564, %v5562
        %v5735 = vpack.c.bf16 %v5567, %v5565
        %v5736 = vpack.c.bf16 %v5568, %v5566
        %v5737 = vpack.c.bf16 %v5571, %v5569
        %v5738 = vpack.c.bf16 %v5572, %v5570
        %v5739 = vpack.c.bf16 %v5575, %v5573
        %v5740 = vpack.c.bf16 %v5576, %v5574
        %v5741 = vpack.c.bf16 %v5579, %v5577
        %v5742 = vpack.c.bf16 %v5580, %v5578
        %v5743 = vpack.c.bf16 %v5583, %v5581
        %v5744 = vpack.c.bf16 %v5584, %v5582
        %v5745 = vpack.c.bf16 %v5587, %v5585
        %v5746 = vpack.c.bf16 %v5588, %v5586
        %v5747 = vpack.c.bf16 %v5591, %v5589
        %v5748 = vpack.c.bf16 %v5592, %v5590
        %v5749 = vpack.c.bf16 %v5595, %v5593
        %v5750 = vpack.c.bf16 %v5596, %v5594
        %v5751 = vpack.c.bf16 %v5599, %v5597
        %v5752 = vpack.c.bf16 %v5600, %v5598
        %v5753 = vpack.c.bf16 %v5603, %v5601
        %v5754 = vpack.c.bf16 %v5604, %v5602
        %v5755 = vpack.c.bf16 %v5607, %v5605
        %v5756 = vpack.c.bf16 %v5608, %v5606
        %v5757 = vpack.c.bf16 %v5611, %v5609
        %v5758 = vpack.c.bf16 %v5612, %v5610
        %v5759 = vpack.c.bf16 %v5615, %v5613
        %v5760 = vpack.c.bf16 %v5616, %v5614
        %v5761 = vpack.c.bf16 %v5619, %v5617
        %v5762 = vpack.c.bf16 %v5620, %v5618
        %v5763 = vpack.c.bf16 %v5623, %v5621
        %v5764 = vpack.c.bf16 %v5624, %v5622
        %v5765 = vpack.c.bf16 %v5627, %v5625
        %v5766 = vpack.c.bf16 %v5628, %v5626
        %v5767 = vpack.c.bf16 %v5631, %v5629
        %v5768 = vpack.c.bf16 %v5632, %v5630
        %v5769 = vpack.c.bf16 %v5635, %v5633
        %v5770 = vpack.c.bf16 %v5636, %v5634
        %v5771 = vpack.c.bf16 %v5639, %v5637
        %v5772 = vpack.c.bf16 %v5640, %v5638
        %v5773 = vpack.c.bf16 %v5643, %v5641
        %v5774 = vpack.c.bf16 %v5644, %v5642
        %v5775 = vpack.c.bf16 %v5647, %v5645
        %v5776 = vpack.c.bf16 %v5648, %v5646
        %v5777 = vld [vmem:[%s7] sm:$0xff]
        %v5778 = vld [vmem:[%s7 + $0x8] sm:$0xff]
        %v5779 = vld [vmem:[%s7 + $0x10] sm:$0xff]
        %v5780 = vld [vmem:[%s7 + $0x18] sm:$0xff]
        %v5781 = vld [vmem:[%s7 + $0x20] sm:$0xff]
        %v5782 = vld [vmem:[%s7 + $0x28] sm:$0xff]
        %v5783 = vld [vmem:[%s7 + $0x30] sm:$0xff]
        %v5784 = vld [vmem:[%s7 + $0x38] sm:$0xff]
        %v5785 = vld [vmem:[%s7 + $0x40] sm:$0xff]
        %v5786 = vld [vmem:[%s7 + $0x48] sm:$0xff]
        %v5787 = vld [vmem:[%s7 + $0x50] sm:$0xff]
        %v5788 = vld [vmem:[%s7 + $0x58] sm:$0xff]
        %v5789 = vld [vmem:[%s7 + $0x60] sm:$0xff]
        %v5790 = vld [vmem:[%s7 + $0x68] sm:$0xff]
        %v5791 = vld [vmem:[%s7 + $0x70] sm:$0xff]
        %v5792 = vld [vmem:[%s7 + $0x78] sm:$0xff]
        %v5793 = vld [vmem:[%s7 + $0x80] sm:$0xff]
        %v5794 = vld [vmem:[%s7 + $0x88] sm:$0xff]
        %v5795 = vld [vmem:[%s7 + $0x90] sm:$0xff]
        %v5796 = vld [vmem:[%s7 + $0x98] sm:$0xff]
        %v5797 = vld [vmem:[%s7 + $0xa0] sm:$0xff]
        %v5798 = vld [vmem:[%s7 + $0xa8] sm:$0xff]
        %v5799 = vld [vmem:[%s7 + $0xb0] sm:$0xff]
        %v5800 = vld [vmem:[%s7 + $0xb8] sm:$0xff]
        %v5801 = vld [vmem:[%s7 + $0xc0] sm:$0xff]
        %v5802 = vld [vmem:[%s7 + $0xc8] sm:$0xff]
        %v5803 = vld [vmem:[%s7 + $0xd0] sm:$0xff]
        %v5804 = vld [vmem:[%s7 + $0xd8] sm:$0xff]
        %v5805 = vld [vmem:[%s7 + $0xe0] sm:$0xff]
        %v5806 = vld [vmem:[%s7 + $0xe8] sm:$0xff]
        %v5807 = vld [vmem:[%s7 + $0xf0] sm:$0xff]
        %v5808 = vld [vmem:[%s7 + $0xf8] sm:$0xff]
        %v5809 = vld [vmem:[%s7 + $0x100] sm:$0xff]
        %v5810 = vld [vmem:[%s7 + $0x108] sm:$0xff]
        %v5811 = vld [vmem:[%s7 + $0x110] sm:$0xff]
        %v5812 = vld [vmem:[%s7 + $0x118] sm:$0xff]
        %v5813 = vld [vmem:[%s7 + $0x120] sm:$0xff]
        %v5814 = vld [vmem:[%s7 + $0x128] sm:$0xff]
        %v5815 = vld [vmem:[%s7 + $0x130] sm:$0xff]
        %v5816 = vld [vmem:[%s7 + $0x138] sm:$0xff]
        %v5817 = vld [vmem:[%s7 + $0x140] sm:$0xff]
        %v5818 = vld [vmem:[%s7 + $0x148] sm:$0xff]
        %v5819 = vld [vmem:[%s7 + $0x150] sm:$0xff]
        %v5820 = vld [vmem:[%s7 + $0x158] sm:$0xff]
        %v5821 = vld [vmem:[%s7 + $0x160] sm:$0xff]
        %v5822 = vld [vmem:[%s7 + $0x168] sm:$0xff]
        %v5823 = vld [vmem:[%s7 + $0x170] sm:$0xff]
        %v5824 = vld [vmem:[%s7 + $0x178] sm:$0xff]
        %v5825 = vld [vmem:[%s7 + $0x180] sm:$0xff]
        %v5826 = vld [vmem:[%s7 + $0x188] sm:$0xff]
        %v5827 = vld [vmem:[%s7 + $0x190] sm:$0xff]
        %v5828 = vld [vmem:[%s7 + $0x198] sm:$0xff]
        %v5829 = vld [vmem:[%s7 + $0x1a0] sm:$0xff]
        %v5830 = vld [vmem:[%s7 + $0x1a8] sm:$0xff]
        %v5831 = vld [vmem:[%s7 + $0x1b0] sm:$0xff]
        %v5832 = vld [vmem:[%s7 + $0x1b8] sm:$0xff]
        %v5833 = vld [vmem:[%s7 + $0x1c0] sm:$0xff]
        %v5834 = vld [vmem:[%s7 + $0x1c8] sm:$0xff]
        %v5835 = vld [vmem:[%s7 + $0x1d0] sm:$0xff]
        %v5836 = vld [vmem:[%s7 + $0x1d8] sm:$0xff]
        %v5837 = vld [vmem:[%s7 + $0x1e0] sm:$0xff]
        %v5838 = vld [vmem:[%s7 + $0x1e8] sm:$0xff]
        %v5839 = vld [vmem:[%s7 + $0x1f0] sm:$0xff]
        %v5840 = vld [vmem:[%s7 + $0x1f8] sm:$0xff]
        %v5841 = vld [vmem:[%s8] sm:$0xf]
        %v5843 = vlaneseq
        %v5844 = vshrl.u32 %v5843, 7
        %v5845 = vsub.s32 0, %v5844
        %v5846 = vrot.slane %v5841, %v5845
        %v5847 = vlaneseq
        %v5848 = vshrl.u32 %v5847, 7
        %v5849 = vsub.s32 1, %v5848
        %v5850 = vrot.slane %v5841, %v5849
        %v5851 = vlaneseq
        %v5852 = vshrl.u32 %v5851, 7
        %v5853 = vsub.s32 2, %v5852
        %v5854 = vrot.slane %v5841, %v5853
        %v5855 = vlaneseq
        %v5856 = vshrl.u32 %v5855, 7
        %v5857 = vsub.s32 3, %v5856
        %v5858 = vrot.slane %v5841, %v5857
        %v5927 = vunpack.c.l.b16 %v5777
        %v5928 = vunpack.c.h.b16 %v5777
        %v5929 = vunpack.c.l.b16 %v5778
        %v5930 = vunpack.c.h.b16 %v5778
        %v5931 = vunpack.c.l.b16 %v5779
        %v5932 = vunpack.c.h.b16 %v5779
        %v5933 = vunpack.c.l.b16 %v5780
        %v5934 = vunpack.c.h.b16 %v5780
        %v5935 = vunpack.c.l.b16 %v5781
        %v5936 = vunpack.c.h.b16 %v5781
        %v5937 = vunpack.c.l.b16 %v5782
        %v5938 = vunpack.c.h.b16 %v5782
        %v5939 = vunpack.c.l.b16 %v5783
        %v5940 = vunpack.c.h.b16 %v5783
        %v5941 = vunpack.c.l.b16 %v5784
        %v5942 = vunpack.c.h.b16 %v5784
        %v5943 = vunpack.c.l.b16 %v5785
        %v5944 = vunpack.c.h.b16 %v5785
        %v5945 = vunpack.c.l.b16 %v5786
        %v5946 = vunpack.c.h.b16 %v5786
        %v5947 = vunpack.c.l.b16 %v5787
        %v5948 = vunpack.c.h.b16 %v5787
        %v5949 = vunpack.c.l.b16 %v5788
        %v5950 = vunpack.c.h.b16 %v5788
        %v5951 = vunpack.c.l.b16 %v5789
        %v5952 = vunpack.c.h.b16 %v5789
        %v5953 = vunpack.c.l.b16 %v5790
        %v5954 = vunpack.c.h.b16 %v5790
        %v5955 = vunpack.c.l.b16 %v5791
        %v5956 = vunpack.c.h.b16 %v5791
        %v5957 = vunpack.c.l.b16 %v5792
        %v5958 = vunpack.c.h.b16 %v5792
        %v5959 = vunpack.c.l.b16 %v5793
        %v5960 = vunpack.c.h.b16 %v5793
        %v5961 = vunpack.c.l.b16 %v5794
        %v5962 = vunpack.c.h.b16 %v5794
        %v5963 = vunpack.c.l.b16 %v5795
        %v5964 = vunpack.c.h.b16 %v5795
        %v5965 = vunpack.c.l.b16 %v5796
        %v5966 = vunpack.c.h.b16 %v5796
        %v5967 = vunpack.c.l.b16 %v5797
        %v5968 = vunpack.c.h.b16 %v5797
        %v5969 = vunpack.c.l.b16 %v5798
        %v5970 = vunpack.c.h.b16 %v5798
        %v5971 = vunpack.c.l.b16 %v5799
        %v5972 = vunpack.c.h.b16 %v5799
        %v5973 = vunpack.c.l.b16 %v5800
        %v5974 = vunpack.c.h.b16 %v5800
        %v5975 = vunpack.c.l.b16 %v5801
        %v5976 = vunpack.c.h.b16 %v5801
        %v5977 = vunpack.c.l.b16 %v5802
        %v5978 = vunpack.c.h.b16 %v5802
        %v5979 = vunpack.c.l.b16 %v5803
        %v5980 = vunpack.c.h.b16 %v5803
        %v5981 = vunpack.c.l.b16 %v5804
        %v5982 = vunpack.c.h.b16 %v5804
        %v5983 = vunpack.c.l.b16 %v5805
        %v5984 = vunpack.c.h.b16 %v5805
        %v5985 = vunpack.c.l.b16 %v5806
        %v5986 = vunpack.c.h.b16 %v5806
        %v5987 = vunpack.c.l.b16 %v5807
        %v5988 = vunpack.c.h.b16 %v5807
        %v5989 = vunpack.c.l.b16 %v5808
        %v5990 = vunpack.c.h.b16 %v5808
        %v5991 = vunpack.c.l.b16 %v5809
        %v5992 = vunpack.c.h.b16 %v5809
        %v5993 = vunpack.c.l.b16 %v5810
        %v5994 = vunpack.c.h.b16 %v5810
        %v5995 = vunpack.c.l.b16 %v5811
        %v5996 = vunpack.c.h.b16 %v5811
        %v5997 = vunpack.c.l.b16 %v5812
        %v5998 = vunpack.c.h.b16 %v5812
        %v5999 = vunpack.c.l.b16 %v5813
        %v6000 = vunpack.c.h.b16 %v5813
        %v6001 = vunpack.c.l.b16 %v5814
        %v6002 = vunpack.c.h.b16 %v5814
        %v6003 = vunpack.c.l.b16 %v5815
        %v6004 = vunpack.c.h.b16 %v5815
        %v6005 = vunpack.c.l.b16 %v5816
        %v6006 = vunpack.c.h.b16 %v5816
        %v6007 = vunpack.c.l.b16 %v5817
        %v6008 = vunpack.c.h.b16 %v5817
        %v6009 = vunpack.c.l.b16 %v5818
        %v6010 = vunpack.c.h.b16 %v5818
        %v6011 = vunpack.c.l.b16 %v5819
        %v6012 = vunpack.c.h.b16 %v5819
        %v6013 = vunpack.c.l.b16 %v5820
        %v6014 = vunpack.c.h.b16 %v5820
        %v6015 = vunpack.c.l.b16 %v5821
        %v6016 = vunpack.c.h.b16 %v5821
        %v6017 = vunpack.c.l.b16 %v5822
        %v6018 = vunpack.c.h.b16 %v5822
        %v6019 = vunpack.c.l.b16 %v5823
        %v6020 = vunpack.c.h.b16 %v5823
        %v6021 = vunpack.c.l.b16 %v5824
        %v6022 = vunpack.c.h.b16 %v5824
        %v6023 = vunpack.c.l.b16 %v5825
        %v6024 = vunpack.c.h.b16 %v5825
        %v6025 = vunpack.c.l.b16 %v5826
        %v6026 = vunpack.c.h.b16 %v5826
        %v6027 = vunpack.c.l.b16 %v5827
        %v6028 = vunpack.c.h.b16 %v5827
        %v6029 = vunpack.c.l.b16 %v5828
        %v6030 = vunpack.c.h.b16 %v5828
        %v6031 = vunpack.c.l.b16 %v5829
        %v6032 = vunpack.c.h.b16 %v5829
        %v6033 = vunpack.c.l.b16 %v5830
        %v6034 = vunpack.c.h.b16 %v5830
        %v6035 = vunpack.c.l.b16 %v5831
        %v6036 = vunpack.c.h.b16 %v5831
        %v6037 = vunpack.c.l.b16 %v5832
        %v6038 = vunpack.c.h.b16 %v5832
        %v6039 = vunpack.c.l.b16 %v5833
        %v6040 = vunpack.c.h.b16 %v5833
        %v6041 = vunpack.c.l.b16 %v5834
        %v6042 = vunpack.c.h.b16 %v5834
        %v6043 = vunpack.c.l.b16 %v5835
        %v6044 = vunpack.c.h.b16 %v5835
        %v6045 = vunpack.c.l.b16 %v5836
        %v6046 = vunpack.c.h.b16 %v5836
        %v6047 = vunpack.c.l.b16 %v5837
        %v6048 = vunpack.c.h.b16 %v5837
        %v6049 = vunpack.c.l.b16 %v5838
        %v6050 = vunpack.c.h.b16 %v5838
        %v6051 = vunpack.c.l.b16 %v5839
        %v6052 = vunpack.c.h.b16 %v5839
        %v6053 = vunpack.c.l.b16 %v5840
        %v6054 = vunpack.c.h.b16 %v5840
        %v6055 = vpack.c.b16 %v5931, %v5927
        %v6056 = vpack.c.b16 %v5932, %v5928
        %v6057 = vpack.c.b16 %v5933, %v5929
        %v6058 = vpack.c.b16 %v5934, %v5930
        %v6059 = vpack.c.b16 %v5939, %v5935
        %v6060 = vpack.c.b16 %v5940, %v5936
        %v6061 = vpack.c.b16 %v5941, %v5937
        %v6062 = vpack.c.b16 %v5942, %v5938
        %v6063 = vpack.c.b16 %v5947, %v5943
        %v6064 = vpack.c.b16 %v5948, %v5944
        %v6065 = vpack.c.b16 %v5949, %v5945
        %v6066 = vpack.c.b16 %v5950, %v5946
        %v6067 = vpack.c.b16 %v5955, %v5951
        %v6068 = vpack.c.b16 %v5956, %v5952
        %v6069 = vpack.c.b16 %v5957, %v5953
        %v6070 = vpack.c.b16 %v5958, %v5954
        %v6071 = vpack.c.b16 %v5963, %v5959
        %v6072 = vpack.c.b16 %v5964, %v5960
        %v6073 = vpack.c.b16 %v5965, %v5961
        %v6074 = vpack.c.b16 %v5966, %v5962
        %v6075 = vpack.c.b16 %v5971, %v5967
        %v6076 = vpack.c.b16 %v5972, %v5968
        %v6077 = vpack.c.b16 %v5973, %v5969
        %v6078 = vpack.c.b16 %v5974, %v5970
        %v6079 = vpack.c.b16 %v5979, %v5975
        %v6080 = vpack.c.b16 %v5980, %v5976
        %v6081 = vpack.c.b16 %v5981, %v5977
        %v6082 = vpack.c.b16 %v5982, %v5978
        %v6083 = vpack.c.b16 %v5987, %v5983
        %v6084 = vpack.c.b16 %v5988, %v5984
        %v6085 = vpack.c.b16 %v5989, %v5985
        %v6086 = vpack.c.b16 %v5990, %v5986
        %v6087 = vpack.c.b16 %v5995, %v5991
        %v6088 = vpack.c.b16 %v5996, %v5992
        %v6089 = vpack.c.b16 %v5997, %v5993
        %v6090 = vpack.c.b16 %v5998, %v5994
        %v6091 = vpack.c.b16 %v6003, %v5999
        %v6092 = vpack.c.b16 %v6004, %v6000
        %v6093 = vpack.c.b16 %v6005, %v6001
        %v6094 = vpack.c.b16 %v6006, %v6002
        %v6095 = vpack.c.b16 %v6011, %v6007
        %v6096 = vpack.c.b16 %v6012, %v6008
        %v6097 = vpack.c.b16 %v6013, %v6009
        %v6098 = vpack.c.b16 %v6014, %v6010
        %v6099 = vpack.c.b16 %v6019, %v6015
        %v6100 = vpack.c.b16 %v6020, %v6016
        %v6101 = vpack.c.b16 %v6021, %v6017
        %v6102 = vpack.c.b16 %v6022, %v6018
        %v6103 = vpack.c.b16 %v6027, %v6023
        %v6104 = vpack.c.b16 %v6028, %v6024
        %v6105 = vpack.c.b16 %v6029, %v6025
        %v6106 = vpack.c.b16 %v6030, %v6026
        %v6107 = vpack.c.b16 %v6035, %v6031
        %v6108 = vpack.c.b16 %v6036, %v6032
        %v6109 = vpack.c.b16 %v6037, %v6033
        %v6110 = vpack.c.b16 %v6038, %v6034
        %v6111 = vpack.c.b16 %v6043, %v6039
        %v6112 = vpack.c.b16 %v6044, %v6040
        %v6113 = vpack.c.b16 %v6045, %v6041
        %v6114 = vpack.c.b16 %v6046, %v6042
        %v6115 = vpack.c.b16 %v6051, %v6047
        %v6116 = vpack.c.b16 %v6052, %v6048
        %v6117 = vpack.c.b16 %v6053, %v6049
        %v6118 = vpack.c.b16 %v6054, %v6050
        %6183 = vmatprep.subr.bf16.mxu0 %v6084
        %6184 = vmatpush1.bf16.msra.mxu0 %v6083
        %6185 = vmatprep.subr.bf16.mxu0 %v6080
        %6186 = vmatpush1.bf16.msra.mxu0 %v6079
        %6187 = vmatprep.subr.bf16.mxu0 %v6076
        %6188 = vmatpush1.bf16.msra.mxu0 %v6075
        %6189 = vmatprep.subr.bf16.mxu0 %v6072
        %6190 = vmatpush1.bf16.msra.mxu0 %v6071
        %6191 = vmatprep.subr.bf16.mxu0 %v6068
        %6192 = vmatpush1.bf16.msra.mxu0 %v6067
        %6193 = vmatprep.subr.bf16.mxu0 %v6064
        %6194 = vmatpush1.bf16.msra.mxu0 %v6063
        %6195 = vmatprep.subr.bf16.mxu0 %v6060
        %6196 = vmatpush1.bf16.msra.mxu0 %v6059
        %6197 = vmatprep.subr.bf16.mxu0 %v6056
        %6198 = vmatpush1.bf16.msra.mxu0 %v6055
        %6199 = vmatprep.subr.bf16.mxu0 %v6116
        %6200 = vmatpush2.bf16.msra.mxu0 %v6115
        %6201 = vmatprep.subr.bf16.mxu0 %v6112
        %6202 = vmatpush2.bf16.msra.mxu0 %v6111
        %6203 = vmatprep.subr.bf16.mxu0 %v6108
        %6204 = vmatpush2.bf16.msra.mxu0 %v6107
        %6205 = vmatprep.subr.bf16.mxu0 %v6104
        %6206 = vmatpush2.bf16.msra.mxu0 %v6103
        %6207 = vmatprep.subr.bf16.mxu0 %v6100
        %6208 = vmatpush2.bf16.msra.mxu0 %v6099
        %6209 = vmatprep.subr.bf16.mxu0 %v6096
        %6210 = vmatpush2.bf16.msra.mxu0 %v6095
        %6211 = vmatprep.subr.bf16.mxu0 %v6092
        %6212 = vmatpush2.bf16.msra.mxu0 %v6091
        %6213 = vmatprep.subr.bf16.mxu0 %v6088
        %6214 = vmatpush2.bf16.msra.mxu0 %v6087
        %6215 = vmatprep.mubr.bf16.mxu0 %v5650
        %6216 = vmatmul.mubr.bf16.gmra.mxu0 %v5649
        %v6217 = vpop.f32.mrf.mxu0
        %v6218 = vadd.f32 %v5846, %v6217
        %v6219 = vpop.f32.mrf.mxu0
        %v6220 = vadd.f32 %v5850, %v6219
        %v6221 = vpop.f32.mrf.mxu0
        %v6222 = vadd.f32 %v5846, %v6221
        %v6223 = vpop.f32.mrf.mxu0
        %v6224 = vadd.f32 %v5850, %v6223
        %6225 = vmatprep.mubr.bf16.mxu0 %v5652
        %6226 = vmatmul.mubr.bf16.gmra.mxu0 %v5651
        %v6227 = vpop.f32.mrf.mxu0
        %v6228 = vadd.f32 %v5846, %v6227
        %v6229 = vpop.f32.mrf.mxu0
        %v6230 = vadd.f32 %v5850, %v6229
        %v6231 = vpop.f32.mrf.mxu0
        %v6232 = vadd.f32 %v5846, %v6231
        %v6233 = vpop.f32.mrf.mxu0
        %v6234 = vadd.f32 %v5850, %v6233
        %6235 = vmatprep.mubr.bf16.mxu0 %v5654
        %6236 = vmatmul.mubr.bf16.gmra.mxu0 %v5653
        %v6237 = vpop.f32.mrf.mxu0
        %v6238 = vadd.f32 %v5846, %v6237
        %v6239 = vpop.f32.mrf.mxu0
        %v6240 = vadd.f32 %v5850, %v6239
        %v6241 = vpop.f32.mrf.mxu0
        %v6242 = vadd.f32 %v5846, %v6241
        %v6243 = vpop.f32.mrf.mxu0
        %v6244 = vadd.f32 %v5850, %v6243
        %6245 = vmatprep.mubr.bf16.mxu0 %v5656
        %6246 = vmatmul.mubr.bf16.gmra.mxu0 %v5655
        %v6247 = vpop.f32.mrf.mxu0
        %v6248 = vadd.f32 %v5846, %v6247
        %v6249 = vpop.f32.mrf.mxu0
        %v6250 = vadd.f32 %v5850, %v6249
        %v6251 = vpop.f32.mrf.mxu0
        %v6252 = vadd.f32 %v5846, %v6251
        %v6253 = vpop.f32.mrf.mxu0
        %v6254 = vadd.f32 %v5850, %v6253
        %6255 = vmatprep.mubr.bf16.mxu0 %v5658
        %6256 = vmatmul.mubr.bf16.gmra.mxu0 %v5657
        %v6257 = vpop.f32.mrf.mxu0
        %v6258 = vadd.f32 %v5846, %v6257
        %v6259 = vpop.f32.mrf.mxu0
        %v6260 = vadd.f32 %v5850, %v6259
        %v6261 = vpop.f32.mrf.mxu0
        %v6262 = vadd.f32 %v5846, %v6261
        %v6263 = vpop.f32.mrf.mxu0
        %v6264 = vadd.f32 %v5850, %v6263
        %6265 = vmatprep.mubr.bf16.mxu0 %v5660
        %6266 = vmatmul.mubr.bf16.gmra.mxu0 %v5659
        %v6267 = vpop.f32.mrf.mxu0
        %v6268 = vadd.f32 %v5846, %v6267
        %v6269 = vpop.f32.mrf.mxu0
        %v6270 = vadd.f32 %v5850, %v6269
        %v6271 = vpop.f32.mrf.mxu0
        %v6272 = vadd.f32 %v5846, %v6271
        %v6273 = vpop.f32.mrf.mxu0
        %v6274 = vadd.f32 %v5850, %v6273
        %6275 = vmatprep.mubr.bf16.mxu0 %v5662
        %6276 = vmatmul.mubr.bf16.gmra.mxu0 %v5661
        %v6277 = vpop.f32.mrf.mxu0
        %v6278 = vadd.f32 %v5846, %v6277
        %v6279 = vpop.f32.mrf.mxu0
        %v6280 = vadd.f32 %v5850, %v6279
        %v6281 = vpop.f32.mrf.mxu0
        %v6282 = vadd.f32 %v5846, %v6281
        %v6283 = vpop.f32.mrf.mxu0
        %v6284 = vadd.f32 %v5850, %v6283
        %6285 = vmatprep.mubr.bf16.mxu0 %v5664
        %6286 = vmatmul.mubr.bf16.gmra.mxu0 %v5663
        %v6287 = vpop.f32.mrf.mxu0
        %v6288 = vadd.f32 %v5846, %v6287
        %v6289 = vpop.f32.mrf.mxu0
        %v6290 = vadd.f32 %v5850, %v6289
        %v6291 = vpop.f32.mrf.mxu0
        %v6292 = vadd.f32 %v5846, %v6291
        %v6293 = vpop.f32.mrf.mxu0
        %v6294 = vadd.f32 %v5850, %v6293
        %6295 = vmatprep.mubr.bf16.mxu0 %v5666
        %6296 = vmatmul.mubr.bf16.gmra.mxu0 %v5665
        %v6297 = vpop.f32.mrf.mxu0
        %v6298 = vadd.f32 %v5846, %v6297
        %v6299 = vpop.f32.mrf.mxu0
        %v6300 = vadd.f32 %v5850, %v6299
        %v6301 = vpop.f32.mrf.mxu0
        %v6302 = vadd.f32 %v5846, %v6301
        %v6303 = vpop.f32.mrf.mxu0
        %v6304 = vadd.f32 %v5850, %v6303
        %6305 = vmatprep.mubr.bf16.mxu0 %v5668
        %6306 = vmatmul.mubr.bf16.gmra.mxu0 %v5667
        %v6307 = vpop.f32.mrf.mxu0
        %v6308 = vadd.f32 %v5846, %v6307
        %v6309 = vpop.f32.mrf.mxu0
        %v6310 = vadd.f32 %v5850, %v6309
        %v6311 = vpop.f32.mrf.mxu0
        %v6312 = vadd.f32 %v5846, %v6311
        %v6313 = vpop.f32.mrf.mxu0
        %v6314 = vadd.f32 %v5850, %v6313
        %6315 = vmatprep.mubr.bf16.mxu0 %v5670
        %6316 = vmatmul.mubr.bf16.gmra.mxu0 %v5669
        %v6317 = vpop.f32.mrf.mxu0
        %v6318 = vadd.f32 %v5846, %v6317
        %v6319 = vpop.f32.mrf.mxu0
        %v6320 = vadd.f32 %v5850, %v6319
        %v6321 = vpop.f32.mrf.mxu0
        %v6322 = vadd.f32 %v5846, %v6321
        %v6323 = vpop.f32.mrf.mxu0
        %v6324 = vadd.f32 %v5850, %v6323
        %6325 = vmatprep.mubr.bf16.mxu0 %v5672
        %6326 = vmatmul.mubr.bf16.gmra.mxu0 %v5671
        %v6327 = vpop.f32.mrf.mxu0
        %v6328 = vadd.f32 %v5846, %v6327
        %v6329 = vpop.f32.mrf.mxu0
        %v6330 = vadd.f32 %v5850, %v6329
        %v6331 = vpop.f32.mrf.mxu0
        %v6332 = vadd.f32 %v5846, %v6331
        %v6333 = vpop.f32.mrf.mxu0
        %v6334 = vadd.f32 %v5850, %v6333
        %6335 = vmatprep.mubr.bf16.mxu0 %v5674
        %6336 = vmatmul.mubr.bf16.gmra.mxu0 %v5673
        %v6337 = vpop.f32.mrf.mxu0
        %v6338 = vadd.f32 %v5846, %v6337
        %v6339 = vpop.f32.mrf.mxu0
        %v6340 = vadd.f32 %v5850, %v6339
        %v6341 = vpop.f32.mrf.mxu0
        %v6342 = vadd.f32 %v5846, %v6341
        %v6343 = vpop.f32.mrf.mxu0
        %v6344 = vadd.f32 %v5850, %v6343
        %6345 = vmatprep.mubr.bf16.mxu0 %v5676
        %6346 = vmatmul.mubr.bf16.gmra.mxu0 %v5675
        %v6347 = vpop.f32.mrf.mxu0
        %v6348 = vadd.f32 %v5846, %v6347
        %v6349 = vpop.f32.mrf.mxu0
        %v6350 = vadd.f32 %v5850, %v6349
        %v6351 = vpop.f32.mrf.mxu0
        %v6352 = vadd.f32 %v5846, %v6351
        %v6353 = vpop.f32.mrf.mxu0
        %v6354 = vadd.f32 %v5850, %v6353
        %6355 = vmatprep.mubr.bf16.mxu0 %v5678
        %6356 = vmatmul.mubr.bf16.gmra.mxu0 %v5677
        %v6357 = vpop.f32.mrf.mxu0
        %v6358 = vadd.f32 %v5846, %v6357
        %v6359 = vpop.f32.mrf.mxu0
        %v6360 = vadd.f32 %v5850, %v6359
        %v6361 = vpop.f32.mrf.mxu0
        %v6362 = vadd.f32 %v5846, %v6361
        %v6363 = vpop.f32.mrf.mxu0
        %v6364 = vadd.f32 %v5850, %v6363
        %6365 = vmatprep.mubr.bf16.mxu0 %v5680
        %6366 = vmatmul.mubr.bf16.gmra.mxu0 %v5679
        %v6367 = vpop.f32.mrf.mxu0
        %v6368 = vadd.f32 %v5846, %v6367
        %v6369 = vpop.f32.mrf.mxu0
        %v6370 = vadd.f32 %v5850, %v6369
        %v6371 = vpop.f32.mrf.mxu0
        %v6372 = vadd.f32 %v5846, %v6371
        %v6373 = vpop.f32.mrf.mxu0
        %v6374 = vadd.f32 %v5850, %v6373
        %6375 = vmatprep.mubr.bf16.mxu0 %v5682
        %6376 = vmatmul.mubr.bf16.gmra.mxu0 %v5681
        %v6377 = vpop.f32.mrf.mxu0
        %v6378 = vadd.f32 %v5846, %v6377
        %v6379 = vpop.f32.mrf.mxu0
        %v6380 = vadd.f32 %v5850, %v6379
        %v6381 = vpop.f32.mrf.mxu0
        %v6382 = vadd.f32 %v5846, %v6381
        %v6383 = vpop.f32.mrf.mxu0
        %v6384 = vadd.f32 %v5850, %v6383
        %6385 = vmatprep.mubr.bf16.mxu0 %v5684
        %6386 = vmatmul.mubr.bf16.gmra.mxu0 %v5683
        %v6387 = vpop.f32.mrf.mxu0
        %v6388 = vadd.f32 %v5846, %v6387
        %v6389 = vpop.f32.mrf.mxu0
        %v6390 = vadd.f32 %v5850, %v6389
        %v6391 = vpop.f32.mrf.mxu0
        %v6392 = vadd.f32 %v5846, %v6391
        %v6393 = vpop.f32.mrf.mxu0
        %v6394 = vadd.f32 %v5850, %v6393
        %6395 = vmatprep.mubr.bf16.mxu0 %v5686
        %6396 = vmatmul.mubr.bf16.gmra.mxu0 %v5685
        %v6397 = vpop.f32.mrf.mxu0
        %v6398 = vadd.f32 %v5846, %v6397
        %v6399 = vpop.f32.mrf.mxu0
        %v6400 = vadd.f32 %v5850, %v6399
        %v6401 = vpop.f32.mrf.mxu0
        %v6402 = vadd.f32 %v5846, %v6401
        %v6403 = vpop.f32.mrf.mxu0
        %v6404 = vadd.f32 %v5850, %v6403
        %6405 = vmatprep.mubr.bf16.mxu0 %v5688
        %6406 = vmatmul.mubr.bf16.gmra.mxu0 %v5687
        %v6407 = vpop.f32.mrf.mxu0
        %v6408 = vadd.f32 %v5846, %v6407
        %v6409 = vpop.f32.mrf.mxu0
        %v6410 = vadd.f32 %v5850, %v6409
        %v6411 = vpop.f32.mrf.mxu0
        %v6412 = vadd.f32 %v5846, %v6411
        %v6413 = vpop.f32.mrf.mxu0
        %v6414 = vadd.f32 %v5850, %v6413
        %6415 = vmatprep.mubr.bf16.mxu0 %v5690
        %6416 = vmatmul.mubr.bf16.gmra.mxu0 %v5689
        %v6417 = vpop.f32.mrf.mxu0
        %v6418 = vadd.f32 %v5846, %v6417
        %v6419 = vpop.f32.mrf.mxu0
        %v6420 = vadd.f32 %v5850, %v6419
        %v6421 = vpop.f32.mrf.mxu0
        %v6422 = vadd.f32 %v5846, %v6421
        %v6423 = vpop.f32.mrf.mxu0
        %v6424 = vadd.f32 %v5850, %v6423
        %6425 = vmatprep.mubr.bf16.mxu0 %v5692
        %6426 = vmatmul.mubr.bf16.gmra.mxu0 %v5691
        %v6427 = vpop.f32.mrf.mxu0
        %v6428 = vadd.f32 %v5846, %v6427
        %v6429 = vpop.f32.mrf.mxu0
        %v6430 = vadd.f32 %v5850, %v6429
        %v6431 = vpop.f32.mrf.mxu0
        %v6432 = vadd.f32 %v5846, %v6431
        %v6433 = vpop.f32.mrf.mxu0
        %v6434 = vadd.f32 %v5850, %v6433
        %6435 = vmatprep.mubr.bf16.mxu0 %v5694
        %6436 = vmatmul.mubr.bf16.gmra.mxu0 %v5693
        %v6437 = vpop.f32.mrf.mxu0
        %v6438 = vadd.f32 %v5846, %v6437
        %v6439 = vpop.f32.mrf.mxu0
        %v6440 = vadd.f32 %v5850, %v6439
        %v6441 = vpop.f32.mrf.mxu0
        %v6442 = vadd.f32 %v5846, %v6441
        %v6443 = vpop.f32.mrf.mxu0
        %v6444 = vadd.f32 %v5850, %v6443
        %6445 = vmatprep.mubr.bf16.mxu0 %v5696
        %6446 = vmatmul.mubr.bf16.gmra.mxu0 %v5695
        %v6447 = vpop.f32.mrf.mxu0
        %v6448 = vadd.f32 %v5846, %v6447
        %v6449 = vpop.f32.mrf.mxu0
        %v6450 = vadd.f32 %v5850, %v6449
        %v6451 = vpop.f32.mrf.mxu0
        %v6452 = vadd.f32 %v5846, %v6451
        %v6453 = vpop.f32.mrf.mxu0
        %v6454 = vadd.f32 %v5850, %v6453
        %6455 = vmatprep.mubr.bf16.mxu0 %v5698
        %6456 = vmatmul.mubr.bf16.gmra.mxu0 %v5697
        %v6457 = vpop.f32.mrf.mxu0
        %v6458 = vadd.f32 %v5846, %v6457
        %v6459 = vpop.f32.mrf.mxu0
        %v6460 = vadd.f32 %v5850, %v6459
        %v6461 = vpop.f32.mrf.mxu0
        %v6462 = vadd.f32 %v5846, %v6461
        %v6463 = vpop.f32.mrf.mxu0
        %v6464 = vadd.f32 %v5850, %v6463
        %6465 = vmatprep.mubr.bf16.mxu0 %v5700
        %6466 = vmatmul.mubr.bf16.gmra.mxu0 %v5699
        %v6467 = vpop.f32.mrf.mxu0
        %v6468 = vadd.f32 %v5846, %v6467
        %v6469 = vpop.f32.mrf.mxu0
        %v6470 = vadd.f32 %v5850, %v6469
        %v6471 = vpop.f32.mrf.mxu0
        %v6472 = vadd.f32 %v5846, %v6471
        %v6473 = vpop.f32.mrf.mxu0
        %v6474 = vadd.f32 %v5850, %v6473
        %6475 = vmatprep.mubr.bf16.mxu0 %v5702
        %6476 = vmatmul.mubr.bf16.gmra.mxu0 %v5701
        %v6477 = vpop.f32.mrf.mxu0
        %v6478 = vadd.f32 %v5846, %v6477
        %v6479 = vpop.f32.mrf.mxu0
        %v6480 = vadd.f32 %v5850, %v6479
        %v6481 = vpop.f32.mrf.mxu0
        %v6482 = vadd.f32 %v5846, %v6481
        %v6483 = vpop.f32.mrf.mxu0
        %v6484 = vadd.f32 %v5850, %v6483
        %6485 = vmatprep.mubr.bf16.mxu0 %v5704
        %6486 = vmatmul.mubr.bf16.gmra.mxu0 %v5703
        %v6487 = vpop.f32.mrf.mxu0
        %v6488 = vadd.f32 %v5846, %v6487
        %v6489 = vpop.f32.mrf.mxu0
        %v6490 = vadd.f32 %v5850, %v6489
        %v6491 = vpop.f32.mrf.mxu0
        %v6492 = vadd.f32 %v5846, %v6491
        %v6493 = vpop.f32.mrf.mxu0
        %v6494 = vadd.f32 %v5850, %v6493
        %6495 = vmatprep.mubr.bf16.mxu0 %v5706
        %6496 = vmatmul.mubr.bf16.gmra.mxu0 %v5705
        %v6497 = vpop.f32.mrf.mxu0
        %v6498 = vadd.f32 %v5846, %v6497
        %v6499 = vpop.f32.mrf.mxu0
        %v6500 = vadd.f32 %v5850, %v6499
        %v6501 = vpop.f32.mrf.mxu0
        %v6502 = vadd.f32 %v5846, %v6501
        %v6503 = vpop.f32.mrf.mxu0
        %v6504 = vadd.f32 %v5850, %v6503
        %6505 = vmatprep.mubr.bf16.mxu0 %v5708
        %6506 = vmatmul.mubr.bf16.gmra.mxu0 %v5707
        %v6507 = vpop.f32.mrf.mxu0
        %v6508 = vadd.f32 %v5846, %v6507
        %v6509 = vpop.f32.mrf.mxu0
        %v6510 = vadd.f32 %v5850, %v6509
        %v6511 = vpop.f32.mrf.mxu0
        %v6512 = vadd.f32 %v5846, %v6511
        %v6513 = vpop.f32.mrf.mxu0
        %v6514 = vadd.f32 %v5850, %v6513
        %6515 = vmatprep.mubr.bf16.mxu0 %v5710
        %6516 = vmatmul.mubr.bf16.gmra.mxu0 %v5709
        %v6517 = vpop.f32.mrf.mxu0
        %v6518 = vadd.f32 %v5846, %v6517
        %v6519 = vpop.f32.mrf.mxu0
        %v6520 = vadd.f32 %v5850, %v6519
        %v6521 = vpop.f32.mrf.mxu0
        %v6522 = vadd.f32 %v5846, %v6521
        %v6523 = vpop.f32.mrf.mxu0
        %v6524 = vadd.f32 %v5850, %v6523
        %6525 = vmatprep.mubr.bf16.mxu0 %v5712
        %6526 = vmatmul.mubr.bf16.gmra.mxu0 %v5711
        %v6527 = vpop.f32.mrf.mxu0
        %v6528 = vadd.f32 %v5846, %v6527
        %v6529 = vpop.f32.mrf.mxu0
        %v6530 = vadd.f32 %v5850, %v6529
        %v6531 = vpop.f32.mrf.mxu0
        %v6532 = vadd.f32 %v5846, %v6531
        %v6533 = vpop.f32.mrf.mxu0
        %v6534 = vadd.f32 %v5850, %v6533
        %6535 = vmatprep.mubr.bf16.mxu0 %v5714
        %6536 = vmatmul.mubr.bf16.gmra.mxu0 %v5713
        %v6537 = vpop.f32.mrf.mxu0
        %v6538 = vadd.f32 %v5846, %v6537
        %v6539 = vpop.f32.mrf.mxu0
        %v6540 = vadd.f32 %v5850, %v6539
        %v6541 = vpop.f32.mrf.mxu0
        %v6542 = vadd.f32 %v5846, %v6541
        %v6543 = vpop.f32.mrf.mxu0
        %v6544 = vadd.f32 %v5850, %v6543
        %6545 = vmatprep.mubr.bf16.mxu0 %v5716
        %6546 = vmatmul.mubr.bf16.gmra.mxu0 %v5715
        %v6547 = vpop.f32.mrf.mxu0
        %v6548 = vadd.f32 %v5846, %v6547
        %v6549 = vpop.f32.mrf.mxu0
        %v6550 = vadd.f32 %v5850, %v6549
        %v6551 = vpop.f32.mrf.mxu0
        %v6552 = vadd.f32 %v5846, %v6551
        %v6553 = vpop.f32.mrf.mxu0
        %v6554 = vadd.f32 %v5850, %v6553
        %6555 = vmatprep.mubr.bf16.mxu0 %v5718
        %6556 = vmatmul.mubr.bf16.gmra.mxu0 %v5717
        %v6557 = vpop.f32.mrf.mxu0
        %v6558 = vadd.f32 %v5846, %v6557
        %v6559 = vpop.f32.mrf.mxu0
        %v6560 = vadd.f32 %v5850, %v6559
        %v6561 = vpop.f32.mrf.mxu0
        %v6562 = vadd.f32 %v5846, %v6561
        %v6563 = vpop.f32.mrf.mxu0
        %v6564 = vadd.f32 %v5850, %v6563
        %6565 = vmatprep.mubr.bf16.mxu0 %v5720
        %6566 = vmatmul.mubr.bf16.gmra.mxu0 %v5719
        %v6567 = vpop.f32.mrf.mxu0
        %v6568 = vadd.f32 %v5846, %v6567
        %v6569 = vpop.f32.mrf.mxu0
        %v6570 = vadd.f32 %v5850, %v6569
        %v6571 = vpop.f32.mrf.mxu0
        %v6572 = vadd.f32 %v5846, %v6571
        %v6573 = vpop.f32.mrf.mxu0
        %v6574 = vadd.f32 %v5850, %v6573
        %6575 = vmatprep.mubr.bf16.mxu0 %v5722
        %6576 = vmatmul.mubr.bf16.gmra.mxu0 %v5721
        %v6577 = vpop.f32.mrf.mxu0
        %v6578 = vadd.f32 %v5846, %v6577
        %v6579 = vpop.f32.mrf.mxu0
        %v6580 = vadd.f32 %v5850, %v6579
        %v6581 = vpop.f32.mrf.mxu0
        %v6582 = vadd.f32 %v5846, %v6581
        %v6583 = vpop.f32.mrf.mxu0
        %v6584 = vadd.f32 %v5850, %v6583
        %6585 = vmatprep.mubr.bf16.mxu0 %v5724
        %6586 = vmatmul.mubr.bf16.gmra.mxu0 %v5723
        %v6587 = vpop.f32.mrf.mxu0
        %v6588 = vadd.f32 %v5846, %v6587
        %v6589 = vpop.f32.mrf.mxu0
        %v6590 = vadd.f32 %v5850, %v6589
        %v6591 = vpop.f32.mrf.mxu0
        %v6592 = vadd.f32 %v5846, %v6591
        %v6593 = vpop.f32.mrf.mxu0
        %v6594 = vadd.f32 %v5850, %v6593
        %6595 = vmatprep.mubr.bf16.mxu0 %v5726
        %6596 = vmatmul.mubr.bf16.gmra.mxu0 %v5725
        %v6597 = vpop.f32.mrf.mxu0
        %v6598 = vadd.f32 %v5846, %v6597
        %v6599 = vpop.f32.mrf.mxu0
        %v6600 = vadd.f32 %v5850, %v6599
        %v6601 = vpop.f32.mrf.mxu0
        %v6602 = vadd.f32 %v5846, %v6601
        %v6603 = vpop.f32.mrf.mxu0
        %v6604 = vadd.f32 %v5850, %v6603
        %6605 = vmatprep.mubr.bf16.mxu0 %v5728
        %6606 = vmatmul.mubr.bf16.gmra.mxu0 %v5727
        %v6607 = vpop.f32.mrf.mxu0
        %v6608 = vadd.f32 %v5846, %v6607
        %v6609 = vpop.f32.mrf.mxu0
        %v6610 = vadd.f32 %v5850, %v6609
        %v6611 = vpop.f32.mrf.mxu0
        %v6612 = vadd.f32 %v5846, %v6611
        %v6613 = vpop.f32.mrf.mxu0
        %v6614 = vadd.f32 %v5850, %v6613
        %6615 = vmatprep.mubr.bf16.mxu0 %v5730
        %6616 = vmatmul.mubr.bf16.gmra.mxu0 %v5729
        %v6617 = vpop.f32.mrf.mxu0
        %v6618 = vadd.f32 %v5846, %v6617
        %v6619 = vpop.f32.mrf.mxu0
        %v6620 = vadd.f32 %v5850, %v6619
        %v6621 = vpop.f32.mrf.mxu0
        %v6622 = vadd.f32 %v5846, %v6621
        %v6623 = vpop.f32.mrf.mxu0
        %v6624 = vadd.f32 %v5850, %v6623
        %6625 = vmatprep.mubr.bf16.mxu0 %v5732
        %6626 = vmatmul.mubr.bf16.gmra.mxu0 %v5731
        %v6627 = vpop.f32.mrf.mxu0
        %v6628 = vadd.f32 %v5846, %v6627
        %v6629 = vpop.f32.mrf.mxu0
        %v6630 = vadd.f32 %v5850, %v6629
        %v6631 = vpop.f32.mrf.mxu0
        %v6632 = vadd.f32 %v5846, %v6631
        %v6633 = vpop.f32.mrf.mxu0
        %v6634 = vadd.f32 %v5850, %v6633
        %6635 = vmatprep.mubr.bf16.mxu0 %v5734
        %6636 = vmatmul.mubr.bf16.gmra.mxu0 %v5733
        %v6637 = vpop.f32.mrf.mxu0
        %v6638 = vadd.f32 %v5846, %v6637
        %v6639 = vpop.f32.mrf.mxu0
        %v6640 = vadd.f32 %v5850, %v6639
        %v6641 = vpop.f32.mrf.mxu0
        %v6642 = vadd.f32 %v5846, %v6641
        %v6643 = vpop.f32.mrf.mxu0
        %v6644 = vadd.f32 %v5850, %v6643
        %6645 = vmatprep.mubr.bf16.mxu0 %v5736
        %6646 = vmatmul.mubr.bf16.gmra.mxu0 %v5735
        %v6647 = vpop.f32.mrf.mxu0
        %v6648 = vadd.f32 %v5846, %v6647
        %v6649 = vpop.f32.mrf.mxu0
        %v6650 = vadd.f32 %v5850, %v6649
        %v6651 = vpop.f32.mrf.mxu0
        %v6652 = vadd.f32 %v5846, %v6651
        %v6653 = vpop.f32.mrf.mxu0
        %v6654 = vadd.f32 %v5850, %v6653
        %6655 = vmatprep.mubr.bf16.mxu0 %v5738
        %6656 = vmatmul.mubr.bf16.gmra.mxu0 %v5737
        %v6657 = vpop.f32.mrf.mxu0
        %v6658 = vadd.f32 %v5846, %v6657
        %v6659 = vpop.f32.mrf.mxu0
        %v6660 = vadd.f32 %v5850, %v6659
        %v6661 = vpop.f32.mrf.mxu0
        %v6662 = vadd.f32 %v5846, %v6661
        %v6663 = vpop.f32.mrf.mxu0
        %v6664 = vadd.f32 %v5850, %v6663
        %6665 = vmatprep.mubr.bf16.mxu0 %v5740
        %6666 = vmatmul.mubr.bf16.gmra.mxu0 %v5739
        %v6667 = vpop.f32.mrf.mxu0
        %v6668 = vadd.f32 %v5846, %v6667
        %v6669 = vpop.f32.mrf.mxu0
        %v6670 = vadd.f32 %v5850, %v6669
        %v6671 = vpop.f32.mrf.mxu0
        %v6672 = vadd.f32 %v5846, %v6671
        %v6673 = vpop.f32.mrf.mxu0
        %v6674 = vadd.f32 %v5850, %v6673
        %6675 = vmatprep.mubr.bf16.mxu0 %v5742
        %6676 = vmatmul.mubr.bf16.gmra.mxu0 %v5741
        %v6677 = vpop.f32.mrf.mxu0
        %v6678 = vadd.f32 %v5846, %v6677
        %v6679 = vpop.f32.mrf.mxu0
        %v6680 = vadd.f32 %v5850, %v6679
        %v6681 = vpop.f32.mrf.mxu0
        %v6682 = vadd.f32 %v5846, %v6681
        %v6683 = vpop.f32.mrf.mxu0
        %v6684 = vadd.f32 %v5850, %v6683
        %6685 = vmatprep.mubr.bf16.mxu0 %v5744
        %6686 = vmatmul.mubr.bf16.gmra.mxu0 %v5743
        %v6687 = vpop.f32.mrf.mxu0
        %v6688 = vadd.f32 %v5846, %v6687
        %v6689 = vpop.f32.mrf.mxu0
        %v6690 = vadd.f32 %v5850, %v6689
        %v6691 = vpop.f32.mrf.mxu0
        %v6692 = vadd.f32 %v5846, %v6691
        %v6693 = vpop.f32.mrf.mxu0
        %v6694 = vadd.f32 %v5850, %v6693
        %6695 = vmatprep.mubr.bf16.mxu0 %v5746
        %6696 = vmatmul.mubr.bf16.gmra.mxu0 %v5745
        %v6697 = vpop.f32.mrf.mxu0
        %v6698 = vadd.f32 %v5846, %v6697
        %v6699 = vpop.f32.mrf.mxu0
        %v6700 = vadd.f32 %v5850, %v6699
        %v6701 = vpop.f32.mrf.mxu0
        %v6702 = vadd.f32 %v5846, %v6701
        %v6703 = vpop.f32.mrf.mxu0
        %v6704 = vadd.f32 %v5850, %v6703
        %6705 = vmatprep.mubr.bf16.mxu0 %v5748
        %6706 = vmatmul.mubr.bf16.gmra.mxu0 %v5747
        %v6707 = vpop.f32.mrf.mxu0
        %v6708 = vadd.f32 %v5846, %v6707
        %v6709 = vpop.f32.mrf.mxu0
        %v6710 = vadd.f32 %v5850, %v6709
        %v6711 = vpop.f32.mrf.mxu0
        %v6712 = vadd.f32 %v5846, %v6711
        %v6713 = vpop.f32.mrf.mxu0
        %v6714 = vadd.f32 %v5850, %v6713
        %6715 = vmatprep.mubr.bf16.mxu0 %v5750
        %6716 = vmatmul.mubr.bf16.gmra.mxu0 %v5749
        %v6717 = vpop.f32.mrf.mxu0
        %v6718 = vadd.f32 %v5846, %v6717
        %v6719 = vpop.f32.mrf.mxu0
        %v6720 = vadd.f32 %v5850, %v6719
        %v6721 = vpop.f32.mrf.mxu0
        %v6722 = vadd.f32 %v5846, %v6721
        %v6723 = vpop.f32.mrf.mxu0
        %v6724 = vadd.f32 %v5850, %v6723
        %6725 = vmatprep.mubr.bf16.mxu0 %v5752
        %6726 = vmatmul.mubr.bf16.gmra.mxu0 %v5751
        %v6727 = vpop.f32.mrf.mxu0
        %v6728 = vadd.f32 %v5846, %v6727
        %v6729 = vpop.f32.mrf.mxu0
        %v6730 = vadd.f32 %v5850, %v6729
        %v6731 = vpop.f32.mrf.mxu0
        %v6732 = vadd.f32 %v5846, %v6731
        %v6733 = vpop.f32.mrf.mxu0
        %v6734 = vadd.f32 %v5850, %v6733
        %6735 = vmatprep.mubr.bf16.mxu0 %v5754
        %6736 = vmatmul.mubr.bf16.gmra.mxu0 %v5753
        %v6737 = vpop.f32.mrf.mxu0
        %v6738 = vadd.f32 %v5846, %v6737
        %v6739 = vpop.f32.mrf.mxu0
        %v6740 = vadd.f32 %v5850, %v6739
        %v6741 = vpop.f32.mrf.mxu0
        %v6742 = vadd.f32 %v5846, %v6741
        %v6743 = vpop.f32.mrf.mxu0
        %v6744 = vadd.f32 %v5850, %v6743
        %6745 = vmatprep.mubr.bf16.mxu0 %v5756
        %6746 = vmatmul.mubr.bf16.gmra.mxu0 %v5755
        %v6747 = vpop.f32.mrf.mxu0
        %v6748 = vadd.f32 %v5846, %v6747
        %v6749 = vpop.f32.mrf.mxu0
        %v6750 = vadd.f32 %v5850, %v6749
        %v6751 = vpop.f32.mrf.mxu0
        %v6752 = vadd.f32 %v5846, %v6751
        %v6753 = vpop.f32.mrf.mxu0
        %v6754 = vadd.f32 %v5850, %v6753
        %6755 = vmatprep.mubr.bf16.mxu0 %v5758
        %6756 = vmatmul.mubr.bf16.gmra.mxu0 %v5757
        %v6757 = vpop.f32.mrf.mxu0
        %v6758 = vadd.f32 %v5846, %v6757
        %v6759 = vpop.f32.mrf.mxu0
        %v6760 = vadd.f32 %v5850, %v6759
        %v6761 = vpop.f32.mrf.mxu0
        %v6762 = vadd.f32 %v5846, %v6761
        %v6763 = vpop.f32.mrf.mxu0
        %v6764 = vadd.f32 %v5850, %v6763
        %6765 = vmatprep.mubr.bf16.mxu0 %v5760
        %6766 = vmatmul.mubr.bf16.gmra.mxu0 %v5759
        %v6767 = vpop.f32.mrf.mxu0
        %v6768 = vadd.f32 %v5846, %v6767
        %v6769 = vpop.f32.mrf.mxu0
        %v6770 = vadd.f32 %v5850, %v6769
        %v6771 = vpop.f32.mrf.mxu0
        %v6772 = vadd.f32 %v5846, %v6771
        %v6773 = vpop.f32.mrf.mxu0
        %v6774 = vadd.f32 %v5850, %v6773
        %6775 = vmatprep.mubr.bf16.mxu0 %v5762
        %6776 = vmatmul.mubr.bf16.gmra.mxu0 %v5761
        %v6777 = vpop.f32.mrf.mxu0
        %v6778 = vadd.f32 %v5846, %v6777
        %v6779 = vpop.f32.mrf.mxu0
        %v6780 = vadd.f32 %v5850, %v6779
        %v6781 = vpop.f32.mrf.mxu0
        %v6782 = vadd.f32 %v5846, %v6781
        %v6783 = vpop.f32.mrf.mxu0
        %v6784 = vadd.f32 %v5850, %v6783
        %6785 = vmatprep.mubr.bf16.mxu0 %v5764
        %6786 = vmatmul.mubr.bf16.gmra.mxu0 %v5763
        %v6787 = vpop.f32.mrf.mxu0
        %v6788 = vadd.f32 %v5846, %v6787
        %v6789 = vpop.f32.mrf.mxu0
        %v6790 = vadd.f32 %v5850, %v6789
        %v6791 = vpop.f32.mrf.mxu0
        %v6792 = vadd.f32 %v5846, %v6791
        %v6793 = vpop.f32.mrf.mxu0
        %v6794 = vadd.f32 %v5850, %v6793
        %6795 = vmatprep.mubr.bf16.mxu0 %v5766
        %6796 = vmatmul.mubr.bf16.gmra.mxu0 %v5765
        %v6797 = vpop.f32.mrf.mxu0
        %v6798 = vadd.f32 %v5846, %v6797
        %v6799 = vpop.f32.mrf.mxu0
        %v6800 = vadd.f32 %v5850, %v6799
        %v6801 = vpop.f32.mrf.mxu0
        %v6802 = vadd.f32 %v5846, %v6801
        %v6803 = vpop.f32.mrf.mxu0
        %v6804 = vadd.f32 %v5850, %v6803
        %6805 = vmatprep.mubr.bf16.mxu0 %v5768
        %6806 = vmatmul.mubr.bf16.gmra.mxu0 %v5767
        %v6807 = vpop.f32.mrf.mxu0
        %v6808 = vadd.f32 %v5846, %v6807
        %v6809 = vpop.f32.mrf.mxu0
        %v6810 = vadd.f32 %v5850, %v6809
        %v6811 = vpop.f32.mrf.mxu0
        %v6812 = vadd.f32 %v5846, %v6811
        %v6813 = vpop.f32.mrf.mxu0
        %v6814 = vadd.f32 %v5850, %v6813
        %6815 = vmatprep.mubr.bf16.mxu0 %v5770
        %6816 = vmatmul.mubr.bf16.gmra.mxu0 %v5769
        %v6817 = vpop.f32.mrf.mxu0
        %v6818 = vadd.f32 %v5846, %v6817
        %v6819 = vpop.f32.mrf.mxu0
        %v6820 = vadd.f32 %v5850, %v6819
        %v6821 = vpop.f32.mrf.mxu0
        %v6822 = vadd.f32 %v5846, %v6821
        %v6823 = vpop.f32.mrf.mxu0
        %v6824 = vadd.f32 %v5850, %v6823
        %6825 = vmatprep.mubr.bf16.mxu0 %v5772
        %6826 = vmatmul.mubr.bf16.gmra.mxu0 %v5771
        %v6827 = vpop.f32.mrf.mxu0
        %v6828 = vadd.f32 %v5846, %v6827
        %v6829 = vpop.f32.mrf.mxu0
        %v6830 = vadd.f32 %v5850, %v6829
        %v6831 = vpop.f32.mrf.mxu0
        %v6832 = vadd.f32 %v5846, %v6831
        %v6833 = vpop.f32.mrf.mxu0
        %v6834 = vadd.f32 %v5850, %v6833
        %6835 = vmatprep.mubr.bf16.mxu0 %v5774
        %6836 = vmatmul.mubr.bf16.gmra.mxu0 %v5773
        %v6837 = vpop.f32.mrf.mxu0
        %v6838 = vadd.f32 %v5846, %v6837
        %v6839 = vpop.f32.mrf.mxu0
        %v6840 = vadd.f32 %v5850, %v6839
        %v6841 = vpop.f32.mrf.mxu0
        %v6842 = vadd.f32 %v5846, %v6841
        %v6843 = vpop.f32.mrf.mxu0
        %v6844 = vadd.f32 %v5850, %v6843
        %6845 = vmatprep.mubr.bf16.mxu0 %v5776
        %6846 = vmatmul.mubr.bf16.gmra.mxu0 %v5775
        %v6847 = vpop.f32.mrf.mxu0
        %v6848 = vadd.f32 %v5846, %v6847
        %v6849 = vpop.f32.mrf.mxu0
        %v6850 = vadd.f32 %v5850, %v6849
        %v6851 = vpop.f32.mrf.mxu0
        %v6852 = vadd.f32 %v5846, %v6851
        %v6853 = vpop.f32.mrf.mxu0
        %v6854 = vadd.f32 %v5850, %v6853
        %6855 = vdwg.mxu0
        %6856 = vmatprep.subr.bf16.mxu0 %v6086
        %6857 = vmatpush1.bf16.msra.mxu0 %v6085
        %6858 = vmatprep.subr.bf16.mxu0 %v6082
        %6859 = vmatpush1.bf16.msra.mxu0 %v6081
        %6860 = vmatprep.subr.bf16.mxu0 %v6078
        %6861 = vmatpush1.bf16.msra.mxu0 %v6077
        %6862 = vmatprep.subr.bf16.mxu0 %v6074
        %6863 = vmatpush1.bf16.msra.mxu0 %v6073
        %6864 = vmatprep.subr.bf16.mxu0 %v6070
        %6865 = vmatpush1.bf16.msra.mxu0 %v6069
        %6866 = vmatprep.subr.bf16.mxu0 %v6066
        %6867 = vmatpush1.bf16.msra.mxu0 %v6065
        %6868 = vmatprep.subr.bf16.mxu0 %v6062
        %6869 = vmatpush1.bf16.msra.mxu0 %v6061
        %6870 = vmatprep.subr.bf16.mxu0 %v6058
        %6871 = vmatpush1.bf16.msra.mxu0 %v6057
        %6872 = vmatprep.subr.bf16.mxu0 %v6118
        %6873 = vmatpush2.bf16.msra.mxu0 %v6117
        %6874 = vmatprep.subr.bf16.mxu0 %v6114
        %6875 = vmatpush2.bf16.msra.mxu0 %v6113
        %6876 = vmatprep.subr.bf16.mxu0 %v6110
        %6877 = vmatpush2.bf16.msra.mxu0 %v6109
        %6878 = vmatprep.subr.bf16.mxu0 %v6106
        %6879 = vmatpush2.bf16.msra.mxu0 %v6105
        %6880 = vmatprep.subr.bf16.mxu0 %v6102
        %6881 = vmatpush2.bf16.msra.mxu0 %v6101
        %6882 = vmatprep.subr.bf16.mxu0 %v6098
        %6883 = vmatpush2.bf16.msra.mxu0 %v6097
        %6884 = vmatprep.subr.bf16.mxu0 %v6094
        %6885 = vmatpush2.bf16.msra.mxu0 %v6093
        %6886 = vmatprep.subr.bf16.mxu0 %v6090
        %6887 = vmatpush2.bf16.msra.mxu0 %v6089
        %6888 = vmatprep.mubr.bf16.mxu0 %v5650
        %6889 = vmatmul.mubr.bf16.gmra.mxu0 %v5649
        %v6890 = vpop.f32.mrf.mxu0
        %v6891 = vadd.f32 %v5854, %v6890
        %v6892 = vpop.f32.mrf.mxu0
        %v6893 = vadd.f32 %v5858, %v6892
        %v6894 = vpop.f32.mrf.mxu0
        %v6895 = vadd.f32 %v5854, %v6894
        %v6896 = vpop.f32.mrf.mxu0
        %v6897 = vadd.f32 %v5858, %v6896
        %6898 = vmatprep.mubr.bf16.mxu0 %v5652
        %6899 = vmatmul.mubr.bf16.gmra.mxu0 %v5651
        %v6900 = vpop.f32.mrf.mxu0
        %v6901 = vadd.f32 %v5854, %v6900
        %v6902 = vpop.f32.mrf.mxu0
        %v6903 = vadd.f32 %v5858, %v6902
        %v6904 = vpop.f32.mrf.mxu0
        %v6905 = vadd.f32 %v5854, %v6904
        %v6906 = vpop.f32.mrf.mxu0
        %v6907 = vadd.f32 %v5858, %v6906
        %6908 = vmatprep.mubr.bf16.mxu0 %v5654
        %6909 = vmatmul.mubr.bf16.gmra.mxu0 %v5653
        %v6910 = vpop.f32.mrf.mxu0
        %v6911 = vadd.f32 %v5854, %v6910
        %v6912 = vpop.f32.mrf.mxu0
        %v6913 = vadd.f32 %v5858, %v6912
        %v6914 = vpop.f32.mrf.mxu0
        %v6915 = vadd.f32 %v5854, %v6914
        %v6916 = vpop.f32.mrf.mxu0
        %v6917 = vadd.f32 %v5858, %v6916
        %6918 = vmatprep.mubr.bf16.mxu0 %v5656
        %6919 = vmatmul.mubr.bf16.gmra.mxu0 %v5655
        %v6920 = vpop.f32.mrf.mxu0
        %v6921 = vadd.f32 %v5854, %v6920
        %v6922 = vpop.f32.mrf.mxu0
        %v6923 = vadd.f32 %v5858, %v6922
        %v6924 = vpop.f32.mrf.mxu0
        %v6925 = vadd.f32 %v5854, %v6924
        %v6926 = vpop.f32.mrf.mxu0
        %v6927 = vadd.f32 %v5858, %v6926
        %6928 = vmatprep.mubr.bf16.mxu0 %v5658
        %6929 = vmatmul.mubr.bf16.gmra.mxu0 %v5657
        %v6930 = vpop.f32.mrf.mxu0
        %v6931 = vadd.f32 %v5854, %v6930
        %v6932 = vpop.f32.mrf.mxu0
        %v6933 = vadd.f32 %v5858, %v6932
        %v6934 = vpop.f32.mrf.mxu0
        %v6935 = vadd.f32 %v5854, %v6934
        %v6936 = vpop.f32.mrf.mxu0
        %v6937 = vadd.f32 %v5858, %v6936
        %6938 = vmatprep.mubr.bf16.mxu0 %v5660
        %6939 = vmatmul.mubr.bf16.gmra.mxu0 %v5659
        %v6940 = vpop.f32.mrf.mxu0
        %v6941 = vadd.f32 %v5854, %v6940
        %v6942 = vpop.f32.mrf.mxu0
        %v6943 = vadd.f32 %v5858, %v6942
        %v6944 = vpop.f32.mrf.mxu0
        %v6945 = vadd.f32 %v5854, %v6944
        %v6946 = vpop.f32.mrf.mxu0
        %v6947 = vadd.f32 %v5858, %v6946
        %6948 = vmatprep.mubr.bf16.mxu0 %v5662
        %6949 = vmatmul.mubr.bf16.gmra.mxu0 %v5661
        %v6950 = vpop.f32.mrf.mxu0
        %v6951 = vadd.f32 %v5854, %v6950
        %v6952 = vpop.f32.mrf.mxu0
        %v6953 = vadd.f32 %v5858, %v6952
        %v6954 = vpop.f32.mrf.mxu0
        %v6955 = vadd.f32 %v5854, %v6954
        %v6956 = vpop.f32.mrf.mxu0
        %v6957 = vadd.f32 %v5858, %v6956
        %6958 = vmatprep.mubr.bf16.mxu0 %v5664
        %6959 = vmatmul.mubr.bf16.gmra.mxu0 %v5663
        %v6960 = vpop.f32.mrf.mxu0
        %v6961 = vadd.f32 %v5854, %v6960
        %v6962 = vpop.f32.mrf.mxu0
        %v6963 = vadd.f32 %v5858, %v6962
        %v6964 = vpop.f32.mrf.mxu0
        %v6965 = vadd.f32 %v5854, %v6964
        %v6966 = vpop.f32.mrf.mxu0
        %v6967 = vadd.f32 %v5858, %v6966
        %6968 = vmatprep.mubr.bf16.mxu0 %v5666
        %6969 = vmatmul.mubr.bf16.gmra.mxu0 %v5665
        %v6970 = vpop.f32.mrf.mxu0
        %v6971 = vadd.f32 %v5854, %v6970
        %v6972 = vpop.f32.mrf.mxu0
        %v6973 = vadd.f32 %v5858, %v6972
        %v6974 = vpop.f32.mrf.mxu0
        %v6975 = vadd.f32 %v5854, %v6974
        %v6976 = vpop.f32.mrf.mxu0
        %v6977 = vadd.f32 %v5858, %v6976
        %6978 = vmatprep.mubr.bf16.mxu0 %v5668
        %6979 = vmatmul.mubr.bf16.gmra.mxu0 %v5667
        %v6980 = vpop.f32.mrf.mxu0
        %v6981 = vadd.f32 %v5854, %v6980
        %v6982 = vpop.f32.mrf.mxu0
        %v6983 = vadd.f32 %v5858, %v6982
        %v6984 = vpop.f32.mrf.mxu0
        %v6985 = vadd.f32 %v5854, %v6984
        %v6986 = vpop.f32.mrf.mxu0
        %v6987 = vadd.f32 %v5858, %v6986
        %6988 = vmatprep.mubr.bf16.mxu0 %v5670
        %6989 = vmatmul.mubr.bf16.gmra.mxu0 %v5669
        %v6990 = vpop.f32.mrf.mxu0
        %v6991 = vadd.f32 %v5854, %v6990
        %v6992 = vpop.f32.mrf.mxu0
        %v6993 = vadd.f32 %v5858, %v6992
        %v6994 = vpop.f32.mrf.mxu0
        %v6995 = vadd.f32 %v5854, %v6994
        %v6996 = vpop.f32.mrf.mxu0
        %v6997 = vadd.f32 %v5858, %v6996
        %6998 = vmatprep.mubr.bf16.mxu0 %v5672
        %6999 = vmatmul.mubr.bf16.gmra.mxu0 %v5671
        %v7000 = vpop.f32.mrf.mxu0
        %v7001 = vadd.f32 %v5854, %v7000
        %v7002 = vpop.f32.mrf.mxu0
        %v7003 = vadd.f32 %v5858, %v7002
        %v7004 = vpop.f32.mrf.mxu0
        %v7005 = vadd.f32 %v5854, %v7004
        %v7006 = vpop.f32.mrf.mxu0
        %v7007 = vadd.f32 %v5858, %v7006
        %7008 = vmatprep.mubr.bf16.mxu0 %v5674
        %7009 = vmatmul.mubr.bf16.gmra.mxu0 %v5673
        %v7010 = vpop.f32.mrf.mxu0
        %v7011 = vadd.f32 %v5854, %v7010
        %v7012 = vpop.f32.mrf.mxu0
        %v7013 = vadd.f32 %v5858, %v7012
        %v7014 = vpop.f32.mrf.mxu0
        %v7015 = vadd.f32 %v5854, %v7014
        %v7016 = vpop.f32.mrf.mxu0
        %v7017 = vadd.f32 %v5858, %v7016
        %7018 = vmatprep.mubr.bf16.mxu0 %v5676
        %7019 = vmatmul.mubr.bf16.gmra.mxu0 %v5675
        %v7020 = vpop.f32.mrf.mxu0
        %v7021 = vadd.f32 %v5854, %v7020
        %v7022 = vpop.f32.mrf.mxu0
        %v7023 = vadd.f32 %v5858, %v7022
        %v7024 = vpop.f32.mrf.mxu0
        %v7025 = vadd.f32 %v5854, %v7024
        %v7026 = vpop.f32.mrf.mxu0
        %v7027 = vadd.f32 %v5858, %v7026
        %7028 = vmatprep.mubr.bf16.mxu0 %v5678
        %7029 = vmatmul.mubr.bf16.gmra.mxu0 %v5677
        %v7030 = vpop.f32.mrf.mxu0
        %v7031 = vadd.f32 %v5854, %v7030
        %v7032 = vpop.f32.mrf.mxu0
        %v7033 = vadd.f32 %v5858, %v7032
        %v7034 = vpop.f32.mrf.mxu0
        %v7035 = vadd.f32 %v5854, %v7034
        %v7036 = vpop.f32.mrf.mxu0
        %v7037 = vadd.f32 %v5858, %v7036
        %7038 = vmatprep.mubr.bf16.mxu0 %v5680
        %7039 = vmatmul.mubr.bf16.gmra.mxu0 %v5679
        %v7040 = vpop.f32.mrf.mxu0
        %v7041 = vadd.f32 %v5854, %v7040
        %v7042 = vpop.f32.mrf.mxu0
        %v7043 = vadd.f32 %v5858, %v7042
        %v7044 = vpop.f32.mrf.mxu0
        %v7045 = vadd.f32 %v5854, %v7044
        %v7046 = vpop.f32.mrf.mxu0
        %v7047 = vadd.f32 %v5858, %v7046
        %7048 = vmatprep.mubr.bf16.mxu0 %v5682
        %7049 = vmatmul.mubr.bf16.gmra.mxu0 %v5681
        %v7050 = vpop.f32.mrf.mxu0
        %v7051 = vadd.f32 %v5854, %v7050
        %v7052 = vpop.f32.mrf.mxu0
        %v7053 = vadd.f32 %v5858, %v7052
        %v7054 = vpop.f32.mrf.mxu0
        %v7055 = vadd.f32 %v5854, %v7054
        %v7056 = vpop.f32.mrf.mxu0
        %v7057 = vadd.f32 %v5858, %v7056
        %7058 = vmatprep.mubr.bf16.mxu0 %v5684
        %7059 = vmatmul.mubr.bf16.gmra.mxu0 %v5683
        %v7060 = vpop.f32.mrf.mxu0
        %v7061 = vadd.f32 %v5854, %v7060
        %v7062 = vpop.f32.mrf.mxu0
        %v7063 = vadd.f32 %v5858, %v7062
        %v7064 = vpop.f32.mrf.mxu0
        %v7065 = vadd.f32 %v5854, %v7064
        %v7066 = vpop.f32.mrf.mxu0
        %v7067 = vadd.f32 %v5858, %v7066
        %7068 = vmatprep.mubr.bf16.mxu0 %v5686
        %7069 = vmatmul.mubr.bf16.gmra.mxu0 %v5685
        %v7070 = vpop.f32.mrf.mxu0
        %v7071 = vadd.f32 %v5854, %v7070
        %v7072 = vpop.f32.mrf.mxu0
        %v7073 = vadd.f32 %v5858, %v7072
        %v7074 = vpop.f32.mrf.mxu0
        %v7075 = vadd.f32 %v5854, %v7074
        %v7076 = vpop.f32.mrf.mxu0
        %v7077 = vadd.f32 %v5858, %v7076
        %7078 = vmatprep.mubr.bf16.mxu0 %v5688
        %7079 = vmatmul.mubr.bf16.gmra.mxu0 %v5687
        %v7080 = vpop.f32.mrf.mxu0
        %v7081 = vadd.f32 %v5854, %v7080
        %v7082 = vpop.f32.mrf.mxu0
        %v7083 = vadd.f32 %v5858, %v7082
        %v7084 = vpop.f32.mrf.mxu0
        %v7085 = vadd.f32 %v5854, %v7084
        %v7086 = vpop.f32.mrf.mxu0
        %v7087 = vadd.f32 %v5858, %v7086
        %7088 = vmatprep.mubr.bf16.mxu0 %v5690
        %7089 = vmatmul.mubr.bf16.gmra.mxu0 %v5689
        %v7090 = vpop.f32.mrf.mxu0
        %v7091 = vadd.f32 %v5854, %v7090
        %v7092 = vpop.f32.mrf.mxu0
        %v7093 = vadd.f32 %v5858, %v7092
        %v7094 = vpop.f32.mrf.mxu0
        %v7095 = vadd.f32 %v5854, %v7094
        %v7096 = vpop.f32.mrf.mxu0
        %v7097 = vadd.f32 %v5858, %v7096
        %7098 = vmatprep.mubr.bf16.mxu0 %v5692
        %7099 = vmatmul.mubr.bf16.gmra.mxu0 %v5691
        %v7100 = vpop.f32.mrf.mxu0
        %v7101 = vadd.f32 %v5854, %v7100
        %v7102 = vpop.f32.mrf.mxu0
        %v7103 = vadd.f32 %v5858, %v7102
        %v7104 = vpop.f32.mrf.mxu0
        %v7105 = vadd.f32 %v5854, %v7104
        %v7106 = vpop.f32.mrf.mxu0
        %v7107 = vadd.f32 %v5858, %v7106
        %7108 = vmatprep.mubr.bf16.mxu0 %v5694
        %7109 = vmatmul.mubr.bf16.gmra.mxu0 %v5693
        %v7110 = vpop.f32.mrf.mxu0
        %v7111 = vadd.f32 %v5854, %v7110
        %v7112 = vpop.f32.mrf.mxu0
        %v7113 = vadd.f32 %v5858, %v7112
        %v7114 = vpop.f32.mrf.mxu0
        %v7115 = vadd.f32 %v5854, %v7114
        %v7116 = vpop.f32.mrf.mxu0
        %v7117 = vadd.f32 %v5858, %v7116
        %7118 = vmatprep.mubr.bf16.mxu0 %v5696
        %7119 = vmatmul.mubr.bf16.gmra.mxu0 %v5695
        %v7120 = vpop.f32.mrf.mxu0
        %v7121 = vadd.f32 %v5854, %v7120
        %v7122 = vpop.f32.mrf.mxu0
        %v7123 = vadd.f32 %v5858, %v7122
        %v7124 = vpop.f32.mrf.mxu0
        %v7125 = vadd.f32 %v5854, %v7124
        %v7126 = vpop.f32.mrf.mxu0
        %v7127 = vadd.f32 %v5858, %v7126
        %7128 = vmatprep.mubr.bf16.mxu0 %v5698
        %7129 = vmatmul.mubr.bf16.gmra.mxu0 %v5697
        %v7130 = vpop.f32.mrf.mxu0
        %v7131 = vadd.f32 %v5854, %v7130
        %v7132 = vpop.f32.mrf.mxu0
        %v7133 = vadd.f32 %v5858, %v7132
        %v7134 = vpop.f32.mrf.mxu0
        %v7135 = vadd.f32 %v5854, %v7134
        %v7136 = vpop.f32.mrf.mxu0
        %v7137 = vadd.f32 %v5858, %v7136
        %7138 = vmatprep.mubr.bf16.mxu0 %v5700
        %7139 = vmatmul.mubr.bf16.gmra.mxu0 %v5699
        %v7140 = vpop.f32.mrf.mxu0
        %v7141 = vadd.f32 %v5854, %v7140
        %v7142 = vpop.f32.mrf.mxu0
        %v7143 = vadd.f32 %v5858, %v7142
        %v7144 = vpop.f32.mrf.mxu0
        %v7145 = vadd.f32 %v5854, %v7144
        %v7146 = vpop.f32.mrf.mxu0
        %v7147 = vadd.f32 %v5858, %v7146
        %7148 = vmatprep.mubr.bf16.mxu0 %v5702
        %7149 = vmatmul.mubr.bf16.gmra.mxu0 %v5701
        %v7150 = vpop.f32.mrf.mxu0
        %v7151 = vadd.f32 %v5854, %v7150
        %v7152 = vpop.f32.mrf.mxu0
        %v7153 = vadd.f32 %v5858, %v7152
        %v7154 = vpop.f32.mrf.mxu0
        %v7155 = vadd.f32 %v5854, %v7154
        %v7156 = vpop.f32.mrf.mxu0
        %v7157 = vadd.f32 %v5858, %v7156
        %7158 = vmatprep.mubr.bf16.mxu0 %v5704
        %7159 = vmatmul.mubr.bf16.gmra.mxu0 %v5703
        %v7160 = vpop.f32.mrf.mxu0
        %v7161 = vadd.f32 %v5854, %v7160
        %v7162 = vpop.f32.mrf.mxu0
        %v7163 = vadd.f32 %v5858, %v7162
        %v7164 = vpop.f32.mrf.mxu0
        %v7165 = vadd.f32 %v5854, %v7164
        %v7166 = vpop.f32.mrf.mxu0
        %v7167 = vadd.f32 %v5858, %v7166
        %7168 = vmatprep.mubr.bf16.mxu0 %v5706
        %7169 = vmatmul.mubr.bf16.gmra.mxu0 %v5705
        %v7170 = vpop.f32.mrf.mxu0
        %v7171 = vadd.f32 %v5854, %v7170
        %v7172 = vpop.f32.mrf.mxu0
        %v7173 = vadd.f32 %v5858, %v7172
        %v7174 = vpop.f32.mrf.mxu0
        %v7175 = vadd.f32 %v5854, %v7174
        %v7176 = vpop.f32.mrf.mxu0
        %v7177 = vadd.f32 %v5858, %v7176
        %7178 = vmatprep.mubr.bf16.mxu0 %v5708
        %7179 = vmatmul.mubr.bf16.gmra.mxu0 %v5707
        %v7180 = vpop.f32.mrf.mxu0
        %v7181 = vadd.f32 %v5854, %v7180
        %v7182 = vpop.f32.mrf.mxu0
        %v7183 = vadd.f32 %v5858, %v7182
        %v7184 = vpop.f32.mrf.mxu0
        %v7185 = vadd.f32 %v5854, %v7184
        %v7186 = vpop.f32.mrf.mxu0
        %v7187 = vadd.f32 %v5858, %v7186
        %7188 = vmatprep.mubr.bf16.mxu0 %v5710
        %7189 = vmatmul.mubr.bf16.gmra.mxu0 %v5709
        %v7190 = vpop.f32.mrf.mxu0
        %v7191 = vadd.f32 %v5854, %v7190
        %v7192 = vpop.f32.mrf.mxu0
        %v7193 = vadd.f32 %v5858, %v7192
        %v7194 = vpop.f32.mrf.mxu0
        %v7195 = vadd.f32 %v5854, %v7194
        %v7196 = vpop.f32.mrf.mxu0
        %v7197 = vadd.f32 %v5858, %v7196
        %7198 = vmatprep.mubr.bf16.mxu0 %v5712
        %7199 = vmatmul.mubr.bf16.gmra.mxu0 %v5711
        %v7200 = vpop.f32.mrf.mxu0
        %v7201 = vadd.f32 %v5854, %v7200
        %v7202 = vpop.f32.mrf.mxu0
        %v7203 = vadd.f32 %v5858, %v7202
        %v7204 = vpop.f32.mrf.mxu0
        %v7205 = vadd.f32 %v5854, %v7204
        %v7206 = vpop.f32.mrf.mxu0
        %v7207 = vadd.f32 %v5858, %v7206
        %7208 = vmatprep.mubr.bf16.mxu0 %v5714
        %7209 = vmatmul.mubr.bf16.gmra.mxu0 %v5713
        %v7210 = vpop.f32.mrf.mxu0
        %v7211 = vadd.f32 %v5854, %v7210
        %v7212 = vpop.f32.mrf.mxu0
        %v7213 = vadd.f32 %v5858, %v7212
        %v7214 = vpop.f32.mrf.mxu0
        %v7215 = vadd.f32 %v5854, %v7214
        %v7216 = vpop.f32.mrf.mxu0
        %v7217 = vadd.f32 %v5858, %v7216
        %7218 = vmatprep.mubr.bf16.mxu0 %v5716
        %7219 = vmatmul.mubr.bf16.gmra.mxu0 %v5715
        %v7220 = vpop.f32.mrf.mxu0
        %v7221 = vadd.f32 %v5854, %v7220
        %v7222 = vpop.f32.mrf.mxu0
        %v7223 = vadd.f32 %v5858, %v7222
        %v7224 = vpop.f32.mrf.mxu0
        %v7225 = vadd.f32 %v5854, %v7224
        %v7226 = vpop.f32.mrf.mxu0
        %v7227 = vadd.f32 %v5858, %v7226
        %7228 = vmatprep.mubr.bf16.mxu0 %v5718
        %7229 = vmatmul.mubr.bf16.gmra.mxu0 %v5717
        %v7230 = vpop.f32.mrf.mxu0
        %v7231 = vadd.f32 %v5854, %v7230
        %v7232 = vpop.f32.mrf.mxu0
        %v7233 = vadd.f32 %v5858, %v7232
        %v7234 = vpop.f32.mrf.mxu0
        %v7235 = vadd.f32 %v5854, %v7234
        %v7236 = vpop.f32.mrf.mxu0
        %v7237 = vadd.f32 %v5858, %v7236
        %7238 = vmatprep.mubr.bf16.mxu0 %v5720
        %7239 = vmatmul.mubr.bf16.gmra.mxu0 %v5719
        %v7240 = vpop.f32.mrf.mxu0
        %v7241 = vadd.f32 %v5854, %v7240
        %v7242 = vpop.f32.mrf.mxu0
        %v7243 = vadd.f32 %v5858, %v7242
        %v7244 = vpop.f32.mrf.mxu0
        %v7245 = vadd.f32 %v5854, %v7244
        %v7246 = vpop.f32.mrf.mxu0
        %v7247 = vadd.f32 %v5858, %v7246
        %7248 = vmatprep.mubr.bf16.mxu0 %v5722
        %7249 = vmatmul.mubr.bf16.gmra.mxu0 %v5721
        %v7250 = vpop.f32.mrf.mxu0
        %v7251 = vadd.f32 %v5854, %v7250
        %v7252 = vpop.f32.mrf.mxu0
        %v7253 = vadd.f32 %v5858, %v7252
        %v7254 = vpop.f32.mrf.mxu0
        %v7255 = vadd.f32 %v5854, %v7254
        %v7256 = vpop.f32.mrf.mxu0
        %v7257 = vadd.f32 %v5858, %v7256
        %7258 = vmatprep.mubr.bf16.mxu0 %v5724
        %7259 = vmatmul.mubr.bf16.gmra.mxu0 %v5723
        %v7260 = vpop.f32.mrf.mxu0
        %v7261 = vadd.f32 %v5854, %v7260
        %v7262 = vpop.f32.mrf.mxu0
        %v7263 = vadd.f32 %v5858, %v7262
        %v7264 = vpop.f32.mrf.mxu0
        %v7265 = vadd.f32 %v5854, %v7264
        %v7266 = vpop.f32.mrf.mxu0
        %v7267 = vadd.f32 %v5858, %v7266
        %7268 = vmatprep.mubr.bf16.mxu0 %v5726
        %7269 = vmatmul.mubr.bf16.gmra.mxu0 %v5725
        %v7270 = vpop.f32.mrf.mxu0
        %v7271 = vadd.f32 %v5854, %v7270
        %v7272 = vpop.f32.mrf.mxu0
        %v7273 = vadd.f32 %v5858, %v7272
        %v7274 = vpop.f32.mrf.mxu0
        %v7275 = vadd.f32 %v5854, %v7274
        %v7276 = vpop.f32.mrf.mxu0
        %v7277 = vadd.f32 %v5858, %v7276
        %7278 = vmatprep.mubr.bf16.mxu0 %v5728
        %7279 = vmatmul.mubr.bf16.gmra.mxu0 %v5727
        %v7280 = vpop.f32.mrf.mxu0
        %v7281 = vadd.f32 %v5854, %v7280
        %v7282 = vpop.f32.mrf.mxu0
        %v7283 = vadd.f32 %v5858, %v7282
        %v7284 = vpop.f32.mrf.mxu0
        %v7285 = vadd.f32 %v5854, %v7284
        %v7286 = vpop.f32.mrf.mxu0
        %v7287 = vadd.f32 %v5858, %v7286
        %7288 = vmatprep.mubr.bf16.mxu0 %v5730
        %7289 = vmatmul.mubr.bf16.gmra.mxu0 %v5729
        %v7290 = vpop.f32.mrf.mxu0
        %v7291 = vadd.f32 %v5854, %v7290
        %v7292 = vpop.f32.mrf.mxu0
        %v7293 = vadd.f32 %v5858, %v7292
        %v7294 = vpop.f32.mrf.mxu0
        %v7295 = vadd.f32 %v5854, %v7294
        %v7296 = vpop.f32.mrf.mxu0
        %v7297 = vadd.f32 %v5858, %v7296
        %7298 = vmatprep.mubr.bf16.mxu0 %v5732
        %7299 = vmatmul.mubr.bf16.gmra.mxu0 %v5731
        %v7300 = vpop.f32.mrf.mxu0
        %v7301 = vadd.f32 %v5854, %v7300
        %v7302 = vpop.f32.mrf.mxu0
        %v7303 = vadd.f32 %v5858, %v7302
        %v7304 = vpop.f32.mrf.mxu0
        %v7305 = vadd.f32 %v5854, %v7304
        %v7306 = vpop.f32.mrf.mxu0
        %v7307 = vadd.f32 %v5858, %v7306
        %7308 = vmatprep.mubr.bf16.mxu0 %v5734
        %7309 = vmatmul.mubr.bf16.gmra.mxu0 %v5733
        %v7310 = vpop.f32.mrf.mxu0
        %v7311 = vadd.f32 %v5854, %v7310
        %v7312 = vpop.f32.mrf.mxu0
        %v7313 = vadd.f32 %v5858, %v7312
        %v7314 = vpop.f32.mrf.mxu0
        %v7315 = vadd.f32 %v5854, %v7314
        %v7316 = vpop.f32.mrf.mxu0
        %v7317 = vadd.f32 %v5858, %v7316
        %7318 = vmatprep.mubr.bf16.mxu0 %v5736
        %7319 = vmatmul.mubr.bf16.gmra.mxu0 %v5735
        %v7320 = vpop.f32.mrf.mxu0
        %v7321 = vadd.f32 %v5854, %v7320
        %v7322 = vpop.f32.mrf.mxu0
        %v7323 = vadd.f32 %v5858, %v7322
        %v7324 = vpop.f32.mrf.mxu0
        %v7325 = vadd.f32 %v5854, %v7324
        %v7326 = vpop.f32.mrf.mxu0
        %v7327 = vadd.f32 %v5858, %v7326
        %7328 = vmatprep.mubr.bf16.mxu0 %v5738
        %7329 = vmatmul.mubr.bf16.gmra.mxu0 %v5737
        %v7330 = vpop.f32.mrf.mxu0
        %v7331 = vadd.f32 %v5854, %v7330
        %v7332 = vpop.f32.mrf.mxu0
        %v7333 = vadd.f32 %v5858, %v7332
        %v7334 = vpop.f32.mrf.mxu0
        %v7335 = vadd.f32 %v5854, %v7334
        %v7336 = vpop.f32.mrf.mxu0
        %v7337 = vadd.f32 %v5858, %v7336
        %7338 = vmatprep.mubr.bf16.mxu0 %v5740
        %7339 = vmatmul.mubr.bf16.gmra.mxu0 %v5739
        %v7340 = vpop.f32.mrf.mxu0
        %v7341 = vadd.f32 %v5854, %v7340
        %v7342 = vpop.f32.mrf.mxu0
        %v7343 = vadd.f32 %v5858, %v7342
        %v7344 = vpop.f32.mrf.mxu0
        %v7345 = vadd.f32 %v5854, %v7344
        %v7346 = vpop.f32.mrf.mxu0
        %v7347 = vadd.f32 %v5858, %v7346
        %7348 = vmatprep.mubr.bf16.mxu0 %v5742
        %7349 = vmatmul.mubr.bf16.gmra.mxu0 %v5741
        %v7350 = vpop.f32.mrf.mxu0
        %v7351 = vadd.f32 %v5854, %v7350
        %v7352 = vpop.f32.mrf.mxu0
        %v7353 = vadd.f32 %v5858, %v7352
        %v7354 = vpop.f32.mrf.mxu0
        %v7355 = vadd.f32 %v5854, %v7354
        %v7356 = vpop.f32.mrf.mxu0
        %v7357 = vadd.f32 %v5858, %v7356
        %7358 = vmatprep.mubr.bf16.mxu0 %v5744
        %7359 = vmatmul.mubr.bf16.gmra.mxu0 %v5743
        %v7360 = vpop.f32.mrf.mxu0
        %v7361 = vadd.f32 %v5854, %v7360
        %v7362 = vpop.f32.mrf.mxu0
        %v7363 = vadd.f32 %v5858, %v7362
        %v7364 = vpop.f32.mrf.mxu0
        %v7365 = vadd.f32 %v5854, %v7364
        %v7366 = vpop.f32.mrf.mxu0
        %v7367 = vadd.f32 %v5858, %v7366
        %7368 = vmatprep.mubr.bf16.mxu0 %v5746
        %7369 = vmatmul.mubr.bf16.gmra.mxu0 %v5745
        %v7370 = vpop.f32.mrf.mxu0
        %v7371 = vadd.f32 %v5854, %v7370
        %v7372 = vpop.f32.mrf.mxu0
        %v7373 = vadd.f32 %v5858, %v7372
        %v7374 = vpop.f32.mrf.mxu0
        %v7375 = vadd.f32 %v5854, %v7374
        %v7376 = vpop.f32.mrf.mxu0
        %v7377 = vadd.f32 %v5858, %v7376
        %7378 = vmatprep.mubr.bf16.mxu0 %v5748
        %7379 = vmatmul.mubr.bf16.gmra.mxu0 %v5747
        %v7380 = vpop.f32.mrf.mxu0
        %v7381 = vadd.f32 %v5854, %v7380
        %v7382 = vpop.f32.mrf.mxu0
        %v7383 = vadd.f32 %v5858, %v7382
        %v7384 = vpop.f32.mrf.mxu0
        %v7385 = vadd.f32 %v5854, %v7384
        %v7386 = vpop.f32.mrf.mxu0
        %v7387 = vadd.f32 %v5858, %v7386
        %7388 = vmatprep.mubr.bf16.mxu0 %v5750
        %7389 = vmatmul.mubr.bf16.gmra.mxu0 %v5749
        %v7390 = vpop.f32.mrf.mxu0
        %v7391 = vadd.f32 %v5854, %v7390
        %v7392 = vpop.f32.mrf.mxu0
        %v7393 = vadd.f32 %v5858, %v7392
        %v7394 = vpop.f32.mrf.mxu0
        %v7395 = vadd.f32 %v5854, %v7394
        %v7396 = vpop.f32.mrf.mxu0
        %v7397 = vadd.f32 %v5858, %v7396
        %7398 = vmatprep.mubr.bf16.mxu0 %v5752
        %7399 = vmatmul.mubr.bf16.gmra.mxu0 %v5751
        %v7400 = vpop.f32.mrf.mxu0
        %v7401 = vadd.f32 %v5854, %v7400
        %v7402 = vpop.f32.mrf.mxu0
        %v7403 = vadd.f32 %v5858, %v7402
        %v7404 = vpop.f32.mrf.mxu0
        %v7405 = vadd.f32 %v5854, %v7404
        %v7406 = vpop.f32.mrf.mxu0
        %v7407 = vadd.f32 %v5858, %v7406
        %7408 = vmatprep.mubr.bf16.mxu0 %v5754
        %7409 = vmatmul.mubr.bf16.gmra.mxu0 %v5753
        %v7410 = vpop.f32.mrf.mxu0
        %v7411 = vadd.f32 %v5854, %v7410
        %v7412 = vpop.f32.mrf.mxu0
        %v7413 = vadd.f32 %v5858, %v7412
        %v7414 = vpop.f32.mrf.mxu0
        %v7415 = vadd.f32 %v5854, %v7414
        %v7416 = vpop.f32.mrf.mxu0
        %v7417 = vadd.f32 %v5858, %v7416
        %7418 = vmatprep.mubr.bf16.mxu0 %v5756
        %7419 = vmatmul.mubr.bf16.gmra.mxu0 %v5755
        %v7420 = vpop.f32.mrf.mxu0
        %v7421 = vadd.f32 %v5854, %v7420
        %v7422 = vpop.f32.mrf.mxu0
        %v7423 = vadd.f32 %v5858, %v7422
        %v7424 = vpop.f32.mrf.mxu0
        %v7425 = vadd.f32 %v5854, %v7424
        %v7426 = vpop.f32.mrf.mxu0
        %v7427 = vadd.f32 %v5858, %v7426
        %7428 = vmatprep.mubr.bf16.mxu0 %v5758
        %7429 = vmatmul.mubr.bf16.gmra.mxu0 %v5757
        %v7430 = vpop.f32.mrf.mxu0
        %v7431 = vadd.f32 %v5854, %v7430
        %v7432 = vpop.f32.mrf.mxu0
        %v7433 = vadd.f32 %v5858, %v7432
        %v7434 = vpop.f32.mrf.mxu0
        %v7435 = vadd.f32 %v5854, %v7434
        %v7436 = vpop.f32.mrf.mxu0
        %v7437 = vadd.f32 %v5858, %v7436
        %7438 = vmatprep.mubr.bf16.mxu0 %v5760
        %7439 = vmatmul.mubr.bf16.gmra.mxu0 %v5759
        %v7440 = vpop.f32.mrf.mxu0
        %v7441 = vadd.f32 %v5854, %v7440
        %v7442 = vpop.f32.mrf.mxu0
        %v7443 = vadd.f32 %v5858, %v7442
        %v7444 = vpop.f32.mrf.mxu0
        %v7445 = vadd.f32 %v5854, %v7444
        %v7446 = vpop.f32.mrf.mxu0
        %v7447 = vadd.f32 %v5858, %v7446
        %7448 = vmatprep.mubr.bf16.mxu0 %v5762
        %7449 = vmatmul.mubr.bf16.gmra.mxu0 %v5761
        %v7450 = vpop.f32.mrf.mxu0
        %v7451 = vadd.f32 %v5854, %v7450
        %v7452 = vpop.f32.mrf.mxu0
        %v7453 = vadd.f32 %v5858, %v7452
        %v7454 = vpop.f32.mrf.mxu0
        %v7455 = vadd.f32 %v5854, %v7454
        %v7456 = vpop.f32.mrf.mxu0
        %v7457 = vadd.f32 %v5858, %v7456
        %7458 = vmatprep.mubr.bf16.mxu0 %v5764
        %7459 = vmatmul.mubr.bf16.gmra.mxu0 %v5763
        %v7460 = vpop.f32.mrf.mxu0
        %v7461 = vadd.f32 %v5854, %v7460
        %v7462 = vpop.f32.mrf.mxu0
        %v7463 = vadd.f32 %v5858, %v7462
        %v7464 = vpop.f32.mrf.mxu0
        %v7465 = vadd.f32 %v5854, %v7464
        %v7466 = vpop.f32.mrf.mxu0
        %v7467 = vadd.f32 %v5858, %v7466
        %7468 = vmatprep.mubr.bf16.mxu0 %v5766
        %7469 = vmatmul.mubr.bf16.gmra.mxu0 %v5765
        %v7470 = vpop.f32.mrf.mxu0
        %v7471 = vadd.f32 %v5854, %v7470
        %v7472 = vpop.f32.mrf.mxu0
        %v7473 = vadd.f32 %v5858, %v7472
        %v7474 = vpop.f32.mrf.mxu0
        %v7475 = vadd.f32 %v5854, %v7474
        %v7476 = vpop.f32.mrf.mxu0
        %v7477 = vadd.f32 %v5858, %v7476
        %7478 = vmatprep.mubr.bf16.mxu0 %v5768
        %7479 = vmatmul.mubr.bf16.gmra.mxu0 %v5767
        %v7480 = vpop.f32.mrf.mxu0
        %v7481 = vadd.f32 %v5854, %v7480
        %v7482 = vpop.f32.mrf.mxu0
        %v7483 = vadd.f32 %v5858, %v7482
        %v7484 = vpop.f32.mrf.mxu0
        %v7485 = vadd.f32 %v5854, %v7484
        %v7486 = vpop.f32.mrf.mxu0
        %v7487 = vadd.f32 %v5858, %v7486
        %7488 = vmatprep.mubr.bf16.mxu0 %v5770
        %7489 = vmatmul.mubr.bf16.gmra.mxu0 %v5769
        %v7490 = vpop.f32.mrf.mxu0
        %v7491 = vadd.f32 %v5854, %v7490
        %v7492 = vpop.f32.mrf.mxu0
        %v7493 = vadd.f32 %v5858, %v7492
        %v7494 = vpop.f32.mrf.mxu0
        %v7495 = vadd.f32 %v5854, %v7494
        %v7496 = vpop.f32.mrf.mxu0
        %v7497 = vadd.f32 %v5858, %v7496
        %7498 = vmatprep.mubr.bf16.mxu0 %v5772
        %7499 = vmatmul.mubr.bf16.gmra.mxu0 %v5771
        %v7500 = vpop.f32.mrf.mxu0
        %v7501 = vadd.f32 %v5854, %v7500
        %v7502 = vpop.f32.mrf.mxu0
        %v7503 = vadd.f32 %v5858, %v7502
        %v7504 = vpop.f32.mrf.mxu0
        %v7505 = vadd.f32 %v5854, %v7504
        %v7506 = vpop.f32.mrf.mxu0
        %v7507 = vadd.f32 %v5858, %v7506
        %7508 = vmatprep.mubr.bf16.mxu0 %v5774
        %7509 = vmatmul.mubr.bf16.gmra.mxu0 %v5773
        %v7510 = vpop.f32.mrf.mxu0
        %v7511 = vadd.f32 %v5854, %v7510
        %v7512 = vpop.f32.mrf.mxu0
        %v7513 = vadd.f32 %v5858, %v7512
        %v7514 = vpop.f32.mrf.mxu0
        %v7515 = vadd.f32 %v5854, %v7514
        %v7516 = vpop.f32.mrf.mxu0
        %v7517 = vadd.f32 %v5858, %v7516
        %7518 = vmatprep.mubr.bf16.mxu0 %v5776
        %7519 = vmatmul.mubr.bf16.gmra.mxu0 %v5775
        %v7520 = vpop.f32.mrf.mxu0
        %v7521 = vadd.f32 %v5854, %v7520
        %v7522 = vpop.f32.mrf.mxu0
        %v7523 = vadd.f32 %v5858, %v7522
        %v7524 = vpop.f32.mrf.mxu0
        %v7525 = vadd.f32 %v5854, %v7524
        %v7526 = vpop.f32.mrf.mxu0
        %v7527 = vadd.f32 %v5858, %v7526
        %7528 = vdwg.mxu0
        %v7529 = vld [vmem:[#allocation2] sm:$0xff]
        %v7530 = vmax.f32 %v6218, %v6222
        %v7531 = vmax.f32 %v7530, %v6228
        %v7532 = vmax.f32 %v7531, %v6232
        %v7533 = vmax.f32 %v7532, %v6238
        %v7534 = vmax.f32 %v7533, %v6242
        %v7535 = vmax.f32 %v7534, %v6248
        %v7536 = vmax.f32 %v7535, %v6252
        %v7537 = vmax.f32 %v7536, %v6258
        %v7538 = vmax.f32 %v7537, %v6262
        %v7539 = vmax.f32 %v7538, %v6268
        %v7540 = vmax.f32 %v7539, %v6272
        %v7541 = vmax.f32 %v7540, %v6278
        %v7542 = vmax.f32 %v7541, %v6282
        %v7543 = vmax.f32 %v7542, %v6288
        %v7544 = vmax.f32 %v7543, %v6292
        %v7545 = vmax.f32 %v7544, %v6298
        %v7546 = vmax.f32 %v7545, %v6302
        %v7547 = vmax.f32 %v7546, %v6308
        %v7548 = vmax.f32 %v7547, %v6312
        %v7549 = vmax.f32 %v7548, %v6318
        %v7550 = vmax.f32 %v7549, %v6322
        %v7551 = vmax.f32 %v7550, %v6328
        %v7552 = vmax.f32 %v7551, %v6332
        %v7553 = vmax.f32 %v7552, %v6338
        %v7554 = vmax.f32 %v7553, %v6342
        %v7555 = vmax.f32 %v7554, %v6348
        %v7556 = vmax.f32 %v7555, %v6352
        %v7557 = vmax.f32 %v7556, %v6358
        %v7558 = vmax.f32 %v7557, %v6362
        %v7559 = vmax.f32 %v7558, %v6368
        %v7560 = vmax.f32 %v7559, %v6372
        %v7561 = vmax.f32 %v7560, %v6378
        %v7562 = vmax.f32 %v7561, %v6382
        %v7563 = vmax.f32 %v7562, %v6388
        %v7564 = vmax.f32 %v7563, %v6392
        %v7565 = vmax.f32 %v7564, %v6398
        %v7566 = vmax.f32 %v7565, %v6402
        %v7567 = vmax.f32 %v7566, %v6408
        %v7568 = vmax.f32 %v7567, %v6412
        %v7569 = vmax.f32 %v7568, %v6418
        %v7570 = vmax.f32 %v7569, %v6422
        %v7571 = vmax.f32 %v7570, %v6428
        %v7572 = vmax.f32 %v7571, %v6432
        %v7573 = vmax.f32 %v7572, %v6438
        %v7574 = vmax.f32 %v7573, %v6442
        %v7575 = vmax.f32 %v7574, %v6448
        %v7576 = vmax.f32 %v7575, %v6452
        %v7577 = vmax.f32 %v7576, %v6458
        %v7578 = vmax.f32 %v7577, %v6462
        %v7579 = vmax.f32 %v7578, %v6468
        %v7580 = vmax.f32 %v7579, %v6472
        %v7581 = vmax.f32 %v7580, %v6478
        %v7582 = vmax.f32 %v7581, %v6482
        %v7583 = vmax.f32 %v7582, %v6488
        %v7584 = vmax.f32 %v7583, %v6492
        %v7585 = vmax.f32 %v7584, %v6498
        %v7586 = vmax.f32 %v7585, %v6502
        %v7587 = vmax.f32 %v7586, %v6508
        %v7588 = vmax.f32 %v7587, %v6512
        %v7589 = vmax.f32 %v7588, %v6518
        %v7590 = vmax.f32 %v7589, %v6522
        %v7591 = vmax.f32 %v7590, %v6528
        %v7592 = vmax.f32 %v7591, %v6532
        %v7593 = vrot.slane %v7592, 4
        %v7594 = vmax.f32 %v7592, %v7593
        %v7595 = vrot.slane %v7594, 2
        %v7596 = vmax.f32 %v7594, %v7595
        %v7597 = vrot.slane %v7596, 1
        %v7598 = vmax.f32 %v7596, %v7597
        %v7599 = vmax.f32 %v6220, %v6224
        %v7600 = vmax.f32 %v7599, %v6230
        %v7601 = vmax.f32 %v7600, %v6234
        %v7602 = vmax.f32 %v7601, %v6240
        %v7603 = vmax.f32 %v7602, %v6244
        %v7604 = vmax.f32 %v7603, %v6250
        %v7605 = vmax.f32 %v7604, %v6254
        %v7606 = vmax.f32 %v7605, %v6260
        %v7607 = vmax.f32 %v7606, %v6264
        %v7608 = vmax.f32 %v7607, %v6270
        %v7609 = vmax.f32 %v7608, %v6274
        %v7610 = vmax.f32 %v7609, %v6280
        %v7611 = vmax.f32 %v7610, %v6284
        %v7612 = vmax.f32 %v7611, %v6290
        %v7613 = vmax.f32 %v7612, %v6294
        %v7614 = vmax.f32 %v7613, %v6300
        %v7615 = vmax.f32 %v7614, %v6304
        %v7616 = vmax.f32 %v7615, %v6310
        %v7617 = vmax.f32 %v7616, %v6314
        %v7618 = vmax.f32 %v7617, %v6320
        %v7619 = vmax.f32 %v7618, %v6324
        %v7620 = vmax.f32 %v7619, %v6330
        %v7621 = vmax.f32 %v7620, %v6334
        %v7622 = vmax.f32 %v7621, %v6340
        %v7623 = vmax.f32 %v7622, %v6344
        %v7624 = vmax.f32 %v7623, %v6350
        %v7625 = vmax.f32 %v7624, %v6354
        %v7626 = vmax.f32 %v7625, %v6360
        %v7627 = vmax.f32 %v7626, %v6364
        %v7628 = vmax.f32 %v7627, %v6370
        %v7629 = vmax.f32 %v7628, %v6374
        %v7630 = vmax.f32 %v7629, %v6380
        %v7631 = vmax.f32 %v7630, %v6384
        %v7632 = vmax.f32 %v7631, %v6390
        %v7633 = vmax.f32 %v7632, %v6394
        %v7634 = vmax.f32 %v7633, %v6400
        %v7635 = vmax.f32 %v7634, %v6404
        %v7636 = vmax.f32 %v7635, %v6410
        %v7637 = vmax.f32 %v7636, %v6414
        %v7638 = vmax.f32 %v7637, %v6420
        %v7639 = vmax.f32 %v7638, %v6424
        %v7640 = vmax.f32 %v7639, %v6430
        %v7641 = vmax.f32 %v7640, %v6434
        %v7642 = vmax.f32 %v7641, %v6440
        %v7643 = vmax.f32 %v7642, %v6444
        %v7644 = vmax.f32 %v7643, %v6450
        %v7645 = vmax.f32 %v7644, %v6454
        %v7646 = vmax.f32 %v7645, %v6460
        %v7647 = vmax.f32 %v7646, %v6464
        %v7648 = vmax.f32 %v7647, %v6470
        %v7649 = vmax.f32 %v7648, %v6474
        %v7650 = vmax.f32 %v7649, %v6480
        %v7651 = vmax.f32 %v7650, %v6484
        %v7652 = vmax.f32 %v7651, %v6490
        %v7653 = vmax.f32 %v7652, %v6494
        %v7654 = vmax.f32 %v7653, %v6500
        %v7655 = vmax.f32 %v7654, %v6504
        %v7656 = vmax.f32 %v7655, %v6510
        %v7657 = vmax.f32 %v7656, %v6514
        %v7658 = vmax.f32 %v7657, %v6520
        %v7659 = vmax.f32 %v7658, %v6524
        %v7660 = vmax.f32 %v7659, %v6530
        %v7661 = vmax.f32 %v7660, %v6534
        %v7662 = vrot.slane %v7661, 4
        %v7663 = vmax.f32 %v7661, %v7662
        %v7664 = vrot.slane %v7663, 2
        %v7665 = vmax.f32 %v7663, %v7664
        %v7666 = vrot.slane %v7665, 1
        %v7667 = vmax.f32 %v7665, %v7666
        %v7668 = vmax.f32 %v6891, %v6895
        %v7669 = vmax.f32 %v7668, %v6901
        %v7670 = vmax.f32 %v7669, %v6905
        %v7671 = vmax.f32 %v7670, %v6911
        %v7672 = vmax.f32 %v7671, %v6915
        %v7673 = vmax.f32 %v7672, %v6921
        %v7674 = vmax.f32 %v7673, %v6925
        %v7675 = vmax.f32 %v7674, %v6931
        %v7676 = vmax.f32 %v7675, %v6935
        %v7677 = vmax.f32 %v7676, %v6941
        %v7678 = vmax.f32 %v7677, %v6945
        %v7679 = vmax.f32 %v7678, %v6951
        %v7680 = vmax.f32 %v7679, %v6955
        %v7681 = vmax.f32 %v7680, %v6961
        %v7682 = vmax.f32 %v7681, %v6965
        %v7683 = vmax.f32 %v7682, %v6971
        %v7684 = vmax.f32 %v7683, %v6975
        %v7685 = vmax.f32 %v7684, %v6981
        %v7686 = vmax.f32 %v7685, %v6985
        %v7687 = vmax.f32 %v7686, %v6991
        %v7688 = vmax.f32 %v7687, %v6995
        %v7689 = vmax.f32 %v7688, %v7001
        %v7690 = vmax.f32 %v7689, %v7005
        %v7691 = vmax.f32 %v7690, %v7011
        %v7692 = vmax.f32 %v7691, %v7015
        %v7693 = vmax.f32 %v7692, %v7021
        %v7694 = vmax.f32 %v7693, %v7025
        %v7695 = vmax.f32 %v7694, %v7031
        %v7696 = vmax.f32 %v7695, %v7035
        %v7697 = vmax.f32 %v7696, %v7041
        %v7698 = vmax.f32 %v7697, %v7045
        %v7699 = vmax.f32 %v7698, %v7051
        %v7700 = vmax.f32 %v7699, %v7055
        %v7701 = vmax.f32 %v7700, %v7061
        %v7702 = vmax.f32 %v7701, %v7065
        %v7703 = vmax.f32 %v7702, %v7071
        %v7704 = vmax.f32 %v7703, %v7075
        %v7705 = vmax.f32 %v7704, %v7081
        %v7706 = vmax.f32 %v7705, %v7085
        %v7707 = vmax.f32 %v7706, %v7091
        %v7708 = vmax.f32 %v7707, %v7095
        %v7709 = vmax.f32 %v7708, %v7101
        %v7710 = vmax.f32 %v7709, %v7105
        %v7711 = vmax.f32 %v7710, %v7111
        %v7712 = vmax.f32 %v7711, %v7115
        %v7713 = vmax.f32 %v7712, %v7121
        %v7714 = vmax.f32 %v7713, %v7125
        %v7715 = vmax.f32 %v7714, %v7131
        %v7716 = vmax.f32 %v7715, %v7135
        %v7717 = vmax.f32 %v7716, %v7141
        %v7718 = vmax.f32 %v7717, %v7145
        %v7719 = vmax.f32 %v7718, %v7151
        %v7720 = vmax.f32 %v7719, %v7155
        %v7721 = vmax.f32 %v7720, %v7161
        %v7722 = vmax.f32 %v7721, %v7165
        %v7723 = vmax.f32 %v7722, %v7171
        %v7724 = vmax.f32 %v7723, %v7175
        %v7725 = vmax.f32 %v7724, %v7181
        %v7726 = vmax.f32 %v7725, %v7185
        %v7727 = vmax.f32 %v7726, %v7191
        %v7728 = vmax.f32 %v7727, %v7195
        %v7729 = vmax.f32 %v7728, %v7201
        %v7730 = vmax.f32 %v7729, %v7205
        %v7731 = vrot.slane %v7730, 4
        %v7732 = vmax.f32 %v7730, %v7731
        %v7733 = vrot.slane %v7732, 2
        %v7734 = vmax.f32 %v7732, %v7733
        %v7735 = vrot.slane %v7734, 1
        %v7736 = vmax.f32 %v7734, %v7735
        %v7737 = vmax.f32 %v6893, %v6897
        %v7738 = vmax.f32 %v7737, %v6903
        %v7739 = vmax.f32 %v7738, %v6907
        %v7740 = vmax.f32 %v7739, %v6913
        %v7741 = vmax.f32 %v7740, %v6917
        %v7742 = vmax.f32 %v7741, %v6923
        %v7743 = vmax.f32 %v7742, %v6927
        %v7744 = vmax.f32 %v7743, %v6933
        %v7745 = vmax.f32 %v7744, %v6937
        %v7746 = vmax.f32 %v7745, %v6943
        %v7747 = vmax.f32 %v7746, %v6947
        %v7748 = vmax.f32 %v7747, %v6953
        %v7749 = vmax.f32 %v7748, %v6957
        %v7750 = vmax.f32 %v7749, %v6963
        %v7751 = vmax.f32 %v7750, %v6967
        %v7752 = vmax.f32 %v7751, %v6973
        %v7753 = vmax.f32 %v7752, %v6977
        %v7754 = vmax.f32 %v7753, %v6983
        %v7755 = vmax.f32 %v7754, %v6987
        %v7756 = vmax.f32 %v7755, %v6993
        %v7757 = vmax.f32 %v7756, %v6997
        %v7758 = vmax.f32 %v7757, %v7003
        %v7759 = vmax.f32 %v7758, %v7007
        %v7760 = vmax.f32 %v7759, %v7013
        %v7761 = vmax.f32 %v7760, %v7017
        %v7762 = vmax.f32 %v7761, %v7023
        %v7763 = vmax.f32 %v7762, %v7027
        %v7764 = vmax.f32 %v7763, %v7033
        %v7765 = vmax.f32 %v7764, %v7037
        %v7766 = vmax.f32 %v7765, %v7043
        %v7767 = vmax.f32 %v7766, %v7047
        %v7768 = vmax.f32 %v7767, %v7053
        %v7769 = vmax.f32 %v7768, %v7057
        %v7770 = vmax.f32 %v7769, %v7063
        %v7771 = vmax.f32 %v7770, %v7067
        %v7772 = vmax.f32 %v7771, %v7073
        %v7773 = vmax.f32 %v7772, %v7077
        %v7774 = vmax.f32 %v7773, %v7083
        %v7775 = vmax.f32 %v7774, %v7087
        %v7776 = vmax.f32 %v7775, %v7093
        %v7777 = vmax.f32 %v7776, %v7097
        %v7778 = vmax.f32 %v7777, %v7103
        %v7779 = vmax.f32 %v7778, %v7107
        %v7780 = vmax.f32 %v7779, %v7113
        %v7781 = vmax.f32 %v7780, %v7117
        %v7782 = vmax.f32 %v7781, %v7123
        %v7783 = vmax.f32 %v7782, %v7127
        %v7784 = vmax.f32 %v7783, %v7133
        %v7785 = vmax.f32 %v7784, %v7137
        %v7786 = vmax.f32 %v7785, %v7143
        %v7787 = vmax.f32 %v7786, %v7147
        %v7788 = vmax.f32 %v7787, %v7153
        %v7789 = vmax.f32 %v7788, %v7157
        %v7790 = vmax.f32 %v7789, %v7163
        %v7791 = vmax.f32 %v7790, %v7167
        %v7792 = vmax.f32 %v7791, %v7173
        %v7793 = vmax.f32 %v7792, %v7177
        %v7794 = vmax.f32 %v7793, %v7183
        %v7795 = vmax.f32 %v7794, %v7187
        %v7796 = vmax.f32 %v7795, %v7193
        %v7797 = vmax.f32 %v7796, %v7197
        %v7798 = vmax.f32 %v7797, %v7203
        %v7799 = vmax.f32 %v7798, %v7207
        %v7800 = vrot.slane %v7799, 4
        %v7801 = vmax.f32 %v7799, %v7800
        %v7802 = vrot.slane %v7801, 2
        %v7803 = vmax.f32 %v7801, %v7802
        %v7804 = vrot.slane %v7803, 1
        %v7805 = vmax.f32 %v7803, %v7804
        %v7806 = vmax.f32 %v6538, %v6542
        %v7807 = vmax.f32 %v7806, %v6548
        %v7808 = vmax.f32 %v7807, %v6552
        %v7809 = vmax.f32 %v7808, %v6558
        %v7810 = vmax.f32 %v7809, %v6562
        %v7811 = vmax.f32 %v7810, %v6568
        %v7812 = vmax.f32 %v7811, %v6572
        %v7813 = vmax.f32 %v7812, %v6578
        %v7814 = vmax.f32 %v7813, %v6582
        %v7815 = vmax.f32 %v7814, %v6588
        %v7816 = vmax.f32 %v7815, %v6592
        %v7817 = vmax.f32 %v7816, %v6598
        %v7818 = vmax.f32 %v7817, %v6602
        %v7819 = vmax.f32 %v7818, %v6608
        %v7820 = vmax.f32 %v7819, %v6612
        %v7821 = vmax.f32 %v7820, %v6618
        %v7822 = vmax.f32 %v7821, %v6622
        %v7823 = vmax.f32 %v7822, %v6628
        %v7824 = vmax.f32 %v7823, %v6632
        %v7825 = vmax.f32 %v7824, %v6638
        %v7826 = vmax.f32 %v7825, %v6642
        %v7827 = vmax.f32 %v7826, %v6648
        %v7828 = vmax.f32 %v7827, %v6652
        %v7829 = vmax.f32 %v7828, %v6658
        %v7830 = vmax.f32 %v7829, %v6662
        %v7831 = vmax.f32 %v7830, %v6668
        %v7832 = vmax.f32 %v7831, %v6672
        %v7833 = vmax.f32 %v7832, %v6678
        %v7834 = vmax.f32 %v7833, %v6682
        %v7835 = vmax.f32 %v7834, %v6688
        %v7836 = vmax.f32 %v7835, %v6692
        %v7837 = vmax.f32 %v7836, %v6698
        %v7838 = vmax.f32 %v7837, %v6702
        %v7839 = vmax.f32 %v7838, %v6708
        %v7840 = vmax.f32 %v7839, %v6712
        %v7841 = vmax.f32 %v7840, %v6718
        %v7842 = vmax.f32 %v7841, %v6722
        %v7843 = vmax.f32 %v7842, %v6728
        %v7844 = vmax.f32 %v7843, %v6732
        %v7845 = vmax.f32 %v7844, %v6738
        %v7846 = vmax.f32 %v7845, %v6742
        %v7847 = vmax.f32 %v7846, %v6748
        %v7848 = vmax.f32 %v7847, %v6752
        %v7849 = vmax.f32 %v7848, %v6758
        %v7850 = vmax.f32 %v7849, %v6762
        %v7851 = vmax.f32 %v7850, %v6768
        %v7852 = vmax.f32 %v7851, %v6772
        %v7853 = vmax.f32 %v7852, %v6778
        %v7854 = vmax.f32 %v7853, %v6782
        %v7855 = vmax.f32 %v7854, %v6788
        %v7856 = vmax.f32 %v7855, %v6792
        %v7857 = vmax.f32 %v7856, %v6798
        %v7858 = vmax.f32 %v7857, %v6802
        %v7859 = vmax.f32 %v7858, %v6808
        %v7860 = vmax.f32 %v7859, %v6812
        %v7861 = vmax.f32 %v7860, %v6818
        %v7862 = vmax.f32 %v7861, %v6822
        %v7863 = vmax.f32 %v7862, %v6828
        %v7864 = vmax.f32 %v7863, %v6832
        %v7865 = vmax.f32 %v7864, %v6838
        %v7866 = vmax.f32 %v7865, %v6842
        %v7867 = vmax.f32 %v7866, %v6848
        %v7868 = vmax.f32 %v7867, %v6852
        %v7869 = vrot.slane %v7868, 4
        %v7870 = vmax.f32 %v7868, %v7869
        %v7871 = vrot.slane %v7870, 2
        %v7872 = vmax.f32 %v7870, %v7871
        %v7873 = vrot.slane %v7872, 1
        %v7874 = vmax.f32 %v7872, %v7873
        %v7875 = vmax.f32 %v6540, %v6544
        %v7876 = vmax.f32 %v7875, %v6550
        %v7877 = vmax.f32 %v7876, %v6554
        %v7878 = vmax.f32 %v7877, %v6560
        %v7879 = vmax.f32 %v7878, %v6564
        %v7880 = vmax.f32 %v7879, %v6570
        %v7881 = vmax.f32 %v7880, %v6574
        %v7882 = vmax.f32 %v7881, %v6580
        %v7883 = vmax.f32 %v7882, %v6584
        %v7884 = vmax.f32 %v7883, %v6590
        %v7885 = vmax.f32 %v7884, %v6594
        %v7886 = vmax.f32 %v7885, %v6600
        %v7887 = vmax.f32 %v7886, %v6604
        %v7888 = vmax.f32 %v7887, %v6610
        %v7889 = vmax.f32 %v7888, %v6614
        %v7890 = vmax.f32 %v7889, %v6620
        %v7891 = vmax.f32 %v7890, %v6624
        %v7892 = vmax.f32 %v7891, %v6630
        %v7893 = vmax.f32 %v7892, %v6634
        %v7894 = vmax.f32 %v7893, %v6640
        %v7895 = vmax.f32 %v7894, %v6644
        %v7896 = vmax.f32 %v7895, %v6650
        %v7897 = vmax.f32 %v7896, %v6654
        %v7898 = vmax.f32 %v7897, %v6660
        %v7899 = vmax.f32 %v7898, %v6664
        %v7900 = vmax.f32 %v7899, %v6670
        %v7901 = vmax.f32 %v7900, %v6674
        %v7902 = vmax.f32 %v7901, %v6680
        %v7903 = vmax.f32 %v7902, %v6684
        %v7904 = vmax.f32 %v7903, %v6690
        %v7905 = vmax.f32 %v7904, %v6694
        %v7906 = vmax.f32 %v7905, %v6700
        %v7907 = vmax.f32 %v7906, %v6704
        %v7908 = vmax.f32 %v7907, %v6710
        %v7909 = vmax.f32 %v7908, %v6714
        %v7910 = vmax.f32 %v7909, %v6720
        %v7911 = vmax.f32 %v7910, %v6724
        %v7912 = vmax.f32 %v7911, %v6730
        %v7913 = vmax.f32 %v7912, %v6734
        %v7914 = vmax.f32 %v7913, %v6740
        %v7915 = vmax.f32 %v7914, %v6744
        %v7916 = vmax.f32 %v7915, %v6750
        %v7917 = vmax.f32 %v7916, %v6754
        %v7918 = vmax.f32 %v7917, %v6760
        %v7919 = vmax.f32 %v7918, %v6764
        %v7920 = vmax.f32 %v7919, %v6770
        %v7921 = vmax.f32 %v7920, %v6774
        %v7922 = vmax.f32 %v7921, %v6780
        %v7923 = vmax.f32 %v7922, %v6784
        %v7924 = vmax.f32 %v7923, %v6790
        %v7925 = vmax.f32 %v7924, %v6794
        %v7926 = vmax.f32 %v7925, %v6800
        %v7927 = vmax.f32 %v7926, %v6804
        %v7928 = vmax.f32 %v7927, %v6810
        %v7929 = vmax.f32 %v7928, %v6814
        %v7930 = vmax.f32 %v7929, %v6820
        %v7931 = vmax.f32 %v7930, %v6824
        %v7932 = vmax.f32 %v7931, %v6830
        %v7933 = vmax.f32 %v7932, %v6834
        %v7934 = vmax.f32 %v7933, %v6840
        %v7935 = vmax.f32 %v7934, %v6844
        %v7936 = vmax.f32 %v7935, %v6850
        %v7937 = vmax.f32 %v7936, %v6854
        %v7938 = vrot.slane %v7937, 4
        %v7939 = vmax.f32 %v7937, %v7938
        %v7940 = vrot.slane %v7939, 2
        %v7941 = vmax.f32 %v7939, %v7940
        %v7942 = vrot.slane %v7941, 1
        %v7943 = vmax.f32 %v7941, %v7942
        %v7944 = vmax.f32 %v7211, %v7215
        %v7945 = vmax.f32 %v7944, %v7221
        %v7946 = vmax.f32 %v7945, %v7225
        %v7947 = vmax.f32 %v7946, %v7231
        %v7948 = vmax.f32 %v7947, %v7235
        %v7949 = vmax.f32 %v7948, %v7241
        %v7950 = vmax.f32 %v7949, %v7245
        %v7951 = vmax.f32 %v7950, %v7251
        %v7952 = vmax.f32 %v7951, %v7255
        %v7953 = vmax.f32 %v7952, %v7261
        %v7954 = vmax.f32 %v7953, %v7265
        %v7955 = vmax.f32 %v7954, %v7271
        %v7956 = vmax.f32 %v7955, %v7275
        %v7957 = vmax.f32 %v7956, %v7281
        %v7958 = vmax.f32 %v7957, %v7285
        %v7959 = vmax.f32 %v7958, %v7291
        %v7960 = vmax.f32 %v7959, %v7295
        %v7961 = vmax.f32 %v7960, %v7301
        %v7962 = vmax.f32 %v7961, %v7305
        %v7963 = vmax.f32 %v7962, %v7311
        %v7964 = vmax.f32 %v7963, %v7315
        %v7965 = vmax.f32 %v7964, %v7321
        %v7966 = vmax.f32 %v7965, %v7325
        %v7967 = vmax.f32 %v7966, %v7331
        %v7968 = vmax.f32 %v7967, %v7335
        %v7969 = vmax.f32 %v7968, %v7341
        %v7970 = vmax.f32 %v7969, %v7345
        %v7971 = vmax.f32 %v7970, %v7351
        %v7972 = vmax.f32 %v7971, %v7355
        %v7973 = vmax.f32 %v7972, %v7361
        %v7974 = vmax.f32 %v7973, %v7365
        %v7975 = vmax.f32 %v7974, %v7371
        %v7976 = vmax.f32 %v7975, %v7375
        %v7977 = vmax.f32 %v7976, %v7381
        %v7978 = vmax.f32 %v7977, %v7385
        %v7979 = vmax.f32 %v7978, %v7391
        %v7980 = vmax.f32 %v7979, %v7395
        %v7981 = vmax.f32 %v7980, %v7401
        %v7982 = vmax.f32 %v7981, %v7405
        %v7983 = vmax.f32 %v7982, %v7411
        %v7984 = vmax.f32 %v7983, %v7415
        %v7985 = vmax.f32 %v7984, %v7421
        %v7986 = vmax.f32 %v7985, %v7425
        %v7987 = vmax.f32 %v7986, %v7431
        %v7988 = vmax.f32 %v7987, %v7435
        %v7989 = vmax.f32 %v7988, %v7441
        %v7990 = vmax.f32 %v7989, %v7445
        %v7991 = vmax.f32 %v7990, %v7451
        %v7992 = vmax.f32 %v7991, %v7455
        %v7993 = vmax.f32 %v7992, %v7461
        %v7994 = vmax.f32 %v7993, %v7465
        %v7995 = vmax.f32 %v7994, %v7471
        %v7996 = vmax.f32 %v7995, %v7475
        %v7997 = vmax.f32 %v7996, %v7481
        %v7998 = vmax.f32 %v7997, %v7485
        %v7999 = vmax.f32 %v7998, %v7491
        %v8000 = vmax.f32 %v7999, %v7495
        %v8001 = vmax.f32 %v8000, %v7501
        %v8002 = vmax.f32 %v8001, %v7505
        %v8003 = vmax.f32 %v8002, %v7511
        %v8004 = vmax.f32 %v8003, %v7515
        %v8005 = vmax.f32 %v8004, %v7521
        %v8006 = vmax.f32 %v8005, %v7525
        %v8007 = vrot.slane %v8006, 4
        %v8008 = vmax.f32 %v8006, %v8007
        %v8009 = vrot.slane %v8008, 2
        %v8010 = vmax.f32 %v8008, %v8009
        %v8011 = vrot.slane %v8010, 1
        %v8012 = vmax.f32 %v8010, %v8011
        %v8013 = vmax.f32 %v7213, %v7217
        %v8014 = vmax.f32 %v8013, %v7223
        %v8015 = vmax.f32 %v8014, %v7227
        %v8016 = vmax.f32 %v8015, %v7233
        %v8017 = vmax.f32 %v8016, %v7237
        %v8018 = vmax.f32 %v8017, %v7243
        %v8019 = vmax.f32 %v8018, %v7247
        %v8020 = vmax.f32 %v8019, %v7253
        %v8021 = vmax.f32 %v8020, %v7257
        %v8022 = vmax.f32 %v8021, %v7263
        %v8023 = vmax.f32 %v8022, %v7267
        %v8024 = vmax.f32 %v8023, %v7273
        %v8025 = vmax.f32 %v8024, %v7277
        %v8026 = vmax.f32 %v8025, %v7283
        %v8027 = vmax.f32 %v8026, %v7287
        %v8028 = vmax.f32 %v8027, %v7293
        %v8029 = vmax.f32 %v8028, %v7297
        %v8030 = vmax.f32 %v8029, %v7303
        %v8031 = vmax.f32 %v8030, %v7307
        %v8032 = vmax.f32 %v8031, %v7313
        %v8033 = vmax.f32 %v8032, %v7317
        %v8034 = vmax.f32 %v8033, %v7323
        %v8035 = vmax.f32 %v8034, %v7327
        %v8036 = vmax.f32 %v8035, %v7333
        %v8037 = vmax.f32 %v8036, %v7337
        %v8038 = vmax.f32 %v8037, %v7343
        %v8039 = vmax.f32 %v8038, %v7347
        %v8040 = vmax.f32 %v8039, %v7353
        %v8041 = vmax.f32 %v8040, %v7357
        %v8042 = vmax.f32 %v8041, %v7363
        %v8043 = vmax.f32 %v8042, %v7367
        %v8044 = vmax.f32 %v8043, %v7373
        %v8045 = vmax.f32 %v8044, %v7377
        %v8046 = vmax.f32 %v8045, %v7383
        %v8047 = vmax.f32 %v8046, %v7387
        %v8048 = vmax.f32 %v8047, %v7393
        %v8049 = vmax.f32 %v8048, %v7397
        %v8050 = vmax.f32 %v8049, %v7403
        %v8051 = vmax.f32 %v8050, %v7407
        %v8052 = vmax.f32 %v8051, %v7413
        %v8053 = vmax.f32 %v8052, %v7417
        %v8054 = vmax.f32 %v8053, %v7423
        %v8055 = vmax.f32 %v8054, %v7427
        %v8056 = vmax.f32 %v8055, %v7433
        %v8057 = vmax.f32 %v8056, %v7437
        %v8058 = vmax.f32 %v8057, %v7443
        %v8059 = vmax.f32 %v8058, %v7447
        %v8060 = vmax.f32 %v8059, %v7453
        %v8061 = vmax.f32 %v8060, %v7457
        %v8062 = vmax.f32 %v8061, %v7463
        %v8063 = vmax.f32 %v8062, %v7467
        %v8064 = vmax.f32 %v8063, %v7473
        %v8065 = vmax.f32 %v8064, %v7477
        %v8066 = vmax.f32 %v8065, %v7483
        %v8067 = vmax.f32 %v8066, %v7487
        %v8068 = vmax.f32 %v8067, %v7493
        %v8069 = vmax.f32 %v8068, %v7497
        %v8070 = vmax.f32 %v8069, %v7503
        %v8071 = vmax.f32 %v8070, %v7507
        %v8072 = vmax.f32 %v8071, %v7513
        %v8073 = vmax.f32 %v8072, %v7517
        %v8074 = vmax.f32 %v8073, %v7523
        %v8075 = vmax.f32 %v8074, %v7527
        %v8076 = vrot.slane %v8075, 4
        %v8077 = vmax.f32 %v8075, %v8076
        %v8078 = vrot.slane %v8077, 2
        %v8079 = vmax.f32 %v8077, %v8078
        %v8080 = vrot.slane %v8079, 1
        %v8081 = vmax.f32 %v8079, %v8080
        %v8090 = vcombine.low %v7598, %v7667
        %v8091 = vcombine.low %v7736, %v7805
        %v8093 = vunpack.c.l.s4 1983009808
        %v8094 = vunpack.c.0.s8 %v8093
        %v8095 = vlaneseq
        %v8096 = vshrl.u32 %v8095, 7
        %v8097 = vsub.s32 %v8094, %v8096
        %v8098 = vrot.slane %v8090, %v8097
        %v8100 = vunpack.c.l.s4 1983009808
        %v8101 = vunpack.c.0.s8 %v8100
        %v8102 = vlaneseq
        %v8103 = vshrl.u32 %v8102, 7
        %v8104 = vsub.s32 %v8101, %v8103
        %v8105 = vrot.slane %v8091, %v8104
        %v8106 = vcombine.low %v8098, %v8105
        %v8107 = vcombine.low %v7874, %v7943
        %v8108 = vcombine.low %v8012, %v8081
        %v8110 = vunpack.c.l.s4 1983009808
        %v8111 = vunpack.c.0.s8 %v8110
        %v8112 = vlaneseq
        %v8113 = vshrl.u32 %v8112, 7
        %v8114 = vsub.s32 %v8111, %v8113
        %v8115 = vrot.slane %v8107, %v8114
        %v8117 = vunpack.c.l.s4 1983009808
        %v8118 = vunpack.c.0.s8 %v8117
        %v8119 = vlaneseq
        %v8120 = vshrl.u32 %v8119, 7
        %v8121 = vsub.s32 %v8118, %v8120
        %v8122 = vrot.slane %v8108, %v8121
        %v8123 = vcombine.low %v8115, %v8122
        %vm8124 = vcmask 1044484
        %v8125 = vsel %vm8124, %v8106, %v8106
        %vm8126 = vcmask 1046534
        %v8127 = vsel %vm8126, %v8106, %v8125
        %v8128 = vrot.slane %v8123, 7
        %vm8129 = vcmask 1041409
        %v8130 = vsel %vm8129, %v8128, %v8127
        %vm8131 = vcmask 1043459
        %v8132 = vsel %vm8131, %v8128, %v8130
        %vm8133 = vcmask 1045509
        %v8134 = vsel %vm8133, %v8128, %v8132
        %vm8135 = vcmask 1047559
        %v8136 = vsel %vm8135, %v8128, %v8134
        %v8138 = vmax.f32 %v7529, %v8136
        %8139 = vst [vmem:[#allocation2] sm:$0xff] %v8138
        %p8140 = scmp.eq.s32.totalorder %s27, 3
        // Predicated region
        $region123: #{tpu_custom_call.1} parent=113 // pred_check
          %p8141 = pneg %p8140
        $region124: #{tpu_custom_call.1} parent=113 // pred_check_branch
          %8143 = sbr.rel (%p8141) target = $region126
        $region125: #{tpu_custom_call.1} parent=113 // pred_region
          %v8144 = vld [vmem:[#allocation2] sm:$0xff]
          %v8146 = vcombine.high %v8144, %v8144
          %v8148 = vunpack.c.l.s4 1983009808
          %v8149 = vunpack.c.0.s8 %v8148
          %v8150 = vlaneseq
          %v8151 = vshrl.u32 %v8150, 7
          %v8152 = vsub.s32 %v8149, %v8151
          %v8153 = vrot.slane %v8144, %v8152
          %v8155 = vunpack.c.l.s4 1983009808
          %v8156 = vunpack.c.0.s8 %v8155
          %v8157 = vlaneseq
          %v8158 = vshrl.u32 %v8157, 7
          %v8159 = vsub.s32 %v8156, %v8158
          %v8160 = vrot.slane %v8146, %v8159
          %v8161 = vcombine.high %v8153, %v8153
          %v8162 = vcombine.high %v8160, %v8160
          %v8167 = vpack.c.bf16 %v8153, %v8153
          %v8168 = vpack.c.bf16 %v8161, %v8161
          %v8169 = vpack.c.bf16 %v8160, %v8160
          %v8170 = vpack.c.bf16 %v8162, %v8162
          %v8171 = vld [vmem:[%s9] sm:$0xff]
          %v8172 = vld [vmem:[%s9 + $0x8] sm:$0xff]
          %v8173 = vld [vmem:[%s9 + $0x10] sm:$0xff]
          %v8174 = vld [vmem:[%s9 + $0x18] sm:$0xff]
          %v8175 = vld [vmem:[%s9 + $0x20] sm:$0xff]
          %v8176 = vld [vmem:[%s9 + $0x28] sm:$0xff]
          %v8177 = vld [vmem:[%s9 + $0x30] sm:$0xff]
          %v8178 = vld [vmem:[%s9 + $0x38] sm:$0xff]
          %v8179 = vld [vmem:[%s9 + $0x40] sm:$0xff]
          %v8180 = vld [vmem:[%s9 + $0x48] sm:$0xff]
          %v8181 = vld [vmem:[%s9 + $0x50] sm:$0xff]
          %v8182 = vld [vmem:[%s9 + $0x58] sm:$0xff]
          %v8183 = vld [vmem:[%s9 + $0x60] sm:$0xff]
          %v8184 = vld [vmem:[%s9 + $0x68] sm:$0xff]
          %v8185 = vld [vmem:[%s9 + $0x70] sm:$0xff]
          %v8186 = vld [vmem:[%s9 + $0x78] sm:$0xff]
          %v8187 = vld [vmem:[%s9 + $0x80] sm:$0xff]
          %v8188 = vld [vmem:[%s9 + $0x88] sm:$0xff]
          %v8189 = vld [vmem:[%s9 + $0x90] sm:$0xff]
          %v8190 = vld [vmem:[%s9 + $0x98] sm:$0xff]
          %v8191 = vld [vmem:[%s9 + $0xa0] sm:$0xff]
          %v8192 = vld [vmem:[%s9 + $0xa8] sm:$0xff]
          %v8193 = vld [vmem:[%s9 + $0xb0] sm:$0xff]
          %v8194 = vld [vmem:[%s9 + $0xb8] sm:$0xff]
          %v8195 = vld [vmem:[%s9 + $0xc0] sm:$0xff]
          %v8196 = vld [vmem:[%s9 + $0xc8] sm:$0xff]
          %v8197 = vld [vmem:[%s9 + $0xd0] sm:$0xff]
          %v8198 = vld [vmem:[%s9 + $0xd8] sm:$0xff]
          %v8199 = vld [vmem:[%s9 + $0xe0] sm:$0xff]
          %v8200 = vld [vmem:[%s9 + $0xe8] sm:$0xff]
          %v8201 = vld [vmem:[%s9 + $0xf0] sm:$0xff]
          %v8202 = vld [vmem:[%s9 + $0xf8] sm:$0xff]
          %v8203 = vld [vmem:[%s9 + $0x100] sm:$0xff]
          %v8204 = vld [vmem:[%s9 + $0x108] sm:$0xff]
          %v8205 = vld [vmem:[%s9 + $0x110] sm:$0xff]
          %v8206 = vld [vmem:[%s9 + $0x118] sm:$0xff]
          %v8207 = vld [vmem:[%s9 + $0x120] sm:$0xff]
          %v8208 = vld [vmem:[%s9 + $0x128] sm:$0xff]
          %v8209 = vld [vmem:[%s9 + $0x130] sm:$0xff]
          %v8210 = vld [vmem:[%s9 + $0x138] sm:$0xff]
          %v8211 = vld [vmem:[%s9 + $0x140] sm:$0xff]
          %v8212 = vld [vmem:[%s9 + $0x148] sm:$0xff]
          %v8213 = vld [vmem:[%s9 + $0x150] sm:$0xff]
          %v8214 = vld [vmem:[%s9 + $0x158] sm:$0xff]
          %v8215 = vld [vmem:[%s9 + $0x160] sm:$0xff]
          %v8216 = vld [vmem:[%s9 + $0x168] sm:$0xff]
          %v8217 = vld [vmem:[%s9 + $0x170] sm:$0xff]
          %v8218 = vld [vmem:[%s9 + $0x178] sm:$0xff]
          %v8219 = vld [vmem:[%s9 + $0x180] sm:$0xff]
          %v8220 = vld [vmem:[%s9 + $0x188] sm:$0xff]
          %v8221 = vld [vmem:[%s9 + $0x190] sm:$0xff]
          %v8222 = vld [vmem:[%s9 + $0x198] sm:$0xff]
          %v8223 = vld [vmem:[%s9 + $0x1a0] sm:$0xff]
          %v8224 = vld [vmem:[%s9 + $0x1a8] sm:$0xff]
          %v8225 = vld [vmem:[%s9 + $0x1b0] sm:$0xff]
          %v8226 = vld [vmem:[%s9 + $0x1b8] sm:$0xff]
          %v8227 = vld [vmem:[%s9 + $0x1c0] sm:$0xff]
          %v8228 = vld [vmem:[%s9 + $0x1c8] sm:$0xff]
          %v8229 = vld [vmem:[%s9 + $0x1d0] sm:$0xff]
          %v8230 = vld [vmem:[%s9 + $0x1d8] sm:$0xff]
          %v8231 = vld [vmem:[%s9 + $0x1e0] sm:$0xff]
          %v8232 = vld [vmem:[%s9 + $0x1e8] sm:$0xff]
          %v8233 = vld [vmem:[%s9 + $0x1f0] sm:$0xff]
          %v8234 = vld [vmem:[%s9 + $0x1f8] sm:$0xff]
          %v8235 = vld [vmem:[%s9 + $0x200] sm:$0xff]
          %v8236 = vld [vmem:[%s9 + $0x208] sm:$0xff]
          %v8237 = vld [vmem:[%s9 + $0x210] sm:$0xff]
          %v8238 = vld [vmem:[%s9 + $0x218] sm:$0xff]
          %v8239 = vld [vmem:[%s9 + $0x220] sm:$0xff]
          %v8240 = vld [vmem:[%s9 + $0x228] sm:$0xff]
          %v8241 = vld [vmem:[%s9 + $0x230] sm:$0xff]
          %v8242 = vld [vmem:[%s9 + $0x238] sm:$0xff]
          %v8243 = vld [vmem:[%s9 + $0x240] sm:$0xff]
          %v8244 = vld [vmem:[%s9 + $0x248] sm:$0xff]
          %v8245 = vld [vmem:[%s9 + $0x250] sm:$0xff]
          %v8246 = vld [vmem:[%s9 + $0x258] sm:$0xff]
          %v8247 = vld [vmem:[%s9 + $0x260] sm:$0xff]
          %v8248 = vld [vmem:[%s9 + $0x268] sm:$0xff]
          %v8249 = vld [vmem:[%s9 + $0x270] sm:$0xff]
          %v8250 = vld [vmem:[%s9 + $0x278] sm:$0xff]
          %v8251 = vld [vmem:[%s9 + $0x280] sm:$0xff]
          %v8252 = vld [vmem:[%s9 + $0x288] sm:$0xff]
          %v8253 = vld [vmem:[%s9 + $0x290] sm:$0xff]
          %v8254 = vld [vmem:[%s9 + $0x298] sm:$0xff]
          %v8255 = vld [vmem:[%s9 + $0x2a0] sm:$0xff]
          %v8256 = vld [vmem:[%s9 + $0x2a8] sm:$0xff]
          %v8257 = vld [vmem:[%s9 + $0x2b0] sm:$0xff]
          %v8258 = vld [vmem:[%s9 + $0x2b8] sm:$0xff]
          %v8259 = vld [vmem:[%s9 + $0x2c0] sm:$0xff]
          %v8260 = vld [vmem:[%s9 + $0x2c8] sm:$0xff]
          %v8261 = vld [vmem:[%s9 + $0x2d0] sm:$0xff]
          %v8262 = vld [vmem:[%s9 + $0x2d8] sm:$0xff]
          %v8263 = vld [vmem:[%s9 + $0x2e0] sm:$0xff]
          %v8264 = vld [vmem:[%s9 + $0x2e8] sm:$0xff]
          %v8265 = vld [vmem:[%s9 + $0x2f0] sm:$0xff]
          %v8266 = vld [vmem:[%s9 + $0x2f8] sm:$0xff]
          %v8267 = vld [vmem:[%s9 + $0x300] sm:$0xff]
          %v8268 = vld [vmem:[%s9 + $0x308] sm:$0xff]
          %v8269 = vld [vmem:[%s9 + $0x310] sm:$0xff]
          %v8270 = vld [vmem:[%s9 + $0x318] sm:$0xff]
          %v8271 = vld [vmem:[%s9 + $0x320] sm:$0xff]
          %v8272 = vld [vmem:[%s9 + $0x328] sm:$0xff]
          %v8273 = vld [vmem:[%s9 + $0x330] sm:$0xff]
          %v8274 = vld [vmem:[%s9 + $0x338] sm:$0xff]
          %v8275 = vld [vmem:[%s9 + $0x340] sm:$0xff]
          %v8276 = vld [vmem:[%s9 + $0x348] sm:$0xff]
          %v8277 = vld [vmem:[%s9 + $0x350] sm:$0xff]
          %v8278 = vld [vmem:[%s9 + $0x358] sm:$0xff]
          %v8279 = vld [vmem:[%s9 + $0x360] sm:$0xff]
          %v8280 = vld [vmem:[%s9 + $0x368] sm:$0xff]
          %v8281 = vld [vmem:[%s9 + $0x370] sm:$0xff]
          %v8282 = vld [vmem:[%s9 + $0x378] sm:$0xff]
          %v8283 = vld [vmem:[%s9 + $0x380] sm:$0xff]
          %v8284 = vld [vmem:[%s9 + $0x388] sm:$0xff]
          %v8285 = vld [vmem:[%s9 + $0x390] sm:$0xff]
          %v8286 = vld [vmem:[%s9 + $0x398] sm:$0xff]
          %v8287 = vld [vmem:[%s9 + $0x3a0] sm:$0xff]
          %v8288 = vld [vmem:[%s9 + $0x3a8] sm:$0xff]
          %v8289 = vld [vmem:[%s9 + $0x3b0] sm:$0xff]
          %v8290 = vld [vmem:[%s9 + $0x3b8] sm:$0xff]
          %v8291 = vld [vmem:[%s9 + $0x3c0] sm:$0xff]
          %v8292 = vld [vmem:[%s9 + $0x3c8] sm:$0xff]
          %v8293 = vld [vmem:[%s9 + $0x3d0] sm:$0xff]
          %v8294 = vld [vmem:[%s9 + $0x3d8] sm:$0xff]
          %v8295 = vld [vmem:[%s9 + $0x3e0] sm:$0xff]
          %v8296 = vld [vmem:[%s9 + $0x3e8] sm:$0xff]
          %v8297 = vld [vmem:[%s9 + $0x3f0] sm:$0xff]
          %v8298 = vld [vmem:[%s9 + $0x3f8] sm:$0xff]
          %v8299 = vld [vmem:[%s10] sm:$0xf]
          %v8301 = vlaneseq
          %v8302 = vshrl.u32 %v8301, 7
          %v8303 = vsub.s32 0, %v8302
          %v8304 = vrot.slane %v8299, %v8303
          %v8305 = vlaneseq
          %v8306 = vshrl.u32 %v8305, 7
          %v8307 = vsub.s32 1, %v8306
          %v8308 = vrot.slane %v8299, %v8307
          %v8309 = vlaneseq
          %v8310 = vshrl.u32 %v8309, 7
          %v8311 = vsub.s32 2, %v8310
          %v8312 = vrot.slane %v8299, %v8311
          %v8313 = vlaneseq
          %v8314 = vshrl.u32 %v8313, 7
          %v8315 = vsub.s32 3, %v8314
          %v8316 = vrot.slane %v8299, %v8315
          %v8449 = vunpack.c.l.b16 %v8171
          %v8450 = vunpack.c.h.b16 %v8171
          %v8451 = vunpack.c.l.b16 %v8172
          %v8452 = vunpack.c.h.b16 %v8172
          %v8453 = vunpack.c.l.b16 %v8173
          %v8454 = vunpack.c.h.b16 %v8173
          %v8455 = vunpack.c.l.b16 %v8174
          %v8456 = vunpack.c.h.b16 %v8174
          %v8457 = vunpack.c.l.b16 %v8175
          %v8458 = vunpack.c.h.b16 %v8175
          %v8459 = vunpack.c.l.b16 %v8176
          %v8460 = vunpack.c.h.b16 %v8176
          %v8461 = vunpack.c.l.b16 %v8177
          %v8462 = vunpack.c.h.b16 %v8177
          %v8463 = vunpack.c.l.b16 %v8178
          %v8464 = vunpack.c.h.b16 %v8178
          %v8465 = vunpack.c.l.b16 %v8179
          %v8466 = vunpack.c.h.b16 %v8179
          %v8467 = vunpack.c.l.b16 %v8180
          %v8468 = vunpack.c.h.b16 %v8180
          %v8469 = vunpack.c.l.b16 %v8181
          %v8470 = vunpack.c.h.b16 %v8181
          %v8471 = vunpack.c.l.b16 %v8182
          %v8472 = vunpack.c.h.b16 %v8182
          %v8473 = vunpack.c.l.b16 %v8183
          %v8474 = vunpack.c.h.b16 %v8183
          %v8475 = vunpack.c.l.b16 %v8184
          %v8476 = vunpack.c.h.b16 %v8184
          %v8477 = vunpack.c.l.b16 %v8185
          %v8478 = vunpack.c.h.b16 %v8185
          %v8479 = vunpack.c.l.b16 %v8186
          %v8480 = vunpack.c.h.b16 %v8186
          %v8481 = vunpack.c.l.b16 %v8187
          %v8482 = vunpack.c.h.b16 %v8187
          %v8483 = vunpack.c.l.b16 %v8188
          %v8484 = vunpack.c.h.b16 %v8188
          %v8485 = vunpack.c.l.b16 %v8189
          %v8486 = vunpack.c.h.b16 %v8189
          %v8487 = vunpack.c.l.b16 %v8190
          %v8488 = vunpack.c.h.b16 %v8190
          %v8489 = vunpack.c.l.b16 %v8191
          %v8490 = vunpack.c.h.b16 %v8191
          %v8491 = vunpack.c.l.b16 %v8192
          %v8492 = vunpack.c.h.b16 %v8192
          %v8493 = vunpack.c.l.b16 %v8193
          %v8494 = vunpack.c.h.b16 %v8193
          %v8495 = vunpack.c.l.b16 %v8194
          %v8496 = vunpack.c.h.b16 %v8194
          %v8497 = vunpack.c.l.b16 %v8195
          %v8498 = vunpack.c.h.b16 %v8195
          %v8499 = vunpack.c.l.b16 %v8196
          %v8500 = vunpack.c.h.b16 %v8196
          %v8501 = vunpack.c.l.b16 %v8197
          %v8502 = vunpack.c.h.b16 %v8197
          %v8503 = vunpack.c.l.b16 %v8198
          %v8504 = vunpack.c.h.b16 %v8198
          %v8505 = vunpack.c.l.b16 %v8199
          %v8506 = vunpack.c.h.b16 %v8199
          %v8507 = vunpack.c.l.b16 %v8200
          %v8508 = vunpack.c.h.b16 %v8200
          %v8509 = vunpack.c.l.b16 %v8201
          %v8510 = vunpack.c.h.b16 %v8201
          %v8511 = vunpack.c.l.b16 %v8202
          %v8512 = vunpack.c.h.b16 %v8202
          %v8513 = vunpack.c.l.b16 %v8203
          %v8514 = vunpack.c.h.b16 %v8203
          %v8515 = vunpack.c.l.b16 %v8204
          %v8516 = vunpack.c.h.b16 %v8204
          %v8517 = vunpack.c.l.b16 %v8205
          %v8518 = vunpack.c.h.b16 %v8205
          %v8519 = vunpack.c.l.b16 %v8206
          %v8520 = vunpack.c.h.b16 %v8206
          %v8521 = vunpack.c.l.b16 %v8207
          %v8522 = vunpack.c.h.b16 %v8207
          %v8523 = vunpack.c.l.b16 %v8208
          %v8524 = vunpack.c.h.b16 %v8208
          %v8525 = vunpack.c.l.b16 %v8209
          %v8526 = vunpack.c.h.b16 %v8209
          %v8527 = vunpack.c.l.b16 %v8210
          %v8528 = vunpack.c.h.b16 %v8210
          %v8529 = vunpack.c.l.b16 %v8211
          %v8530 = vunpack.c.h.b16 %v8211
          %v8531 = vunpack.c.l.b16 %v8212
          %v8532 = vunpack.c.h.b16 %v8212
          %v8533 = vunpack.c.l.b16 %v8213
          %v8534 = vunpack.c.h.b16 %v8213
          %v8535 = vunpack.c.l.b16 %v8214
          %v8536 = vunpack.c.h.b16 %v8214
          %v8537 = vunpack.c.l.b16 %v8215
          %v8538 = vunpack.c.h.b16 %v8215
          %v8539 = vunpack.c.l.b16 %v8216
          %v8540 = vunpack.c.h.b16 %v8216
          %v8541 = vunpack.c.l.b16 %v8217
          %v8542 = vunpack.c.h.b16 %v8217
          %v8543 = vunpack.c.l.b16 %v8218
          %v8544 = vunpack.c.h.b16 %v8218
          %v8545 = vunpack.c.l.b16 %v8219
          %v8546 = vunpack.c.h.b16 %v8219
          %v8547 = vunpack.c.l.b16 %v8220
          %v8548 = vunpack.c.h.b16 %v8220
          %v8549 = vunpack.c.l.b16 %v8221
          %v8550 = vunpack.c.h.b16 %v8221
          %v8551 = vunpack.c.l.b16 %v8222
          %v8552 = vunpack.c.h.b16 %v8222
          %v8553 = vunpack.c.l.b16 %v8223
          %v8554 = vunpack.c.h.b16 %v8223
          %v8555 = vunpack.c.l.b16 %v8224
          %v8556 = vunpack.c.h.b16 %v8224
          %v8557 = vunpack.c.l.b16 %v8225
          %v8558 = vunpack.c.h.b16 %v8225
          %v8559 = vunpack.c.l.b16 %v8226
          %v8560 = vunpack.c.h.b16 %v8226
          %v8561 = vunpack.c.l.b16 %v8227
          %v8562 = vunpack.c.h.b16 %v8227
          %v8563 = vunpack.c.l.b16 %v8228
          %v8564 = vunpack.c.h.b16 %v8228
          %v8565 = vunpack.c.l.b16 %v8229
          %v8566 = vunpack.c.h.b16 %v8229
          %v8567 = vunpack.c.l.b16 %v8230
          %v8568 = vunpack.c.h.b16 %v8230
          %v8569 = vunpack.c.l.b16 %v8231
          %v8570 = vunpack.c.h.b16 %v8231
          %v8571 = vunpack.c.l.b16 %v8232
          %v8572 = vunpack.c.h.b16 %v8232
          %v8573 = vunpack.c.l.b16 %v8233
          %v8574 = vunpack.c.h.b16 %v8233
          %v8575 = vunpack.c.l.b16 %v8234
          %v8576 = vunpack.c.h.b16 %v8234
          %v8577 = vunpack.c.l.b16 %v8235
          %v8578 = vunpack.c.h.b16 %v8235
          %v8579 = vunpack.c.l.b16 %v8236
          %v8580 = vunpack.c.h.b16 %v8236
          %v8581 = vunpack.c.l.b16 %v8237
          %v8582 = vunpack.c.h.b16 %v8237
          %v8583 = vunpack.c.l.b16 %v8238
          %v8584 = vunpack.c.h.b16 %v8238
          %v8585 = vunpack.c.l.b16 %v8239
          %v8586 = vunpack.c.h.b16 %v8239
          %v8587 = vunpack.c.l.b16 %v8240
          %v8588 = vunpack.c.h.b16 %v8240
          %v8589 = vunpack.c.l.b16 %v8241
          %v8590 = vunpack.c.h.b16 %v8241
          %v8591 = vunpack.c.l.b16 %v8242
          %v8592 = vunpack.c.h.b16 %v8242
          %v8593 = vunpack.c.l.b16 %v8243
          %v8594 = vunpack.c.h.b16 %v8243
          %v8595 = vunpack.c.l.b16 %v8244
          %v8596 = vunpack.c.h.b16 %v8244
          %v8597 = vunpack.c.l.b16 %v8245
          %v8598 = vunpack.c.h.b16 %v8245
          %v8599 = vunpack.c.l.b16 %v8246
          %v8600 = vunpack.c.h.b16 %v8246
          %v8601 = vunpack.c.l.b16 %v8247
          %v8602 = vunpack.c.h.b16 %v8247
          %v8603 = vunpack.c.l.b16 %v8248
          %v8604 = vunpack.c.h.b16 %v8248
          %v8605 = vunpack.c.l.b16 %v8249
          %v8606 = vunpack.c.h.b16 %v8249
          %v8607 = vunpack.c.l.b16 %v8250
          %v8608 = vunpack.c.h.b16 %v8250
          %v8609 = vunpack.c.l.b16 %v8251
          %v8610 = vunpack.c.h.b16 %v8251
          %v8611 = vunpack.c.l.b16 %v8252
          %v8612 = vunpack.c.h.b16 %v8252
          %v8613 = vunpack.c.l.b16 %v8253
          %v8614 = vunpack.c.h.b16 %v8253
          %v8615 = vunpack.c.l.b16 %v8254
          %v8616 = vunpack.c.h.b16 %v8254
          %v8617 = vunpack.c.l.b16 %v8255
          %v8618 = vunpack.c.h.b16 %v8255
          %v8619 = vunpack.c.l.b16 %v8256
          %v8620 = vunpack.c.h.b16 %v8256
          %v8621 = vunpack.c.l.b16 %v8257
          %v8622 = vunpack.c.h.b16 %v8257
          %v8623 = vunpack.c.l.b16 %v8258
          %v8624 = vunpack.c.h.b16 %v8258
          %v8625 = vunpack.c.l.b16 %v8259
          %v8626 = vunpack.c.h.b16 %v8259
          %v8627 = vunpack.c.l.b16 %v8260
          %v8628 = vunpack.c.h.b16 %v8260
          %v8629 = vunpack.c.l.b16 %v8261
          %v8630 = vunpack.c.h.b16 %v8261
          %v8631 = vunpack.c.l.b16 %v8262
          %v8632 = vunpack.c.h.b16 %v8262
          %v8633 = vunpack.c.l.b16 %v8263
          %v8634 = vunpack.c.h.b16 %v8263
          %v8635 = vunpack.c.l.b16 %v8264
          %v8636 = vunpack.c.h.b16 %v8264
          %v8637 = vunpack.c.l.b16 %v8265
          %v8638 = vunpack.c.h.b16 %v8265
          %v8639 = vunpack.c.l.b16 %v8266
          %v8640 = vunpack.c.h.b16 %v8266
          %v8641 = vunpack.c.l.b16 %v8267
          %v8642 = vunpack.c.h.b16 %v8267
          %v8643 = vunpack.c.l.b16 %v8268
          %v8644 = vunpack.c.h.b16 %v8268
          %v8645 = vunpack.c.l.b16 %v8269
          %v8646 = vunpack.c.h.b16 %v8269
          %v8647 = vunpack.c.l.b16 %v8270
          %v8648 = vunpack.c.h.b16 %v8270
          %v8649 = vunpack.c.l.b16 %v8271
          %v8650 = vunpack.c.h.b16 %v8271
          %v8651 = vunpack.c.l.b16 %v8272
          %v8652 = vunpack.c.h.b16 %v8272
          %v8653 = vunpack.c.l.b16 %v8273
          %v8654 = vunpack.c.h.b16 %v8273
          %v8655 = vunpack.c.l.b16 %v8274
          %v8656 = vunpack.c.h.b16 %v8274
          %v8657 = vunpack.c.l.b16 %v8275
          %v8658 = vunpack.c.h.b16 %v8275
          %v8659 = vunpack.c.l.b16 %v8276
          %v8660 = vunpack.c.h.b16 %v8276
          %v8661 = vunpack.c.l.b16 %v8277
          %v8662 = vunpack.c.h.b16 %v8277
          %v8663 = vunpack.c.l.b16 %v8278
          %v8664 = vunpack.c.h.b16 %v8278
          %v8665 = vunpack.c.l.b16 %v8279
          %v8666 = vunpack.c.h.b16 %v8279
          %v8667 = vunpack.c.l.b16 %v8280
          %v8668 = vunpack.c.h.b16 %v8280
          %v8669 = vunpack.c.l.b16 %v8281
          %v8670 = vunpack.c.h.b16 %v8281
          %v8671 = vunpack.c.l.b16 %v8282
          %v8672 = vunpack.c.h.b16 %v8282
          %v8673 = vunpack.c.l.b16 %v8283
          %v8674 = vunpack.c.h.b16 %v8283
          %v8675 = vunpack.c.l.b16 %v8284
          %v8676 = vunpack.c.h.b16 %v8284
          %v8677 = vunpack.c.l.b16 %v8285
          %v8678 = vunpack.c.h.b16 %v8285
          %v8679 = vunpack.c.l.b16 %v8286
          %v8680 = vunpack.c.h.b16 %v8286
          %v8681 = vunpack.c.l.b16 %v8287
          %v8682 = vunpack.c.h.b16 %v8287
          %v8683 = vunpack.c.l.b16 %v8288
          %v8684 = vunpack.c.h.b16 %v8288
          %v8685 = vunpack.c.l.b16 %v8289
          %v8686 = vunpack.c.h.b16 %v8289
          %v8687 = vunpack.c.l.b16 %v8290
          %v8688 = vunpack.c.h.b16 %v8290
          %v8689 = vunpack.c.l.b16 %v8291
          %v8690 = vunpack.c.h.b16 %v8291
          %v8691 = vunpack.c.l.b16 %v8292
          %v8692 = vunpack.c.h.b16 %v8292
          %v8693 = vunpack.c.l.b16 %v8293
          %v8694 = vunpack.c.h.b16 %v8293
          %v8695 = vunpack.c.l.b16 %v8294
          %v8696 = vunpack.c.h.b16 %v8294
          %v8697 = vunpack.c.l.b16 %v8295
          %v8698 = vunpack.c.h.b16 %v8295
          %v8699 = vunpack.c.l.b16 %v8296
          %v8700 = vunpack.c.h.b16 %v8296
          %v8701 = vunpack.c.l.b16 %v8297
          %v8702 = vunpack.c.h.b16 %v8297
          %v8703 = vunpack.c.l.b16 %v8298
          %v8704 = vunpack.c.h.b16 %v8298
          %v8705 = vpack.c.b16 %v8453, %v8449
          %v8706 = vpack.c.b16 %v8454, %v8450
          %v8707 = vpack.c.b16 %v8455, %v8451
          %v8708 = vpack.c.b16 %v8456, %v8452
          %v8709 = vpack.c.b16 %v8461, %v8457
          %v8710 = vpack.c.b16 %v8462, %v8458
          %v8711 = vpack.c.b16 %v8463, %v8459
          %v8712 = vpack.c.b16 %v8464, %v8460
          %v8713 = vpack.c.b16 %v8469, %v8465
          %v8714 = vpack.c.b16 %v8470, %v8466
          %v8715 = vpack.c.b16 %v8471, %v8467
          %v8716 = vpack.c.b16 %v8472, %v8468
          %v8717 = vpack.c.b16 %v8477, %v8473
          %v8718 = vpack.c.b16 %v8478, %v8474
          %v8719 = vpack.c.b16 %v8479, %v8475
          %v8720 = vpack.c.b16 %v8480, %v8476
          %v8721 = vpack.c.b16 %v8485, %v8481
          %v8722 = vpack.c.b16 %v8486, %v8482
          %v8723 = vpack.c.b16 %v8487, %v8483
          %v8724 = vpack.c.b16 %v8488, %v8484
          %v8725 = vpack.c.b16 %v8493, %v8489
          %v8726 = vpack.c.b16 %v8494, %v8490
          %v8727 = vpack.c.b16 %v8495, %v8491
          %v8728 = vpack.c.b16 %v8496, %v8492
          %v8729 = vpack.c.b16 %v8501, %v8497
          %v8730 = vpack.c.b16 %v8502, %v8498
          %v8731 = vpack.c.b16 %v8503, %v8499
          %v8732 = vpack.c.b16 %v8504, %v8500
          %v8733 = vpack.c.b16 %v8509, %v8505
          %v8734 = vpack.c.b16 %v8510, %v8506
          %v8735 = vpack.c.b16 %v8511, %v8507
          %v8736 = vpack.c.b16 %v8512, %v8508
          %v8737 = vpack.c.b16 %v8517, %v8513
          %v8738 = vpack.c.b16 %v8518, %v8514
          %v8739 = vpack.c.b16 %v8519, %v8515
          %v8740 = vpack.c.b16 %v8520, %v8516
          %v8741 = vpack.c.b16 %v8525, %v8521
          %v8742 = vpack.c.b16 %v8526, %v8522
          %v8743 = vpack.c.b16 %v8527, %v8523
          %v8744 = vpack.c.b16 %v8528, %v8524
          %v8745 = vpack.c.b16 %v8533, %v8529
          %v8746 = vpack.c.b16 %v8534, %v8530
          %v8747 = vpack.c.b16 %v8535, %v8531
          %v8748 = vpack.c.b16 %v8536, %v8532
          %v8749 = vpack.c.b16 %v8541, %v8537
          %v8750 = vpack.c.b16 %v8542, %v8538
          %v8751 = vpack.c.b16 %v8543, %v8539
          %v8752 = vpack.c.b16 %v8544, %v8540
          %v8753 = vpack.c.b16 %v8549, %v8545
          %v8754 = vpack.c.b16 %v8550, %v8546
          %v8755 = vpack.c.b16 %v8551, %v8547
          %v8756 = vpack.c.b16 %v8552, %v8548
          %v8757 = vpack.c.b16 %v8557, %v8553
          %v8758 = vpack.c.b16 %v8558, %v8554
          %v8759 = vpack.c.b16 %v8559, %v8555
          %v8760 = vpack.c.b16 %v8560, %v8556
          %v8761 = vpack.c.b16 %v8565, %v8561
          %v8762 = vpack.c.b16 %v8566, %v8562
          %v8763 = vpack.c.b16 %v8567, %v8563
          %v8764 = vpack.c.b16 %v8568, %v8564
          %v8765 = vpack.c.b16 %v8573, %v8569
          %v8766 = vpack.c.b16 %v8574, %v8570
          %v8767 = vpack.c.b16 %v8575, %v8571
          %v8768 = vpack.c.b16 %v8576, %v8572
          %v8769 = vpack.c.b16 %v8581, %v8577
          %v8770 = vpack.c.b16 %v8582, %v8578
          %v8771 = vpack.c.b16 %v8583, %v8579
          %v8772 = vpack.c.b16 %v8584, %v8580
          %v8773 = vpack.c.b16 %v8589, %v8585
          %v8774 = vpack.c.b16 %v8590, %v8586
          %v8775 = vpack.c.b16 %v8591, %v8587
          %v8776 = vpack.c.b16 %v8592, %v8588
          %v8777 = vpack.c.b16 %v8597, %v8593
          %v8778 = vpack.c.b16 %v8598, %v8594
          %v8779 = vpack.c.b16 %v8599, %v8595
          %v8780 = vpack.c.b16 %v8600, %v8596
          %v8781 = vpack.c.b16 %v8605, %v8601
          %v8782 = vpack.c.b16 %v8606, %v8602
          %v8783 = vpack.c.b16 %v8607, %v8603
          %v8784 = vpack.c.b16 %v8608, %v8604
          %v8785 = vpack.c.b16 %v8613, %v8609
          %v8786 = vpack.c.b16 %v8614, %v8610
          %v8787 = vpack.c.b16 %v8615, %v8611
          %v8788 = vpack.c.b16 %v8616, %v8612
          %v8789 = vpack.c.b16 %v8621, %v8617
          %v8790 = vpack.c.b16 %v8622, %v8618
          %v8791 = vpack.c.b16 %v8623, %v8619
          %v8792 = vpack.c.b16 %v8624, %v8620
          %v8793 = vpack.c.b16 %v8629, %v8625
          %v8794 = vpack.c.b16 %v8630, %v8626
          %v8795 = vpack.c.b16 %v8631, %v8627
          %v8796 = vpack.c.b16 %v8632, %v8628
          %v8797 = vpack.c.b16 %v8637, %v8633
          %v8798 = vpack.c.b16 %v8638, %v8634
          %v8799 = vpack.c.b16 %v8639, %v8635
          %v8800 = vpack.c.b16 %v8640, %v8636
          %v8801 = vpack.c.b16 %v8645, %v8641
          %v8802 = vpack.c.b16 %v8646, %v8642
          %v8803 = vpack.c.b16 %v8647, %v8643
          %v8804 = vpack.c.b16 %v8648, %v8644
          %v8805 = vpack.c.b16 %v8653, %v8649
          %v8806 = vpack.c.b16 %v8654, %v8650
          %v8807 = vpack.c.b16 %v8655, %v8651
          %v8808 = vpack.c.b16 %v8656, %v8652
          %v8809 = vpack.c.b16 %v8661, %v8657
          %v8810 = vpack.c.b16 %v8662, %v8658
          %v8811 = vpack.c.b16 %v8663, %v8659
          %v8812 = vpack.c.b16 %v8664, %v8660
          %v8813 = vpack.c.b16 %v8669, %v8665
          %v8814 = vpack.c.b16 %v8670, %v8666
          %v8815 = vpack.c.b16 %v8671, %v8667
          %v8816 = vpack.c.b16 %v8672, %v8668
          %v8817 = vpack.c.b16 %v8677, %v8673
          %v8818 = vpack.c.b16 %v8678, %v8674
          %v8819 = vpack.c.b16 %v8679, %v8675
          %v8820 = vpack.c.b16 %v8680, %v8676
          %v8821 = vpack.c.b16 %v8685, %v8681
          %v8822 = vpack.c.b16 %v8686, %v8682
          %v8823 = vpack.c.b16 %v8687, %v8683
          %v8824 = vpack.c.b16 %v8688, %v8684
          %v8825 = vpack.c.b16 %v8693, %v8689
          %v8826 = vpack.c.b16 %v8694, %v8690
          %v8827 = vpack.c.b16 %v8695, %v8691
          %v8828 = vpack.c.b16 %v8696, %v8692
          %v8829 = vpack.c.b16 %v8701, %v8697
          %v8830 = vpack.c.b16 %v8702, %v8698
          %v8831 = vpack.c.b16 %v8703, %v8699
          %v8832 = vpack.c.b16 %v8704, %v8700
          %8961 = vmatprep.subr.bf16.mxu0 %v8734
          %8962 = vmatpush1.bf16.msra.mxu0 %v8733
          %8963 = vmatprep.subr.bf16.mxu0 %v8730
          %8964 = vmatpush1.bf16.msra.mxu0 %v8729
          %8965 = vmatprep.subr.bf16.mxu0 %v8726
          %8966 = vmatpush1.bf16.msra.mxu0 %v8725
          %8967 = vmatprep.subr.bf16.mxu0 %v8722
          %8968 = vmatpush1.bf16.msra.mxu0 %v8721
          %8969 = vmatprep.subr.bf16.mxu0 %v8718
          %8970 = vmatpush1.bf16.msra.mxu0 %v8717
          %8971 = vmatprep.subr.bf16.mxu0 %v8714
          %8972 = vmatpush1.bf16.msra.mxu0 %v8713
          %8973 = vmatprep.subr.bf16.mxu0 %v8710
          %8974 = vmatpush1.bf16.msra.mxu0 %v8709
          %8975 = vmatprep.subr.bf16.mxu0 %v8706
          %8976 = vmatpush1.bf16.msra.mxu0 %v8705
          %8977 = vmatprep.subr.bf16.mxu0 %v8766
          %8978 = vmatpush2.bf16.msra.mxu0 %v8765
          %8979 = vmatprep.subr.bf16.mxu0 %v8762
          %8980 = vmatpush2.bf16.msra.mxu0 %v8761
          %8981 = vmatprep.subr.bf16.mxu0 %v8758
          %8982 = vmatpush2.bf16.msra.mxu0 %v8757
          %8983 = vmatprep.subr.bf16.mxu0 %v8754
          %8984 = vmatpush2.bf16.msra.mxu0 %v8753
          %8985 = vmatprep.subr.bf16.mxu0 %v8750
          %8986 = vmatpush2.bf16.msra.mxu0 %v8749
          %8987 = vmatprep.subr.bf16.mxu0 %v8746
          %8988 = vmatpush2.bf16.msra.mxu0 %v8745
          %8989 = vmatprep.subr.bf16.mxu0 %v8742
          %8990 = vmatpush2.bf16.msra.mxu0 %v8741
          %8991 = vmatprep.subr.bf16.mxu0 %v8738
          %8992 = vmatpush2.bf16.msra.mxu0 %v8737
          %8993 = vmatprep.mubr.bf16.mxu0 %v8168
          %8994 = vmatmul.mubr.bf16.gmra.mxu0 %v8167
          %v8995 = vpop.f32.mrf.mxu0
          %v8996 = vadd.f32 %v8304, %v8995
          %v8997 = vpop.f32.mrf.mxu0
          %v8998 = vadd.f32 %v8308, %v8997
          %v8999 = vpop.f32.mrf.mxu0
          %v9000 = vpop.f32.mrf.mxu0
          %9001 = vdwg.mxu0
          %9002 = vmatprep.subr.bf16.mxu0 %v8798
          %9003 = vmatpush1.bf16.msra.mxu0 %v8797
          %9004 = vmatprep.subr.bf16.mxu0 %v8794
          %9005 = vmatpush1.bf16.msra.mxu0 %v8793
          %9006 = vmatprep.subr.bf16.mxu0 %v8790
          %9007 = vmatpush1.bf16.msra.mxu0 %v8789
          %9008 = vmatprep.subr.bf16.mxu0 %v8786
          %9009 = vmatpush1.bf16.msra.mxu0 %v8785
          %9010 = vmatprep.subr.bf16.mxu0 %v8782
          %9011 = vmatpush1.bf16.msra.mxu0 %v8781
          %9012 = vmatprep.subr.bf16.mxu0 %v8778
          %9013 = vmatpush1.bf16.msra.mxu0 %v8777
          %9014 = vmatprep.subr.bf16.mxu0 %v8774
          %9015 = vmatpush1.bf16.msra.mxu0 %v8773
          %9016 = vmatprep.subr.bf16.mxu0 %v8770
          %9017 = vmatpush1.bf16.msra.mxu0 %v8769
          %9018 = vmatprep.subr.bf16.mxu0 %v8830
          %9019 = vmatpush2.bf16.msra.mxu0 %v8829
          %9020 = vmatprep.subr.bf16.mxu0 %v8826
          %9021 = vmatpush2.bf16.msra.mxu0 %v8825
          %9022 = vmatprep.subr.bf16.mxu0 %v8822
          %9023 = vmatpush2.bf16.msra.mxu0 %v8821
          %9024 = vmatprep.subr.bf16.mxu0 %v8818
          %9025 = vmatpush2.bf16.msra.mxu0 %v8817
          %9026 = vmatprep.subr.bf16.mxu0 %v8814
          %9027 = vmatpush2.bf16.msra.mxu0 %v8813
          %9028 = vmatprep.subr.bf16.mxu0 %v8810
          %9029 = vmatpush2.bf16.msra.mxu0 %v8809
          %9030 = vmatprep.subr.bf16.mxu0 %v8806
          %9031 = vmatpush2.bf16.msra.mxu0 %v8805
          %9032 = vmatprep.subr.bf16.mxu0 %v8802
          %9033 = vmatpush2.bf16.msra.mxu0 %v8801
          %9034 = vmatprep.mubr.bf16.mxu0 %v8170
          %9035 = vmatmul.mubr.bf16.gmra.mxu0 %v8169
          %v9036 = vpop.f32.mrf.mxu0
          %v9037 = vadd.f32 %v8996, %v9036
          %v9038 = vpop.f32.mrf.mxu0
          %v9039 = vadd.f32 %v8998, %v9038
          %v9040 = vpop.f32.mrf.mxu0
          %v9041 = vpop.f32.mrf.mxu0
          %9042 = vdwg.mxu0
          %9043 = vmatprep.subr.bf16.mxu0 %v8736
          %9044 = vmatpush1.bf16.msra.mxu0 %v8735
          %9045 = vmatprep.subr.bf16.mxu0 %v8732
          %9046 = vmatpush1.bf16.msra.mxu0 %v8731
          %9047 = vmatprep.subr.bf16.mxu0 %v8728
          %9048 = vmatpush1.bf16.msra.mxu0 %v8727
          %9049 = vmatprep.subr.bf16.mxu0 %v8724
          %9050 = vmatpush1.bf16.msra.mxu0 %v8723
          %9051 = vmatprep.subr.bf16.mxu0 %v8720
          %9052 = vmatpush1.bf16.msra.mxu0 %v8719
          %9053 = vmatprep.subr.bf16.mxu0 %v8716
          %9054 = vmatpush1.bf16.msra.mxu0 %v8715
          %9055 = vmatprep.subr.bf16.mxu0 %v8712
          %9056 = vmatpush1.bf16.msra.mxu0 %v8711
          %9057 = vmatprep.subr.bf16.mxu0 %v8708
          %9058 = vmatpush1.bf16.msra.mxu0 %v8707
          %9059 = vmatprep.subr.bf16.mxu0 %v8768
          %9060 = vmatpush2.bf16.msra.mxu0 %v8767
          %9061 = vmatprep.subr.bf16.mxu0 %v8764
          %9062 = vmatpush2.bf16.msra.mxu0 %v8763
          %9063 = vmatprep.subr.bf16.mxu0 %v8760
          %9064 = vmatpush2.bf16.msra.mxu0 %v8759
          %9065 = vmatprep.subr.bf16.mxu0 %v8756
          %9066 = vmatpush2.bf16.msra.mxu0 %v8755
          %9067 = vmatprep.subr.bf16.mxu0 %v8752
          %9068 = vmatpush2.bf16.msra.mxu0 %v8751
          %9069 = vmatprep.subr.bf16.mxu0 %v8748
          %9070 = vmatpush2.bf16.msra.mxu0 %v8747
          %9071 = vmatprep.subr.bf16.mxu0 %v8744
          %9072 = vmatpush2.bf16.msra.mxu0 %v8743
          %9073 = vmatprep.subr.bf16.mxu0 %v8740
          %9074 = vmatpush2.bf16.msra.mxu0 %v8739
          %9075 = vmatprep.mubr.bf16.mxu0 %v8168
          %9076 = vmatmul.mubr.bf16.gmra.mxu0 %v8167
          %v9077 = vpop.f32.mrf.mxu0
          %v9078 = vadd.f32 %v8312, %v9077
          %v9079 = vpop.f32.mrf.mxu0
          %v9080 = vadd.f32 %v8316, %v9079
          %v9081 = vpop.f32.mrf.mxu0
          %v9082 = vpop.f32.mrf.mxu0
          %9083 = vdwg.mxu0
          %9084 = vmatprep.subr.bf16.mxu0 %v8800
          %9085 = vmatpush1.bf16.msra.mxu0 %v8799
          %9086 = vmatprep.subr.bf16.mxu0 %v8796
          %9087 = vmatpush1.bf16.msra.mxu0 %v8795
          %9088 = vmatprep.subr.bf16.mxu0 %v8792
          %9089 = vmatpush1.bf16.msra.mxu0 %v8791
          %9090 = vmatprep.subr.bf16.mxu0 %v8788
          %9091 = vmatpush1.bf16.msra.mxu0 %v8787
          %9092 = vmatprep.subr.bf16.mxu0 %v8784
          %9093 = vmatpush1.bf16.msra.mxu0 %v8783
          %9094 = vmatprep.subr.bf16.mxu0 %v8780
          %9095 = vmatpush1.bf16.msra.mxu0 %v8779
          %9096 = vmatprep.subr.bf16.mxu0 %v8776
          %9097 = vmatpush1.bf16.msra.mxu0 %v8775
          %9098 = vmatprep.subr.bf16.mxu0 %v8772
          %9099 = vmatpush1.bf16.msra.mxu0 %v8771
          %9100 = vmatprep.subr.bf16.mxu0 %v8832
          %9101 = vmatpush2.bf16.msra.mxu0 %v8831
          %9102 = vmatprep.subr.bf16.mxu0 %v8828
          %9103 = vmatpush2.bf16.msra.mxu0 %v8827
          %9104 = vmatprep.subr.bf16.mxu0 %v8824
          %9105 = vmatpush2.bf16.msra.mxu0 %v8823
          %9106 = vmatprep.subr.bf16.mxu0 %v8820
          %9107 = vmatpush2.bf16.msra.mxu0 %v8819
          %9108 = vmatprep.subr.bf16.mxu0 %v8816
          %9109 = vmatpush2.bf16.msra.mxu0 %v8815
          %9110 = vmatprep.subr.bf16.mxu0 %v8812
          %9111 = vmatpush2.bf16.msra.mxu0 %v8811
          %9112 = vmatprep.subr.bf16.mxu0 %v8808
          %9113 = vmatpush2.bf16.msra.mxu0 %v8807
          %9114 = vmatprep.subr.bf16.mxu0 %v8804
          %9115 = vmatpush2.bf16.msra.mxu0 %v8803
          %9116 = vmatprep.mubr.bf16.mxu0 %v8170
          %9117 = vmatmul.mubr.bf16.gmra.mxu0 %v8169
          %v9118 = vpop.f32.mrf.mxu0
          %v9119 = vadd.f32 %v9078, %v9118
          %v9120 = vpop.f32.mrf.mxu0
          %v9121 = vadd.f32 %v9080, %v9120
          %v9122 = vpop.f32.mrf.mxu0
          %v9123 = vpop.f32.mrf.mxu0
          %9124 = vdwg.mxu0
          %v9125 = vmax.f32 %v9037, 0.0
          %v9126 = vmax.f32 %v9039, 0.0
          %v9127 = vmax.f32 %v9119, 0.0
          %v9128 = vmax.f32 %v9121, 0.0
          %v9129 = vpack.c.bf16 %v9125, %v9125
          %v9130 = vpack.c.bf16 %v9126, %v9126
          %v9131 = vpack.c.bf16 %v9127, %v9127
          %v9132 = vpack.c.bf16 %v9128, %v9128
          %v9133 = vld [vmem:[%s11] sm:$0xff]
          %v9134 = vld [vmem:[%s11 + $0x8] sm:$0xff]
          %v9135 = vld [vmem:[%s11 + $0x10] sm:$0xff]
          %v9136 = vld [vmem:[%s11 + $0x18] sm:$0xff]
          %v9137 = vld [vmem:[%s11 + $0x20] sm:$0xff]
          %v9138 = vld [vmem:[%s11 + $0x28] sm:$0xff]
          %v9139 = vld [vmem:[%s11 + $0x30] sm:$0xff]
          %v9140 = vld [vmem:[%s11 + $0x38] sm:$0xff]
          %v9141 = vld [vmem:[%s11 + $0x40] sm:$0xff]
          %v9142 = vld [vmem:[%s11 + $0x48] sm:$0xff]
          %v9143 = vld [vmem:[%s11 + $0x50] sm:$0xff]
          %v9144 = vld [vmem:[%s11 + $0x58] sm:$0xff]
          %v9145 = vld [vmem:[%s11 + $0x60] sm:$0xff]
          %v9146 = vld [vmem:[%s11 + $0x68] sm:$0xff]
          %v9147 = vld [vmem:[%s11 + $0x70] sm:$0xff]
          %v9148 = vld [vmem:[%s11 + $0x78] sm:$0xff]
          %v9149 = vld [vmem:[%s11 + $0x80] sm:$0xff]
          %v9150 = vld [vmem:[%s11 + $0x88] sm:$0xff]
          %v9151 = vld [vmem:[%s11 + $0x90] sm:$0xff]
          %v9152 = vld [vmem:[%s11 + $0x98] sm:$0xff]
          %v9153 = vld [vmem:[%s11 + $0xa0] sm:$0xff]
          %v9154 = vld [vmem:[%s11 + $0xa8] sm:$0xff]
          %v9155 = vld [vmem:[%s11 + $0xb0] sm:$0xff]
          %v9156 = vld [vmem:[%s11 + $0xb8] sm:$0xff]
          %v9157 = vld [vmem:[%s11 + $0xc0] sm:$0xff]
          %v9158 = vld [vmem:[%s11 + $0xc8] sm:$0xff]
          %v9159 = vld [vmem:[%s11 + $0xd0] sm:$0xff]
          %v9160 = vld [vmem:[%s11 + $0xd8] sm:$0xff]
          %v9161 = vld [vmem:[%s11 + $0xe0] sm:$0xff]
          %v9162 = vld [vmem:[%s11 + $0xe8] sm:$0xff]
          %v9163 = vld [vmem:[%s11 + $0xf0] sm:$0xff]
          %v9164 = vld [vmem:[%s11 + $0xf8] sm:$0xff]
          %v9165 = vld [vmem:[%s11 + $0x100] sm:$0xff]
          %v9166 = vld [vmem:[%s11 + $0x108] sm:$0xff]
          %v9167 = vld [vmem:[%s11 + $0x110] sm:$0xff]
          %v9168 = vld [vmem:[%s11 + $0x118] sm:$0xff]
          %v9169 = vld [vmem:[%s11 + $0x120] sm:$0xff]
          %v9170 = vld [vmem:[%s11 + $0x128] sm:$0xff]
          %v9171 = vld [vmem:[%s11 + $0x130] sm:$0xff]
          %v9172 = vld [vmem:[%s11 + $0x138] sm:$0xff]
          %v9173 = vld [vmem:[%s11 + $0x140] sm:$0xff]
          %v9174 = vld [vmem:[%s11 + $0x148] sm:$0xff]
          %v9175 = vld [vmem:[%s11 + $0x150] sm:$0xff]
          %v9176 = vld [vmem:[%s11 + $0x158] sm:$0xff]
          %v9177 = vld [vmem:[%s11 + $0x160] sm:$0xff]
          %v9178 = vld [vmem:[%s11 + $0x168] sm:$0xff]
          %v9179 = vld [vmem:[%s11 + $0x170] sm:$0xff]
          %v9180 = vld [vmem:[%s11 + $0x178] sm:$0xff]
          %v9181 = vld [vmem:[%s11 + $0x180] sm:$0xff]
          %v9182 = vld [vmem:[%s11 + $0x188] sm:$0xff]
          %v9183 = vld [vmem:[%s11 + $0x190] sm:$0xff]
          %v9184 = vld [vmem:[%s11 + $0x198] sm:$0xff]
          %v9185 = vld [vmem:[%s11 + $0x1a0] sm:$0xff]
          %v9186 = vld [vmem:[%s11 + $0x1a8] sm:$0xff]
          %v9187 = vld [vmem:[%s11 + $0x1b0] sm:$0xff]
          %v9188 = vld [vmem:[%s11 + $0x1b8] sm:$0xff]
          %v9189 = vld [vmem:[%s11 + $0x1c0] sm:$0xff]
          %v9190 = vld [vmem:[%s11 + $0x1c8] sm:$0xff]
          %v9191 = vld [vmem:[%s11 + $0x1d0] sm:$0xff]
          %v9192 = vld [vmem:[%s11 + $0x1d8] sm:$0xff]
          %v9193 = vld [vmem:[%s11 + $0x1e0] sm:$0xff]
          %v9194 = vld [vmem:[%s11 + $0x1e8] sm:$0xff]
          %v9195 = vld [vmem:[%s11 + $0x1f0] sm:$0xff]
          %v9196 = vld [vmem:[%s11 + $0x1f8] sm:$0xff]
          %v9197 = vld [vmem:[%s12] sm:$0x3]
          %v9199 = vlaneseq
          %v9200 = vshrl.u32 %v9199, 7
          %v9201 = vsub.s32 0, %v9200
          %v9202 = vrot.slane %v9197, %v9201
          %v9203 = vlaneseq
          %v9204 = vshrl.u32 %v9203, 7
          %v9205 = vsub.s32 1, %v9204
          %v9206 = vrot.slane %v9197, %v9205
          %v9273 = vunpack.c.l.b16 %v9133
          %v9274 = vunpack.c.h.b16 %v9133
          %v9275 = vunpack.c.l.b16 %v9134
          %v9276 = vunpack.c.h.b16 %v9134
          %v9277 = vunpack.c.l.b16 %v9135
          %v9278 = vunpack.c.h.b16 %v9135
          %v9279 = vunpack.c.l.b16 %v9136
          %v9280 = vunpack.c.h.b16 %v9136
          %v9281 = vunpack.c.l.b16 %v9137
          %v9282 = vunpack.c.h.b16 %v9137
          %v9283 = vunpack.c.l.b16 %v9138
          %v9284 = vunpack.c.h.b16 %v9138
          %v9285 = vunpack.c.l.b16 %v9139
          %v9286 = vunpack.c.h.b16 %v9139
          %v9287 = vunpack.c.l.b16 %v9140
          %v9288 = vunpack.c.h.b16 %v9140
          %v9289 = vunpack.c.l.b16 %v9141
          %v9290 = vunpack.c.h.b16 %v9141
          %v9291 = vunpack.c.l.b16 %v9142
          %v9292 = vunpack.c.h.b16 %v9142
          %v9293 = vunpack.c.l.b16 %v9143
          %v9294 = vunpack.c.h.b16 %v9143
          %v9295 = vunpack.c.l.b16 %v9144
          %v9296 = vunpack.c.h.b16 %v9144
          %v9297 = vunpack.c.l.b16 %v9145
          %v9298 = vunpack.c.h.b16 %v9145
          %v9299 = vunpack.c.l.b16 %v9146
          %v9300 = vunpack.c.h.b16 %v9146
          %v9301 = vunpack.c.l.b16 %v9147
          %v9302 = vunpack.c.h.b16 %v9147
          %v9303 = vunpack.c.l.b16 %v9148
          %v9304 = vunpack.c.h.b16 %v9148
          %v9305 = vunpack.c.l.b16 %v9149
          %v9306 = vunpack.c.h.b16 %v9149
          %v9307 = vunpack.c.l.b16 %v9150
          %v9308 = vunpack.c.h.b16 %v9150
          %v9309 = vunpack.c.l.b16 %v9151
          %v9310 = vunpack.c.h.b16 %v9151
          %v9311 = vunpack.c.l.b16 %v9152
          %v9312 = vunpack.c.h.b16 %v9152
          %v9313 = vunpack.c.l.b16 %v9153
          %v9314 = vunpack.c.h.b16 %v9153
          %v9315 = vunpack.c.l.b16 %v9154
          %v9316 = vunpack.c.h.b16 %v9154
          %v9317 = vunpack.c.l.b16 %v9155
          %v9318 = vunpack.c.h.b16 %v9155
          %v9319 = vunpack.c.l.b16 %v9156
          %v9320 = vunpack.c.h.b16 %v9156
          %v9321 = vunpack.c.l.b16 %v9157
          %v9322 = vunpack.c.h.b16 %v9157
          %v9323 = vunpack.c.l.b16 %v9158
          %v9324 = vunpack.c.h.b16 %v9158
          %v9325 = vunpack.c.l.b16 %v9159
          %v9326 = vunpack.c.h.b16 %v9159
          %v9327 = vunpack.c.l.b16 %v9160
          %v9328 = vunpack.c.h.b16 %v9160
          %v9329 = vunpack.c.l.b16 %v9161
          %v9330 = vunpack.c.h.b16 %v9161
          %v9331 = vunpack.c.l.b16 %v9162
          %v9332 = vunpack.c.h.b16 %v9162
          %v9333 = vunpack.c.l.b16 %v9163
          %v9334 = vunpack.c.h.b16 %v9163
          %v9335 = vunpack.c.l.b16 %v9164
          %v9336 = vunpack.c.h.b16 %v9164
          %v9337 = vunpack.c.l.b16 %v9165
          %v9338 = vunpack.c.h.b16 %v9165
          %v9339 = vunpack.c.l.b16 %v9166
          %v9340 = vunpack.c.h.b16 %v9166
          %v9341 = vunpack.c.l.b16 %v9167
          %v9342 = vunpack.c.h.b16 %v9167
          %v9343 = vunpack.c.l.b16 %v9168
          %v9344 = vunpack.c.h.b16 %v9168
          %v9345 = vunpack.c.l.b16 %v9169
          %v9346 = vunpack.c.h.b16 %v9169
          %v9347 = vunpack.c.l.b16 %v9170
          %v9348 = vunpack.c.h.b16 %v9170
          %v9349 = vunpack.c.l.b16 %v9171
          %v9350 = vunpack.c.h.b16 %v9171
          %v9351 = vunpack.c.l.b16 %v9172
          %v9352 = vunpack.c.h.b16 %v9172
          %v9353 = vunpack.c.l.b16 %v9173
          %v9354 = vunpack.c.h.b16 %v9173
          %v9355 = vunpack.c.l.b16 %v9174
          %v9356 = vunpack.c.h.b16 %v9174
          %v9357 = vunpack.c.l.b16 %v9175
          %v9358 = vunpack.c.h.b16 %v9175
          %v9359 = vunpack.c.l.b16 %v9176
          %v9360 = vunpack.c.h.b16 %v9176
          %v9361 = vunpack.c.l.b16 %v9177
          %v9362 = vunpack.c.h.b16 %v9177
          %v9363 = vunpack.c.l.b16 %v9178
          %v9364 = vunpack.c.h.b16 %v9178
          %v9365 = vunpack.c.l.b16 %v9179
          %v9366 = vunpack.c.h.b16 %v9179
          %v9367 = vunpack.c.l.b16 %v9180
          %v9368 = vunpack.c.h.b16 %v9180
          %v9369 = vunpack.c.l.b16 %v9181
          %v9370 = vunpack.c.h.b16 %v9181
          %v9371 = vunpack.c.l.b16 %v9182
          %v9372 = vunpack.c.h.b16 %v9182
          %v9373 = vunpack.c.l.b16 %v9183
          %v9374 = vunpack.c.h.b16 %v9183
          %v9375 = vunpack.c.l.b16 %v9184
          %v9376 = vunpack.c.h.b16 %v9184
          %v9377 = vunpack.c.l.b16 %v9185
          %v9378 = vunpack.c.h.b16 %v9185
          %v9379 = vunpack.c.l.b16 %v9186
          %v9380 = vunpack.c.h.b16 %v9186
          %v9381 = vunpack.c.l.b16 %v9187
          %v9382 = vunpack.c.h.b16 %v9187
          %v9383 = vunpack.c.l.b16 %v9188
          %v9384 = vunpack.c.h.b16 %v9188
          %v9385 = vunpack.c.l.b16 %v9189
          %v9386 = vunpack.c.h.b16 %v9189
          %v9387 = vunpack.c.l.b16 %v9190
          %v9388 = vunpack.c.h.b16 %v9190
          %v9389 = vunpack.c.l.b16 %v9191
          %v9390 = vunpack.c.h.b16 %v9191
          %v9391 = vunpack.c.l.b16 %v9192
          %v9392 = vunpack.c.h.b16 %v9192
          %v9393 = vunpack.c.l.b16 %v9193
          %v9394 = vunpack.c.h.b16 %v9193
          %v9395 = vunpack.c.l.b16 %v9194
          %v9396 = vunpack.c.h.b16 %v9194
          %v9397 = vunpack.c.l.b16 %v9195
          %v9398 = vunpack.c.h.b16 %v9195
          %v9399 = vunpack.c.l.b16 %v9196
          %v9400 = vunpack.c.h.b16 %v9196
          %v9401 = vpack.c.b16 %v9275, %v9273
          %v9402 = vpack.c.b16 %v9276, %v9274
          %v9403 = vpack.c.b16 %v9279, %v9277
          %v9404 = vpack.c.b16 %v9280, %v9278
          %v9405 = vpack.c.b16 %v9283, %v9281
          %v9406 = vpack.c.b16 %v9284, %v9282
          %v9407 = vpack.c.b16 %v9287, %v9285
          %v9408 = vpack.c.b16 %v9288, %v9286
          %v9409 = vpack.c.b16 %v9291, %v9289
          %v9410 = vpack.c.b16 %v9292, %v9290
          %v9411 = vpack.c.b16 %v9295, %v9293
          %v9412 = vpack.c.b16 %v9296, %v9294
          %v9413 = vpack.c.b16 %v9299, %v9297
          %v9414 = vpack.c.b16 %v9300, %v9298
          %v9415 = vpack.c.b16 %v9303, %v9301
          %v9416 = vpack.c.b16 %v9304, %v9302
          %v9417 = vpack.c.b16 %v9307, %v9305
          %v9418 = vpack.c.b16 %v9308, %v9306
          %v9419 = vpack.c.b16 %v9311, %v9309
          %v9420 = vpack.c.b16 %v9312, %v9310
          %v9421 = vpack.c.b16 %v9315, %v9313
          %v9422 = vpack.c.b16 %v9316, %v9314
          %v9423 = vpack.c.b16 %v9319, %v9317
          %v9424 = vpack.c.b16 %v9320, %v9318
          %v9425 = vpack.c.b16 %v9323, %v9321
          %v9426 = vpack.c.b16 %v9324, %v9322
          %v9427 = vpack.c.b16 %v9327, %v9325
          %v9428 = vpack.c.b16 %v9328, %v9326
          %v9429 = vpack.c.b16 %v9331, %v9329
          %v9430 = vpack.c.b16 %v9332, %v9330
          %v9431 = vpack.c.b16 %v9335, %v9333
          %v9432 = vpack.c.b16 %v9336, %v9334
          %v9433 = vpack.c.b16 %v9339, %v9337
          %v9434 = vpack.c.b16 %v9340, %v9338
          %v9435 = vpack.c.b16 %v9343, %v9341
          %v9436 = vpack.c.b16 %v9344, %v9342
          %v9437 = vpack.c.b16 %v9347, %v9345
          %v9438 = vpack.c.b16 %v9348, %v9346
          %v9439 = vpack.c.b16 %v9351, %v9349
          %v9440 = vpack.c.b16 %v9352, %v9350
          %v9441 = vpack.c.b16 %v9355, %v9353
          %v9442 = vpack.c.b16 %v9356, %v9354
          %v9443 = vpack.c.b16 %v9359, %v9357
          %v9444 = vpack.c.b16 %v9360, %v9358
          %v9445 = vpack.c.b16 %v9363, %v9361
          %v9446 = vpack.c.b16 %v9364, %v9362
          %v9447 = vpack.c.b16 %v9367, %v9365
          %v9448 = vpack.c.b16 %v9368, %v9366
          %v9449 = vpack.c.b16 %v9371, %v9369
          %v9450 = vpack.c.b16 %v9372, %v9370
          %v9451 = vpack.c.b16 %v9375, %v9373
          %v9452 = vpack.c.b16 %v9376, %v9374
          %v9453 = vpack.c.b16 %v9379, %v9377
          %v9454 = vpack.c.b16 %v9380, %v9378
          %v9455 = vpack.c.b16 %v9383, %v9381
          %v9456 = vpack.c.b16 %v9384, %v9382
          %v9457 = vpack.c.b16 %v9387, %v9385
          %v9458 = vpack.c.b16 %v9388, %v9386
          %v9459 = vpack.c.b16 %v9391, %v9389
          %v9460 = vpack.c.b16 %v9392, %v9390
          %v9461 = vpack.c.b16 %v9395, %v9393
          %v9462 = vpack.c.b16 %v9396, %v9394
          %v9463 = vpack.c.b16 %v9399, %v9397
          %v9464 = vpack.c.b16 %v9400, %v9398
          %9529 = vmatprep.subr.bf16.mxu0 %v9416
          %9530 = vmatpush1.bf16.msra.mxu0 %v9415
          %9531 = vmatprep.subr.bf16.mxu0 %v9414
          %9532 = vmatpush1.bf16.msra.mxu0 %v9413
          %9533 = vmatprep.subr.bf16.mxu0 %v9412
          %9534 = vmatpush1.bf16.msra.mxu0 %v9411
          %9535 = vmatprep.subr.bf16.mxu0 %v9410
          %9536 = vmatpush1.bf16.msra.mxu0 %v9409
          %9537 = vmatprep.subr.bf16.mxu0 %v9408
          %9538 = vmatpush1.bf16.msra.mxu0 %v9407
          %9539 = vmatprep.subr.bf16.mxu0 %v9406
          %9540 = vmatpush1.bf16.msra.mxu0 %v9405
          %9541 = vmatprep.subr.bf16.mxu0 %v9404
          %9542 = vmatpush1.bf16.msra.mxu0 %v9403
          %9543 = vmatprep.subr.bf16.mxu0 %v9402
          %9544 = vmatpush1.bf16.msra.mxu0 %v9401
          %9545 = vmatprep.subr.bf16.mxu0 %v9432
          %9546 = vmatpush2.bf16.msra.mxu0 %v9431
          %9547 = vmatprep.subr.bf16.mxu0 %v9430
          %9548 = vmatpush2.bf16.msra.mxu0 %v9429
          %9549 = vmatprep.subr.bf16.mxu0 %v9428
          %9550 = vmatpush2.bf16.msra.mxu0 %v9427
          %9551 = vmatprep.subr.bf16.mxu0 %v9426
          %9552 = vmatpush2.bf16.msra.mxu0 %v9425
          %9553 = vmatprep.subr.bf16.mxu0 %v9424
          %9554 = vmatpush2.bf16.msra.mxu0 %v9423
          %9555 = vmatprep.subr.bf16.mxu0 %v9422
          %9556 = vmatpush2.bf16.msra.mxu0 %v9421
          %9557 = vmatprep.subr.bf16.mxu0 %v9420
          %9558 = vmatpush2.bf16.msra.mxu0 %v9419
          %9559 = vmatprep.subr.bf16.mxu0 %v9418
          %9560 = vmatpush2.bf16.msra.mxu0 %v9417
          %9561 = vmatprep.mubr.bf16.mxu0 %v9130
          %9562 = vmatmul.mubr.bf16.gmra.mxu0 %v9129
          %v9563 = vpop.f32.mrf.mxu0
          %v9564 = vadd.f32 %v9202, %v9563
          %v9565 = vpop.f32.mrf.mxu0
          %v9566 = vadd.f32 %v9206, %v9565
          %v9567 = vpop.f32.mrf.mxu0
          %v9568 = vpop.f32.mrf.mxu0
          %9569 = vdwg.mxu0
          %9570 = vmatprep.subr.bf16.mxu0 %v9448
          %9571 = vmatpush1.bf16.msra.mxu0 %v9447
          %9572 = vmatprep.subr.bf16.mxu0 %v9446
          %9573 = vmatpush1.bf16.msra.mxu0 %v9445
          %9574 = vmatprep.subr.bf16.mxu0 %v9444
          %9575 = vmatpush1.bf16.msra.mxu0 %v9443
          %9576 = vmatprep.subr.bf16.mxu0 %v9442
          %9577 = vmatpush1.bf16.msra.mxu0 %v9441
          %9578 = vmatprep.subr.bf16.mxu0 %v9440
          %9579 = vmatpush1.bf16.msra.mxu0 %v9439
          %9580 = vmatprep.subr.bf16.mxu0 %v9438
          %9581 = vmatpush1.bf16.msra.mxu0 %v9437
          %9582 = vmatprep.subr.bf16.mxu0 %v9436
          %9583 = vmatpush1.bf16.msra.mxu0 %v9435
          %9584 = vmatprep.subr.bf16.mxu0 %v9434
          %9585 = vmatpush1.bf16.msra.mxu0 %v9433
          %9586 = vmatprep.subr.bf16.mxu0 %v9464
          %9587 = vmatpush2.bf16.msra.mxu0 %v9463
          %9588 = vmatprep.subr.bf16.mxu0 %v9462
          %9589 = vmatpush2.bf16.msra.mxu0 %v9461
          %9590 = vmatprep.subr.bf16.mxu0 %v9460
          %9591 = vmatpush2.bf16.msra.mxu0 %v9459
          %9592 = vmatprep.subr.bf16.mxu0 %v9458
          %9593 = vmatpush2.bf16.msra.mxu0 %v9457
          %9594 = vmatprep.subr.bf16.mxu0 %v9456
          %9595 = vmatpush2.bf16.msra.mxu0 %v9455
          %9596 = vmatprep.subr.bf16.mxu0 %v9454
          %9597 = vmatpush2.bf16.msra.mxu0 %v9453
          %9598 = vmatprep.subr.bf16.mxu0 %v9452
          %9599 = vmatpush2.bf16.msra.mxu0 %v9451
          %9600 = vmatprep.subr.bf16.mxu0 %v9450
          %9601 = vmatpush2.bf16.msra.mxu0 %v9449
          %9602 = vmatprep.mubr.bf16.mxu0 %v9132
          %9603 = vmatmul.mubr.bf16.gmra.mxu0 %v9131
          %v9604 = vpop.f32.mrf.mxu0
          %v9605 = vadd.f32 %v9564, %v9604
          %v9606 = vpop.f32.mrf.mxu0
          %v9607 = vadd.f32 %v9566, %v9606
          %v9608 = vpop.f32.mrf.mxu0
          %v9609 = vpop.f32.mrf.mxu0
          %9610 = vdwg.mxu0
          %v9611 = vmax.f32 %v9605, 0.0
          %v9612 = vmax.f32 %v9607, 0.0
          %v9613 = vpack.c.bf16 %v9611, %v9611
          %v9614 = vpack.c.bf16 %v9612, %v9612
          %v9615 = vld [vmem:[%s13] sm:$0xf]
          %v9616 = vld [vmem:[%s13 + $0x4] sm:$0xf]
          %v9617 = vld [vmem:[%s13 + $0x8] sm:$0xf]
          %v9618 = vld [vmem:[%s13 + $0xc] sm:$0xf]
          %v9619 = vld [vmem:[%s13 + $0x10] sm:$0xf]
          %v9620 = vld [vmem:[%s13 + $0x14] sm:$0xf]
          %v9621 = vld [vmem:[%s13 + $0x18] sm:$0xf]
          %v9622 = vld [vmem:[%s13 + $0x1c] sm:$0xf]
          %v9623 = vld [vmem:[%s13 + $0x20] sm:$0xf]
          %v9624 = vld [vmem:[%s13 + $0x24] sm:$0xf]
          %v9625 = vld [vmem:[%s13 + $0x28] sm:$0xf]
          %v9626 = vld [vmem:[%s13 + $0x2c] sm:$0xf]
          %v9627 = vld [vmem:[%s13 + $0x30] sm:$0xf]
          %v9628 = vld [vmem:[%s13 + $0x34] sm:$0xf]
          %v9629 = vld [vmem:[%s13 + $0x38] sm:$0xf]
          %v9630 = vld [vmem:[%s13 + $0x3c] sm:$0xf]
          %v9631 = vld [vmem:[%s13 + $0x40] sm:$0xf]
          %v9632 = vld [vmem:[%s13 + $0x44] sm:$0xf]
          %v9633 = vld [vmem:[%s13 + $0x48] sm:$0xf]
          %v9634 = vld [vmem:[%s13 + $0x4c] sm:$0xf]
          %v9635 = vld [vmem:[%s13 + $0x50] sm:$0xf]
          %v9636 = vld [vmem:[%s13 + $0x54] sm:$0xf]
          %v9637 = vld [vmem:[%s13 + $0x58] sm:$0xf]
          %v9638 = vld [vmem:[%s13 + $0x5c] sm:$0xf]
          %v9639 = vld [vmem:[%s13 + $0x60] sm:$0xf]
          %v9640 = vld [vmem:[%s13 + $0x64] sm:$0xf]
          %v9641 = vld [vmem:[%s13 + $0x68] sm:$0xf]
          %v9642 = vld [vmem:[%s13 + $0x6c] sm:$0xf]
          %v9643 = vld [vmem:[%s13 + $0x70] sm:$0xf]
          %v9644 = vld [vmem:[%s13 + $0x74] sm:$0xf]
          %v9645 = vld [vmem:[%s13 + $0x78] sm:$0xf]
          %v9646 = vld [vmem:[%s13 + $0x7c] sm:$0xf]
          %v9647 = vld [vmem:[%s14] sm:$0x1]
          %v9649 = vlaneseq
          %v9650 = vshrl.u32 %v9649, 7
          %v9651 = vsub.s32 0, %v9650
          %v9652 = vrot.slane %v9647, %v9651
          %v9686 = vunpack.c.l.b16 %v9615
          %v9687 = vunpack.c.l.b16 %v9616
          %v9688 = vunpack.c.l.b16 %v9617
          %v9689 = vunpack.c.l.b16 %v9618
          %v9690 = vunpack.c.l.b16 %v9619
          %v9691 = vunpack.c.l.b16 %v9620
          %v9692 = vunpack.c.l.b16 %v9621
          %v9693 = vunpack.c.l.b16 %v9622
          %v9694 = vunpack.c.l.b16 %v9623
          %v9695 = vunpack.c.l.b16 %v9624
          %v9696 = vunpack.c.l.b16 %v9625
          %v9697 = vunpack.c.l.b16 %v9626
          %v9698 = vunpack.c.l.b16 %v9627
          %v9699 = vunpack.c.l.b16 %v9628
          %v9700 = vunpack.c.l.b16 %v9629
          %v9701 = vunpack.c.l.b16 %v9630
          %v9702 = vunpack.c.l.b16 %v9631
          %v9703 = vunpack.c.l.b16 %v9632
          %v9704 = vunpack.c.l.b16 %v9633
          %v9705 = vunpack.c.l.b16 %v9634
          %v9706 = vunpack.c.l.b16 %v9635
          %v9707 = vunpack.c.l.b16 %v9636
          %v9708 = vunpack.c.l.b16 %v9637
          %v9709 = vunpack.c.l.b16 %v9638
          %v9710 = vunpack.c.l.b16 %v9639
          %v9711 = vunpack.c.l.b16 %v9640
          %v9712 = vunpack.c.l.b16 %v9641
          %v9713 = vunpack.c.l.b16 %v9642
          %v9714 = vunpack.c.l.b16 %v9643
          %v9715 = vunpack.c.l.b16 %v9644
          %v9716 = vunpack.c.l.b16 %v9645
          %v9717 = vunpack.c.l.b16 %v9646
          %v9718 = vpack.c.b16 %v9687, %v9686
          %v9719 = vpack.c.b16 %v9689, %v9688
          %v9720 = vpack.c.b16 %v9691, %v9690
          %v9721 = vpack.c.b16 %v9693, %v9692
          %v9722 = vpack.c.b16 %v9695, %v9694
          %v9723 = vpack.c.b16 %v9697, %v9696
          %v9724 = vpack.c.b16 %v9699, %v9698
          %v9725 = vpack.c.b16 %v9701, %v9700
          %v9726 = vpack.c.b16 %v9703, %v9702
          %v9727 = vpack.c.b16 %v9705, %v9704
          %v9728 = vpack.c.b16 %v9707, %v9706
          %v9729 = vpack.c.b16 %v9709, %v9708
          %v9730 = vpack.c.b16 %v9711, %v9710
          %v9731 = vpack.c.b16 %v9713, %v9712
          %v9732 = vpack.c.b16 %v9715, %v9714
          %v9733 = vpack.c.b16 %v9717, %v9716
          %9750 = vmatprep.subr.bf16.mxu0 0
          %9751 = vmatpush1.bf16.msra.mxu0 %v9725
          %9752 = vmatprep.subr.bf16.mxu0 0
          %9753 = vmatpush1.bf16.msra.mxu0 %v9724
          %9754 = vmatprep.subr.bf16.mxu0 0
          %9755 = vmatpush1.bf16.msra.mxu0 %v9723
          %9756 = vmatprep.subr.bf16.mxu0 0
          %9757 = vmatpush1.bf16.msra.mxu0 %v9722
          %9758 = vmatprep.subr.bf16.mxu0 0
          %9759 = vmatpush1.bf16.msra.mxu0 %v9721
          %9760 = vmatprep.subr.bf16.mxu0 0
          %9761 = vmatpush1.bf16.msra.mxu0 %v9720
          %9762 = vmatprep.subr.bf16.mxu0 0
          %9763 = vmatpush1.bf16.msra.mxu0 %v9719
          %9764 = vmatprep.subr.bf16.mxu0 0
          %9765 = vmatpush1.bf16.msra.mxu0 %v9718
          %9766 = vmatprep.subr.bf16.mxu0 0
          %9767 = vmatpush2.bf16.msra.mxu0 %v9733
          %9768 = vmatprep.subr.bf16.mxu0 0
          %9769 = vmatpush2.bf16.msra.mxu0 %v9732
          %9770 = vmatprep.subr.bf16.mxu0 0
          %9771 = vmatpush2.bf16.msra.mxu0 %v9731
          %9772 = vmatprep.subr.bf16.mxu0 0
          %9773 = vmatpush2.bf16.msra.mxu0 %v9730
          %9774 = vmatprep.subr.bf16.mxu0 0
          %9775 = vmatpush2.bf16.msra.mxu0 %v9729
          %9776 = vmatprep.subr.bf16.mxu0 0
          %9777 = vmatpush2.bf16.msra.mxu0 %v9728
          %9778 = vmatprep.subr.bf16.mxu0 0
          %9779 = vmatpush2.bf16.msra.mxu0 %v9727
          %9780 = vmatprep.subr.bf16.mxu0 0
          %9781 = vmatpush2.bf16.msra.mxu0 %v9726
          %9782 = vmatprep.mubr.bf16.mxu0 %v9614
          %9783 = vmatmul.mubr.bf16.gmra.mxu0 %v9613
          %v9784 = vpop.f32.mrf.mxu0
          %v9785 = vadd.f32 %v9652, %v9784
          %v9786 = vpop.f32.mrf.mxu0
          %v9787 = vpop.f32.mrf.mxu0
          %v9788 = vpop.f32.mrf.mxu0
          %9789 = vdwg.mxu0
          %9790 = vst [vmem:[#allocation4] sm:$0x3] %v9785
        $region126: #{tpu_custom_call.1} parent=113 // pred_fallthru
          _
        // Predicated region
        $region127: #{tpu_custom_call.1} parent=113 // pred_check
          %p9791 = pneg %p360
        $region128: #{tpu_custom_call.1} parent=113 // pred_check_branch
          %9793 = sbr.rel (%p9791) target = $region130
        $region129: #{tpu_custom_call.1} parent=113 // pred_region
          %s9795 = ssub.s32 32, 32
          %9796 = vsyncadd [#allocation5], %s9795
          %s9798 = sshll.u32 [#allocation4], 4
          %s9799 = int_to_ptr.vmem [resolvable:$true] %s9798
          %9801 = dma.vmem_to_hbm [thread:$0]  %s9799, 32, %s15, [#allocation5]
        $region130: #{tpu_custom_call.1} parent=113 // pred_fallthru
          _
        // Predicated region
        $region131: #{tpu_custom_call.1} parent=113 // pred_check
          %p9802 = pneg %p360
        $region132: #{tpu_custom_call.1} parent=113 // pred_check_branch
          %9804 = sbr.rel (%p9802) target = $region134
        $region133: #{tpu_custom_call.1} parent=113 // pred_region
          %9805 = dma.done [#allocation5], 32
        $region134: #{tpu_custom_call.1} parent=113 // pred_fallthru
          _
      $region114: #{tpu_custom_call.1} parent=5 // pred_fallthru
        _
      %p9806 = scmp.le.s32.totalorder 2, %s22
      // Predicated region
      $region135: #{tpu_custom_call.1} parent=5 // pred_check
        %p9807 = pneg %p9806
      $region136: #{tpu_custom_call.1} parent=5 // pred_check_branch
        %9809 = sbr.rel (%p9807) target = $region138
      $region137: #{tpu_custom_call.1} parent=5 // pred_region
        %s9810 = ssub.s32 %s22, 2
      $region138: #{tpu_custom_call.1} parent=5 // pred_fallthru
        _
    $region6: #{tpu_custom_call.1} parent=1 // loop_footer
      %s26 = sadd.s32 1, %s22
    $region7: #{tpu_custom_call.1} parent=1 // loop_footer_branch
      %21 = sbr.rel target = $region3
    $region8: #{tpu_custom_call.1} parent=1 // loop_exit
      _
    %9811 = vsyncpa [#allocation5], 1
    %s9812 = scalar_lea.sflag [#allocation5], 1
    %9813 = vsyncpa %s9812, 1

</llo_original>
